<compile_context>
chip_gen: v7x
topology: tpu7x:2x2x1
jax: 0.10.0
libtpu: 0.0.40
codegen_flags: <defaults>
</compile_context>

<pallas_src>
import math
import functools

import numpy as np
import jax
import jax.numpy as jnp
from jax.experimental import pallas as pl
from jax.experimental.pallas import tpu as pltpu


def encoder_layer_kernel(
    x_ref,        # (bb, S, D)   activations, compute dtype
    mask_ref,     # (bb, 1, S)   int32 key-padding mask, 0 = masked
    wq_ref, bq_ref, wk_ref, bk_ref, wv_ref, bv_ref, wo_ref, bo_ref,
    g1_ref, be1_ref,
    w1_ref, b1_ref, w2_ref, b2_ref,
    g2_ref, be2_ref,
    o_ref,        # (bb, S, D)   output (input dtype)
    acc_ref,      # (bb*S, D)    f32 VMEM scratch: attention-output accumulator
    *, num_heads: int, d_k: int, heads_per_group: int, approx_recip: bool,
):
    f32 = jnp.float32
    bb, S, D = x_ref.shape
    T = bb * S
    cdt = x_ref.dtype

    xf = x_ref[...].reshape(T, D)            # batch fused into the matmul M dim

    # ---- QKV projections on the fused token slab (MXU, f32 accumulation) ----
    def proj(w_ref, b_ref):
        y = jnp.dot(xf, w_ref[...], preferred_element_type=f32) + b_ref[...]
        return y.astype(cdt)

    q = proj(wq_ref, bq_ref).reshape(bb, S, D)
    k = proj(wk_ref, bk_ref).reshape(bb, S, D)
    v = proj(wv_ref, bv_ref).reshape(bb, S, D)

    # Additive key-padding bias (bb,1,S): 0 = keep, -1e9 = masked.  Broadcast
    # over queries happens implicitly in the add (no (bb,S,S) mask in VMEM).
    # NOTE: for a fully-masked query row this softmaxes the raw logits instead
    # of torch's exactly-uniform result (degenerate case, no NaN either way).
    bias = jnp.where(mask_ref[...] == 0, -1e9, 0.0).astype(f32)

    scale = 1.0 / math.sqrt(d_k)
    wo = wo_ref[...]                          # (D, D), resident in VMEM

    # ---- Attention: heads processed in groups so each Wo-fold matmul has a
    #      contraction of heads_per_group * d_k (fills the MXU depth). ----
    acc_ref[...] = jnp.zeros_like(acc_ref)
    G = heads_per_group
    for grp in range(num_heads // G):
        ctx_parts = []
        for hh in range(G):
            off = (grp * G + hh) * d_k
            qh = q[:, :, off:off + d_k]                        # (bb, S, d_k)
            kh = k[:, :, off:off + d_k]
            vh = v[:, :, off:off + d_k]
            s = jnp.einsum("bqd,bkd->bqk", qh, kh,
                           preferred_element_type=f32) * scale + bias
            m = jnp.max(s, axis=-1, keepdims=True)
            e = jnp.exp(s - m)
            denom = jnp.sum(e, axis=-1, keepdims=True)
            p = e * pl.reciprocal(denom, approx=approx_recip)
            ctx_parts.append(jnp.einsum("bqk,bkd->bqd", p.astype(cdt), vh,
                                        preferred_element_type=f32))
        lo = grp * G * d_k
        ctx = jnp.concatenate(ctx_parts, axis=-1).reshape(T, G * d_k).astype(cdt)
        acc_ref[...] += jnp.dot(ctx, wo[lo:lo + G * d_k, :],
                                preferred_element_type=f32)
    attn_out = acc_ref[...] + bo_ref[...]                      # (T, D) f32

    # ---- residual + LayerNorm (f32, one-pass moments) ----
    def layer_norm(y, g_ref, b_ref):                           # y: f32 (T, D)
        mu = jnp.mean(y, axis=-1, keepdims=True)
        ms = jnp.mean(y * y, axis=-1, keepdims=True)
        var = jnp.maximum(ms - mu * mu, 0.0)
        return (y - mu) * jax.lax.rsqrt(var + 1e-5) * g_ref[...] + b_ref[...]

    x1 = layer_norm(xf.astype(f32) + attn_out, g1_ref, be1_ref)     # f32 (T, D)

    # ---- Position-wise feed forward (fused-batch slab) ----
    h1 = jnp.dot(x1.astype(cdt), w1_ref[...],
                 preferred_element_type=f32) + b1_ref[...]
    h1 = jnp.maximum(h1, 0.0).astype(cdt)
    ff = jnp.dot(h1, w2_ref[...], preferred_element_type=f32) + b2_ref[...]

    x2 = layer_norm(x1 + ff, g2_ref, be2_ref)
    o_ref[...] = x2.reshape(bb, S, D).astype(o_ref.dtype)


_PARAM_ORDER = ("wq", "bq", "wk", "bk", "wv", "bv", "wo", "bo",
                "g1", "be1", "w1", "b1", "w2", "b2", "g2", "be2")
_BIG_MATS = {"wq", "wk", "wv", "wo", "w1", "w2"}


def encoder_layer(x, key_mask, params, *, num_heads,
                  batch_block=None, compute_dtype=None):
    """x: (B,S,D); key_mask: (B,S) or (B,1,S), 0 = masked key position."""
    B, S, D = x.shape
    assert D % num_heads == 0, "d_model must be divisible by num_heads"
    d_k = D // num_heads
    d_ff = params["w1"].shape[1]

    cdt = np.dtype(compute_dtype if compute_dtype is not None else x.dtype)
    x_c = x.astype(cdt)
    # Only the big matrices get the compute dtype; biases / LN params stay f32.
    w_c = [params[n].astype(cdt) if n in _BIG_MATS
           else params[n].astype(jnp.float32) for n in _PARAM_ORDER]
    mask = key_mask.reshape(B, 1, S).astype(jnp.int32)

    # Head grouping: each Wo-fold matmul gets contraction G*d_k (<= 256).
    heads_per_group = min(num_heads, max(1, 256 // d_k))
    while num_heads % heads_per_group:
        heads_per_group -= 1

    # Generation-aware VMEM budget (~75% of capacity leaves compiler headroom:
    # ~48 MiB on v7x, ~96 MiB on v5e/v6e).
    try:
        vmem_cap = int(pltpu.get_tpu_info().vmem_capacity_bytes)
    except Exception:
        vmem_cap = 64 << 20
    vmem_budget = (vmem_cap * 3) // 4

    itc = cdt.itemsize
    weight_bytes = sum(int(w.size) * w.dtype.itemsize for w in w_c)

    def step_bytes(bb):
        T = bb * S
        return (weight_bytes                              # single-buffered weights
                + 4 * T * D * itc                         # x in + out, 2-deep pipeline
                + 2 * bb * S * 4                          # int32 key mask
                + 3 * T * D * itc + T * D * 4             # q/k/v + f32 proj temp
                + 3 * T * D * 4                           # acc scratch, x1, residual
                + T * d_ff * (4 + itc)                    # FFN hidden
                + T * heads_per_group * d_k * 4           # grouped context slab
                + 2 * bb * S * S * 4)                     # scores + exp (per head)

    if batch_block is None:
        # Target ~256 fused tokens per step (fills the MXU M dimension), keep
        # >=2 grid steps so v7x's two TensorCores both get work, and shrink if
        # the per-step working set (incl. the bb*S^2 score term) exceeds VMEM.
        bb = max(1, min(B, 256 // max(1, S)))
        if B >= 2:
            bb = min(bb, max(1, B // 2))
        while bb > 1 and step_bytes(bb) > vmem_budget:
            bb -= 1
        batch_block = bb
    while B % batch_block:
        batch_block -= 1
    grid = (B // batch_block,)

    vmem_limit = int(min(vmem_budget,
                         max(16 << 20, (3 * step_bytes(batch_block)) // 2)))

    kernel = functools.partial(
        encoder_layer_kernel, num_heads=num_heads, d_k=d_k,
        heads_per_group=heads_per_group,
        approx_recip=(cdt != np.dtype(np.float32)))

    def build(single_buffer_weights):
        def w_spec(a):
            nd = a.ndim
            if single_buffer_weights:
                # Constant index_map -> fetched once; don't double-buffer.
                return pl.BlockSpec(a.shape, lambda b: (0,) * nd,
                                    pipeline_mode=pl.Buffered(1))
            return pl.BlockSpec(a.shape, lambda b: (0,) * nd)

        return pl.pallas_call(
            kernel,
            out_shape=jax.ShapeDtypeStruct((B, S, D), x.dtype),
            grid_spec=pltpu.PrefetchScalarGridSpec(
                num_scalar_prefetch=0,
                grid=grid,
                in_specs=[
                    pl.BlockSpec((batch_block, S, D), lambda b: (b, 0, 0)),  # x
                    pl.BlockSpec((batch_block, 1, S), lambda b: (b, 0, 0)),  # mask
                ] + [w_spec(w) for w in w_c],
                out_specs=pl.BlockSpec((batch_block, S, D), lambda b: (b, 0, 0)),
                scratch_shapes=[pltpu.VMEM((batch_block * S, D), jnp.float32)],
            ),
            compiler_params=pltpu.CompilerParams(
                dimension_semantics=("parallel",),
                vmem_limit_bytes=vmem_limit),
        )

    try:
        return build(True)(x_c, mask, *w_c)
    except Exception:
        # TODO(synk): fallback in case this JAX version rejects single-buffered
        # (pipeline_mode=pl.Buffered(1)) weight BlockSpecs.
        return build(False)(x_c, mask, *w_c)


def reference(x, key_mask, params, *, num_heads):
    """Plain-JAX reference of the PyTorch forward (eval mode)."""
    B, S, D = x.shape
    d_k = D // num_heads
    lin = lambda y, w, b: y @ w + b

    def split(t):
        return t.reshape(B, S, num_heads, d_k).transpose(0, 2, 1, 3)

    q = split(lin(x, params["wq"], params["bq"]))
    k = split(lin(x, params["wk"], params["bk"]))
    v = split(lin(x, params["wv"], params["bv"]))
    scores = jnp.einsum("bhqd,bhkd->bhqk", q, k) / math.sqrt(d_k)
    scores = jnp.where(key_mask.reshape(B, 1, 1, S) == 0, -1e9, scores)
    probs = jax.nn.softmax(scores, axis=-1)
    attn = jnp.einsum("bhqk,bhkd->bhqd", probs, v)
    attn = attn.transpose(0, 2, 1, 3).reshape(B, S, D)
    attn = lin(attn, params["wo"], params["bo"])

    def ln(y, g, b):
        mu = y.mean(-1, keepdims=True)
        var = ((y - mu) ** 2).mean(-1, keepdims=True)
        return (y - mu) / jnp.sqrt(var + 1e-5) * g + b

    x1 = ln(x + attn, params["g1"], params["be1"])
    ff = lin(jnp.maximum(lin(x1, params["w1"], params["b1"]), 0.0),
             params["w2"], params["b2"])
    return ln(x1 + ff, params["g2"], params["be2"])


if __name__ == "__main__":
    # Small but lane-dense sizes (D, d_ff multiples of 128).
    B, S, D, H, D_FF = 4, 16, 128, 4, 256

    key = jax.random.PRNGKey(0)
    keys = jax.random.split(key, 16)

    def init_w(k, shape, scale=0.1):
        return (scale * jax.random.normal(k, shape)).astype(jnp.float32)

    params = {
        "wq": init_w(keys[0], (D, D)), "bq": init_w(keys[1], (1, D)),
        "wk": init_w(keys[2], (D, D)), "bk": init_w(keys[3], (1, D)),
        "wv": init_w(keys[4], (D, D)), "bv": init_w(keys[5], (1, D)),
        "wo": init_w(keys[6], (D, D)), "bo": init_w(keys[7], (1, D)),
        "g1": jnp.ones((1, D), jnp.float32), "be1": jnp.zeros((1, D), jnp.float32),
        "w1": init_w(keys[8], (D, D_FF)), "b1": init_w(keys[9], (1, D_FF)),
        "w2": init_w(keys[10], (D_FF, D)), "b2": init_w(keys[11], (1, D)),
        "g2": jnp.ones((1, D), jnp.float32), "be2": jnp.zeros((1, D), jnp.float32),
    }

    x = jax.random.normal(keys[12], (B, S, D), jnp.float32)
    # Key-padding mask (0 = masked): trailing positions of batches 1 and 3.
    key_mask = jnp.ones((B, S), jnp.float32)
    key_mask = key_mask.at[1, -5:].set(0.0).at[3, -2:].set(0.0)

    ref = reference(x, key_mask, params, num_heads=H)

    # f32 run: 2 batch elements per grid step -> grid=(2,) "parallel".
    out = encoder_layer(x, key_mask, params, num_heads=H, batch_block=2)
    out = jax.block_until_ready(out)
    assert out.shape == (B, S, D)
    assert jnp.allclose(out, ref, atol=1e-3, rtol=1e-3), "f32 mismatch vs reference"

    # bf16 run (fast MXU path, f32 accumulation).  Default heuristic picks
    # batch_block=2 -> grid=(2,), so both v7x TensorCores get work.
    out_bf16 = encoder_layer(x, key_mask, params, num_heads=H,
                             compute_dtype=jnp.bfloat16)
    out_bf16 = jax.block_until_ready(out_bf16)
    err = float(jnp.max(jnp.abs(out_bf16.astype(jnp.float32) - ref)))
    assert err < 0.2, f"bf16 mismatch vs reference (max abs err {err})"

    print("KERNEL_OK")
</pallas_src>

<mosaic_0001>
module attributes {stable_mosaic.version = 11 : i64} {
  func.func @encoder_layer_kernel(%arg0: i32, %arg1: memref<2x16x128xf32, #tpu.memory_space<vmem>>, %arg2: memref<2x1x16xi32, #tpu.memory_space<vmem>>, %arg3: memref<128x128xf32, #tpu.memory_space<vmem>>, %arg4: memref<1x128xf32, #tpu.memory_space<vmem>>, %arg5: memref<128x128xf32, #tpu.memory_space<vmem>>, %arg6: memref<1x128xf32, #tpu.memory_space<vmem>>, %arg7: memref<128x128xf32, #tpu.memory_space<vmem>>, %arg8: memref<1x128xf32, #tpu.memory_space<vmem>>, %arg9: memref<128x128xf32, #tpu.memory_space<vmem>>, %arg10: memref<1x128xf32, #tpu.memory_space<vmem>>, %arg11: memref<1x128xf32, #tpu.memory_space<vmem>>, %arg12: memref<1x128xf32, #tpu.memory_space<vmem>>, %arg13: memref<128x256xf32, #tpu.memory_space<vmem>>, %arg14: memref<1x256xf32, #tpu.memory_space<vmem>>, %arg15: memref<256x128xf32, #tpu.memory_space<vmem>>, %arg16: memref<1x128xf32, #tpu.memory_space<vmem>>, %arg17: memref<1x128xf32, #tpu.memory_space<vmem>>, %arg18: memref<1x128xf32, #tpu.memory_space<vmem>>, %arg19: memref<2x16x128xf32, #tpu.memory_space<vmem>>, %arg20: memref<32x128xf32, #tpu.memory_space<vmem>>) attributes {dimension_semantics = [#tpu.dimension_semantics<parallel>], iteration_bounds = array<i64: 2>, scalar_prefetch = 0 : i64, scratch_operands = 1 : i64, tpu.core_type = #tpu.core_type<tc>, window_params = [{transform_indices = @transform_0, window_bounds = array<i64: 2, 16, 128>}, {transform_indices = @transform_1, window_bounds = array<i64: 2, 1, 16>}, {pipeline_mode = #tpu.pipeline_mode<synchronous>, transform_indices = @transform_2, window_bounds = array<i64: 128, 128>}, {pipeline_mode = #tpu.pipeline_mode<synchronous>, transform_indices = @transform_3, window_bounds = array<i64: 1, 128>}, {pipeline_mode = #tpu.pipeline_mode<synchronous>, transform_indices = @transform_4, window_bounds = array<i64: 128, 128>}, {pipeline_mode = #tpu.pipeline_mode<synchronous>, transform_indices = @transform_5, window_bounds = array<i64: 1, 128>}, {pipeline_mode = #tpu.pipeline_mode<synchronous>, transform_indices = @transform_6, window_bounds = array<i64: 128, 128>}, {pipeline_mode = #tpu.pipeline_mode<synchronous>, transform_indices = @transform_7, window_bounds = array<i64: 1, 128>}, {pipeline_mode = #tpu.pipeline_mode<synchronous>, transform_indices = @transform_8, window_bounds = array<i64: 128, 128>}, {pipeline_mode = #tpu.pipeline_mode<synchronous>, transform_indices = @transform_9, window_bounds = array<i64: 1, 128>}, {pipeline_mode = #tpu.pipeline_mode<synchronous>, transform_indices = @transform_10, window_bounds = array<i64: 1, 128>}, {pipeline_mode = #tpu.pipeline_mode<synchronous>, transform_indices = @transform_11, window_bounds = array<i64: 1, 128>}, {pipeline_mode = #tpu.pipeline_mode<synchronous>, transform_indices = @transform_12, window_bounds = array<i64: 128, 256>}, {pipeline_mode = #tpu.pipeline_mode<synchronous>, transform_indices = @transform_13, window_bounds = array<i64: 1, 256>}, {pipeline_mode = #tpu.pipeline_mode<synchronous>, transform_indices = @transform_14, window_bounds = array<i64: 256, 128>}, {pipeline_mode = #tpu.pipeline_mode<synchronous>, transform_indices = @transform_15, window_bounds = array<i64: 1, 128>}, {pipeline_mode = #tpu.pipeline_mode<synchronous>, transform_indices = @transform_16, window_bounds = array<i64: 1, 128>}, {pipeline_mode = #tpu.pipeline_mode<synchronous>, transform_indices = @transform_17, window_bounds = array<i64: 1, 128>}, {transform_indices = @transform_18, window_bounds = array<i64: 2, 16, 128>}]} {
    %c0 = arith.constant 0 : index
    %c0_0 = arith.constant 0 : index
    %c0_1 = arith.constant 0 : index
    %0 = vector.load %arg1[%c0, %c0_0, %c0_1] : memref<2x16x128xf32, #tpu.memory_space<vmem>>, vector<2x16x128xf32>
    %1 = vector.shape_cast %0 : vector<2x16x128xf32> to vector<32x128xf32>
    %c0_2 = arith.constant 0 : index
    %c0_3 = arith.constant 0 : index
    %2 = vector.load %arg3[%c0_2, %c0_3] : memref<128x128xf32, #tpu.memory_space<vmem>>, vector<128x128xf32>
    %cst = arith.constant dense<0.000000e+00> : vector<32x128xf32>
    %3 = tpu.matmul %1, %2, %cst {dimension_numbers = #tpu.dot_dimension_numbers<[1], [0], [0], [1], [0, 0, 1, 1], [], []>} : vector<32x128xf32>, vector<128x128xf32>, vector<32x128xf32> -> vector<32x128xf32>
    %c0_4 = arith.constant 0 : index
    %c0_5 = arith.constant 0 : index
    %4 = vector.load %arg4[%c0_4, %c0_5] : memref<1x128xf32, #tpu.memory_space<vmem>>, vector<1x128xf32>
    %5 = vector.broadcast %4 : vector<1x128xf32> to vector<32x128xf32>
    %6 = arith.addf %3, %5 : vector<32x128xf32>
    %7 = vector.shape_cast %6 : vector<32x128xf32> to vector<2x16x128xf32>
    %c0_6 = arith.constant 0 : index
    %c0_7 = arith.constant 0 : index
    %8 = vector.load %arg5[%c0_6, %c0_7] : memref<128x128xf32, #tpu.memory_space<vmem>>, vector<128x128xf32>
    %cst_8 = arith.constant dense<0.000000e+00> : vector<32x128xf32>
    %9 = tpu.matmul %1, %8, %cst_8 {dimension_numbers = #tpu.dot_dimension_numbers<[1], [0], [0], [1], [0, 0, 1, 1], [], []>} : vector<32x128xf32>, vector<128x128xf32>, vector<32x128xf32> -> vector<32x128xf32>
    %c0_9 = arith.constant 0 : index
    %c0_10 = arith.constant 0 : index
    %10 = vector.load %arg6[%c0_9, %c0_10] : memref<1x128xf32, #tpu.memory_space<vmem>>, vector<1x128xf32>
    %11 = vector.broadcast %10 : vector<1x128xf32> to vector<32x128xf32>
    %12 = arith.addf %9, %11 : vector<32x128xf32>
    %13 = vector.shape_cast %12 : vector<32x128xf32> to vector<2x16x128xf32>
    %c0_11 = arith.constant 0 : index
    %c0_12 = arith.constant 0 : index
    %14 = vector.load %arg7[%c0_11, %c0_12] : memref<128x128xf32, #tpu.memory_space<vmem>>, vector<128x128xf32>
    %cst_13 = arith.constant dense<0.000000e+00> : vector<32x128xf32>
    %15 = tpu.matmul %1, %14, %cst_13 {dimension_numbers = #tpu.dot_dimension_numbers<[1], [0], [0], [1], [0, 0, 1, 1], [], []>} : vector<32x128xf32>, vector<128x128xf32>, vector<32x128xf32> -> vector<32x128xf32>
    %c0_14 = arith.constant 0 : index
    %c0_15 = arith.constant 0 : index
    %16 = vector.load %arg8[%c0_14, %c0_15] : memref<1x128xf32, #tpu.memory_space<vmem>>, vector<1x128xf32>
    %17 = vector.broadcast %16 : vector<1x128xf32> to vector<32x128xf32>
    %18 = arith.addf %15, %17 : vector<32x128xf32>
    %19 = vector.shape_cast %18 : vector<32x128xf32> to vector<2x16x128xf32>
    %c0_16 = arith.constant 0 : index
    %c0_17 = arith.constant 0 : index
    %c0_18 = arith.constant 0 : index
    %20 = vector.load %arg2[%c0_16, %c0_17, %c0_18] : memref<2x1x16xi32, #tpu.memory_space<vmem>>, vector<2x1x16xi32>
    %c0_i32 = arith.constant 0 : i32
    %21 = vector.broadcast %c0_i32 : i32 to vector<2x1x16xi32>
    %22 = arith.cmpi eq, %20, %21 : vector<2x1x16xi32>
    %cst_19 = arith.constant -1.000000e+09 : f32
    %cst_20 = arith.constant 0.000000e+00 : f32
    %23 = vector.broadcast %cst_19 : f32 to vector<2x1x16xf32>
    %24 = vector.broadcast %cst_20 : f32 to vector<2x1x16xf32>
    %25 = arith.select %22, %23, %24 : vector<2x1x16xi1>, vector<2x1x16xf32>
    %c0_21 = arith.constant 0 : index
    %c0_22 = arith.constant 0 : index
    %26 = vector.load %arg9[%c0_21, %c0_22] : memref<128x128xf32, #tpu.memory_space<vmem>>, vector<128x128xf32>
    %cst_23 = arith.constant 0.000000e+00 : f32
    %27 = vector.broadcast %cst_23 : f32 to vector<32x128xf32>
    %c0_24 = arith.constant 0 : index
    %c0_25 = arith.constant 0 : index
    %28 = vector.load %arg20[%c0_24, %c0_25] : memref<32x128xf32, #tpu.memory_space<vmem>>, vector<32x128xf32>
    tpu.vector_store %arg20[%c0_24, %c0_25], %27 {strides = array<i32>} : memref<32x128xf32, #tpu.memory_space<vmem>>, vector<32x128xf32>,
    %29 = vector.extract_strided_slice %7 {offsets = [0, 0, 0], sizes = [2, 16, 32], strides = [1, 1, 1]} : vector<2x16x128xf32> to vector<2x16x32xf32>
    %30 = vector.extract_strided_slice %13 {offsets = [0, 0, 0], sizes = [2, 16, 32], strides = [1, 1, 1]} : vector<2x16x128xf32> to vector<2x16x32xf32>
    %31 = vector.extract_strided_slice %19 {offsets = [0, 0, 0], sizes = [2, 16, 32], strides = [1, 1, 1]} : vector<2x16x128xf32> to vector<2x16x32xf32>
    "tpu.trace_start"() <{level = 10 : i32, message = "bqd,bkd->bqk"}> : () -> ()
    %cst_26 = arith.constant dense<0.000000e+00> : vector<2x16x16xf32>
    %32 = tpu.matmul %29, %30, %cst_26 {dimension_numbers = #tpu.dot_dimension_numbers<[2], [2], [1], [1], [0, 0, 0, 1, 1, 1], [0], [0]>} : vector<2x16x32xf32>, vector<2x16x32xf32>, vector<2x16x16xf32> -> vector<2x16x16xf32>
    "tpu.trace_stop"() : () -> ()
    %cst_27 = arith.constant 0.176776692 : f32
    %33 = vector.broadcast %cst_27 : f32 to vector<2x16x16xf32>
    %34 = arith.mulf %32, %33 : vector<2x16x16xf32>
    %35 = vector.broadcast %25 : vector<2x1x16xf32> to vector<2x16x16xf32>
    %36 = arith.addf %34, %35 : vector<2x16x16xf32>
    %cst_28 = arith.constant dense<0xFF800000> : vector<2x16xf32>
    %37 = vector.multi_reduction <maximumf>, %36, %cst_28 [2] : vector<2x16x16xf32> to vector<2x16xf32>
    %38 = vector.shape_cast %37 : vector<2x16xf32> to vector<2x16x1xf32>
    %39 = vector.broadcast %38 : vector<2x16x1xf32> to vector<2x16x16xf32>
    %40 = arith.subf %36, %39 : vector<2x16x16xf32>
    %41 = math.exp %40 : vector<2x16x16xf32>
    %cst_29 = arith.constant dense<0.000000e+00> : vector<2x16xf32>
    %42 = vector.multi_reduction <add>, %41, %cst_29 [2] : vector<2x16x16xf32> to vector<2x16xf32>
    %43 = vector.shape_cast %42 : vector<2x16xf32> to vector<2x16x1xf32>
    %44 = tpu.reciprocal %43 : vector<2x16x1xf32> -> vector<2x16x1xf32>
    %45 = vector.broadcast %44 : vector<2x16x1xf32> to vector<2x16x16xf32>
    %46 = arith.mulf %41, %45 : vector<2x16x16xf32>
    "tpu.trace_start"() <{level = 10 : i32, message = "bqk,bkd->bqd"}> : () -> ()
    %cst_30 = arith.constant dense<0.000000e+00> : vector<2x16x32xf32>
    %47 = tpu.matmul %46, %31, %cst_30 {dimension_numbers = #tpu.dot_dimension_numbers<[2], [1], [1], [2], [0, 0, 0, 1, 1, 2], [0], [0]>} : vector<2x16x16xf32>, vector<2x16x32xf32>, vector<2x16x32xf32> -> vector<2x16x32xf32>
    "tpu.trace_stop"() : () -> ()
    %48 = vector.extract_strided_slice %7 {offsets = [0, 0, 32], sizes = [2, 16, 32], strides = [1, 1, 1]} : vector<2x16x128xf32> to vector<2x16x32xf32>
    %49 = vector.extract_strided_slice %13 {offsets = [0, 0, 32], sizes = [2, 16, 32], strides = [1, 1, 1]} : vector<2x16x128xf32> to vector<2x16x32xf32>
    %50 = vector.extract_strided_slice %19 {offsets = [0, 0, 32], sizes = [2, 16, 32], strides = [1, 1, 1]} : vector<2x16x128xf32> to vector<2x16x32xf32>
    "tpu.trace_start"() <{level = 10 : i32, message = "bqd,bkd->bqk"}> : () -> ()
    %cst_31 = arith.constant dense<0.000000e+00> : vector<2x16x16xf32>
    %51 = tpu.matmul %48, %49, %cst_31 {dimension_numbers = #tpu.dot_dimension_numbers<[2], [2], [1], [1], [0, 0, 0, 1, 1, 1], [0], [0]>} : vector<2x16x32xf32>, vector<2x16x32xf32>, vector<2x16x16xf32> -> vector<2x16x16xf32>
    "tpu.trace_stop"() : () -> ()
    %cst_32 = arith.constant 0.176776692 : f32
    %52 = vector.broadcast %cst_32 : f32 to vector<2x16x16xf32>
    %53 = arith.mulf %51, %52 : vector<2x16x16xf32>
    %54 = vector.broadcast %25 : vector<2x1x16xf32> to vector<2x16x16xf32>
    %55 = arith.addf %53, %54 : vector<2x16x16xf32>
    %cst_33 = arith.constant dense<0xFF800000> : vector<2x16xf32>
    %56 = vector.multi_reduction <maximumf>, %55, %cst_33 [2] : vector<2x16x16xf32> to vector<2x16xf32>
    %57 = vector.shape_cast %56 : vector<2x16xf32> to vector<2x16x1xf32>
    %58 = vector.broadcast %57 : vector<2x16x1xf32> to vector<2x16x16xf32>
    %59 = arith.subf %55, %58 : vector<2x16x16xf32>
    %60 = math.exp %59 : vector<2x16x16xf32>
    %cst_34 = arith.constant dense<0.000000e+00> : vector<2x16xf32>
    %61 = vector.multi_reduction <add>, %60, %cst_34 [2] : vector<2x16x16xf32> to vector<2x16xf32>
    %62 = vector.shape_cast %61 : vector<2x16xf32> to vector<2x16x1xf32>
    %63 = tpu.reciprocal %62 : vector<2x16x1xf32> -> vector<2x16x1xf32>
    %64 = vector.broadcast %63 : vector<2x16x1xf32> to vector<2x16x16xf32>
    %65 = arith.mulf %60, %64 : vector<2x16x16xf32>
    "tpu.trace_start"() <{level = 10 : i32, message = "bqk,bkd->bqd"}> : () -> ()
    %cst_35 = arith.constant dense<0.000000e+00> : vector<2x16x32xf32>
    %66 = tpu.matmul %65, %50, %cst_35 {dimension_numbers = #tpu.dot_dimension_numbers<[2], [1], [1], [2], [0, 0, 0, 1, 1, 2], [0], [0]>} : vector<2x16x16xf32>, vector<2x16x32xf32>, vector<2x16x32xf32> -> vector<2x16x32xf32>
    "tpu.trace_stop"() : () -> ()
    %67 = vector.extract_strided_slice %7 {offsets = [0, 0, 64], sizes = [2, 16, 32], strides = [1, 1, 1]} : vector<2x16x128xf32> to vector<2x16x32xf32>
    %68 = vector.extract_strided_slice %13 {offsets = [0, 0, 64], sizes = [2, 16, 32], strides = [1, 1, 1]} : vector<2x16x128xf32> to vector<2x16x32xf32>
    %69 = vector.extract_strided_slice %19 {offsets = [0, 0, 64], sizes = [2, 16, 32], strides = [1, 1, 1]} : vector<2x16x128xf32> to vector<2x16x32xf32>
    "tpu.trace_start"() <{level = 10 : i32, message = "bqd,bkd->bqk"}> : () -> ()
    %cst_36 = arith.constant dense<0.000000e+00> : vector<2x16x16xf32>
    %70 = tpu.matmul %67, %68, %cst_36 {dimension_numbers = #tpu.dot_dimension_numbers<[2], [2], [1], [1], [0, 0, 0, 1, 1, 1], [0], [0]>} : vector<2x16x32xf32>, vector<2x16x32xf32>, vector<2x16x16xf32> -> vector<2x16x16xf32>
    "tpu.trace_stop"() : () -> ()
    %cst_37 = arith.constant 0.176776692 : f32
    %71 = vector.broadcast %cst_37 : f32 to vector<2x16x16xf32>
    %72 = arith.mulf %70, %71 : vector<2x16x16xf32>
    %73 = vector.broadcast %25 : vector<2x1x16xf32> to vector<2x16x16xf32>
    %74 = arith.addf %72, %73 : vector<2x16x16xf32>
    %cst_38 = arith.constant dense<0xFF800000> : vector<2x16xf32>
    %75 = vector.multi_reduction <maximumf>, %74, %cst_38 [2] : vector<2x16x16xf32> to vector<2x16xf32>
    %76 = vector.shape_cast %75 : vector<2x16xf32> to vector<2x16x1xf32>
    %77 = vector.broadcast %76 : vector<2x16x1xf32> to vector<2x16x16xf32>
    %78 = arith.subf %74, %77 : vector<2x16x16xf32>
    %79 = math.exp %78 : vector<2x16x16xf32>
    %cst_39 = arith.constant dense<0.000000e+00> : vector<2x16xf32>
    %80 = vector.multi_reduction <add>, %79, %cst_39 [2] : vector<2x16x16xf32> to vector<2x16xf32>
    %81 = vector.shape_cast %80 : vector<2x16xf32> to vector<2x16x1xf32>
    %82 = tpu.reciprocal %81 : vector<2x16x1xf32> -> vector<2x16x1xf32>
    %83 = vector.broadcast %82 : vector<2x16x1xf32> to vector<2x16x16xf32>
    %84 = arith.mulf %79, %83 : vector<2x16x16xf32>
    "tpu.trace_start"() <{level = 10 : i32, message = "bqk,bkd->bqd"}> : () -> ()
    %cst_40 = arith.constant dense<0.000000e+00> : vector<2x16x32xf32>
    %85 = tpu.matmul %84, %69, %cst_40 {dimension_numbers = #tpu.dot_dimension_numbers<[2], [1], [1], [2], [0, 0, 0, 1, 1, 2], [0], [0]>} : vector<2x16x16xf32>, vector<2x16x32xf32>, vector<2x16x32xf32> -> vector<2x16x32xf32>
    "tpu.trace_stop"() : () -> ()
    %86 = vector.extract_strided_slice %7 {offsets = [0, 0, 96], sizes = [2, 16, 32], strides = [1, 1, 1]} : vector<2x16x128xf32> to vector<2x16x32xf32>
    %87 = vector.extract_strided_slice %13 {offsets = [0, 0, 96], sizes = [2, 16, 32], strides = [1, 1, 1]} : vector<2x16x128xf32> to vector<2x16x32xf32>
    %88 = vector.extract_strided_slice %19 {offsets = [0, 0, 96], sizes = [2, 16, 32], strides = [1, 1, 1]} : vector<2x16x128xf32> to vector<2x16x32xf32>
    "tpu.trace_start"() <{level = 10 : i32, message = "bqd,bkd->bqk"}> : () -> ()
    %cst_41 = arith.constant dense<0.000000e+00> : vector<2x16x16xf32>
    %89 = tpu.matmul %86, %87, %cst_41 {dimension_numbers = #tpu.dot_dimension_numbers<[2], [2], [1], [1], [0, 0, 0, 1, 1, 1], [0], [0]>} : vector<2x16x32xf32>, vector<2x16x32xf32>, vector<2x16x16xf32> -> vector<2x16x16xf32>
    "tpu.trace_stop"() : () -> ()
    %cst_42 = arith.constant 0.176776692 : f32
    %90 = vector.broadcast %cst_42 : f32 to vector<2x16x16xf32>
    %91 = arith.mulf %89, %90 : vector<2x16x16xf32>
    %92 = vector.broadcast %25 : vector<2x1x16xf32> to vector<2x16x16xf32>
    %93 = arith.addf %91, %92 : vector<2x16x16xf32>
    %cst_43 = arith.constant dense<0xFF800000> : vector<2x16xf32>
    %94 = vector.multi_reduction <maximumf>, %93, %cst_43 [2] : vector<2x16x16xf32> to vector<2x16xf32>
    %95 = vector.shape_cast %94 : vector<2x16xf32> to vector<2x16x1xf32>
    %96 = vector.broadcast %95 : vector<2x16x1xf32> to vector<2x16x16xf32>
    %97 = arith.subf %93, %96 : vector<2x16x16xf32>
    %98 = math.exp %97 : vector<2x16x16xf32>
    %cst_44 = arith.constant dense<0.000000e+00> : vector<2x16xf32>
    %99 = vector.multi_reduction <add>, %98, %cst_44 [2] : vector<2x16x16xf32> to vector<2x16xf32>
    %100 = vector.shape_cast %99 : vector<2x16xf32> to vector<2x16x1xf32>
    %101 = tpu.reciprocal %100 : vector<2x16x1xf32> -> vector<2x16x1xf32>
    %102 = vector.broadcast %101 : vector<2x16x1xf32> to vector<2x16x16xf32>
    %103 = arith.mulf %98, %102 : vector<2x16x16xf32>
    "tpu.trace_start"() <{level = 10 : i32, message = "bqk,bkd->bqd"}> : () -> ()
    %cst_45 = arith.constant dense<0.000000e+00> : vector<2x16x32xf32>
    %104 = tpu.matmul %103, %88, %cst_45 {dimension_numbers = #tpu.dot_dimension_numbers<[2], [1], [1], [2], [0, 0, 0, 1, 1, 2], [0], [0]>} : vector<2x16x16xf32>, vector<2x16x32xf32>, vector<2x16x32xf32> -> vector<2x16x32xf32>
    "tpu.trace_stop"() : () -> ()
    %105 = tpu.concatenate %47, %66, %85, %104 in 2 : vector<2x16x32xf32>, vector<2x16x32xf32>, vector<2x16x32xf32>, vector<2x16x32xf32> -> vector<2x16x128xf32>
    %106 = vector.shape_cast %105 : vector<2x16x128xf32> to vector<32x128xf32>
    %c0_46 = arith.constant 0 : index
    %c0_47 = arith.constant 0 : index
    %107 = vector.load %arg20[%c0_46, %c0_47] : memref<32x128xf32, #tpu.memory_space<vmem>>, vector<32x128xf32>
    %cst_48 = arith.constant dense<0.000000e+00> : vector<32x128xf32>
    %108 = tpu.matmul %106, %26, %cst_48 {dimension_numbers = #tpu.dot_dimension_numbers<[1], [0], [0], [1], [0, 0, 1, 1], [], []>} : vector<32x128xf32>, vector<128x128xf32>, vector<32x128xf32> -> vector<32x128xf32>
    %109 = arith.addf %107, %108 : vector<32x128xf32>
    %c0_49 = arith.constant 0 : index
    %c0_50 = arith.constant 0 : index
    %110 = vector.load %arg20[%c0_49, %c0_50] : memref<32x128xf32, #tpu.memory_space<vmem>>, vector<32x128xf32>
    tpu.vector_store %arg20[%c0_49, %c0_50], %109 {strides = array<i32>} : memref<32x128xf32, #tpu.memory_space<vmem>>, vector<32x128xf32>,
    %c0_51 = arith.constant 0 : index
    %c0_52 = arith.constant 0 : index
    %111 = vector.load %arg20[%c0_51, %c0_52] : memref<32x128xf32, #tpu.memory_space<vmem>>, vector<32x128xf32>
    %c0_53 = arith.constant 0 : index
    %c0_54 = arith.constant 0 : index
    %112 = vector.load %arg10[%c0_53, %c0_54] : memref<1x128xf32, #tpu.memory_space<vmem>>, vector<1x128xf32>
    %113 = vector.broadcast %112 : vector<1x128xf32> to vector<32x128xf32>
    %114 = arith.addf %111, %113 : vector<32x128xf32>
    %115 = arith.addf %1, %114 : vector<32x128xf32>
    %cst_55 = arith.constant dense<0.000000e+00> : vector<32xf32>
    %116 = vector.multi_reduction <add>, %115, %cst_55 [1] : vector<32x128xf32> to vector<32xf32>
    %117 = vector.shape_cast %116 : vector<32xf32> to vector<32x1xf32>
    %cst_56 = arith.constant 1.280000e+02 : f32
    %118 = vector.broadcast %cst_56 : f32 to vector<32x1xf32>
    %119 = arith.divf %117, %118 : vector<32x1xf32>
    %120 = arith.mulf %115, %115 : vector<32x128xf32>
    %cst_57 = arith.constant dense<0.000000e+00> : vector<32xf32>
    %121 = vector.multi_reduction <add>, %120, %cst_57 [1] : vector<32x128xf32> to vector<32xf32>
    %122 = vector.shape_cast %121 : vector<32xf32> to vector<32x1xf32>
    %cst_58 = arith.constant 1.280000e+02 : f32
    %123 = vector.broadcast %cst_58 : f32 to vector<32x1xf32>
    %124 = arith.divf %122, %123 : vector<32x1xf32>
    %125 = arith.mulf %119, %119 : vector<32x1xf32>
    %126 = arith.subf %124, %125 : vector<32x1xf32>
    %cst_59 = arith.constant 0.000000e+00 : f32
    %127 = vector.broadcast %cst_59 : f32 to vector<32x1xf32>
    %128 = arith.maximumf %126, %127 : vector<32x1xf32>
    %129 = vector.broadcast %119 : vector<32x1xf32> to vector<32x128xf32>
    %130 = arith.subf %115, %129 : vector<32x128xf32>
    %cst_60 = arith.constant 9.99999974E-6 : f32
    %131 = vector.broadcast %cst_60 : f32 to vector<32x1xf32>
    %132 = arith.addf %128, %131 : vector<32x1xf32>
    %133 = math.rsqrt %132 : vector<32x1xf32>
    %134 = vector.broadcast %133 : vector<32x1xf32> to vector<32x128xf32>
    %135 = arith.mulf %130, %134 : vector<32x128xf32>
    %c0_61 = arith.constant 0 : index
    %c0_62 = arith.constant 0 : index
    %136 = vector.load %arg11[%c0_61, %c0_62] : memref<1x128xf32, #tpu.memory_space<vmem>>, vector<1x128xf32>
    %137 = vector.broadcast %136 : vector<1x128xf32> to vector<32x128xf32>
    %138 = arith.mulf %135, %137 : vector<32x128xf32>
    %c0_63 = arith.constant 0 : index
    %c0_64 = arith.constant 0 : index
    %139 = vector.load %arg12[%c0_63, %c0_64] : memref<1x128xf32, #tpu.memory_space<vmem>>, vector<1x128xf32>
    %140 = vector.broadcast %139 : vector<1x128xf32> to vector<32x128xf32>
    %141 = arith.addf %138, %140 : vector<32x128xf32>
    %c0_65 = arith.constant 0 : index
    %c0_66 = arith.constant 0 : index
    %142 = vector.load %arg13[%c0_65, %c0_66] : memref<128x256xf32, #tpu.memory_space<vmem>>, vector<128x256xf32>
    %cst_67 = arith.constant dense<0.000000e+00> : vector<32x256xf32>
    %143 = tpu.matmul %141, %142, %cst_67 {dimension_numbers = #tpu.dot_dimension_numbers<[1], [0], [0], [1], [0, 0, 1, 1], [], []>} : vector<32x128xf32>, vector<128x256xf32>, vector<32x256xf32> -> vector<32x256xf32>
    %c0_68 = arith.constant 0 : index
    %c0_69 = arith.constant 0 : index
    %144 = vector.load %arg14[%c0_68, %c0_69] : memref<1x256xf32, #tpu.memory_space<vmem>>, vector<1x256xf32>
    %145 = vector.broadcast %144 : vector<1x256xf32> to vector<32x256xf32>
    %146 = arith.addf %143, %145 : vector<32x256xf32>
    %cst_70 = arith.constant 0.000000e+00 : f32
    %147 = vector.broadcast %cst_70 : f32 to vector<32x256xf32>
    %148 = arith.maximumf %146, %147 : vector<32x256xf32>
    %c0_71 = arith.constant 0 : index
    %c0_72 = arith.constant 0 : index
    %149 = vector.load %arg15[%c0_71, %c0_72] : memref<256x128xf32, #tpu.memory_space<vmem>>, vector<256x128xf32>
    %cst_73 = arith.constant dense<0.000000e+00> : vector<32x128xf32>
    %150 = tpu.matmul %148, %149, %cst_73 {dimension_numbers = #tpu.dot_dimension_numbers<[1], [0], [0], [1], [0, 0, 1, 1], [], []>} : vector<32x256xf32>, vector<256x128xf32>, vector<32x128xf32> -> vector<32x128xf32>
    %c0_74 = arith.constant 0 : index
    %c0_75 = arith.constant 0 : index
    %151 = vector.load %arg16[%c0_74, %c0_75] : memref<1x128xf32, #tpu.memory_space<vmem>>, vector<1x128xf32>
    %152 = vector.broadcast %151 : vector<1x128xf32> to vector<32x128xf32>
    %153 = arith.addf %150, %152 : vector<32x128xf32>
    %154 = arith.addf %141, %153 : vector<32x128xf32>
    %cst_76 = arith.constant dense<0.000000e+00> : vector<32xf32>
    %155 = vector.multi_reduction <add>, %154, %cst_76 [1] : vector<32x128xf32> to vector<32xf32>
    %156 = vector.shape_cast %155 : vector<32xf32> to vector<32x1xf32>
    %cst_77 = arith.constant 1.280000e+02 : f32
    %157 = vector.broadcast %cst_77 : f32 to vector<32x1xf32>
    %158 = arith.divf %156, %157 : vector<32x1xf32>
    %159 = arith.mulf %154, %154 : vector<32x128xf32>
    %cst_78 = arith.constant dense<0.000000e+00> : vector<32xf32>
    %160 = vector.multi_reduction <add>, %159, %cst_78 [1] : vector<32x128xf32> to vector<32xf32>
    %161 = vector.shape_cast %160 : vector<32xf32> to vector<32x1xf32>
    %cst_79 = arith.constant 1.280000e+02 : f32
    %162 = vector.broadcast %cst_79 : f32 to vector<32x1xf32>
    %163 = arith.divf %161, %162 : vector<32x1xf32>
    %164 = arith.mulf %158, %158 : vector<32x1xf32>
    %165 = arith.subf %163, %164 : vector<32x1xf32>
    %cst_80 = arith.constant 0.000000e+00 : f32
    %166 = vector.broadcast %cst_80 : f32 to vector<32x1xf32>
    %167 = arith.maximumf %165, %166 : vector<32x1xf32>
    %168 = vector.broadcast %158 : vector<32x1xf32> to vector<32x128xf32>
    %169 = arith.subf %154, %168 : vector<32x128xf32>
    %cst_81 = arith.constant 9.99999974E-6 : f32
    %170 = vector.broadcast %cst_81 : f32 to vector<32x1xf32>
    %171 = arith.addf %167, %170 : vector<32x1xf32>
    %172 = math.rsqrt %171 : vector<32x1xf32>
    %173 = vector.broadcast %172 : vector<32x1xf32> to vector<32x128xf32>
    %174 = arith.mulf %169, %173 : vector<32x128xf32>
    %c0_82 = arith.constant 0 : index
    %c0_83 = arith.constant 0 : index
    %175 = vector.load %arg17[%c0_82, %c0_83] : memref<1x128xf32, #tpu.memory_space<vmem>>, vector<1x128xf32>
    %176 = vector.broadcast %175 : vector<1x128xf32> to vector<32x128xf32>
    %177 = arith.mulf %174, %176 : vector<32x128xf32>
    %c0_84 = arith.constant 0 : index
    %c0_85 = arith.constant 0 : index
    %178 = vector.load %arg18[%c0_84, %c0_85] : memref<1x128xf32, #tpu.memory_space<vmem>>, vector<1x128xf32>
    %179 = vector.broadcast %178 : vector<1x128xf32> to vector<32x128xf32>
    %180 = arith.addf %177, %179 : vector<32x128xf32>
    %181 = vector.shape_cast %180 : vector<32x128xf32> to vector<2x16x128xf32>
    %c0_86 = arith.constant 0 : index
    %c0_87 = arith.constant 0 : index
    %c0_88 = arith.constant 0 : index
    %182 = vector.load %arg19[%c0_86, %c0_87, %c0_88] : memref<2x16x128xf32, #tpu.memory_space<vmem>>, vector<2x16x128xf32>
    tpu.vector_store %arg19[%c0_86, %c0_87, %c0_88], %181 {strides = array<i32>} : memref<2x16x128xf32, #tpu.memory_space<vmem>>, vector<2x16x128xf32>,
    return
  }
  func.func @transform_0(%arg0: i32) -> (i32, i32, i32) {
    %c0_i32 = arith.constant 0 : i32
    %c0_i32_0 = arith.constant 0 : i32
    %c0_i32_1 = arith.constant 0 : i32
    return %arg0, %c0_i32, %c0_i32_0 : i32, i32, i32
  }
  func.func @transform_1(%arg0: i32) -> (i32, i32, i32) {
    %c0_i32 = arith.constant 0 : i32
    %c0_i32_0 = arith.constant 0 : i32
    %c0_i32_1 = arith.constant 0 : i32
    return %arg0, %c0_i32, %c0_i32_0 : i32, i32, i32
  }
  func.func @transform_2(%arg0: i32) -> (i32, i32) {
    %c0_i32 = arith.constant 0 : i32
    %c0_i32_0 = arith.constant 0 : i32
    %c0_i32_1 = arith.constant 0 : i32
    return %c0_i32, %c0_i32_0 : i32, i32
  }
  func.func @transform_3(%arg0: i32) -> (i32, i32) {
    %c0_i32 = arith.constant 0 : i32
    %c0_i32_0 = arith.constant 0 : i32
    %c0_i32_1 = arith.constant 0 : i32
    return %c0_i32, %c0_i32_0 : i32, i32
  }
  func.func @transform_4(%arg0: i32) -> (i32, i32) {
    %c0_i32 = arith.constant 0 : i32
    %c0_i32_0 = arith.constant 0 : i32
    %c0_i32_1 = arith.constant 0 : i32
    return %c0_i32, %c0_i32_0 : i32, i32
  }
  func.func @transform_5(%arg0: i32) -> (i32, i32) {
    %c0_i32 = arith.constant 0 : i32
    %c0_i32_0 = arith.constant 0 : i32
    %c0_i32_1 = arith.constant 0 : i32
    return %c0_i32, %c0_i32_0 : i32, i32
  }
  func.func @transform_6(%arg0: i32) -> (i32, i32) {
    %c0_i32 = arith.constant 0 : i32
    %c0_i32_0 = arith.constant 0 : i32
    %c0_i32_1 = arith.constant 0 : i32
    return %c0_i32, %c0_i32_0 : i32, i32
  }
  func.func @transform_7(%arg0: i32) -> (i32, i32) {
    %c0_i32 = arith.constant 0 : i32
    %c0_i32_0 = arith.constant 0 : i32
    %c0_i32_1 = arith.constant 0 : i32
    return %c0_i32, %c0_i32_0 : i32, i32
  }
  func.func @transform_8(%arg0: i32) -> (i32, i32) {
    %c0_i32 = arith.constant 0 : i32
    %c0_i32_0 = arith.constant 0 : i32
    %c0_i32_1 = arith.constant 0 : i32
    return %c0_i32, %c0_i32_0 : i32, i32
  }
  func.func @transform_9(%arg0: i32) -> (i32, i32) {
    %c0_i32 = arith.constant 0 : i32
    %c0_i32_0 = arith.constant 0 : i32
    %c0_i32_1 = arith.constant 0 : i32
    return %c0_i32, %c0_i32_0 : i32, i32
  }
  func.func @transform_10(%arg0: i32) -> (i32, i32) {
    %c0_i32 = arith.constant 0 : i32
    %c0_i32_0 = arith.constant 0 : i32
    %c0_i32_1 = arith.constant 0 : i32
    return %c0_i32, %c0_i32_0 : i32, i32
  }
  func.func @transform_11(%arg0: i32) -> (i32, i32) {
    %c0_i32 = arith.constant 0 : i32
    %c0_i32_0 = arith.constant 0 : i32
    %c0_i32_1 = arith.constant 0 : i32
    return %c0_i32, %c0_i32_0 : i32, i32
  }
  func.func @transform_12(%arg0: i32) -> (i32, i32) {
    %c0_i32 = arith.constant 0 : i32
    %c0_i32_0 = arith.constant 0 : i32
    %c0_i32_1 = arith.constant 0 : i32
    return %c0_i32, %c0_i32_0 : i32, i32
  }
  func.func @transform_13(%arg0: i32) -> (i32, i32) {
    %c0_i32 = arith.constant 0 : i32
    %c0_i32_0 = arith.constant 0 : i32
    %c0_i32_1 = arith.constant 0 : i32
    return %c0_i32, %c0_i32_0 : i32, i32
  }
  func.func @transform_14(%arg0: i32) -> (i32, i32) {
    %c0_i32 = arith.constant 0 : i32
    %c0_i32_0 = arith.constant 0 : i32
    %c0_i32_1 = arith.constant 0 : i32
    return %c0_i32, %c0_i32_0 : i32, i32
  }
  func.func @transform_15(%arg0: i32) -> (i32, i32) {
    %c0_i32 = arith.constant 0 : i32
    %c0_i32_0 = arith.constant 0 : i32
    %c0_i32_1 = arith.constant 0 : i32
    return %c0_i32, %c0_i32_0 : i32, i32
  }
  func.func @transform_16(%arg0: i32) -> (i32, i32) {
    %c0_i32 = arith.constant 0 : i32
    %c0_i32_0 = arith.constant 0 : i32
    %c0_i32_1 = arith.constant 0 : i32
    return %c0_i32, %c0_i32_0 : i32, i32
  }
  func.func @transform_17(%arg0: i32) -> (i32, i32) {
    %c0_i32 = arith.constant 0 : i32
    %c0_i32_0 = arith.constant 0 : i32
    %c0_i32_1 = arith.constant 0 : i32
    return %c0_i32, %c0_i32_0 : i32, i32
  }
  func.func @transform_18(%arg0: i32) -> (i32, i32, i32) {
    %c0_i32 = arith.constant 0 : i32
    %c0_i32_0 = arith.constant 0 : i32
    %c0_i32_1 = arith.constant 0 : i32
    return %arg0, %c0_i32, %c0_i32_0 : i32, i32, i32
  }
}

module attributes {stable_mosaic.version = 11 : i64} {
  func.func @encoder_layer_kernel(%arg0: i32, %arg1: memref<2x16x128xf32, #tpu.memory_space<vmem>>, %arg2: memref<2x1x16xi32, #tpu.memory_space<vmem>>, %arg3: memref<128x128xf32, #tpu.memory_space<vmem>>, %arg4: memref<1x128xf32, #tpu.memory_space<vmem>>, %arg5: memref<128x128xf32, #tpu.memory_space<vmem>>, %arg6: memref<1x128xf32, #tpu.memory_space<vmem>>, %arg7: memref<128x128xf32, #tpu.memory_space<vmem>>, %arg8: memref<1x128xf32, #tpu.memory_space<vmem>>, %arg9: memref<128x128xf32, #tpu.memory_space<vmem>>, %arg10: memref<1x128xf32, #tpu.memory_space<vmem>>, %arg11: memref<1x128xf32, #tpu.memory_space<vmem>>, %arg12: memref<1x128xf32, #tpu.memory_space<vmem>>, %arg13: memref<128x256xf32, #tpu.memory_space<vmem>>, %arg14: memref<1x256xf32, #tpu.memory_space<vmem>>, %arg15: memref<256x128xf32, #tpu.memory_space<vmem>>, %arg16: memref<1x128xf32, #tpu.memory_space<vmem>>, %arg17: memref<1x128xf32, #tpu.memory_space<vmem>>, %arg18: memref<1x128xf32, #tpu.memory_space<vmem>>, %arg19: memref<2x16x128xf32, #tpu.memory_space<vmem>>, %arg20: memref<32x128xf32, #tpu.memory_space<vmem>>) attributes {dimension_semantics = [#tpu.dimension_semantics<parallel>], iteration_bounds = array<i64: 2>, scalar_prefetch = 0 : i64, scratch_operands = 1 : i64, tpu.core_type = #tpu.core_type<tc>, window_params = [{transform_indices = @transform_0, window_bounds = array<i64: 2, 16, 128>}, {transform_indices = @transform_1, window_bounds = array<i64: 2, 1, 16>}, {pipeline_mode = #tpu.pipeline_mode<synchronous>, transform_indices = @transform_2, window_bounds = array<i64: 128, 128>}, {pipeline_mode = #tpu.pipeline_mode<synchronous>, transform_indices = @transform_3, window_bounds = array<i64: 1, 128>}, {pipeline_mode = #tpu.pipeline_mode<synchronous>, transform_indices = @transform_4, window_bounds = array<i64: 128, 128>}, {pipeline_mode = #tpu.pipeline_mode<synchronous>, transform_indices = @transform_5, window_bounds = array<i64: 1, 128>}, {pipeline_mode = #tpu.pipeline_mode<synchronous>, transform_indices = @transform_6, window_bounds = array<i64: 128, 128>}, {pipeline_mode = #tpu.pipeline_mode<synchronous>, transform_indices = @transform_7, window_bounds = array<i64: 1, 128>}, {pipeline_mode = #tpu.pipeline_mode<synchronous>, transform_indices = @transform_8, window_bounds = array<i64: 128, 128>}, {pipeline_mode = #tpu.pipeline_mode<synchronous>, transform_indices = @transform_9, window_bounds = array<i64: 1, 128>}, {pipeline_mode = #tpu.pipeline_mode<synchronous>, transform_indices = @transform_10, window_bounds = array<i64: 1, 128>}, {pipeline_mode = #tpu.pipeline_mode<synchronous>, transform_indices = @transform_11, window_bounds = array<i64: 1, 128>}, {pipeline_mode = #tpu.pipeline_mode<synchronous>, transform_indices = @transform_12, window_bounds = array<i64: 128, 256>}, {pipeline_mode = #tpu.pipeline_mode<synchronous>, transform_indices = @transform_13, window_bounds = array<i64: 1, 256>}, {pipeline_mode = #tpu.pipeline_mode<synchronous>, transform_indices = @transform_14, window_bounds = array<i64: 256, 128>}, {pipeline_mode = #tpu.pipeline_mode<synchronous>, transform_indices = @transform_15, window_bounds = array<i64: 1, 128>}, {pipeline_mode = #tpu.pipeline_mode<synchronous>, transform_indices = @transform_16, window_bounds = array<i64: 1, 128>}, {pipeline_mode = #tpu.pipeline_mode<synchronous>, transform_indices = @transform_17, window_bounds = array<i64: 1, 128>}, {transform_indices = @transform_18, window_bounds = array<i64: 2, 16, 128>}]} {
    %c0 = arith.constant 0 : index
    %c0_0 = arith.constant 0 : index
    %c0_1 = arith.constant 0 : index
    %0 = vector.load %arg1[%c0, %c0_0, %c0_1] : memref<2x16x128xf32, #tpu.memory_space<vmem>>, vector<2x16x128xf32>
    %1 = vector.shape_cast %0 : vector<2x16x128xf32> to vector<32x128xf32>
    %c0_2 = arith.constant 0 : index
    %c0_3 = arith.constant 0 : index
    %2 = vector.load %arg3[%c0_2, %c0_3] : memref<128x128xf32, #tpu.memory_space<vmem>>, vector<128x128xf32>
    %cst = arith.constant dense<0.000000e+00> : vector<32x128xf32>
    %3 = tpu.matmul %1, %2, %cst {dimension_numbers = #tpu.dot_dimension_numbers<[1], [0], [0], [1], [0, 0, 1, 1], [], []>} : vector<32x128xf32>, vector<128x128xf32>, vector<32x128xf32> -> vector<32x128xf32>
    %c0_4 = arith.constant 0 : index
    %c0_5 = arith.constant 0 : index
    %4 = vector.load %arg4[%c0_4, %c0_5] : memref<1x128xf32, #tpu.memory_space<vmem>>, vector<1x128xf32>
    %5 = vector.broadcast %4 : vector<1x128xf32> to vector<32x128xf32>
    %6 = arith.addf %3, %5 : vector<32x128xf32>
    %7 = vector.shape_cast %6 : vector<32x128xf32> to vector<2x16x128xf32>
    %c0_6 = arith.constant 0 : index
    %c0_7 = arith.constant 0 : index
    %8 = vector.load %arg5[%c0_6, %c0_7] : memref<128x128xf32, #tpu.memory_space<vmem>>, vector<128x128xf32>
    %cst_8 = arith.constant dense<0.000000e+00> : vector<32x128xf32>
    %9 = tpu.matmul %1, %8, %cst_8 {dimension_numbers = #tpu.dot_dimension_numbers<[1], [0], [0], [1], [0, 0, 1, 1], [], []>} : vector<32x128xf32>, vector<128x128xf32>, vector<32x128xf32> -> vector<32x128xf32>
    %c0_9 = arith.constant 0 : index
    %c0_10 = arith.constant 0 : index
    %10 = vector.load %arg6[%c0_9, %c0_10] : memref<1x128xf32, #tpu.memory_space<vmem>>, vector<1x128xf32>
    %11 = vector.broadcast %10 : vector<1x128xf32> to vector<32x128xf32>
    %12 = arith.addf %9, %11 : vector<32x128xf32>
    %13 = vector.shape_cast %12 : vector<32x128xf32> to vector<2x16x128xf32>
    %c0_11 = arith.constant 0 : index
    %c0_12 = arith.constant 0 : index
    %14 = vector.load %arg7[%c0_11, %c0_12] : memref<128x128xf32, #tpu.memory_space<vmem>>, vector<128x128xf32>
    %cst_13 = arith.constant dense<0.000000e+00> : vector<32x128xf32>
    %15 = tpu.matmul %1, %14, %cst_13 {dimension_numbers = #tpu.dot_dimension_numbers<[1], [0], [0], [1], [0, 0, 1, 1], [], []>} : vector<32x128xf32>, vector<128x128xf32>, vector<32x128xf32> -> vector<32x128xf32>
    %c0_14 = arith.constant 0 : index
    %c0_15 = arith.constant 0 : index
    %16 = vector.load %arg8[%c0_14, %c0_15] : memref<1x128xf32, #tpu.memory_space<vmem>>, vector<1x128xf32>
    %17 = vector.broadcast %16 : vector<1x128xf32> to vector<32x128xf32>
    %18 = arith.addf %15, %17 : vector<32x128xf32>
    %19 = vector.shape_cast %18 : vector<32x128xf32> to vector<2x16x128xf32>
    %c0_16 = arith.constant 0 : index
    %c0_17 = arith.constant 0 : index
    %c0_18 = arith.constant 0 : index
    %20 = vector.load %arg2[%c0_16, %c0_17, %c0_18] : memref<2x1x16xi32, #tpu.memory_space<vmem>>, vector<2x1x16xi32>
    %c0_i32 = arith.constant 0 : i32
    %21 = vector.broadcast %c0_i32 : i32 to vector<2x1x16xi32>
    %22 = arith.cmpi eq, %20, %21 : vector<2x1x16xi32>
    %cst_19 = arith.constant -1.000000e+09 : f32
    %cst_20 = arith.constant 0.000000e+00 : f32
    %23 = vector.broadcast %cst_19 : f32 to vector<2x1x16xf32>
    %24 = vector.broadcast %cst_20 : f32 to vector<2x1x16xf32>
    %25 = arith.select %22, %23, %24 : vector<2x1x16xi1>, vector<2x1x16xf32>
    %c0_21 = arith.constant 0 : index
    %c0_22 = arith.constant 0 : index
    %26 = vector.load %arg9[%c0_21, %c0_22] : memref<128x128xf32, #tpu.memory_space<vmem>>, vector<128x128xf32>
    %cst_23 = arith.constant 0.000000e+00 : f32
    %27 = vector.broadcast %cst_23 : f32 to vector<32x128xf32>
    %c0_24 = arith.constant 0 : index
    %c0_25 = arith.constant 0 : index
    %28 = vector.load %arg20[%c0_24, %c0_25] : memref<32x128xf32, #tpu.memory_space<vmem>>, vector<32x128xf32>
    tpu.vector_store %arg20[%c0_24, %c0_25], %27 {strides = array<i32>} : memref<32x128xf32, #tpu.memory_space<vmem>>, vector<32x128xf32>,
    %29 = vector.extract_strided_slice %7 {offsets = [0, 0, 0], sizes = [2, 16, 32], strides = [1, 1, 1]} : vector<2x16x128xf32> to vector<2x16x32xf32>
    %30 = vector.extract_strided_slice %13 {offsets = [0, 0, 0], sizes = [2, 16, 32], strides = [1, 1, 1]} : vector<2x16x128xf32> to vector<2x16x32xf32>
    %31 = vector.extract_strided_slice %19 {offsets = [0, 0, 0], sizes = [2, 16, 32], strides = [1, 1, 1]} : vector<2x16x128xf32> to vector<2x16x32xf32>
    "tpu.trace_start"() <{level = 10 : i32, message = "bqd,bkd->bqk"}> : () -> ()
    %cst_26 = arith.constant dense<0.000000e+00> : vector<2x16x16xf32>
    %32 = tpu.matmul %29, %30, %cst_26 {dimension_numbers = #tpu.dot_dimension_numbers<[2], [2], [1], [1], [0, 0, 0, 1, 1, 1], [0], [0]>} : vector<2x16x32xf32>, vector<2x16x32xf32>, vector<2x16x16xf32> -> vector<2x16x16xf32>
    "tpu.trace_stop"() : () -> ()
    %cst_27 = arith.constant 0.176776692 : f32
    %33 = vector.broadcast %cst_27 : f32 to vector<2x16x16xf32>
    %34 = arith.mulf %32, %33 : vector<2x16x16xf32>
    %35 = vector.broadcast %25 : vector<2x1x16xf32> to vector<2x16x16xf32>
    %36 = arith.addf %34, %35 : vector<2x16x16xf32>
    %cst_28 = arith.constant dense<0xFF800000> : vector<2x16xf32>
    %37 = vector.multi_reduction <maximumf>, %36, %cst_28 [2] : vector<2x16x16xf32> to vector<2x16xf32>
    %38 = vector.shape_cast %37 : vector<2x16xf32> to vector<2x16x1xf32>
    %39 = vector.broadcast %38 : vector<2x16x1xf32> to vector<2x16x16xf32>
    %40 = arith.subf %36, %39 : vector<2x16x16xf32>
    %41 = math.exp %40 : vector<2x16x16xf32>
    %cst_29 = arith.constant dense<0.000000e+00> : vector<2x16xf32>
    %42 = vector.multi_reduction <add>, %41, %cst_29 [2] : vector<2x16x16xf32> to vector<2x16xf32>
    %43 = vector.shape_cast %42 : vector<2x16xf32> to vector<2x16x1xf32>
    %44 = tpu.reciprocal %43 : vector<2x16x1xf32> -> vector<2x16x1xf32>
    %45 = vector.broadcast %44 : vector<2x16x1xf32> to vector<2x16x16xf32>
    %46 = arith.mulf %41, %45 : vector<2x16x16xf32>
    "tpu.trace_start"() <{level = 10 : i32, message = "bqk,bkd->bqd"}> : () -> ()
    %cst_30 = arith.constant dense<0.000000e+00> : vector<2x16x32xf32>
    %47 = tpu.matmul %46, %31, %cst_30 {dimension_numbers = #tpu.dot_dimension_numbers<[2], [1], [1], [2], [0, 0, 0, 1, 1, 2], [0], [0]>} : vector<2x16x16xf32>, vector<2x16x32xf32>, vector<2x16x32xf32> -> vector<2x16x32xf32>
    "tpu.trace_stop"() : () -> ()
    %48 = vector.extract_strided_slice %7 {offsets = [0, 0, 32], sizes = [2, 16, 32], strides = [1, 1, 1]} : vector<2x16x128xf32> to vector<2x16x32xf32>
    %49 = vector.extract_strided_slice %13 {offsets = [0, 0, 32], sizes = [2, 16, 32], strides = [1, 1, 1]} : vector<2x16x128xf32> to vector<2x16x32xf32>
    %50 = vector.extract_strided_slice %19 {offsets = [0, 0, 32], sizes = [2, 16, 32], strides = [1, 1, 1]} : vector<2x16x128xf32> to vector<2x16x32xf32>
    "tpu.trace_start"() <{level = 10 : i32, message = "bqd,bkd->bqk"}> : () -> ()
    %cst_31 = arith.constant dense<0.000000e+00> : vector<2x16x16xf32>
    %51 = tpu.matmul %48, %49, %cst_31 {dimension_numbers = #tpu.dot_dimension_numbers<[2], [2], [1], [1], [0, 0, 0, 1, 1, 1], [0], [0]>} : vector<2x16x32xf32>, vector<2x16x32xf32>, vector<2x16x16xf32> -> vector<2x16x16xf32>
    "tpu.trace_stop"() : () -> ()
    %cst_32 = arith.constant 0.176776692 : f32
    %52 = vector.broadcast %cst_32 : f32 to vector<2x16x16xf32>
    %53 = arith.mulf %51, %52 : vector<2x16x16xf32>
    %54 = vector.broadcast %25 : vector<2x1x16xf32> to vector<2x16x16xf32>
    %55 = arith.addf %53, %54 : vector<2x16x16xf32>
    %cst_33 = arith.constant dense<0xFF800000> : vector<2x16xf32>
    %56 = vector.multi_reduction <maximumf>, %55, %cst_33 [2] : vector<2x16x16xf32> to vector<2x16xf32>
    %57 = vector.shape_cast %56 : vector<2x16xf32> to vector<2x16x1xf32>
    %58 = vector.broadcast %57 : vector<2x16x1xf32> to vector<2x16x16xf32>
    %59 = arith.subf %55, %58 : vector<2x16x16xf32>
    %60 = math.exp %59 : vector<2x16x16xf32>
    %cst_34 = arith.constant dense<0.000000e+00> : vector<2x16xf32>
    %61 = vector.multi_reduction <add>, %60, %cst_34 [2] : vector<2x16x16xf32> to vector<2x16xf32>
    %62 = vector.shape_cast %61 : vector<2x16xf32> to vector<2x16x1xf32>
    %63 = tpu.reciprocal %62 : vector<2x16x1xf32> -> vector<2x16x1xf32>
    %64 = vector.broadcast %63 : vector<2x16x1xf32> to vector<2x16x16xf32>
    %65 = arith.mulf %60, %64 : vector<2x16x16xf32>
    "tpu.trace_start"() <{level = 10 : i32, message = "bqk,bkd->bqd"}> : () -> ()
    %cst_35 = arith.constant dense<0.000000e+00> : vector<2x16x32xf32>
    %66 = tpu.matmul %65, %50, %cst_35 {dimension_numbers = #tpu.dot_dimension_numbers<[2], [1], [1], [2], [0, 0, 0, 1, 1, 2], [0], [0]>} : vector<2x16x16xf32>, vector<2x16x32xf32>, vector<2x16x32xf32> -> vector<2x16x32xf32>
    "tpu.trace_stop"() : () -> ()
    %67 = vector.extract_strided_slice %7 {offsets = [0, 0, 64], sizes = [2, 16, 32], strides = [1, 1, 1]} : vector<2x16x128xf32> to vector<2x16x32xf32>
    %68 = vector.extract_strided_slice %13 {offsets = [0, 0, 64], sizes = [2, 16, 32], strides = [1, 1, 1]} : vector<2x16x128xf32> to vector<2x16x32xf32>
    %69 = vector.extract_strided_slice %19 {offsets = [0, 0, 64], sizes = [2, 16, 32], strides = [1, 1, 1]} : vector<2x16x128xf32> to vector<2x16x32xf32>
    "tpu.trace_start"() <{level = 10 : i32, message = "bqd,bkd->bqk"}> : () -> ()
    %cst_36 = arith.constant dense<0.000000e+00> : vector<2x16x16xf32>
    %70 = tpu.matmul %67, %68, %cst_36 {dimension_numbers = #tpu.dot_dimension_numbers<[2], [2], [1], [1], [0, 0, 0, 1, 1, 1], [0], [0]>} : vector<2x16x32xf32>, vector<2x16x32xf32>, vector<2x16x16xf32> -> vector<2x16x16xf32>
    "tpu.trace_stop"() : () -> ()
    %cst_37 = arith.constant 0.176776692 : f32
    %71 = vector.broadcast %cst_37 : f32 to vector<2x16x16xf32>
    %72 = arith.mulf %70, %71 : vector<2x16x16xf32>
    %73 = vector.broadcast %25 : vector<2x1x16xf32> to vector<2x16x16xf32>
    %74 = arith.addf %72, %73 : vector<2x16x16xf32>
    %cst_38 = arith.constant dense<0xFF800000> : vector<2x16xf32>
    %75 = vector.multi_reduction <maximumf>, %74, %cst_38 [2] : vector<2x16x16xf32> to vector<2x16xf32>
    %76 = vector.shape_cast %75 : vector<2x16xf32> to vector<2x16x1xf32>
    %77 = vector.broadcast %76 : vector<2x16x1xf32> to vector<2x16x16xf32>
    %78 = arith.subf %74, %77 : vector<2x16x16xf32>
    %79 = math.exp %78 : vector<2x16x16xf32>
    %cst_39 = arith.constant dense<0.000000e+00> : vector<2x16xf32>
    %80 = vector.multi_reduction <add>, %79, %cst_39 [2] : vector<2x16x16xf32> to vector<2x16xf32>
    %81 = vector.shape_cast %80 : vector<2x16xf32> to vector<2x16x1xf32>
    %82 = tpu.reciprocal %81 : vector<2x16x1xf32> -> vector<2x16x1xf32>
    %83 = vector.broadcast %82 : vector<2x16x1xf32> to vector<2x16x16xf32>
    %84 = arith.mulf %79, %83 : vector<2x16x16xf32>
    "tpu.trace_start"() <{level = 10 : i32, message = "bqk,bkd->bqd"}> : () -> ()
    %cst_40 = arith.constant dense<0.000000e+00> : vector<2x16x32xf32>
    %85 = tpu.matmul %84, %69, %cst_40 {dimension_numbers = #tpu.dot_dimension_numbers<[2], [1], [1], [2], [0, 0, 0, 1, 1, 2], [0], [0]>} : vector<2x16x16xf32>, vector<2x16x32xf32>, vector<2x16x32xf32> -> vector<2x16x32xf32>
    "tpu.trace_stop"() : () -> ()
    %86 = vector.extract_strided_slice %7 {offsets = [0, 0, 96], sizes = [2, 16, 32], strides = [1, 1, 1]} : vector<2x16x128xf32> to vector<2x16x32xf32>
    %87 = vector.extract_strided_slice %13 {offsets = [0, 0, 96], sizes = [2, 16, 32], strides = [1, 1, 1]} : vector<2x16x128xf32> to vector<2x16x32xf32>
    %88 = vector.extract_strided_slice %19 {offsets = [0, 0, 96], sizes = [2, 16, 32], strides = [1, 1, 1]} : vector<2x16x128xf32> to vector<2x16x32xf32>
    "tpu.trace_start"() <{level = 10 : i32, message = "bqd,bkd->bqk"}> : () -> ()
    %cst_41 = arith.constant dense<0.000000e+00> : vector<2x16x16xf32>
    %89 = tpu.matmul %86, %87, %cst_41 {dimension_numbers = #tpu.dot_dimension_numbers<[2], [2], [1], [1], [0, 0, 0, 1, 1, 1], [0], [0]>} : vector<2x16x32xf32>, vector<2x16x32xf32>, vector<2x16x16xf32> -> vector<2x16x16xf32>
    "tpu.trace_stop"() : () -> ()
    %cst_42 = arith.constant 0.176776692 : f32
    %90 = vector.broadcast %cst_42 : f32 to vector<2x16x16xf32>
    %91 = arith.mulf %89, %90 : vector<2x16x16xf32>
    %92 = vector.broadcast %25 : vector<2x1x16xf32> to vector<2x16x16xf32>
    %93 = arith.addf %91, %92 : vector<2x16x16xf32>
    %cst_43 = arith.constant dense<0xFF800000> : vector<2x16xf32>
    %94 = vector.multi_reduction <maximumf>, %93, %cst_43 [2] : vector<2x16x16xf32> to vector<2x16xf32>
    %95 = vector.shape_cast %94 : vector<2x16xf32> to vector<2x16x1xf32>
    %96 = vector.broadcast %95 : vector<2x16x1xf32> to vector<2x16x16xf32>
    %97 = arith.subf %93, %96 : vector<2x16x16xf32>
    %98 = math.exp %97 : vector<2x16x16xf32>
    %cst_44 = arith.constant dense<0.000000e+00> : vector<2x16xf32>
    %99 = vector.multi_reduction <add>, %98, %cst_44 [2] : vector<2x16x16xf32> to vector<2x16xf32>
    %100 = vector.shape_cast %99 : vector<2x16xf32> to vector<2x16x1xf32>
    %101 = tpu.reciprocal %100 : vector<2x16x1xf32> -> vector<2x16x1xf32>
    %102 = vector.broadcast %101 : vector<2x16x1xf32> to vector<2x16x16xf32>
    %103 = arith.mulf %98, %102 : vector<2x16x16xf32>
    "tpu.trace_start"() <{level = 10 : i32, message = "bqk,bkd->bqd"}> : () -> ()
    %cst_45 = arith.constant dense<0.000000e+00> : vector<2x16x32xf32>
    %104 = tpu.matmul %103, %88, %cst_45 {dimension_numbers = #tpu.dot_dimension_numbers<[2], [1], [1], [2], [0, 0, 0, 1, 1, 2], [0], [0]>} : vector<2x16x16xf32>, vector<2x16x32xf32>, vector<2x16x32xf32> -> vector<2x16x32xf32>
    "tpu.trace_stop"() : () -> ()
    %105 = tpu.concatenate %47, %66, %85, %104 in 2 : vector<2x16x32xf32>, vector<2x16x32xf32>, vector<2x16x32xf32>, vector<2x16x32xf32> -> vector<2x16x128xf32>
    %106 = vector.shape_cast %105 : vector<2x16x128xf32> to vector<32x128xf32>
    %c0_46 = arith.constant 0 : index
    %c0_47 = arith.constant 0 : index
    %107 = vector.load %arg20[%c0_46, %c0_47] : memref<32x128xf32, #tpu.memory_space<vmem>>, vector<32x128xf32>
    %cst_48 = arith.constant dense<0.000000e+00> : vector<32x128xf32>
    %108 = tpu.matmul %106, %26, %cst_48 {dimension_numbers = #tpu.dot_dimension_numbers<[1], [0], [0], [1], [0, 0, 1, 1], [], []>} : vector<32x128xf32>, vector<128x128xf32>, vector<32x128xf32> -> vector<32x128xf32>
    %109 = arith.addf %107, %108 : vector<32x128xf32>
    %c0_49 = arith.constant 0 : index
    %c0_50 = arith.constant 0 : index
    %110 = vector.load %arg20[%c0_49, %c0_50] : memref<32x128xf32, #tpu.memory_space<vmem>>, vector<32x128xf32>
    tpu.vector_store %arg20[%c0_49, %c0_50], %109 {strides = array<i32>} : memref<32x128xf32, #tpu.memory_space<vmem>>, vector<32x128xf32>,
    %c0_51 = arith.constant 0 : index
    %c0_52 = arith.constant 0 : index
    %111 = vector.load %arg20[%c0_51, %c0_52] : memref<32x128xf32, #tpu.memory_space<vmem>>, vector<32x128xf32>
    %c0_53 = arith.constant 0 : index
    %c0_54 = arith.constant 0 : index
    %112 = vector.load %arg10[%c0_53, %c0_54] : memref<1x128xf32, #tpu.memory_space<vmem>>, vector<1x128xf32>
    %113 = vector.broadcast %112 : vector<1x128xf32> to vector<32x128xf32>
    %114 = arith.addf %111, %113 : vector<32x128xf32>
    %115 = arith.addf %1, %114 : vector<32x128xf32>
    %cst_55 = arith.constant dense<0.000000e+00> : vector<32xf32>
    %116 = vector.multi_reduction <add>, %115, %cst_55 [1] : vector<32x128xf32> to vector<32xf32>
    %117 = vector.shape_cast %116 : vector<32xf32> to vector<32x1xf32>
    %cst_56 = arith.constant 1.280000e+02 : f32
    %118 = vector.broadcast %cst_56 : f32 to vector<32x1xf32>
    %119 = arith.divf %117, %118 : vector<32x1xf32>
    %120 = arith.mulf %115, %115 : vector<32x128xf32>
    %cst_57 = arith.constant dense<0.000000e+00> : vector<32xf32>
    %121 = vector.multi_reduction <add>, %120, %cst_57 [1] : vector<32x128xf32> to vector<32xf32>
    %122 = vector.shape_cast %121 : vector<32xf32> to vector<32x1xf32>
    %cst_58 = arith.constant 1.280000e+02 : f32
    %123 = vector.broadcast %cst_58 : f32 to vector<32x1xf32>
    %124 = arith.divf %122, %123 : vector<32x1xf32>
    %125 = arith.mulf %119, %119 : vector<32x1xf32>
    %126 = arith.subf %124, %125 : vector<32x1xf32>
    %cst_59 = arith.constant 0.000000e+00 : f32
    %127 = vector.broadcast %cst_59 : f32 to vector<32x1xf32>
    %128 = arith.maximumf %126, %127 : vector<32x1xf32>
    %129 = vector.broadcast %119 : vector<32x1xf32> to vector<32x128xf32>
    %130 = arith.subf %115, %129 : vector<32x128xf32>
    %cst_60 = arith.constant 9.99999974E-6 : f32
    %131 = vector.broadcast %cst_60 : f32 to vector<32x1xf32>
    %132 = arith.addf %128, %131 : vector<32x1xf32>
    %133 = math.rsqrt %132 : vector<32x1xf32>
    %134 = vector.broadcast %133 : vector<32x1xf32> to vector<32x128xf32>
    %135 = arith.mulf %130, %134 : vector<32x128xf32>
    %c0_61 = arith.constant 0 : index
    %c0_62 = arith.constant 0 : index
    %136 = vector.load %arg11[%c0_61, %c0_62] : memref<1x128xf32, #tpu.memory_space<vmem>>, vector<1x128xf32>
    %137 = vector.broadcast %136 : vector<1x128xf32> to vector<32x128xf32>
    %138 = arith.mulf %135, %137 : vector<32x128xf32>
    %c0_63 = arith.constant 0 : index
    %c0_64 = arith.constant 0 : index
    %139 = vector.load %arg12[%c0_63, %c0_64] : memref<1x128xf32, #tpu.memory_space<vmem>>, vector<1x128xf32>
    %140 = vector.broadcast %139 : vector<1x128xf32> to vector<32x128xf32>
    %141 = arith.addf %138, %140 : vector<32x128xf32>
    %c0_65 = arith.constant 0 : index
    %c0_66 = arith.constant 0 : index
    %142 = vector.load %arg13[%c0_65, %c0_66] : memref<128x256xf32, #tpu.memory_space<vmem>>, vector<128x256xf32>
    %cst_67 = arith.constant dense<0.000000e+00> : vector<32x256xf32>
    %143 = tpu.matmul %141, %142, %cst_67 {dimension_numbers = #tpu.dot_dimension_numbers<[1], [0], [0], [1], [0, 0, 1, 1], [], []>} : vector<32x128xf32>, vector<128x256xf32>, vector<32x256xf32> -> vector<32x256xf32>
    %c0_68 = arith.constant 0 : index
    %c0_69 = arith.constant 0 : index
    %144 = vector.load %arg14[%c0_68, %c0_69] : memref<1x256xf32, #tpu.memory_space<vmem>>, vector<1x256xf32>
    %145 = vector.broadcast %144 : vector<1x256xf32> to vector<32x256xf32>
    %146 = arith.addf %143, %145 : vector<32x256xf32>
    %cst_70 = arith.constant 0.000000e+00 : f32
    %147 = vector.broadcast %cst_70 : f32 to vector<32x256xf32>
    %148 = arith.maximumf %146, %147 : vector<32x256xf32>
    %c0_71 = arith.constant 0 : index
    %c0_72 = arith.constant 0 : index
    %149 = vector.load %arg15[%c0_71, %c0_72] : memref<256x128xf32, #tpu.memory_space<vmem>>, vector<256x128xf32>
    %cst_73 = arith.constant dense<0.000000e+00> : vector<32x128xf32>
    %150 = tpu.matmul %148, %149, %cst_73 {dimension_numbers = #tpu.dot_dimension_numbers<[1], [0], [0], [1], [0, 0, 1, 1], [], []>} : vector<32x256xf32>, vector<256x128xf32>, vector<32x128xf32> -> vector<32x128xf32>
    %c0_74 = arith.constant 0 : index
    %c0_75 = arith.constant 0 : index
    %151 = vector.load %arg16[%c0_74, %c0_75] : memref<1x128xf32, #tpu.memory_space<vmem>>, vector<1x128xf32>
    %152 = vector.broadcast %151 : vector<1x128xf32> to vector<32x128xf32>
    %153 = arith.addf %150, %152 : vector<32x128xf32>
    %154 = arith.addf %141, %153 : vector<32x128xf32>
    %cst_76 = arith.constant dense<0.000000e+00> : vector<32xf32>
    %155 = vector.multi_reduction <add>, %154, %cst_76 [1] : vector<32x128xf32> to vector<32xf32>
    %156 = vector.shape_cast %155 : vector<32xf32> to vector<32x1xf32>
    %cst_77 = arith.constant 1.280000e+02 : f32
    %157 = vector.broadcast %cst_77 : f32 to vector<32x1xf32>
    %158 = arith.divf %156, %157 : vector<32x1xf32>
    %159 = arith.mulf %154, %154 : vector<32x128xf32>
    %cst_78 = arith.constant dense<0.000000e+00> : vector<32xf32>
    %160 = vector.multi_reduction <add>, %159, %cst_78 [1] : vector<32x128xf32> to vector<32xf32>
    %161 = vector.shape_cast %160 : vector<32xf32> to vector<32x1xf32>
    %cst_79 = arith.constant 1.280000e+02 : f32
    %162 = vector.broadcast %cst_79 : f32 to vector<32x1xf32>
    %163 = arith.divf %161, %162 : vector<32x1xf32>
    %164 = arith.mulf %158, %158 : vector<32x1xf32>
    %165 = arith.subf %163, %164 : vector<32x1xf32>
    %cst_80 = arith.constant 0.000000e+00 : f32
    %166 = vector.broadcast %cst_80 : f32 to vector<32x1xf32>
    %167 = arith.maximumf %165, %166 : vector<32x1xf32>
    %168 = vector.broadcast %158 : vector<32x1xf32> to vector<32x128xf32>
    %169 = arith.subf %154, %168 : vector<32x128xf32>
    %cst_81 = arith.constant 9.99999974E-6 : f32
    %170 = vector.broadcast %cst_81 : f32 to vector<32x1xf32>
    %171 = arith.addf %167, %170 : vector<32x1xf32>
    %172 = math.rsqrt %171 : vector<32x1xf32>
    %173 = vector.broadcast %172 : vector<32x1xf32> to vector<32x128xf32>
    %174 = arith.mulf %169, %173 : vector<32x128xf32>
    %c0_82 = arith.constant 0 : index
    %c0_83 = arith.constant 0 : index
    %175 = vector.load %arg17[%c0_82, %c0_83] : memref<1x128xf32, #tpu.memory_space<vmem>>, vector<1x128xf32>
    %176 = vector.broadcast %175 : vector<1x128xf32> to vector<32x128xf32>
    %177 = arith.mulf %174, %176 : vector<32x128xf32>
    %c0_84 = arith.constant 0 : index
    %c0_85 = arith.constant 0 : index
    %178 = vector.load %arg18[%c0_84, %c0_85] : memref<1x128xf32, #tpu.memory_space<vmem>>, vector<1x128xf32>
    %179 = vector.broadcast %178 : vector<1x128xf32> to vector<32x128xf32>
    %180 = arith.addf %177, %179 : vector<32x128xf32>
    %181 = vector.shape_cast %180 : vector<32x128xf32> to vector<2x16x128xf32>
    %c0_86 = arith.constant 0 : index
    %c0_87 = arith.constant 0 : index
    %c0_88 = arith.constant 0 : index
    %182 = vector.load %arg19[%c0_86, %c0_87, %c0_88] : memref<2x16x128xf32, #tpu.memory_space<vmem>>, vector<2x16x128xf32>
    tpu.vector_store %arg19[%c0_86, %c0_87, %c0_88], %181 {strides = array<i32>} : memref<2x16x128xf32, #tpu.memory_space<vmem>>, vector<2x16x128xf32>,
    return
  }
  func.func @transform_0(%arg0: i32) -> (i32, i32, i32) {
    %c0_i32 = arith.constant 0 : i32
    %c0_i32_0 = arith.constant 0 : i32
    %c0_i32_1 = arith.constant 0 : i32
    return %arg0, %c0_i32, %c0_i32_0 : i32, i32, i32
  }
  func.func @transform_1(%arg0: i32) -> (i32, i32, i32) {
    %c0_i32 = arith.constant 0 : i32
    %c0_i32_0 = arith.constant 0 : i32
    %c0_i32_1 = arith.constant 0 : i32
    return %arg0, %c0_i32, %c0_i32_0 : i32, i32, i32
  }
  func.func @transform_2(%arg0: i32) -> (i32, i32) {
    %c0_i32 = arith.constant 0 : i32
    %c0_i32_0 = arith.constant 0 : i32
    %c0_i32_1 = arith.constant 0 : i32
    return %c0_i32, %c0_i32_0 : i32, i32
  }
  func.func @transform_3(%arg0: i32) -> (i32, i32) {
    %c0_i32 = arith.constant 0 : i32
    %c0_i32_0 = arith.constant 0 : i32
    %c0_i32_1 = arith.constant 0 : i32
    return %c0_i32, %c0_i32_0 : i32, i32
  }
  func.func @transform_4(%arg0: i32) -> (i32, i32) {
    %c0_i32 = arith.constant 0 : i32
    %c0_i32_0 = arith.constant 0 : i32
    %c0_i32_1 = arith.constant 0 : i32
    return %c0_i32, %c0_i32_0 : i32, i32
  }
  func.func @transform_5(%arg0: i32) -> (i32, i32) {
    %c0_i32 = arith.constant 0 : i32
    %c0_i32_0 = arith.constant 0 : i32
    %c0_i32_1 = arith.constant 0 : i32
    return %c0_i32, %c0_i32_0 : i32, i32
  }
  func.func @transform_6(%arg0: i32) -> (i32, i32) {
    %c0_i32 = arith.constant 0 : i32
    %c0_i32_0 = arith.constant 0 : i32
    %c0_i32_1 = arith.constant 0 : i32
    return %c0_i32, %c0_i32_0 : i32, i32
  }
  func.func @transform_7(%arg0: i32) -> (i32, i32) {
    %c0_i32 = arith.constant 0 : i32
    %c0_i32_0 = arith.constant 0 : i32
    %c0_i32_1 = arith.constant 0 : i32
    return %c0_i32, %c0_i32_0 : i32, i32
  }
  func.func @transform_8(%arg0: i32) -> (i32, i32) {
    %c0_i32 = arith.constant 0 : i32
    %c0_i32_0 = arith.constant 0 : i32
    %c0_i32_1 = arith.constant 0 : i32
    return %c0_i32, %c0_i32_0 : i32, i32
  }
  func.func @transform_9(%arg0: i32) -> (i32, i32) {
    %c0_i32 = arith.constant 0 : i32
    %c0_i32_0 = arith.constant 0 : i32
    %c0_i32_1 = arith.constant 0 : i32
    return %c0_i32, %c0_i32_0 : i32, i32
  }
  func.func @transform_10(%arg0: i32) -> (i32, i32) {
    %c0_i32 = arith.constant 0 : i32
    %c0_i32_0 = arith.constant 0 : i32
    %c0_i32_1 = arith.constant 0 : i32
    return %c0_i32, %c0_i32_0 : i32, i32
  }
  func.func @transform_11(%arg0: i32) -> (i32, i32) {
    %c0_i32 = arith.constant 0 : i32
    %c0_i32_0 = arith.constant 0 : i32
    %c0_i32_1 = arith.constant 0 : i32
    return %c0_i32, %c0_i32_0 : i32, i32
  }
  func.func @transform_12(%arg0: i32) -> (i32, i32) {
    %c0_i32 = arith.constant 0 : i32
    %c0_i32_0 = arith.constant 0 : i32
    %c0_i32_1 = arith.constant 0 : i32
    return %c0_i32, %c0_i32_0 : i32, i32
  }
  func.func @transform_13(%arg0: i32) -> (i32, i32) {
    %c0_i32 = arith.constant 0 : i32
    %c0_i32_0 = arith.constant 0 : i32
    %c0_i32_1 = arith.constant 0 : i32
    return %c0_i32, %c0_i32_0 : i32, i32
  }
  func.func @transform_14(%arg0: i32) -> (i32, i32) {
    %c0_i32 = arith.constant 0 : i32
    %c0_i32_0 = arith.constant 0 : i32
    %c0_i32_1 = arith.constant 0 : i32
    return %c0_i32, %c0_i32_0 : i32, i32
  }
  func.func @transform_15(%arg0: i32) -> (i32, i32) {
    %c0_i32 = arith.constant 0 : i32
    %c0_i32_0 = arith.constant 0 : i32
    %c0_i32_1 = arith.constant 0 : i32
    return %c0_i32, %c0_i32_0 : i32, i32
  }
  func.func @transform_16(%arg0: i32) -> (i32, i32) {
    %c0_i32 = arith.constant 0 : i32
    %c0_i32_0 = arith.constant 0 : i32
    %c0_i32_1 = arith.constant 0 : i32
    return %c0_i32, %c0_i32_0 : i32, i32
  }
  func.func @transform_17(%arg0: i32) -> (i32, i32) {
    %c0_i32 = arith.constant 0 : i32
    %c0_i32_0 = arith.constant 0 : i32
    %c0_i32_1 = arith.constant 0 : i32
    return %c0_i32, %c0_i32_0 : i32, i32
  }
  func.func @transform_18(%arg0: i32) -> (i32, i32, i32) {
    %c0_i32 = arith.constant 0 : i32
    %c0_i32_0 = arith.constant 0 : i32
    %c0_i32_1 = arith.constant 0 : i32
    return %arg0, %c0_i32, %c0_i32_0 : i32, i32, i32
  }
}

</mosaic_0001>

<llo_original>
// kernel: tpu_custom_call.1
$region0: #{tpu_custom_call.1}
  #allocation0 [shape = 'u32[]', space=smem, size = 0x4, offset = 0x4, fixed_abs, tag = 'smem constant byte address 0x4 - core index']
  #allocation1 [shape = 'u32[144,128]{1,0:T(1,128)}', space=vmem, size = 0x12000, scoped, tag = 'internal scratch']
  #allocation2 [shape = 'f32[32,128]{1,0:T(8,128)}', space=vmem, size = 0x4000, scoped, tag = 'scratch operand']
  %s0 = inlined_call_operand.hbm [shape: f32[4,16,128], index: 0, kind: input, shape index: {}]
  %s1 = inlined_call_operand.hbm [shape: s32[4,1,16], index: 1, kind: input, shape index: {}]
  %s2 = inlined_call_operand.hbm [shape: f32[128,128], index: 2, kind: input, shape index: {}]
  %s3 = inlined_call_operand.vmem [shape: f32[1,128], index: 3, kind: input, shape index: {}]
  %s4 = inlined_call_operand.hbm [shape: f32[128,128], index: 4, kind: input, shape index: {}]
  %s5 = inlined_call_operand.vmem [shape: f32[1,128], index: 5, kind: input, shape index: {}]
  %s6 = inlined_call_operand.hbm [shape: f32[128,128], index: 6, kind: input, shape index: {}]
  %s7 = inlined_call_operand.vmem [shape: f32[1,128], index: 7, kind: input, shape index: {}]
  %s8 = inlined_call_operand.hbm [shape: f32[128,128], index: 8, kind: input, shape index: {}]
  %s9 = inlined_call_operand.vmem [shape: f32[1,128], index: 9, kind: input, shape index: {}]
  %s10 = inlined_call_operand.vmem [shape: f32[1,128], index: 10, kind: input, shape index: {}]
  %s11 = inlined_call_operand.vmem [shape: f32[1,128], index: 11, kind: input, shape index: {}]
  %s12 = inlined_call_operand.hbm [shape: f32[128,256], index: 12, kind: input, shape index: {}]
  %s13 = inlined_call_operand.vmem [shape: f32[1,256], index: 13, kind: input, shape index: {}]
  %s14 = inlined_call_operand.hbm [shape: f32[256,128], index: 14, kind: input, shape index: {}]
  %s15 = inlined_call_operand.vmem [shape: f32[1,128], index: 15, kind: input, shape index: {}]
  %s16 = inlined_call_operand.vmem [shape: f32[1,128], index: 16, kind: input, shape index: {}]
  %s17 = inlined_call_operand.vmem [shape: f32[1,128], index: 17, kind: input, shape index: {}]
  %s18 = inlined_call_operand.hbm [shape: f32[4,16,128], index: 18, kind: output, shape index: {}]
  %s19 = sld [smem:[#allocation0]]
  $region137: #{tpu_custom_call.1} parent=0
    _
  %s21 = ssub.s32 1, %s19
  %s22 = scalar_select 0, %s21, %s19
  $region1: #{tpu_custom_call.1} parent=0
    #allocation3 [shape = 'u8[32768]{0}', space=vmem, size = 0x8000, scoped, tag = 'input window, operand 0']
    #allocation4 [shape = 's32[2]{0}', space=sflag, size = 0x8, scoped, tag = 'scoped memory for tpu_custom_call.1']
    #allocation5 [shape = 's32[2]{0}', space=sflag, size = 0x8, scoped, tag = 'scoped memory for tpu_custom_call.1']
    #allocation6 [shape = 'u8[2048]{0}', space=vmem, size = 0x800, scoped, tag = 'input window, operand 1']
    #allocation7 [shape = 's32[2]{0}', space=sflag, size = 0x8, scoped, tag = 'scoped memory for tpu_custom_call.1']
    #allocation8 [shape = 'u8[65536]{0}', space=vmem, size = 0x10000, scoped, tag = 'input window, operand 2, single buffered']
    #allocation9 [shape = 'u8[65536]{0}', space=vmem, size = 0x10000, scoped, tag = 'input window, operand 4, single buffered']
    #allocation10 [shape = 's32[1]{0}', space=sflag, size = 0x4, scoped, tag = 'scoped memory for tpu_custom_call.1']
    #allocation11 [shape = 'u8[65536]{0}', space=vmem, size = 0x10000, scoped, tag = 'input window, operand 6, single buffered']
    #allocation12 [shape = 'u8[65536]{0}', space=vmem, size = 0x10000, scoped, tag = 'input window, operand 8, single buffered']
    #allocation13 [shape = 's32[1]{0}', space=sflag, size = 0x4, scoped, tag = 'scoped memory for tpu_custom_call.1']
    #allocation14 [shape = 'u8[131072]{0}', space=vmem, size = 0x20000, scoped, tag = 'input window, operand 12, single buffered']
    #allocation15 [shape = 'u8[131072]{0}', space=vmem, size = 0x20000, scoped, tag = 'input window, operand 14, single buffered']
    #allocation16 [shape = 's32[1]{0}', space=sflag, size = 0x4, scoped, tag = 'scoped memory for tpu_custom_call.1']
    #allocation17 [shape = 'u8[32768]{0}', space=vmem, size = 0x8000, scoped, tag = 'output window, operand 0']
    %23 = vsyncpa [#allocation4], 0
    %s24 = scalar_lea.sflag [#allocation4], 1
    %25 = vsyncpa %s24, 0
    %26 = vsyncpa [#allocation7], 0
    %s27 = scalar_lea.sflag [#allocation7], 1
    %28 = vsyncpa %s27, 0
    %29 = vsyncpa [#allocation10], 0
    %30 = vsyncpa [#allocation13], 0
    %31 = vsyncpa [#allocation16], 0
    %32 = vsyncpa [#allocation5], 0
    %s33 = scalar_lea.sflag [#allocation5], 1
    %34 = vsyncpa %s33, 0
    loop: start=0, step=1, limit=4
    $region2: #{tpu_custom_call.1} parent=1 // loop_pre_header
      _
    $region3: #{tpu_custom_call.1} parent=1 // loop_header
      %s36 = sphi 0, %s40
      %p37 = scmp.ge.s32.totalorder %s36, 4
      %s46 = sphi 0, %s48
      %s49 = sphi 0, %s46
      %s50 = sphi 0, %s49
      %s66 = sphi 0, %s50
      %s72 = sphi 0, %s74
      %s75 = sphi 0, %s72
      %s76 = sphi 0, %s75
      %s92 = sphi 0, %s76
      %s96 = sphi 0, %s96
      %s98 = sphi 0, %s96
      %s99 = sphi 0, %s98
      %s113 = sphi 0, %s99
      %s117 = sphi 0, %s117
      %s119 = sphi 0, %s117
      %s120 = sphi 0, %s119
      %s134 = sphi 0, %s120
      %s138 = sphi 0, %s138
      %s140 = sphi 0, %s138
      %s141 = sphi 0, %s140
      %s155 = sphi 0, %s141
      %s159 = sphi 0, %s159
      %s161 = sphi 0, %s159
      %s162 = sphi 0, %s161
      %s176 = sphi 0, %s162
      %s180 = sphi 0, %s180
      %s182 = sphi 0, %s180
      %s183 = sphi 0, %s182
      %s197 = sphi 0, %s183
      %s201 = sphi 0, %s201
      %s203 = sphi 0, %s201
      %s204 = sphi 0, %s203
      %s218 = sphi 0, %s204
      %s222 = sphi 0, %s222
      %s224 = sphi 0, %s222
      %s225 = sphi 0, %s224
      %s239 = sphi 0, %s225
      %s243 = sphi 0, %s243
      %s245 = sphi 0, %s243
      %s246 = sphi 0, %s245
      %s260 = sphi 0, %s246
      %s264 = sphi 0, %s264
      %s266 = sphi 0, %s264
      %s267 = sphi 0, %s266
      %s281 = sphi 0, %s267
      %s285 = sphi 0, %s285
      %s287 = sphi 0, %s285
      %s288 = sphi 0, %s287
      %s302 = sphi 0, %s288
      %s306 = sphi 0, %s306
      %s308 = sphi 0, %s306
      %s309 = sphi 0, %s308
      %s323 = sphi 0, %s309
      %s327 = sphi 0, %s327
      %s329 = sphi 0, %s327
      %s330 = sphi 0, %s329
      %s344 = sphi 0, %s330
      %s348 = sphi 0, %s348
      %s350 = sphi 0, %s348
      %s351 = sphi 0, %s350
      %s365 = sphi 0, %s351
      %s369 = sphi 0, %s369
      %s371 = sphi 0, %s369
      %s372 = sphi 0, %s371
      %s386 = sphi 0, %s372
      %s390 = sphi 0, %s390
      %s392 = sphi 0, %s390
      %s393 = sphi 0, %s392
      %s407 = sphi 0, %s393
      %s411 = sphi 0, %s411
      %s413 = sphi 0, %s411
      %s414 = sphi 0, %s413
      %s428 = sphi 0, %s414
      %s434 = sphi 0, %s436
      %s437 = sphi 0, %s434
      %s438 = sphi 0, %s437
      %s454 = sphi 0, %s438
    $region4: #{tpu_custom_call.1} parent=1 // loop_header_branch
      %39 = sbr.rel (%p37) target = $region8
    $region5: #{tpu_custom_call.1} parent=1 // loop_body
      %s41 = ssub.s32 %s36, 1
      %s42 = ssub.s32 %s36, 2
      %s43 = sadd.s32 %s36, 1
      %s44 = ssub.s32 %s36, %s43
      %p45 = scmp.eq.s32.totalorder %s44, 0
      %s47 = sadd.s32 %s46, 1
      %s48 = scalar_select %p45, %s46, %s47
      %p51 = pneg %p45
      %p52 = scmp.eq.s32.totalorder %s36, 1
      %p53 = por %p51, %p52
      %p54 = scmp.ne.s32.totalorder %s46, %s49
      %p55 = scmp.eq.s32.totalorder %s36, 0
      %p56 = por %p54, %p55
      %p57 = scmp.ne.s32.totalorder %s46, %s49
      %p58 = scmp.eq.s32.totalorder %s41, 1
      %p59 = por %p57, %p58
      %p60 = scmp.ne.s32.totalorder %s49, %s50
      %p61 = scmp.eq.s32.totalorder %s41, 0
      %p62 = por %p60, %p61
      %p63 = scmp.ne.s32.totalorder %s49, %s50
      %p64 = scmp.eq.s32.totalorder %s42, 1
      %p65 = por %p63, %p64
      %p67 = scmp.ne.s32.totalorder %s50, %s66
      %p68 = scmp.eq.s32.totalorder %s42, 0
      %p69 = por %p67, %p68
      %s70 = ssub.s32 %s36, %s43
      %p71 = scmp.eq.s32.totalorder %s70, 0
      %s73 = sadd.s32 %s72, 1
      %s74 = scalar_select %p71, %s72, %s73
      %p77 = pneg %p71
      %p78 = scmp.eq.s32.totalorder %s36, 1
      %p79 = por %p77, %p78
      %p80 = scmp.ne.s32.totalorder %s72, %s75
      %p81 = scmp.eq.s32.totalorder %s36, 0
      %p82 = por %p80, %p81
      %p83 = scmp.ne.s32.totalorder %s72, %s75
      %p84 = scmp.eq.s32.totalorder %s41, 1
      %p85 = por %p83, %p84
      %p86 = scmp.ne.s32.totalorder %s75, %s76
      %p87 = scmp.eq.s32.totalorder %s41, 0
      %p88 = por %p86, %p87
      %p89 = scmp.ne.s32.totalorder %s75, %s76
      %p90 = scmp.eq.s32.totalorder %s42, 1
      %p91 = por %p89, %p90
      %p93 = scmp.ne.s32.totalorder %s76, %s92
      %p94 = scmp.eq.s32.totalorder %s42, 0
      %p95 = por %p93, %p94
      %s97 = sadd.s32 %s96, 1
      %p100 = scmp.eq.s32.totalorder %s36, 1
      %p101 = scmp.ne.s32.totalorder %s96, %s98
      %p102 = scmp.eq.s32.totalorder %s36, 0
      %p103 = por %p101, %p102
      %p104 = scmp.ne.s32.totalorder %s96, %s98
      %p105 = scmp.eq.s32.totalorder %s41, 1
      %p106 = por %p104, %p105
      %p107 = scmp.ne.s32.totalorder %s98, %s99
      %p108 = scmp.eq.s32.totalorder %s41, 0
      %p109 = por %p107, %p108
      %p110 = scmp.ne.s32.totalorder %s98, %s99
      %p111 = scmp.eq.s32.totalorder %s42, 1
      %p112 = por %p110, %p111
      %p114 = scmp.ne.s32.totalorder %s99, %s113
      %p115 = scmp.eq.s32.totalorder %s42, 0
      %p116 = por %p114, %p115
      %s118 = sadd.s32 %s117, 1
      %p121 = scmp.eq.s32.totalorder %s36, 1
      %p122 = scmp.ne.s32.totalorder %s117, %s119
      %p123 = scmp.eq.s32.totalorder %s36, 0
      %p124 = por %p122, %p123
      %p125 = scmp.ne.s32.totalorder %s117, %s119
      %p126 = scmp.eq.s32.totalorder %s41, 1
      %p127 = por %p125, %p126
      %p128 = scmp.ne.s32.totalorder %s119, %s120
      %p129 = scmp.eq.s32.totalorder %s41, 0
      %p130 = por %p128, %p129
      %p131 = scmp.ne.s32.totalorder %s119, %s120
      %p132 = scmp.eq.s32.totalorder %s42, 1
      %p133 = por %p131, %p132
      %p135 = scmp.ne.s32.totalorder %s120, %s134
      %p136 = scmp.eq.s32.totalorder %s42, 0
      %p137 = por %p135, %p136
      %s139 = sadd.s32 %s138, 1
      %p142 = scmp.eq.s32.totalorder %s36, 1
      %p143 = scmp.ne.s32.totalorder %s138, %s140
      %p144 = scmp.eq.s32.totalorder %s36, 0
      %p145 = por %p143, %p144
      %p146 = scmp.ne.s32.totalorder %s138, %s140
      %p147 = scmp.eq.s32.totalorder %s41, 1
      %p148 = por %p146, %p147
      %p149 = scmp.ne.s32.totalorder %s140, %s141
      %p150 = scmp.eq.s32.totalorder %s41, 0
      %p151 = por %p149, %p150
      %p152 = scmp.ne.s32.totalorder %s140, %s141
      %p153 = scmp.eq.s32.totalorder %s42, 1
      %p154 = por %p152, %p153
      %p156 = scmp.ne.s32.totalorder %s141, %s155
      %p157 = scmp.eq.s32.totalorder %s42, 0
      %p158 = por %p156, %p157
      %s160 = sadd.s32 %s159, 1
      %p163 = scmp.eq.s32.totalorder %s36, 1
      %p164 = scmp.ne.s32.totalorder %s159, %s161
      %p165 = scmp.eq.s32.totalorder %s36, 0
      %p166 = por %p164, %p165
      %p167 = scmp.ne.s32.totalorder %s159, %s161
      %p168 = scmp.eq.s32.totalorder %s41, 1
      %p169 = por %p167, %p168
      %p170 = scmp.ne.s32.totalorder %s161, %s162
      %p171 = scmp.eq.s32.totalorder %s41, 0
      %p172 = por %p170, %p171
      %p173 = scmp.ne.s32.totalorder %s161, %s162
      %p174 = scmp.eq.s32.totalorder %s42, 1
      %p175 = por %p173, %p174
      %p177 = scmp.ne.s32.totalorder %s162, %s176
      %p178 = scmp.eq.s32.totalorder %s42, 0
      %p179 = por %p177, %p178
      %s181 = sadd.s32 %s180, 1
      %p184 = scmp.eq.s32.totalorder %s36, 1
      %p185 = scmp.ne.s32.totalorder %s180, %s182
      %p186 = scmp.eq.s32.totalorder %s36, 0
      %p187 = por %p185, %p186
      %p188 = scmp.ne.s32.totalorder %s180, %s182
      %p189 = scmp.eq.s32.totalorder %s41, 1
      %p190 = por %p188, %p189
      %p191 = scmp.ne.s32.totalorder %s182, %s183
      %p192 = scmp.eq.s32.totalorder %s41, 0
      %p193 = por %p191, %p192
      %p194 = scmp.ne.s32.totalorder %s182, %s183
      %p195 = scmp.eq.s32.totalorder %s42, 1
      %p196 = por %p194, %p195
      %p198 = scmp.ne.s32.totalorder %s183, %s197
      %p199 = scmp.eq.s32.totalorder %s42, 0
      %p200 = por %p198, %p199
      %s202 = sadd.s32 %s201, 1
      %p205 = scmp.eq.s32.totalorder %s36, 1
      %p206 = scmp.ne.s32.totalorder %s201, %s203
      %p207 = scmp.eq.s32.totalorder %s36, 0
      %p208 = por %p206, %p207
      %p209 = scmp.ne.s32.totalorder %s201, %s203
      %p210 = scmp.eq.s32.totalorder %s41, 1
      %p211 = por %p209, %p210
      %p212 = scmp.ne.s32.totalorder %s203, %s204
      %p213 = scmp.eq.s32.totalorder %s41, 0
      %p214 = por %p212, %p213
      %p215 = scmp.ne.s32.totalorder %s203, %s204
      %p216 = scmp.eq.s32.totalorder %s42, 1
      %p217 = por %p215, %p216
      %p219 = scmp.ne.s32.totalorder %s204, %s218
      %p220 = scmp.eq.s32.totalorder %s42, 0
      %p221 = por %p219, %p220
      %s223 = sadd.s32 %s222, 1
      %p226 = scmp.eq.s32.totalorder %s36, 1
      %p227 = scmp.ne.s32.totalorder %s222, %s224
      %p228 = scmp.eq.s32.totalorder %s36, 0
      %p229 = por %p227, %p228
      %p230 = scmp.ne.s32.totalorder %s222, %s224
      %p231 = scmp.eq.s32.totalorder %s41, 1
      %p232 = por %p230, %p231
      %p233 = scmp.ne.s32.totalorder %s224, %s225
      %p234 = scmp.eq.s32.totalorder %s41, 0
      %p235 = por %p233, %p234
      %p236 = scmp.ne.s32.totalorder %s224, %s225
      %p237 = scmp.eq.s32.totalorder %s42, 1
      %p238 = por %p236, %p237
      %p240 = scmp.ne.s32.totalorder %s225, %s239
      %p241 = scmp.eq.s32.totalorder %s42, 0
      %p242 = por %p240, %p241
      %s244 = sadd.s32 %s243, 1
      %p247 = scmp.eq.s32.totalorder %s36, 1
      %p248 = scmp.ne.s32.totalorder %s243, %s245
      %p249 = scmp.eq.s32.totalorder %s36, 0
      %p250 = por %p248, %p249
      %p251 = scmp.ne.s32.totalorder %s243, %s245
      %p252 = scmp.eq.s32.totalorder %s41, 1
      %p253 = por %p251, %p252
      %p254 = scmp.ne.s32.totalorder %s245, %s246
      %p255 = scmp.eq.s32.totalorder %s41, 0
      %p256 = por %p254, %p255
      %p257 = scmp.ne.s32.totalorder %s245, %s246
      %p258 = scmp.eq.s32.totalorder %s42, 1
      %p259 = por %p257, %p258
      %p261 = scmp.ne.s32.totalorder %s246, %s260
      %p262 = scmp.eq.s32.totalorder %s42, 0
      %p263 = por %p261, %p262
      %s265 = sadd.s32 %s264, 1
      %p268 = scmp.eq.s32.totalorder %s36, 1
      %p269 = scmp.ne.s32.totalorder %s264, %s266
      %p270 = scmp.eq.s32.totalorder %s36, 0
      %p271 = por %p269, %p270
      %p272 = scmp.ne.s32.totalorder %s264, %s266
      %p273 = scmp.eq.s32.totalorder %s41, 1
      %p274 = por %p272, %p273
      %p275 = scmp.ne.s32.totalorder %s266, %s267
      %p276 = scmp.eq.s32.totalorder %s41, 0
      %p277 = por %p275, %p276
      %p278 = scmp.ne.s32.totalorder %s266, %s267
      %p279 = scmp.eq.s32.totalorder %s42, 1
      %p280 = por %p278, %p279
      %p282 = scmp.ne.s32.totalorder %s267, %s281
      %p283 = scmp.eq.s32.totalorder %s42, 0
      %p284 = por %p282, %p283
      %s286 = sadd.s32 %s285, 1
      %p289 = scmp.eq.s32.totalorder %s36, 1
      %p290 = scmp.ne.s32.totalorder %s285, %s287
      %p291 = scmp.eq.s32.totalorder %s36, 0
      %p292 = por %p290, %p291
      %p293 = scmp.ne.s32.totalorder %s285, %s287
      %p294 = scmp.eq.s32.totalorder %s41, 1
      %p295 = por %p293, %p294
      %p296 = scmp.ne.s32.totalorder %s287, %s288
      %p297 = scmp.eq.s32.totalorder %s41, 0
      %p298 = por %p296, %p297
      %p299 = scmp.ne.s32.totalorder %s287, %s288
      %p300 = scmp.eq.s32.totalorder %s42, 1
      %p301 = por %p299, %p300
      %p303 = scmp.ne.s32.totalorder %s288, %s302
      %p304 = scmp.eq.s32.totalorder %s42, 0
      %p305 = por %p303, %p304
      %s307 = sadd.s32 %s306, 1
      %p310 = scmp.eq.s32.totalorder %s36, 1
      %p311 = scmp.ne.s32.totalorder %s306, %s308
      %p312 = scmp.eq.s32.totalorder %s36, 0
      %p313 = por %p311, %p312
      %p314 = scmp.ne.s32.totalorder %s306, %s308
      %p315 = scmp.eq.s32.totalorder %s41, 1
      %p316 = por %p314, %p315
      %p317 = scmp.ne.s32.totalorder %s308, %s309
      %p318 = scmp.eq.s32.totalorder %s41, 0
      %p319 = por %p317, %p318
      %p320 = scmp.ne.s32.totalorder %s308, %s309
      %p321 = scmp.eq.s32.totalorder %s42, 1
      %p322 = por %p320, %p321
      %p324 = scmp.ne.s32.totalorder %s309, %s323
      %p325 = scmp.eq.s32.totalorder %s42, 0
      %p326 = por %p324, %p325
      %s328 = sadd.s32 %s327, 1
      %p331 = scmp.eq.s32.totalorder %s36, 1
      %p332 = scmp.ne.s32.totalorder %s327, %s329
      %p333 = scmp.eq.s32.totalorder %s36, 0
      %p334 = por %p332, %p333
      %p335 = scmp.ne.s32.totalorder %s327, %s329
      %p336 = scmp.eq.s32.totalorder %s41, 1
      %p337 = por %p335, %p336
      %p338 = scmp.ne.s32.totalorder %s329, %s330
      %p339 = scmp.eq.s32.totalorder %s41, 0
      %p340 = por %p338, %p339
      %p341 = scmp.ne.s32.totalorder %s329, %s330
      %p342 = scmp.eq.s32.totalorder %s42, 1
      %p343 = por %p341, %p342
      %p345 = scmp.ne.s32.totalorder %s330, %s344
      %p346 = scmp.eq.s32.totalorder %s42, 0
      %p347 = por %p345, %p346
      %s349 = sadd.s32 %s348, 1
      %p352 = scmp.eq.s32.totalorder %s36, 1
      %p353 = scmp.ne.s32.totalorder %s348, %s350
      %p354 = scmp.eq.s32.totalorder %s36, 0
      %p355 = por %p353, %p354
      %p356 = scmp.ne.s32.totalorder %s348, %s350
      %p357 = scmp.eq.s32.totalorder %s41, 1
      %p358 = por %p356, %p357
      %p359 = scmp.ne.s32.totalorder %s350, %s351
      %p360 = scmp.eq.s32.totalorder %s41, 0
      %p361 = por %p359, %p360
      %p362 = scmp.ne.s32.totalorder %s350, %s351
      %p363 = scmp.eq.s32.totalorder %s42, 1
      %p364 = por %p362, %p363
      %p366 = scmp.ne.s32.totalorder %s351, %s365
      %p367 = scmp.eq.s32.totalorder %s42, 0
      %p368 = por %p366, %p367
      %s370 = sadd.s32 %s369, 1
      %p373 = scmp.eq.s32.totalorder %s36, 1
      %p374 = scmp.ne.s32.totalorder %s369, %s371
      %p375 = scmp.eq.s32.totalorder %s36, 0
      %p376 = por %p374, %p375
      %p377 = scmp.ne.s32.totalorder %s369, %s371
      %p378 = scmp.eq.s32.totalorder %s41, 1
      %p379 = por %p377, %p378
      %p380 = scmp.ne.s32.totalorder %s371, %s372
      %p381 = scmp.eq.s32.totalorder %s41, 0
      %p382 = por %p380, %p381
      %p383 = scmp.ne.s32.totalorder %s371, %s372
      %p384 = scmp.eq.s32.totalorder %s42, 1
      %p385 = por %p383, %p384
      %p387 = scmp.ne.s32.totalorder %s372, %s386
      %p388 = scmp.eq.s32.totalorder %s42, 0
      %p389 = por %p387, %p388
      %s391 = sadd.s32 %s390, 1
      %p394 = scmp.eq.s32.totalorder %s36, 1
      %p395 = scmp.ne.s32.totalorder %s390, %s392
      %p396 = scmp.eq.s32.totalorder %s36, 0
      %p397 = por %p395, %p396
      %p398 = scmp.ne.s32.totalorder %s390, %s392
      %p399 = scmp.eq.s32.totalorder %s41, 1
      %p400 = por %p398, %p399
      %p401 = scmp.ne.s32.totalorder %s392, %s393
      %p402 = scmp.eq.s32.totalorder %s41, 0
      %p403 = por %p401, %p402
      %p404 = scmp.ne.s32.totalorder %s392, %s393
      %p405 = scmp.eq.s32.totalorder %s42, 1
      %p406 = por %p404, %p405
      %p408 = scmp.ne.s32.totalorder %s393, %s407
      %p409 = scmp.eq.s32.totalorder %s42, 0
      %p410 = por %p408, %p409
      %s412 = sadd.s32 %s411, 1
      %p415 = scmp.eq.s32.totalorder %s36, 1
      %p416 = scmp.ne.s32.totalorder %s411, %s413
      %p417 = scmp.eq.s32.totalorder %s36, 0
      %p418 = por %p416, %p417
      %p419 = scmp.ne.s32.totalorder %s411, %s413
      %p420 = scmp.eq.s32.totalorder %s41, 1
      %p421 = por %p419, %p420
      %p422 = scmp.ne.s32.totalorder %s413, %s414
      %p423 = scmp.eq.s32.totalorder %s41, 0
      %p424 = por %p422, %p423
      %p425 = scmp.ne.s32.totalorder %s413, %s414
      %p426 = scmp.eq.s32.totalorder %s42, 1
      %p427 = por %p425, %p426
      %p429 = scmp.ne.s32.totalorder %s414, %s428
      %p430 = scmp.eq.s32.totalorder %s42, 0
      %p431 = por %p429, %p430
      %s432 = ssub.s32 %s36, %s43
      %p433 = scmp.eq.s32.totalorder %s432, 0
      %s435 = sadd.s32 %s434, 1
      %s436 = scalar_select %p433, %s434, %s435
      %p439 = pneg %p433
      %p440 = scmp.eq.s32.totalorder %s36, 1
      %p441 = por %p439, %p440
      %p442 = scmp.ne.s32.totalorder %s434, %s437
      %p443 = scmp.eq.s32.totalorder %s36, 0
      %p444 = por %p442, %p443
      %p445 = scmp.ne.s32.totalorder %s434, %s437
      %p446 = scmp.eq.s32.totalorder %s41, 1
      %p447 = por %p445, %p446
      %p448 = scmp.ne.s32.totalorder %s437, %s438
      %p449 = scmp.eq.s32.totalorder %s41, 0
      %p450 = por %p448, %p449
      %p451 = scmp.ne.s32.totalorder %s437, %s438
      %p452 = scmp.eq.s32.totalorder %s42, 1
      %p453 = por %p451, %p452
      %p455 = scmp.ne.s32.totalorder %s438, %s454
      %p456 = scmp.eq.s32.totalorder %s42, 0
      %p457 = por %p455, %p456
      %p458 = scmp.le.s32.totalorder 1, %s36
      %p459 = scmp.lt.s32.totalorder %s36, 3
      %p460 = pnand %p458, %p459
      %p461 = pneg %p460
      // Predicated region
      $region9: #{tpu_custom_call.1} parent=5 // pred_check
        _
      $region10: #{tpu_custom_call.1} parent=5 // pred_check_branch
        %463 = sbr.rel (%p460) target = $region12
      $region11: #{tpu_custom_call.1} parent=5 // pred_region
        %s464 = ssub.s32 %s36, 1
        // Predicated region
        $region13: #{tpu_custom_call.1} parent=11 // pred_check
          %p465 = pneg %p109
        $region14: #{tpu_custom_call.1} parent=11 // pred_check_branch
          %467 = sbr.rel (%p465) target = $region16
        $region15: #{tpu_custom_call.1} parent=11 // pred_region
          %s469 = ssub.s32 2048, 2048
          %470 = vsyncadd [#allocation7], %s469
          %s471 = sshll.u32 [#allocation8], 4
          %s472 = int_to_ptr.vmem [resolvable:$true] %s471
          %477 = dma.hbm_to_vmem [thread:$0]  %s2, 2048, %s472, [#allocation7], 128, 128, 8
        $region16: #{tpu_custom_call.1} parent=11 // pred_fallthru
          _
        // Predicated region
        $region17: #{tpu_custom_call.1} parent=11 // pred_check
          %p478 = pneg %p130
        $region18: #{tpu_custom_call.1} parent=11 // pred_check_branch
          %480 = sbr.rel (%p478) target = $region20
        $region19: #{tpu_custom_call.1} parent=11 // pred_region
          _
        $region20: #{tpu_custom_call.1} parent=11 // pred_fallthru
          _
        // Predicated region
        $region21: #{tpu_custom_call.1} parent=11 // pred_check
          %p481 = pneg %p151
        $region22: #{tpu_custom_call.1} parent=11 // pred_check_branch
          %483 = sbr.rel (%p481) target = $region24
        $region23: #{tpu_custom_call.1} parent=11 // pred_region
          %s485 = ssub.s32 2048, 2048
          %486 = vsyncadd [#allocation10], %s485
          %s487 = sshll.u32 [#allocation9], 4
          %s488 = int_to_ptr.vmem [resolvable:$true] %s487
          %493 = dma.hbm_to_vmem [thread:$0]  %s4, 2048, %s488, [#allocation10], 128, 128, 8
        $region24: #{tpu_custom_call.1} parent=11 // pred_fallthru
          _
        // Predicated region
        $region25: #{tpu_custom_call.1} parent=11 // pred_check
          %p494 = pneg %p172
        $region26: #{tpu_custom_call.1} parent=11 // pred_check_branch
          %496 = sbr.rel (%p494) target = $region28
        $region27: #{tpu_custom_call.1} parent=11 // pred_region
          _
        $region28: #{tpu_custom_call.1} parent=11 // pred_fallthru
          _
        // Predicated region
        $region29: #{tpu_custom_call.1} parent=11 // pred_check
          %p497 = pneg %p193
        $region30: #{tpu_custom_call.1} parent=11 // pred_check_branch
          %499 = sbr.rel (%p497) target = $region32
        $region31: #{tpu_custom_call.1} parent=11 // pred_region
          %s501 = ssub.s32 2048, 2048
          %502 = vsyncadd [#allocation10], %s501
          %s503 = sshll.u32 [#allocation11], 4
          %s504 = int_to_ptr.vmem [resolvable:$true] %s503
          %509 = dma.hbm_to_vmem [thread:$0]  %s6, 2048, %s504, [#allocation10], 128, 128, 8
        $region32: #{tpu_custom_call.1} parent=11 // pred_fallthru
          _
        // Predicated region
        $region33: #{tpu_custom_call.1} parent=11 // pred_check
          %p510 = pneg %p214
        $region34: #{tpu_custom_call.1} parent=11 // pred_check_branch
          %512 = sbr.rel (%p510) target = $region36
        $region35: #{tpu_custom_call.1} parent=11 // pred_region
          _
        $region36: #{tpu_custom_call.1} parent=11 // pred_fallthru
          _
        // Predicated region
        $region37: #{tpu_custom_call.1} parent=11 // pred_check
          %p513 = pneg %p235
        $region38: #{tpu_custom_call.1} parent=11 // pred_check_branch
          %515 = sbr.rel (%p513) target = $region40
        $region39: #{tpu_custom_call.1} parent=11 // pred_region
          %s517 = ssub.s32 2048, 2048
          %518 = vsyncadd [#allocation13], %s517
          %s519 = sshll.u32 [#allocation12], 4
          %s520 = int_to_ptr.vmem [resolvable:$true] %s519
          %525 = dma.hbm_to_vmem [thread:$0]  %s8, 2048, %s520, [#allocation13], 128, 128, 8
        $region40: #{tpu_custom_call.1} parent=11 // pred_fallthru
          _
        // Predicated region
        $region41: #{tpu_custom_call.1} parent=11 // pred_check
          %p526 = pneg %p256
        $region42: #{tpu_custom_call.1} parent=11 // pred_check_branch
          %528 = sbr.rel (%p526) target = $region44
        $region43: #{tpu_custom_call.1} parent=11 // pred_region
          _
        $region44: #{tpu_custom_call.1} parent=11 // pred_fallthru
          _
        // Predicated region
        $region45: #{tpu_custom_call.1} parent=11 // pred_check
          %p529 = pneg %p277
        $region46: #{tpu_custom_call.1} parent=11 // pred_check_branch
          %531 = sbr.rel (%p529) target = $region48
        $region47: #{tpu_custom_call.1} parent=11 // pred_region
          _
        $region48: #{tpu_custom_call.1} parent=11 // pred_fallthru
          _
        // Predicated region
        $region49: #{tpu_custom_call.1} parent=11 // pred_check
          %p532 = pneg %p298
        $region50: #{tpu_custom_call.1} parent=11 // pred_check_branch
          %534 = sbr.rel (%p532) target = $region52
        $region51: #{tpu_custom_call.1} parent=11 // pred_region
          _
        $region52: #{tpu_custom_call.1} parent=11 // pred_fallthru
          _
        // Predicated region
        $region53: #{tpu_custom_call.1} parent=11 // pred_check
          %p535 = pneg %p319
        $region54: #{tpu_custom_call.1} parent=11 // pred_check_branch
          %537 = sbr.rel (%p535) target = $region56
        $region55: #{tpu_custom_call.1} parent=11 // pred_region
          %s539 = ssub.s32 4096, 4096
          %540 = vsyncadd [#allocation13], %s539
          %s541 = sshll.u32 [#allocation14], 4
          %s542 = int_to_ptr.vmem [resolvable:$true] %s541
          %547 = dma.hbm_to_vmem [thread:$0]  %s12, 4096, %s542, [#allocation13], 256, 256, 16
        $region56: #{tpu_custom_call.1} parent=11 // pred_fallthru
          _
        // Predicated region
        $region57: #{tpu_custom_call.1} parent=11 // pred_check
          %p548 = pneg %p340
        $region58: #{tpu_custom_call.1} parent=11 // pred_check_branch
          %550 = sbr.rel (%p548) target = $region60
        $region59: #{tpu_custom_call.1} parent=11 // pred_region
          _
        $region60: #{tpu_custom_call.1} parent=11 // pred_fallthru
          _
        // Predicated region
        $region61: #{tpu_custom_call.1} parent=11 // pred_check
          %p551 = pneg %p361
        $region62: #{tpu_custom_call.1} parent=11 // pred_check_branch
          %553 = sbr.rel (%p551) target = $region64
        $region63: #{tpu_custom_call.1} parent=11 // pred_region
          %s555 = ssub.s32 4096, 4096
          %556 = vsyncadd [#allocation16], %s555
          %s557 = sshll.u32 [#allocation15], 4
          %s558 = int_to_ptr.vmem [resolvable:$true] %s557
          %563 = dma.hbm_to_vmem [thread:$0]  %s14, 4096, %s558, [#allocation16], 128, 128, 8
        $region64: #{tpu_custom_call.1} parent=11 // pred_fallthru
          _
        // Predicated region
        $region65: #{tpu_custom_call.1} parent=11 // pred_check
          %p564 = pneg %p382
        $region66: #{tpu_custom_call.1} parent=11 // pred_check_branch
          %566 = sbr.rel (%p564) target = $region68
        $region67: #{tpu_custom_call.1} parent=11 // pred_region
          _
        $region68: #{tpu_custom_call.1} parent=11 // pred_fallthru
          _
        // Predicated region
        $region69: #{tpu_custom_call.1} parent=11 // pred_check
          %p567 = pneg %p403
        $region70: #{tpu_custom_call.1} parent=11 // pred_check_branch
          %569 = sbr.rel (%p567) target = $region72
        $region71: #{tpu_custom_call.1} parent=11 // pred_region
          _
        $region72: #{tpu_custom_call.1} parent=11 // pred_fallthru
          _
        // Predicated region
        $region73: #{tpu_custom_call.1} parent=11 // pred_check
          %p570 = pneg %p424
        $region74: #{tpu_custom_call.1} parent=11 // pred_check_branch
          %572 = sbr.rel (%p570) target = $region76
        $region75: #{tpu_custom_call.1} parent=11 // pred_region
          _
        $region76: #{tpu_custom_call.1} parent=11 // pred_fallthru
          _
      $region12: #{tpu_custom_call.1} parent=5 // pred_fallthru
        _
      %p573 = scmp.lt.s32.totalorder %s36, 2
      // Predicated region
      $region77: #{tpu_custom_call.1} parent=5 // pred_check
        %p574 = pneg %p573
      $region78: #{tpu_custom_call.1} parent=5 // pred_check_branch
        %576 = sbr.rel (%p574) target = $region80
      $region79: #{tpu_custom_call.1} parent=5 // pred_region
        // Predicated region
        $region81: #{tpu_custom_call.1} parent=79 // pred_check
          %p577 = pneg %p56
        $region82: #{tpu_custom_call.1} parent=79 // pred_check_branch
          %579 = sbr.rel (%p577) target = $region84
        $region83: #{tpu_custom_call.1} parent=79 // pred_region
          %s580 = sand.u32 %s46, 1
          %s581 = scalar_lea.sflag [#allocation4], %s580
          %s582 = sand.u32 %s46, 1
          %s583 = smul.addr %s582, 32
          %s584 = scalar_lea.vmem [#allocation3], %s583
          %s585 = smul.u32 2, %s36
          %s587 = ssub.s32 512, 512
          %588 = vsyncadd %s581, %s587
          %s589 = smul.addr %s585, 2
          %s590 = smul.addr %s589, 128
          %s591 = scalar_lea.hbm %s0, %s590
          %s592 = sshll.u32 %s584, 4
          %s593 = int_to_ptr.vmem [resolvable:$true] %s592
          %598 = dma.hbm_to_vmem [thread:$0]  %s591, 512, %s593, %s581, 128, 128, 8
        $region84: #{tpu_custom_call.1} parent=79 // pred_fallthru
          _
        // Predicated region
        $region85: #{tpu_custom_call.1} parent=79 // pred_check
          %p599 = pneg %p82
        $region86: #{tpu_custom_call.1} parent=79 // pred_check_branch
          %601 = sbr.rel (%p599) target = $region88
        $region87: #{tpu_custom_call.1} parent=79 // pred_region
          %s602 = sand.u32 %s36, 1
          %s603 = scalar_lea.sflag [#allocation7], %s602
          %s604 = sand.u32 %s72, 1
          %s605 = smul.addr %s604, 2
          %s606 = scalar_lea.vmem [#allocation6], %s605
          %s607 = smul.u32 2, %s36
          %s609 = ssub.s32 32, 32
          %610 = vsyncadd %s603, %s609
          %s611 = smul.addr %s607, 16
          %s612 = scalar_lea.hbm %s1, %s611
          %s613 = sshll.u32 %s606, 4
          %s614 = int_to_ptr.vmem [resolvable:$true] %s613
          %619 = dma.hbm_to_vmem [thread:$0]  %s612, 32, %s614, %s603, 16, 16, 1
        $region88: #{tpu_custom_call.1} parent=79 // pred_fallthru
          _
      $region80: #{tpu_custom_call.1} parent=5 // pred_fallthru
        _
      %p620 = scmp.le.s32.totalorder 1, %s36
      %p621 = scmp.lt.s32.totalorder %s36, 3
      %p622 = pnand %p620, %p621
      %p623 = pneg %p622
      // Predicated region
      $region89: #{tpu_custom_call.1} parent=5 // pred_check
        _
      $region90: #{tpu_custom_call.1} parent=5 // pred_check_branch
        %625 = sbr.rel (%p622) target = $region92
      $region91: #{tpu_custom_call.1} parent=5 // pred_region
        %s626 = ssub.s32 %s36, 1
        %s627 = sand.u32 %s49, 1
        %s628 = scalar_lea.sflag [#allocation4], %s627
        %s629 = sand.u32 %s49, 1
        %s630 = smul.addr %s629, 32
        %s631 = scalar_lea.vmem [#allocation3], %s630
        // Predicated region
        $region93: #{tpu_custom_call.1} parent=91 // pred_check
          %p632 = pneg %p62
        $region94: #{tpu_custom_call.1} parent=91 // pred_check_branch
          %634 = sbr.rel (%p632) target = $region96
        $region95: #{tpu_custom_call.1} parent=91 // pred_region
          %635 = dma.done %s628, 512
        $region96: #{tpu_custom_call.1} parent=91 // pred_fallthru
          _
        %s636 = sand.u32 %s41, 1
        %s637 = scalar_lea.sflag [#allocation7], %s636
        %s638 = sand.u32 %s75, 1
        %s639 = smul.addr %s638, 2
        %s640 = scalar_lea.vmem [#allocation6], %s639
        // Predicated region
        $region97: #{tpu_custom_call.1} parent=91 // pred_check
          %p641 = pneg %p88
        $region98: #{tpu_custom_call.1} parent=91 // pred_check_branch
          %643 = sbr.rel (%p641) target = $region100
        $region99: #{tpu_custom_call.1} parent=91 // pred_region
          %644 = dma.done %s637, 32
        $region100: #{tpu_custom_call.1} parent=91 // pred_fallthru
          _
        // Predicated region
        $region101: #{tpu_custom_call.1} parent=91 // pred_check
          %p645 = pneg %p109
        $region102: #{tpu_custom_call.1} parent=91 // pred_check_branch
          %647 = sbr.rel (%p645) target = $region104
        $region103: #{tpu_custom_call.1} parent=91 // pred_region
          %648 = dma.done [#allocation7], 2048
        $region104: #{tpu_custom_call.1} parent=91 // pred_fallthru
          _
        // Predicated region
        $region105: #{tpu_custom_call.1} parent=91 // pred_check
          %p649 = pneg %p151
        $region106: #{tpu_custom_call.1} parent=91 // pred_check_branch
          %651 = sbr.rel (%p649) target = $region108
        $region107: #{tpu_custom_call.1} parent=91 // pred_region
          %652 = dma.done [#allocation10], 2048
        $region108: #{tpu_custom_call.1} parent=91 // pred_fallthru
          _
        // Predicated region
        $region109: #{tpu_custom_call.1} parent=91 // pred_check
          %p653 = pneg %p193
        $region110: #{tpu_custom_call.1} parent=91 // pred_check_branch
          %655 = sbr.rel (%p653) target = $region112
        $region111: #{tpu_custom_call.1} parent=91 // pred_region
          %656 = dma.done [#allocation10], 2048
        $region112: #{tpu_custom_call.1} parent=91 // pred_fallthru
          _
        // Predicated region
        $region113: #{tpu_custom_call.1} parent=91 // pred_check
          %p657 = pneg %p235
        $region114: #{tpu_custom_call.1} parent=91 // pred_check_branch
          %659 = sbr.rel (%p657) target = $region116
        $region115: #{tpu_custom_call.1} parent=91 // pred_region
          %660 = dma.done [#allocation13], 2048
        $region116: #{tpu_custom_call.1} parent=91 // pred_fallthru
          _
        // Predicated region
        $region117: #{tpu_custom_call.1} parent=91 // pred_check
          %p661 = pneg %p319
        $region118: #{tpu_custom_call.1} parent=91 // pred_check_branch
          %663 = sbr.rel (%p661) target = $region120
        $region119: #{tpu_custom_call.1} parent=91 // pred_region
          %664 = dma.done [#allocation13], 4096
        $region120: #{tpu_custom_call.1} parent=91 // pred_fallthru
          _
        // Predicated region
        $region121: #{tpu_custom_call.1} parent=91 // pred_check
          %p665 = pneg %p361
        $region122: #{tpu_custom_call.1} parent=91 // pred_check_branch
          %667 = sbr.rel (%p665) target = $region124
        $region123: #{tpu_custom_call.1} parent=91 // pred_region
          %668 = dma.done [#allocation16], 4096
        $region124: #{tpu_custom_call.1} parent=91 // pred_fallthru
          _
        %s669 = sand.u32 %s49, 1
        %s670 = scalar_lea.sflag [#allocation4], %s669
        %s671 = sand.u32 %s49, 1
        %s672 = smul.addr %s671, 32
        %s673 = scalar_lea.vmem [#allocation3], %s672
        %p674 = pneg %p62
        %p675 = pneg %p59
        %s676 = sand.u32 %s41, 1
        %s677 = scalar_lea.sflag [#allocation7], %s676
        %s678 = sand.u32 %s75, 1
        %s679 = smul.addr %s678, 2
        %s680 = scalar_lea.vmem [#allocation6], %s679
        %p681 = pneg %p88
        %p682 = pneg %p85
        %p683 = pneg %p109
        %p684 = pneg %p106
        %p685 = pneg %p130
        %p686 = pneg %p127
        %p687 = pneg %p151
        %p688 = pneg %p148
        %p689 = pneg %p172
        %p690 = pneg %p169
        %p691 = pneg %p193
        %p692 = pneg %p190
        %p693 = pneg %p214
        %p694 = pneg %p211
        %p695 = pneg %p235
        %p696 = pneg %p232
        %p697 = pneg %p256
        %p698 = pneg %p253
        %p699 = pneg %p277
        %p700 = pneg %p274
        %p701 = pneg %p298
        %p702 = pneg %p295
        %p703 = pneg %p319
        %p704 = pneg %p316
        %p705 = pneg %p340
        %p706 = pneg %p337
        %p707 = pneg %p361
        %p708 = pneg %p358
        %p709 = pneg %p382
        %p710 = pneg %p379
        %p711 = pneg %p403
        %p712 = pneg %p400
        %p713 = pneg %p424
        %p714 = pneg %p421
        %p715 = pneg %p450
        %p716 = pneg %p447
        %s717 = sand.u32 %s437, 1
        %s718 = scalar_lea.sflag [#allocation5], %s717
        %s719 = sand.u32 %s437, 1
        %s720 = smul.addr %s719, 32
        %s721 = scalar_lea.vmem [#allocation17], %s720
        %s722 = smul.u32 2, %s41
        %s723 = smul.u32 2, %s41
        %s724 = smul.u32 2, %s41
        %v725 = vld [vmem:[%s631] sm:$0xff]
        %v726 = vld [vmem:[%s631 + $0x8] sm:$0xff]
        %v727 = vld [vmem:[%s631 + $0x10] sm:$0xff]
        %v728 = vld [vmem:[%s631 + $0x18] sm:$0xff]
        %v729 = vld [vmem:[#allocation8] sm:$0xff]
        %v730 = vld [vmem:[#allocation8 + $0x8] sm:$0xff]
        %v731 = vld [vmem:[#allocation8 + $0x10] sm:$0xff]
        %v732 = vld [vmem:[#allocation8 + $0x18] sm:$0xff]
        %v733 = vld [vmem:[#allocation8 + $0x20] sm:$0xff]
        %v734 = vld [vmem:[#allocation8 + $0x28] sm:$0xff]
        %v735 = vld [vmem:[#allocation8 + $0x30] sm:$0xff]
        %v736 = vld [vmem:[#allocation8 + $0x38] sm:$0xff]
        %v737 = vld [vmem:[#allocation8 + $0x40] sm:$0xff]
        %v738 = vld [vmem:[#allocation8 + $0x48] sm:$0xff]
        %v739 = vld [vmem:[#allocation8 + $0x50] sm:$0xff]
        %v740 = vld [vmem:[#allocation8 + $0x58] sm:$0xff]
        %v741 = vld [vmem:[#allocation8 + $0x60] sm:$0xff]
        %v742 = vld [vmem:[#allocation8 + $0x68] sm:$0xff]
        %v743 = vld [vmem:[#allocation8 + $0x70] sm:$0xff]
        %v744 = vld [vmem:[#allocation8 + $0x78] sm:$0xff]
        %v745 = vld [vmem:[%s3] sm:$0x1]
        %v747 = vlaneseq
        %v748 = vshrl.u32 %v747, 7
        %v749 = vsub.s32 0, %v748
        %v750 = vrot.slane %v745, %v749
        %752 = vmatprep.subr.mxu0 0.0
        %753 = vmatpush1.msra.mxu0 %v729
        %754 = vmatprep.subr.mxu0 0.0
        %755 = vmatpush1.msra.mxu0 %v730
        %756 = vmatprep.subr.mxu0 0.0
        %757 = vmatpush1.msra.mxu0 %v731
        %758 = vmatprep.subr.mxu0 0.0
        %759 = vmatpush1.msra.mxu0 %v732
        %760 = vmatprep.subr.mxu0 0.0
        %761 = vmatpush1.msra.mxu0 %v733
        %762 = vmatprep.subr.mxu0 0.0
        %763 = vmatpush1.msra.mxu0 %v734
        %764 = vmatprep.subr.mxu0 0.0
        %765 = vmatpush1.msra.mxu0 %v735
        %766 = vmatprep.subr.mxu0 0.0
        %767 = vmatpush1.msra.mxu0 %v736
        %768 = vmatprep.subr.mxu0 0.0
        %769 = vmatpush1.msra.mxu0 %v737
        %770 = vmatprep.subr.mxu0 0.0
        %771 = vmatpush1.msra.mxu0 %v738
        %772 = vmatprep.subr.mxu0 0.0
        %773 = vmatpush1.msra.mxu0 %v739
        %774 = vmatprep.subr.mxu0 0.0
        %775 = vmatpush1.msra.mxu0 %v740
        %776 = vmatprep.subr.mxu0 0.0
        %777 = vmatpush1.msra.mxu0 %v741
        %778 = vmatprep.subr.mxu0 0.0
        %779 = vmatpush1.msra.mxu0 %v742
        %780 = vmatprep.subr.mxu0 0.0
        %781 = vmatpush1.msra.mxu0 %v743
        %782 = vmatprep.subr.mxu0 0.0
        %783 = vmatpush1.msra.mxu0 %v744
        %784 = vmatprep.subr.mxu0 0.0
        %785 = vmatpush1.msra.mxu0 0.0
        %786 = vmatprep.subr.mxu0 0.0
        %787 = vmatpush1.msra.mxu0 0.0
        %788 = vmatprep.subr.mxu0 0.0
        %789 = vmatpush1.msra.mxu0 0.0
        %790 = vmatprep.subr.mxu0 0.0
        %791 = vmatpush1.msra.mxu0 0.0
        %792 = vmatprep.subr.mxu0 0.0
        %793 = vmatpush1.msra.mxu0 0.0
        %794 = vmatprep.subr.mxu0 0.0
        %795 = vmatpush1.msra.mxu0 0.0
        %796 = vmatprep.subr.mxu0 0.0
        %797 = vmatpush1.msra.mxu0 0.0
        %798 = vmatprep.subr.mxu0 0.0
        %799 = vmatpush1.msra.mxu0 0.0
        %800 = vmatprep.subr.mxu0 0.0
        %801 = vmatpush1.msra.mxu0 0.0
        %802 = vmatprep.subr.mxu0 0.0
        %803 = vmatpush1.msra.mxu0 0.0
        %804 = vmatprep.subr.mxu0 0.0
        %805 = vmatpush1.msra.mxu0 0.0
        %806 = vmatprep.subr.mxu0 0.0
        %807 = vmatpush1.msra.mxu0 0.0
        %808 = vmatprep.subr.mxu0 0.0
        %809 = vmatpush1.msra.mxu0 0.0
        %810 = vmatprep.subr.mxu0 0.0
        %811 = vmatpush1.msra.mxu0 0.0
        %812 = vmatprep.subr.mxu0 0.0
        %813 = vmatpush1.msra.mxu0 0.0
        %814 = vmatprep.subr.mxu0 0.0
        %815 = vmatpush1.msra.mxu0 0.0
        %816 = vmatprep.mubr.f32.mxu0 0.0
        %817 = vmatmul.mubr.f32.gmra.mrb[0].mxu0 %v725
        %v818 = vpop.f32.mrb[0].mxu0
        %v819 = vadd.f32 %v750, %v818
        %v820 = vpop.f32.mrb[0].mxu0
        %821 = vmatprep.mubr.f32.mxu0 0.0
        %822 = vmatmul.mubr.f32.gmra.mrb[0].mxu0 %v726
        %v823 = vpop.f32.mrb[0].mxu0
        %v824 = vadd.f32 %v750, %v823
        %v825 = vpop.f32.mrb[0].mxu0
        %826 = vmatprep.mubr.f32.mxu0 0.0
        %827 = vmatmul.mubr.f32.gmra.mrb[0].mxu0 %v727
        %v828 = vpop.f32.mrb[0].mxu0
        %v829 = vadd.f32 %v750, %v828
        %v830 = vpop.f32.mrb[0].mxu0
        %831 = vmatprep.mubr.f32.mxu0 0.0
        %832 = vmatmul.mubr.f32.gmra.mrb[0].mxu0 %v728
        %v833 = vpop.f32.mrb[0].mxu0
        %v834 = vadd.f32 %v750, %v833
        %v835 = vpop.f32.mrb[0].mxu0
        %836 = vdwg.mxu0
        %v837 = vld [vmem:[#allocation9] sm:$0xff]
        %v838 = vld [vmem:[#allocation9 + $0x8] sm:$0xff]
        %v839 = vld [vmem:[#allocation9 + $0x10] sm:$0xff]
        %v840 = vld [vmem:[#allocation9 + $0x18] sm:$0xff]
        %v841 = vld [vmem:[#allocation9 + $0x20] sm:$0xff]
        %v842 = vld [vmem:[#allocation9 + $0x28] sm:$0xff]
        %v843 = vld [vmem:[#allocation9 + $0x30] sm:$0xff]
        %v844 = vld [vmem:[#allocation9 + $0x38] sm:$0xff]
        %v845 = vld [vmem:[#allocation9 + $0x40] sm:$0xff]
        %v846 = vld [vmem:[#allocation9 + $0x48] sm:$0xff]
        %v847 = vld [vmem:[#allocation9 + $0x50] sm:$0xff]
        %v848 = vld [vmem:[#allocation9 + $0x58] sm:$0xff]
        %v849 = vld [vmem:[#allocation9 + $0x60] sm:$0xff]
        %v850 = vld [vmem:[#allocation9 + $0x68] sm:$0xff]
        %v851 = vld [vmem:[#allocation9 + $0x70] sm:$0xff]
        %v852 = vld [vmem:[#allocation9 + $0x78] sm:$0xff]
        %v853 = vld [vmem:[%s5] sm:$0x1]
        %v855 = vlaneseq
        %v856 = vshrl.u32 %v855, 7
        %v857 = vsub.s32 0, %v856
        %v858 = vrot.slane %v853, %v857
        %860 = vmatprep.subr.mxu0 0.0
        %861 = vmatpush1.msra.mxu0 %v837
        %862 = vmatprep.subr.mxu0 0.0
        %863 = vmatpush1.msra.mxu0 %v838
        %864 = vmatprep.subr.mxu0 0.0
        %865 = vmatpush1.msra.mxu0 %v839
        %866 = vmatprep.subr.mxu0 0.0
        %867 = vmatpush1.msra.mxu0 %v840
        %868 = vmatprep.subr.mxu0 0.0
        %869 = vmatpush1.msra.mxu0 %v841
        %870 = vmatprep.subr.mxu0 0.0
        %871 = vmatpush1.msra.mxu0 %v842
        %872 = vmatprep.subr.mxu0 0.0
        %873 = vmatpush1.msra.mxu0 %v843
        %874 = vmatprep.subr.mxu0 0.0
        %875 = vmatpush1.msra.mxu0 %v844
        %876 = vmatprep.subr.mxu0 0.0
        %877 = vmatpush1.msra.mxu0 %v845
        %878 = vmatprep.subr.mxu0 0.0
        %879 = vmatpush1.msra.mxu0 %v846
        %880 = vmatprep.subr.mxu0 0.0
        %881 = vmatpush1.msra.mxu0 %v847
        %882 = vmatprep.subr.mxu0 0.0
        %883 = vmatpush1.msra.mxu0 %v848
        %884 = vmatprep.subr.mxu0 0.0
        %885 = vmatpush1.msra.mxu0 %v849
        %886 = vmatprep.subr.mxu0 0.0
        %887 = vmatpush1.msra.mxu0 %v850
        %888 = vmatprep.subr.mxu0 0.0
        %889 = vmatpush1.msra.mxu0 %v851
        %890 = vmatprep.subr.mxu0 0.0
        %891 = vmatpush1.msra.mxu0 %v852
        %892 = vmatprep.subr.mxu0 0.0
        %893 = vmatpush1.msra.mxu0 0.0
        %894 = vmatprep.subr.mxu0 0.0
        %895 = vmatpush1.msra.mxu0 0.0
        %896 = vmatprep.subr.mxu0 0.0
        %897 = vmatpush1.msra.mxu0 0.0
        %898 = vmatprep.subr.mxu0 0.0
        %899 = vmatpush1.msra.mxu0 0.0
        %900 = vmatprep.subr.mxu0 0.0
        %901 = vmatpush1.msra.mxu0 0.0
        %902 = vmatprep.subr.mxu0 0.0
        %903 = vmatpush1.msra.mxu0 0.0
        %904 = vmatprep.subr.mxu0 0.0
        %905 = vmatpush1.msra.mxu0 0.0
        %906 = vmatprep.subr.mxu0 0.0
        %907 = vmatpush1.msra.mxu0 0.0
        %908 = vmatprep.subr.mxu0 0.0
        %909 = vmatpush1.msra.mxu0 0.0
        %910 = vmatprep.subr.mxu0 0.0
        %911 = vmatpush1.msra.mxu0 0.0
        %912 = vmatprep.subr.mxu0 0.0
        %913 = vmatpush1.msra.mxu0 0.0
        %914 = vmatprep.subr.mxu0 0.0
        %915 = vmatpush1.msra.mxu0 0.0
        %916 = vmatprep.subr.mxu0 0.0
        %917 = vmatpush1.msra.mxu0 0.0
        %918 = vmatprep.subr.mxu0 0.0
        %919 = vmatpush1.msra.mxu0 0.0
        %920 = vmatprep.subr.mxu0 0.0
        %921 = vmatpush1.msra.mxu0 0.0
        %922 = vmatprep.subr.mxu0 0.0
        %923 = vmatpush1.msra.mxu0 0.0
        %924 = vmatprep.mubr.f32.mxu0 0.0
        %925 = vmatmul.mubr.f32.gmra.mrb[0].mxu0 %v725
        %v926 = vpop.f32.mrb[0].mxu0
        %v927 = vadd.f32 %v858, %v926
        %v928 = vpop.f32.mrb[0].mxu0
        %929 = vmatprep.mubr.f32.mxu0 0.0
        %930 = vmatmul.mubr.f32.gmra.mrb[0].mxu0 %v726
        %v931 = vpop.f32.mrb[0].mxu0
        %v932 = vadd.f32 %v858, %v931
        %v933 = vpop.f32.mrb[0].mxu0
        %934 = vmatprep.mubr.f32.mxu0 0.0
        %935 = vmatmul.mubr.f32.gmra.mrb[0].mxu0 %v727
        %v936 = vpop.f32.mrb[0].mxu0
        %v937 = vadd.f32 %v858, %v936
        %v938 = vpop.f32.mrb[0].mxu0
        %939 = vmatprep.mubr.f32.mxu0 0.0
        %940 = vmatmul.mubr.f32.gmra.mrb[0].mxu0 %v728
        %v941 = vpop.f32.mrb[0].mxu0
        %v942 = vadd.f32 %v858, %v941
        %v943 = vpop.f32.mrb[0].mxu0
        %944 = vdwg.mxu0
        %v945 = vld [vmem:[#allocation11] sm:$0xff]
        %v946 = vld [vmem:[#allocation11 + $0x8] sm:$0xff]
        %v947 = vld [vmem:[#allocation11 + $0x10] sm:$0xff]
        %v948 = vld [vmem:[#allocation11 + $0x18] sm:$0xff]
        %v949 = vld [vmem:[#allocation11 + $0x20] sm:$0xff]
        %v950 = vld [vmem:[#allocation11 + $0x28] sm:$0xff]
        %v951 = vld [vmem:[#allocation11 + $0x30] sm:$0xff]
        %v952 = vld [vmem:[#allocation11 + $0x38] sm:$0xff]
        %v953 = vld [vmem:[#allocation11 + $0x40] sm:$0xff]
        %v954 = vld [vmem:[#allocation11 + $0x48] sm:$0xff]
        %v955 = vld [vmem:[#allocation11 + $0x50] sm:$0xff]
        %v956 = vld [vmem:[#allocation11 + $0x58] sm:$0xff]
        %v957 = vld [vmem:[#allocation11 + $0x60] sm:$0xff]
        %v958 = vld [vmem:[#allocation11 + $0x68] sm:$0xff]
        %v959 = vld [vmem:[#allocation11 + $0x70] sm:$0xff]
        %v960 = vld [vmem:[#allocation11 + $0x78] sm:$0xff]
        %v961 = vld [vmem:[%s7] sm:$0x1]
        %v963 = vlaneseq
        %v964 = vshrl.u32 %v963, 7
        %v965 = vsub.s32 0, %v964
        %v966 = vrot.slane %v961, %v965
        %968 = vmatprep.subr.mxu0 0.0
        %969 = vmatpush1.msra.mxu0 %v945
        %970 = vmatprep.subr.mxu0 0.0
        %971 = vmatpush1.msra.mxu0 %v946
        %972 = vmatprep.subr.mxu0 0.0
        %973 = vmatpush1.msra.mxu0 %v947
        %974 = vmatprep.subr.mxu0 0.0
        %975 = vmatpush1.msra.mxu0 %v948
        %976 = vmatprep.subr.mxu0 0.0
        %977 = vmatpush1.msra.mxu0 %v949
        %978 = vmatprep.subr.mxu0 0.0
        %979 = vmatpush1.msra.mxu0 %v950
        %980 = vmatprep.subr.mxu0 0.0
        %981 = vmatpush1.msra.mxu0 %v951
        %982 = vmatprep.subr.mxu0 0.0
        %983 = vmatpush1.msra.mxu0 %v952
        %984 = vmatprep.subr.mxu0 0.0
        %985 = vmatpush1.msra.mxu0 %v953
        %986 = vmatprep.subr.mxu0 0.0
        %987 = vmatpush1.msra.mxu0 %v954
        %988 = vmatprep.subr.mxu0 0.0
        %989 = vmatpush1.msra.mxu0 %v955
        %990 = vmatprep.subr.mxu0 0.0
        %991 = vmatpush1.msra.mxu0 %v956
        %992 = vmatprep.subr.mxu0 0.0
        %993 = vmatpush1.msra.mxu0 %v957
        %994 = vmatprep.subr.mxu0 0.0
        %995 = vmatpush1.msra.mxu0 %v958
        %996 = vmatprep.subr.mxu0 0.0
        %997 = vmatpush1.msra.mxu0 %v959
        %998 = vmatprep.subr.mxu0 0.0
        %999 = vmatpush1.msra.mxu0 %v960
        %1000 = vmatprep.subr.mxu0 0.0
        %1001 = vmatpush1.msra.mxu0 0.0
        %1002 = vmatprep.subr.mxu0 0.0
        %1003 = vmatpush1.msra.mxu0 0.0
        %1004 = vmatprep.subr.mxu0 0.0
        %1005 = vmatpush1.msra.mxu0 0.0
        %1006 = vmatprep.subr.mxu0 0.0
        %1007 = vmatpush1.msra.mxu0 0.0
        %1008 = vmatprep.subr.mxu0 0.0
        %1009 = vmatpush1.msra.mxu0 0.0
        %1010 = vmatprep.subr.mxu0 0.0
        %1011 = vmatpush1.msra.mxu0 0.0
        %1012 = vmatprep.subr.mxu0 0.0
        %1013 = vmatpush1.msra.mxu0 0.0
        %1014 = vmatprep.subr.mxu0 0.0
        %1015 = vmatpush1.msra.mxu0 0.0
        %1016 = vmatprep.subr.mxu0 0.0
        %1017 = vmatpush1.msra.mxu0 0.0
        %1018 = vmatprep.subr.mxu0 0.0
        %1019 = vmatpush1.msra.mxu0 0.0
        %1020 = vmatprep.subr.mxu0 0.0
        %1021 = vmatpush1.msra.mxu0 0.0
        %1022 = vmatprep.subr.mxu0 0.0
        %1023 = vmatpush1.msra.mxu0 0.0
        %1024 = vmatprep.subr.mxu0 0.0
        %1025 = vmatpush1.msra.mxu0 0.0
        %1026 = vmatprep.subr.mxu0 0.0
        %1027 = vmatpush1.msra.mxu0 0.0
        %1028 = vmatprep.subr.mxu0 0.0
        %1029 = vmatpush1.msra.mxu0 0.0
        %1030 = vmatprep.subr.mxu0 0.0
        %1031 = vmatpush1.msra.mxu0 0.0
        %1032 = vmatprep.mubr.f32.mxu0 0.0
        %1033 = vmatmul.mubr.f32.gmra.mrb[0].mxu0 %v725
        %v1034 = vpop.f32.mrb[0].mxu0
        %v1035 = vadd.f32 %v966, %v1034
        %v1036 = vpop.f32.mrb[0].mxu0
        %1037 = vmatprep.mubr.f32.mxu0 0.0
        %1038 = vmatmul.mubr.f32.gmra.mrb[0].mxu0 %v726
        %v1039 = vpop.f32.mrb[0].mxu0
        %v1040 = vadd.f32 %v966, %v1039
        %v1041 = vpop.f32.mrb[0].mxu0
        %1042 = vmatprep.mubr.f32.mxu0 0.0
        %1043 = vmatmul.mubr.f32.gmra.mrb[0].mxu0 %v727
        %v1044 = vpop.f32.mrb[0].mxu0
        %v1045 = vadd.f32 %v966, %v1044
        %v1046 = vpop.f32.mrb[0].mxu0
        %1047 = vmatprep.mubr.f32.mxu0 0.0
        %1048 = vmatmul.mubr.f32.gmra.mrb[0].mxu0 %v728
        %v1049 = vpop.f32.mrb[0].mxu0
        %v1050 = vadd.f32 %v966, %v1049
        %v1051 = vpop.f32.mrb[0].mxu0
        %1052 = vdwg.mxu0
        %v1053 = vld [vmem:[%s640] sm:$0x1]
        %v1054 = vld [vmem:[%s640 + $0x1] sm:$0x1]
        %vm1055 = vcmp.eq.s32.totalorder %v1053, 0
        %vm1056 = vcmp.eq.s32.totalorder %v1054, 0
        %v1057 = vsel %vm1055, -1e+09, 0.0
        %v1058 = vsel %vm1056, -1e+09, 0.0
        %v1059 = vld [vmem:[#allocation12] sm:$0xff]
        %v1060 = vld [vmem:[#allocation12 + $0x8] sm:$0xff]
        %v1061 = vld [vmem:[#allocation12 + $0x10] sm:$0xff]
        %v1062 = vld [vmem:[#allocation12 + $0x18] sm:$0xff]
        %v1063 = vld [vmem:[#allocation12 + $0x20] sm:$0xff]
        %v1064 = vld [vmem:[#allocation12 + $0x28] sm:$0xff]
        %v1065 = vld [vmem:[#allocation12 + $0x30] sm:$0xff]
        %v1066 = vld [vmem:[#allocation12 + $0x38] sm:$0xff]
        %v1067 = vld [vmem:[#allocation12 + $0x40] sm:$0xff]
        %v1068 = vld [vmem:[#allocation12 + $0x48] sm:$0xff]
        %v1069 = vld [vmem:[#allocation12 + $0x50] sm:$0xff]
        %v1070 = vld [vmem:[#allocation12 + $0x58] sm:$0xff]
        %v1071 = vld [vmem:[#allocation12 + $0x60] sm:$0xff]
        %v1072 = vld [vmem:[#allocation12 + $0x68] sm:$0xff]
        %v1073 = vld [vmem:[#allocation12 + $0x70] sm:$0xff]
        %v1074 = vld [vmem:[#allocation12 + $0x78] sm:$0xff]
        %1075 = vst [vmem:[#allocation2] sm:$0xff] 0.0
        %1076 = vst [vmem:[#allocation2 + $0x8] sm:$0xff] 0.0
        %1077 = vst [vmem:[#allocation2 + $0x10] sm:$0xff] 0.0
        %1078 = vst [vmem:[#allocation2 + $0x18] sm:$0xff] 0.0
        %vm1079 = vcmask 261120
        %v1081 = vsel %vm1079, %v819, 0
        %v1084 = vsel %vm1079, %v824, 0
        %v1087 = vsel %vm1079, %v927, 0
        %v1090 = vsel %vm1079, %v932, 0
        %1092 = vmatprep.subr.mxu0 0.0
        %1093 = vmatpush1.xpose.msra.mxu0 %v1087
        %1094 = vmatprep.subr.mxu0 0.0
        %1095 = vmatpush1.xpose.msra.mxu0 %v1090
        %1096 = vmatprep.subr.mxu0 0.0
        %1097 = vmatpush1.xpose.msra.mxu0 0.0
        %1098 = vmatprep.subr.mxu0 0.0
        %1099 = vmatpush1.xpose.msra.mxu0 0.0
        %1100 = vmatprep.subr.mxu0 0.0
        %1101 = vmatpush1.xpose.msra.mxu0 0.0
        %1102 = vmatprep.subr.mxu0 0.0
        %1103 = vmatpush1.xpose.msra.mxu0 0.0
        %1104 = vmatprep.subr.mxu0 0.0
        %1105 = vmatpush1.xpose.msra.mxu0 0.0
        %1106 = vmatprep.subr.mxu0 0.0
        %1107 = vmatpush1.xpose.msra.mxu0 0.0
        %1108 = vmatprep.subr.mxu0 0.0
        %1109 = vmatpush1.xpose.msra.mxu0 0.0
        %1110 = vmatprep.subr.mxu0 0.0
        %1111 = vmatpush1.xpose.msra.mxu0 0.0
        %1112 = vmatprep.subr.mxu0 0.0
        %1113 = vmatpush1.xpose.msra.mxu0 0.0
        %1114 = vmatprep.subr.mxu0 0.0
        %1115 = vmatpush1.xpose.msra.mxu0 0.0
        %1116 = vmatprep.subr.mxu0 0.0
        %1117 = vmatpush1.xpose.msra.mxu0 0.0
        %1118 = vmatprep.subr.mxu0 0.0
        %1119 = vmatpush1.xpose.msra.mxu0 0.0
        %1120 = vmatprep.subr.mxu0 0.0
        %1121 = vmatpush1.xpose.msra.mxu0 0.0
        %1122 = vmatprep.subr.mxu0 0.0
        %1123 = vmatpush1.xpose.msra.mxu0 0.0
        %1124 = vmatprep.subr.mxu0 0.0
        %1125 = vmatpush1.xpose.msra.mxu0 0.0
        %1126 = vmatprep.subr.mxu0 0.0
        %1127 = vmatpush1.xpose.msra.mxu0 0.0
        %1128 = vmatprep.subr.mxu0 0.0
        %1129 = vmatpush1.xpose.msra.mxu0 0.0
        %1130 = vmatprep.subr.mxu0 0.0
        %1131 = vmatpush1.xpose.msra.mxu0 0.0
        %1132 = vmatprep.subr.mxu0 0.0
        %1133 = vmatpush1.xpose.msra.mxu0 0.0
        %1134 = vmatprep.subr.mxu0 0.0
        %1135 = vmatpush1.xpose.msra.mxu0 0.0
        %1136 = vmatprep.subr.mxu0 0.0
        %1137 = vmatpush1.xpose.msra.mxu0 0.0
        %1138 = vmatprep.subr.mxu0 0.0
        %1139 = vmatpush1.xpose.msra.mxu0 0.0
        %1140 = vmatprep.subr.mxu0 0.0
        %1141 = vmatpush1.xpose.msra.mxu0 0.0
        %1142 = vmatprep.subr.mxu0 0.0
        %1143 = vmatpush1.xpose.msra.mxu0 0.0
        %1144 = vmatprep.subr.mxu0 0.0
        %1145 = vmatpush1.xpose.msra.mxu0 0.0
        %1146 = vmatprep.subr.mxu0 0.0
        %1147 = vmatpush1.xpose.msra.mxu0 0.0
        %1148 = vmatprep.subr.mxu0 0.0
        %1149 = vmatpush1.xpose.msra.mxu0 0.0
        %1150 = vmatprep.subr.mxu0 0.0
        %1151 = vmatpush1.xpose.msra.mxu0 0.0
        %1152 = vmatprep.subr.mxu0 0.0
        %1153 = vmatpush1.xpose.msra.mxu0 0.0
        %1154 = vmatprep.subr.mxu0 0.0
        %1155 = vmatpush1.xpose.msra.mxu0 0.0
        %1156 = vmatprep.mubr.f32.mxu0 0.0
        %1157 = vmatmul.mubr.f32.gmra.mrb[0].mxu0 %v1081
        %v1158 = vpop.f32.mrb[0].mxu0
        %v1159 = vadd.f32 0.0, %v1158
        %v1160 = vpop.f32.mrb[0].mxu0
        %1161 = vmatprep.mubr.f32.mxu0 0.0
        %1162 = vmatmul.mubr.f32.gmra.mrb[0].mxu0 %v1084
        %v1163 = vpop.f32.mrb[0].mxu0
        %v1164 = vadd.f32 0.0, %v1163
        %v1165 = vpop.f32.mrb[0].mxu0
        %1166 = vdwg.mxu0
        %v1168 = vsel %vm1079, %v829, 0
        %v1171 = vsel %vm1079, %v834, 0
        %v1174 = vsel %vm1079, %v937, 0
        %v1177 = vsel %vm1079, %v942, 0
        %1179 = vmatprep.subr.mxu0 0.0
        %1180 = vmatpush1.xpose.msra.mxu0 %v1174
        %1181 = vmatprep.subr.mxu0 0.0
        %1182 = vmatpush1.xpose.msra.mxu0 %v1177
        %1183 = vmatprep.subr.mxu0 0.0
        %1184 = vmatpush1.xpose.msra.mxu0 0.0
        %1185 = vmatprep.subr.mxu0 0.0
        %1186 = vmatpush1.xpose.msra.mxu0 0.0
        %1187 = vmatprep.subr.mxu0 0.0
        %1188 = vmatpush1.xpose.msra.mxu0 0.0
        %1189 = vmatprep.subr.mxu0 0.0
        %1190 = vmatpush1.xpose.msra.mxu0 0.0
        %1191 = vmatprep.subr.mxu0 0.0
        %1192 = vmatpush1.xpose.msra.mxu0 0.0
        %1193 = vmatprep.subr.mxu0 0.0
        %1194 = vmatpush1.xpose.msra.mxu0 0.0
        %1195 = vmatprep.subr.mxu0 0.0
        %1196 = vmatpush1.xpose.msra.mxu0 0.0
        %1197 = vmatprep.subr.mxu0 0.0
        %1198 = vmatpush1.xpose.msra.mxu0 0.0
        %1199 = vmatprep.subr.mxu0 0.0
        %1200 = vmatpush1.xpose.msra.mxu0 0.0
        %1201 = vmatprep.subr.mxu0 0.0
        %1202 = vmatpush1.xpose.msra.mxu0 0.0
        %1203 = vmatprep.subr.mxu0 0.0
        %1204 = vmatpush1.xpose.msra.mxu0 0.0
        %1205 = vmatprep.subr.mxu0 0.0
        %1206 = vmatpush1.xpose.msra.mxu0 0.0
        %1207 = vmatprep.subr.mxu0 0.0
        %1208 = vmatpush1.xpose.msra.mxu0 0.0
        %1209 = vmatprep.subr.mxu0 0.0
        %1210 = vmatpush1.xpose.msra.mxu0 0.0
        %1211 = vmatprep.subr.mxu0 0.0
        %1212 = vmatpush1.xpose.msra.mxu0 0.0
        %1213 = vmatprep.subr.mxu0 0.0
        %1214 = vmatpush1.xpose.msra.mxu0 0.0
        %1215 = vmatprep.subr.mxu0 0.0
        %1216 = vmatpush1.xpose.msra.mxu0 0.0
        %1217 = vmatprep.subr.mxu0 0.0
        %1218 = vmatpush1.xpose.msra.mxu0 0.0
        %1219 = vmatprep.subr.mxu0 0.0
        %1220 = vmatpush1.xpose.msra.mxu0 0.0
        %1221 = vmatprep.subr.mxu0 0.0
        %1222 = vmatpush1.xpose.msra.mxu0 0.0
        %1223 = vmatprep.subr.mxu0 0.0
        %1224 = vmatpush1.xpose.msra.mxu0 0.0
        %1225 = vmatprep.subr.mxu0 0.0
        %1226 = vmatpush1.xpose.msra.mxu0 0.0
        %1227 = vmatprep.subr.mxu0 0.0
        %1228 = vmatpush1.xpose.msra.mxu0 0.0
        %1229 = vmatprep.subr.mxu0 0.0
        %1230 = vmatpush1.xpose.msra.mxu0 0.0
        %1231 = vmatprep.subr.mxu0 0.0
        %1232 = vmatpush1.xpose.msra.mxu0 0.0
        %1233 = vmatprep.subr.mxu0 0.0
        %1234 = vmatpush1.xpose.msra.mxu0 0.0
        %1235 = vmatprep.subr.mxu0 0.0
        %1236 = vmatpush1.xpose.msra.mxu0 0.0
        %1237 = vmatprep.subr.mxu0 0.0
        %1238 = vmatpush1.xpose.msra.mxu0 0.0
        %1239 = vmatprep.subr.mxu0 0.0
        %1240 = vmatpush1.xpose.msra.mxu0 0.0
        %1241 = vmatprep.subr.mxu0 0.0
        %1242 = vmatpush1.xpose.msra.mxu0 0.0
        %1243 = vmatprep.mubr.f32.mxu0 0.0
        %1244 = vmatmul.mubr.f32.gmra.mrb[0].mxu0 %v1168
        %v1245 = vpop.f32.mrb[0].mxu0
        %v1246 = vadd.f32 0.0, %v1245
        %v1247 = vpop.f32.mrb[0].mxu0
        %1248 = vmatprep.mubr.f32.mxu0 0.0
        %1249 = vmatmul.mubr.f32.gmra.mrb[0].mxu0 %v1171
        %v1250 = vpop.f32.mrb[0].mxu0
        %v1251 = vadd.f32 0.0, %v1250
        %v1252 = vpop.f32.mrb[0].mxu0
        %1253 = vdwg.mxu0
        %v1254 = vmul.f32 %v1159, 0.17677669
        %v1255 = vmul.f32 %v1164, 0.17677669
        %v1256 = vmul.f32 %v1246, 0.17677669
        %v1257 = vmul.f32 %v1251, 0.17677669
        %v1260 = vlaneseq
        %v1261 = vshrl.u32 %v1260, 7
        %v1262 = vsub.s32 0, %v1261
        %v1263 = vrot.slane %v1057, %v1262
        %v1264 = vlaneseq
        %v1265 = vshrl.u32 %v1264, 7
        %v1266 = vsub.s32 0, %v1265
        %v1267 = vrot.slane %v1058, %v1266
        %v1270 = vadd.f32 %v1254, %v1263
        %v1271 = vadd.f32 %v1255, %v1263
        %v1272 = vadd.f32 %v1256, %v1267
        %v1273 = vadd.f32 %v1257, %v1267
        %vm1274 = vcmask 130048
        %v1275 = vsel %vm1274, %v1270, -inf
        %1276 = vmax.xlane.f32.xlu0 %v1275
        %v1277 = vpop.xlane.xlu0 %1276
        %v1278 = vsel %vm1274, %v1271, -inf
        %1279 = vmax.xlane.f32.xlu0 %v1278
        %v1280 = vpop.xlane.xlu0 %1279
        %v1281 = vsel %vm1274, %v1272, -inf
        %1282 = vmax.xlane.f32.xlu0 %v1281
        %v1283 = vpop.xlane.xlu0 %1282
        %v1284 = vsel %vm1274, %v1273, -inf
        %1285 = vmax.xlane.f32.xlu0 %v1284
        %v1286 = vpop.xlane.xlu0 %1285
        %v1287 = vsub.f32 %v1270, %v1277
        %v1288 = vsub.f32 %v1271, %v1280
        %v1289 = vsub.f32 %v1272, %v1283
        %v1290 = vsub.f32 %v1273, %v1286
        %v1291 = vmul.f32 %v1287, 1.442695
        %v1292 = vpow.pop %v1291
        %v1293 = vmul.f32 %v1288, 1.442695
        %v1294 = vpow.pop %v1293
        %v1295 = vmul.f32 %v1289, 1.442695
        %v1296 = vpow.pop %v1295
        %v1297 = vmul.f32 %v1290, 1.442695
        %v1298 = vpow.pop %v1297
        %v1299 = vsel %vm1274, %v1292, 0.0
        %1300 = vadd.xlane.f32.xlu0 %v1299
        %v1301 = vpop.xlane.xlu0 %1300
        %v1302 = vsel %vm1274, %v1294, 0.0
        %1303 = vadd.xlane.f32.xlu0 %v1302
        %v1304 = vpop.xlane.xlu0 %1303
        %v1305 = vsel %vm1274, %v1296, 0.0
        %1306 = vadd.xlane.f32.xlu0 %v1305
        %v1307 = vpop.xlane.xlu0 %1306
        %v1308 = vsel %vm1274, %v1298, 0.0
        %1309 = vadd.xlane.f32.xlu0 %v1308
        %v1310 = vpop.xlane.xlu0 %1309
        %v1311 = vrcp.pop %v1301
        %v1312 = vrcp.pop %v1304
        %v1313 = vrcp.pop %v1307
        %v1314 = vrcp.pop %v1310
        %v1315 = vmul.f32 %v1292, %v1311
        %v1316 = vmul.f32 %v1294, %v1312
        %v1317 = vmul.f32 %v1296, %v1313
        %v1318 = vmul.f32 %v1298, %v1314
        %v1320 = vsel %vm1274, %v1315, 0
        %v1323 = vsel %vm1274, %v1316, 0
        %1325 = vmatprep.subr.mxu0 0.0
        %1326 = vmatpush1.msra.mxu0 %v1035
        %1327 = vmatprep.subr.mxu0 0.0
        %1328 = vmatpush1.msra.mxu0 %v1040
        %1329 = vmatprep.subr.mxu0 0.0
        %1330 = vmatpush1.msra.mxu0 0.0
        %1331 = vmatprep.subr.mxu0 0.0
        %1332 = vmatpush1.msra.mxu0 0.0
        %1333 = vmatprep.subr.mxu0 0.0
        %1334 = vmatpush1.msra.mxu0 0.0
        %1335 = vmatprep.subr.mxu0 0.0
        %1336 = vmatpush1.msra.mxu0 0.0
        %1337 = vmatprep.subr.mxu0 0.0
        %1338 = vmatpush1.msra.mxu0 0.0
        %1339 = vmatprep.subr.mxu0 0.0
        %1340 = vmatpush1.msra.mxu0 0.0
        %1341 = vmatprep.subr.mxu0 0.0
        %1342 = vmatpush1.msra.mxu0 0.0
        %1343 = vmatprep.subr.mxu0 0.0
        %1344 = vmatpush1.msra.mxu0 0.0
        %1345 = vmatprep.subr.mxu0 0.0
        %1346 = vmatpush1.msra.mxu0 0.0
        %1347 = vmatprep.subr.mxu0 0.0
        %1348 = vmatpush1.msra.mxu0 0.0
        %1349 = vmatprep.subr.mxu0 0.0
        %1350 = vmatpush1.msra.mxu0 0.0
        %1351 = vmatprep.subr.mxu0 0.0
        %1352 = vmatpush1.msra.mxu0 0.0
        %1353 = vmatprep.subr.mxu0 0.0
        %1354 = vmatpush1.msra.mxu0 0.0
        %1355 = vmatprep.subr.mxu0 0.0
        %1356 = vmatpush1.msra.mxu0 0.0
        %1357 = vmatprep.subr.mxu0 0.0
        %1358 = vmatpush1.msra.mxu0 0.0
        %1359 = vmatprep.subr.mxu0 0.0
        %1360 = vmatpush1.msra.mxu0 0.0
        %1361 = vmatprep.subr.mxu0 0.0
        %1362 = vmatpush1.msra.mxu0 0.0
        %1363 = vmatprep.subr.mxu0 0.0
        %1364 = vmatpush1.msra.mxu0 0.0
        %1365 = vmatprep.subr.mxu0 0.0
        %1366 = vmatpush1.msra.mxu0 0.0
        %1367 = vmatprep.subr.mxu0 0.0
        %1368 = vmatpush1.msra.mxu0 0.0
        %1369 = vmatprep.subr.mxu0 0.0
        %1370 = vmatpush1.msra.mxu0 0.0
        %1371 = vmatprep.subr.mxu0 0.0
        %1372 = vmatpush1.msra.mxu0 0.0
        %1373 = vmatprep.subr.mxu0 0.0
        %1374 = vmatpush1.msra.mxu0 0.0
        %1375 = vmatprep.subr.mxu0 0.0
        %1376 = vmatpush1.msra.mxu0 0.0
        %1377 = vmatprep.subr.mxu0 0.0
        %1378 = vmatpush1.msra.mxu0 0.0
        %1379 = vmatprep.subr.mxu0 0.0
        %1380 = vmatpush1.msra.mxu0 0.0
        %1381 = vmatprep.subr.mxu0 0.0
        %1382 = vmatpush1.msra.mxu0 0.0
        %1383 = vmatprep.subr.mxu0 0.0
        %1384 = vmatpush1.msra.mxu0 0.0
        %1385 = vmatprep.subr.mxu0 0.0
        %1386 = vmatpush1.msra.mxu0 0.0
        %1387 = vmatprep.subr.mxu0 0.0
        %1388 = vmatpush1.msra.mxu0 0.0
        %1389 = vmatprep.mubr.f32.mxu0 0.0
        %1390 = vmatmul.mubr.f32.gmra.mrb[0].mxu0 %v1320
        %v1391 = vpop.f32.mrb[0].mxu0
        %v1392 = vadd.f32 0.0, %v1391
        %v1393 = vpop.f32.mrb[0].mxu0
        %1394 = vmatprep.mubr.f32.mxu0 0.0
        %1395 = vmatmul.mubr.f32.gmra.mrb[0].mxu0 %v1323
        %v1396 = vpop.f32.mrb[0].mxu0
        %v1397 = vadd.f32 0.0, %v1396
        %v1398 = vpop.f32.mrb[0].mxu0
        %1399 = vdwg.mxu0
        %v1401 = vsel %vm1274, %v1317, 0
        %v1404 = vsel %vm1274, %v1318, 0
        %1406 = vmatprep.subr.mxu0 0.0
        %1407 = vmatpush1.msra.mxu0 %v1045
        %1408 = vmatprep.subr.mxu0 0.0
        %1409 = vmatpush1.msra.mxu0 %v1050
        %1410 = vmatprep.subr.mxu0 0.0
        %1411 = vmatpush1.msra.mxu0 0.0
        %1412 = vmatprep.subr.mxu0 0.0
        %1413 = vmatpush1.msra.mxu0 0.0
        %1414 = vmatprep.subr.mxu0 0.0
        %1415 = vmatpush1.msra.mxu0 0.0
        %1416 = vmatprep.subr.mxu0 0.0
        %1417 = vmatpush1.msra.mxu0 0.0
        %1418 = vmatprep.subr.mxu0 0.0
        %1419 = vmatpush1.msra.mxu0 0.0
        %1420 = vmatprep.subr.mxu0 0.0
        %1421 = vmatpush1.msra.mxu0 0.0
        %1422 = vmatprep.subr.mxu0 0.0
        %1423 = vmatpush1.msra.mxu0 0.0
        %1424 = vmatprep.subr.mxu0 0.0
        %1425 = vmatpush1.msra.mxu0 0.0
        %1426 = vmatprep.subr.mxu0 0.0
        %1427 = vmatpush1.msra.mxu0 0.0
        %1428 = vmatprep.subr.mxu0 0.0
        %1429 = vmatpush1.msra.mxu0 0.0
        %1430 = vmatprep.subr.mxu0 0.0
        %1431 = vmatpush1.msra.mxu0 0.0
        %1432 = vmatprep.subr.mxu0 0.0
        %1433 = vmatpush1.msra.mxu0 0.0
        %1434 = vmatprep.subr.mxu0 0.0
        %1435 = vmatpush1.msra.mxu0 0.0
        %1436 = vmatprep.subr.mxu0 0.0
        %1437 = vmatpush1.msra.mxu0 0.0
        %1438 = vmatprep.subr.mxu0 0.0
        %1439 = vmatpush1.msra.mxu0 0.0
        %1440 = vmatprep.subr.mxu0 0.0
        %1441 = vmatpush1.msra.mxu0 0.0
        %1442 = vmatprep.subr.mxu0 0.0
        %1443 = vmatpush1.msra.mxu0 0.0
        %1444 = vmatprep.subr.mxu0 0.0
        %1445 = vmatpush1.msra.mxu0 0.0
        %1446 = vmatprep.subr.mxu0 0.0
        %1447 = vmatpush1.msra.mxu0 0.0
        %1448 = vmatprep.subr.mxu0 0.0
        %1449 = vmatpush1.msra.mxu0 0.0
        %1450 = vmatprep.subr.mxu0 0.0
        %1451 = vmatpush1.msra.mxu0 0.0
        %1452 = vmatprep.subr.mxu0 0.0
        %1453 = vmatpush1.msra.mxu0 0.0
        %1454 = vmatprep.subr.mxu0 0.0
        %1455 = vmatpush1.msra.mxu0 0.0
        %1456 = vmatprep.subr.mxu0 0.0
        %1457 = vmatpush1.msra.mxu0 0.0
        %1458 = vmatprep.subr.mxu0 0.0
        %1459 = vmatpush1.msra.mxu0 0.0
        %1460 = vmatprep.subr.mxu0 0.0
        %1461 = vmatpush1.msra.mxu0 0.0
        %1462 = vmatprep.subr.mxu0 0.0
        %1463 = vmatpush1.msra.mxu0 0.0
        %1464 = vmatprep.subr.mxu0 0.0
        %1465 = vmatpush1.msra.mxu0 0.0
        %1466 = vmatprep.subr.mxu0 0.0
        %1467 = vmatpush1.msra.mxu0 0.0
        %1468 = vmatprep.subr.mxu0 0.0
        %1469 = vmatpush1.msra.mxu0 0.0
        %1470 = vmatprep.mubr.f32.mxu0 0.0
        %1471 = vmatmul.mubr.f32.gmra.mrb[0].mxu0 %v1401
        %v1472 = vpop.f32.mrb[0].mxu0
        %v1473 = vadd.f32 0.0, %v1472
        %v1474 = vpop.f32.mrb[0].mxu0
        %1475 = vmatprep.mubr.f32.mxu0 0.0
        %1476 = vmatmul.mubr.f32.gmra.mrb[0].mxu0 %v1404
        %v1477 = vpop.f32.mrb[0].mxu0
        %v1478 = vadd.f32 0.0, %v1477
        %v1479 = vpop.f32.mrb[0].mxu0
        %1480 = vdwg.mxu0
        %1481 = vrot.lane.b32.xlu0 %v819, 96
        %v1482 = vpop.permute.xlu0 %1481
        %1483 = vrot.lane.b32.xlu0 %v824, 96
        %v1484 = vpop.permute.xlu0 %1483
        %1485 = vrot.lane.b32.xlu0 %v927, 96
        %v1486 = vpop.permute.xlu0 %1485
        %1487 = vrot.lane.b32.xlu0 %v932, 96
        %v1488 = vpop.permute.xlu0 %1487
        %v1489 = vsel %vm1079, %v1482, 0
        %v1491 = vsel %vm1079, %v1484, 0
        %v1493 = vsel %vm1079, %v1486, 0
        %v1495 = vsel %vm1079, %v1488, 0
        %1497 = vmatprep.subr.mxu0 0.0
        %1498 = vmatpush1.xpose.msra.mxu0 %v1493
        %1499 = vmatprep.subr.mxu0 0.0
        %1500 = vmatpush1.xpose.msra.mxu0 %v1495
        %1501 = vmatprep.subr.mxu0 0.0
        %1502 = vmatpush1.xpose.msra.mxu0 0.0
        %1503 = vmatprep.subr.mxu0 0.0
        %1504 = vmatpush1.xpose.msra.mxu0 0.0
        %1505 = vmatprep.subr.mxu0 0.0
        %1506 = vmatpush1.xpose.msra.mxu0 0.0
        %1507 = vmatprep.subr.mxu0 0.0
        %1508 = vmatpush1.xpose.msra.mxu0 0.0
        %1509 = vmatprep.subr.mxu0 0.0
        %1510 = vmatpush1.xpose.msra.mxu0 0.0
        %1511 = vmatprep.subr.mxu0 0.0
        %1512 = vmatpush1.xpose.msra.mxu0 0.0
        %1513 = vmatprep.subr.mxu0 0.0
        %1514 = vmatpush1.xpose.msra.mxu0 0.0
        %1515 = vmatprep.subr.mxu0 0.0
        %1516 = vmatpush1.xpose.msra.mxu0 0.0
        %1517 = vmatprep.subr.mxu0 0.0
        %1518 = vmatpush1.xpose.msra.mxu0 0.0
        %1519 = vmatprep.subr.mxu0 0.0
        %1520 = vmatpush1.xpose.msra.mxu0 0.0
        %1521 = vmatprep.subr.mxu0 0.0
        %1522 = vmatpush1.xpose.msra.mxu0 0.0
        %1523 = vmatprep.subr.mxu0 0.0
        %1524 = vmatpush1.xpose.msra.mxu0 0.0
        %1525 = vmatprep.subr.mxu0 0.0
        %1526 = vmatpush1.xpose.msra.mxu0 0.0
        %1527 = vmatprep.subr.mxu0 0.0
        %1528 = vmatpush1.xpose.msra.mxu0 0.0
        %1529 = vmatprep.subr.mxu0 0.0
        %1530 = vmatpush1.xpose.msra.mxu0 0.0
        %1531 = vmatprep.subr.mxu0 0.0
        %1532 = vmatpush1.xpose.msra.mxu0 0.0
        %1533 = vmatprep.subr.mxu0 0.0
        %1534 = vmatpush1.xpose.msra.mxu0 0.0
        %1535 = vmatprep.subr.mxu0 0.0
        %1536 = vmatpush1.xpose.msra.mxu0 0.0
        %1537 = vmatprep.subr.mxu0 0.0
        %1538 = vmatpush1.xpose.msra.mxu0 0.0
        %1539 = vmatprep.subr.mxu0 0.0
        %1540 = vmatpush1.xpose.msra.mxu0 0.0
        %1541 = vmatprep.subr.mxu0 0.0
        %1542 = vmatpush1.xpose.msra.mxu0 0.0
        %1543 = vmatprep.subr.mxu0 0.0
        %1544 = vmatpush1.xpose.msra.mxu0 0.0
        %1545 = vmatprep.subr.mxu0 0.0
        %1546 = vmatpush1.xpose.msra.mxu0 0.0
        %1547 = vmatprep.subr.mxu0 0.0
        %1548 = vmatpush1.xpose.msra.mxu0 0.0
        %1549 = vmatprep.subr.mxu0 0.0
        %1550 = vmatpush1.xpose.msra.mxu0 0.0
        %1551 = vmatprep.subr.mxu0 0.0
        %1552 = vmatpush1.xpose.msra.mxu0 0.0
        %1553 = vmatprep.subr.mxu0 0.0
        %1554 = vmatpush1.xpose.msra.mxu0 0.0
        %1555 = vmatprep.subr.mxu0 0.0
        %1556 = vmatpush1.xpose.msra.mxu0 0.0
        %1557 = vmatprep.subr.mxu0 0.0
        %1558 = vmatpush1.xpose.msra.mxu0 0.0
        %1559 = vmatprep.subr.mxu0 0.0
        %1560 = vmatpush1.xpose.msra.mxu0 0.0
        %1561 = vmatprep.mubr.f32.mxu0 0.0
        %1562 = vmatmul.mubr.f32.gmra.mrb[0].mxu0 %v1489
        %v1563 = vpop.f32.mrb[0].mxu0
        %v1564 = vadd.f32 0.0, %v1563
        %v1565 = vpop.f32.mrb[0].mxu0
        %1566 = vmatprep.mubr.f32.mxu0 0.0
        %1567 = vmatmul.mubr.f32.gmra.mrb[0].mxu0 %v1491
        %v1568 = vpop.f32.mrb[0].mxu0
        %v1569 = vadd.f32 0.0, %v1568
        %v1570 = vpop.f32.mrb[0].mxu0
        %1571 = vdwg.mxu0
        %1572 = vrot.lane.b32.xlu0 %v829, 96
        %v1573 = vpop.permute.xlu0 %1572
        %1574 = vrot.lane.b32.xlu0 %v834, 96
        %v1575 = vpop.permute.xlu0 %1574
        %1576 = vrot.lane.b32.xlu0 %v937, 96
        %v1577 = vpop.permute.xlu0 %1576
        %1578 = vrot.lane.b32.xlu0 %v942, 96
        %v1579 = vpop.permute.xlu0 %1578
        %v1580 = vsel %vm1079, %v1573, 0
        %v1582 = vsel %vm1079, %v1575, 0
        %v1584 = vsel %vm1079, %v1577, 0
        %v1586 = vsel %vm1079, %v1579, 0
        %1588 = vmatprep.subr.mxu0 0.0
        %1589 = vmatpush1.xpose.msra.mxu0 %v1584
        %1590 = vmatprep.subr.mxu0 0.0
        %1591 = vmatpush1.xpose.msra.mxu0 %v1586
        %1592 = vmatprep.subr.mxu0 0.0
        %1593 = vmatpush1.xpose.msra.mxu0 0.0
        %1594 = vmatprep.subr.mxu0 0.0
        %1595 = vmatpush1.xpose.msra.mxu0 0.0
        %1596 = vmatprep.subr.mxu0 0.0
        %1597 = vmatpush1.xpose.msra.mxu0 0.0
        %1598 = vmatprep.subr.mxu0 0.0
        %1599 = vmatpush1.xpose.msra.mxu0 0.0
        %1600 = vmatprep.subr.mxu0 0.0
        %1601 = vmatpush1.xpose.msra.mxu0 0.0
        %1602 = vmatprep.subr.mxu0 0.0
        %1603 = vmatpush1.xpose.msra.mxu0 0.0
        %1604 = vmatprep.subr.mxu0 0.0
        %1605 = vmatpush1.xpose.msra.mxu0 0.0
        %1606 = vmatprep.subr.mxu0 0.0
        %1607 = vmatpush1.xpose.msra.mxu0 0.0
        %1608 = vmatprep.subr.mxu0 0.0
        %1609 = vmatpush1.xpose.msra.mxu0 0.0
        %1610 = vmatprep.subr.mxu0 0.0
        %1611 = vmatpush1.xpose.msra.mxu0 0.0
        %1612 = vmatprep.subr.mxu0 0.0
        %1613 = vmatpush1.xpose.msra.mxu0 0.0
        %1614 = vmatprep.subr.mxu0 0.0
        %1615 = vmatpush1.xpose.msra.mxu0 0.0
        %1616 = vmatprep.subr.mxu0 0.0
        %1617 = vmatpush1.xpose.msra.mxu0 0.0
        %1618 = vmatprep.subr.mxu0 0.0
        %1619 = vmatpush1.xpose.msra.mxu0 0.0
        %1620 = vmatprep.subr.mxu0 0.0
        %1621 = vmatpush1.xpose.msra.mxu0 0.0
        %1622 = vmatprep.subr.mxu0 0.0
        %1623 = vmatpush1.xpose.msra.mxu0 0.0
        %1624 = vmatprep.subr.mxu0 0.0
        %1625 = vmatpush1.xpose.msra.mxu0 0.0
        %1626 = vmatprep.subr.mxu0 0.0
        %1627 = vmatpush1.xpose.msra.mxu0 0.0
        %1628 = vmatprep.subr.mxu0 0.0
        %1629 = vmatpush1.xpose.msra.mxu0 0.0
        %1630 = vmatprep.subr.mxu0 0.0
        %1631 = vmatpush1.xpose.msra.mxu0 0.0
        %1632 = vmatprep.subr.mxu0 0.0
        %1633 = vmatpush1.xpose.msra.mxu0 0.0
        %1634 = vmatprep.subr.mxu0 0.0
        %1635 = vmatpush1.xpose.msra.mxu0 0.0
        %1636 = vmatprep.subr.mxu0 0.0
        %1637 = vmatpush1.xpose.msra.mxu0 0.0
        %1638 = vmatprep.subr.mxu0 0.0
        %1639 = vmatpush1.xpose.msra.mxu0 0.0
        %1640 = vmatprep.subr.mxu0 0.0
        %1641 = vmatpush1.xpose.msra.mxu0 0.0
        %1642 = vmatprep.subr.mxu0 0.0
        %1643 = vmatpush1.xpose.msra.mxu0 0.0
        %1644 = vmatprep.subr.mxu0 0.0
        %1645 = vmatpush1.xpose.msra.mxu0 0.0
        %1646 = vmatprep.subr.mxu0 0.0
        %1647 = vmatpush1.xpose.msra.mxu0 0.0
        %1648 = vmatprep.subr.mxu0 0.0
        %1649 = vmatpush1.xpose.msra.mxu0 0.0
        %1650 = vmatprep.subr.mxu0 0.0
        %1651 = vmatpush1.xpose.msra.mxu0 0.0
        %1652 = vmatprep.mubr.f32.mxu0 0.0
        %1653 = vmatmul.mubr.f32.gmra.mrb[0].mxu0 %v1580
        %v1654 = vpop.f32.mrb[0].mxu0
        %v1655 = vadd.f32 0.0, %v1654
        %v1656 = vpop.f32.mrb[0].mxu0
        %1657 = vmatprep.mubr.f32.mxu0 0.0
        %1658 = vmatmul.mubr.f32.gmra.mrb[0].mxu0 %v1582
        %v1659 = vpop.f32.mrb[0].mxu0
        %v1660 = vadd.f32 0.0, %v1659
        %v1661 = vpop.f32.mrb[0].mxu0
        %1662 = vdwg.mxu0
        %v1663 = vmul.f32 %v1564, 0.17677669
        %v1664 = vmul.f32 %v1569, 0.17677669
        %v1665 = vmul.f32 %v1655, 0.17677669
        %v1666 = vmul.f32 %v1660, 0.17677669
        %v1667 = vadd.f32 %v1663, %v1263
        %v1668 = vadd.f32 %v1664, %v1263
        %v1669 = vadd.f32 %v1665, %v1267
        %v1670 = vadd.f32 %v1666, %v1267
        %v1671 = vsel %vm1274, %v1667, -inf
        %1672 = vmax.xlane.f32.xlu0 %v1671
        %v1673 = vpop.xlane.xlu0 %1672
        %v1674 = vsel %vm1274, %v1668, -inf
        %1675 = vmax.xlane.f32.xlu0 %v1674
        %v1676 = vpop.xlane.xlu0 %1675
        %v1677 = vsel %vm1274, %v1669, -inf
        %1678 = vmax.xlane.f32.xlu0 %v1677
        %v1679 = vpop.xlane.xlu0 %1678
        %v1680 = vsel %vm1274, %v1670, -inf
        %1681 = vmax.xlane.f32.xlu0 %v1680
        %v1682 = vpop.xlane.xlu0 %1681
        %v1683 = vsub.f32 %v1667, %v1673
        %v1684 = vsub.f32 %v1668, %v1676
        %v1685 = vsub.f32 %v1669, %v1679
        %v1686 = vsub.f32 %v1670, %v1682
        %v1687 = vmul.f32 %v1683, 1.442695
        %v1688 = vpow.pop %v1687
        %v1689 = vmul.f32 %v1684, 1.442695
        %v1690 = vpow.pop %v1689
        %v1691 = vmul.f32 %v1685, 1.442695
        %v1692 = vpow.pop %v1691
        %v1693 = vmul.f32 %v1686, 1.442695
        %v1694 = vpow.pop %v1693
        %v1695 = vsel %vm1274, %v1688, 0.0
        %1696 = vadd.xlane.f32.xlu0 %v1695
        %v1697 = vpop.xlane.xlu0 %1696
        %v1698 = vsel %vm1274, %v1690, 0.0
        %1699 = vadd.xlane.f32.xlu0 %v1698
        %v1700 = vpop.xlane.xlu0 %1699
        %v1701 = vsel %vm1274, %v1692, 0.0
        %1702 = vadd.xlane.f32.xlu0 %v1701
        %v1703 = vpop.xlane.xlu0 %1702
        %v1704 = vsel %vm1274, %v1694, 0.0
        %1705 = vadd.xlane.f32.xlu0 %v1704
        %v1706 = vpop.xlane.xlu0 %1705
        %v1707 = vrcp.pop %v1697
        %v1708 = vrcp.pop %v1700
        %v1709 = vrcp.pop %v1703
        %v1710 = vrcp.pop %v1706
        %v1711 = vmul.f32 %v1688, %v1707
        %v1712 = vmul.f32 %v1690, %v1708
        %v1713 = vmul.f32 %v1692, %v1709
        %v1714 = vmul.f32 %v1694, %v1710
        %1717 = vrot.lane.b32.xlu0 %v1035, 96
        %v1718 = vpop.permute.xlu0 %1717
        %1719 = vrot.lane.b32.xlu0 %v1040, 96
        %v1720 = vpop.permute.xlu0 %1719
        %v1724 = vsel %vm1274, %v1711, 0
        %v1727 = vsel %vm1274, %v1712, 0
        %1729 = vmatprep.subr.mxu0 0.0
        %1730 = vmatpush1.msra.mxu0 %v1718
        %1731 = vmatprep.subr.mxu0 0.0
        %1732 = vmatpush1.msra.mxu0 %v1720
        %1733 = vmatprep.subr.mxu0 0.0
        %1734 = vmatpush1.msra.mxu0 0.0
        %1735 = vmatprep.subr.mxu0 0.0
        %1736 = vmatpush1.msra.mxu0 0.0
        %1737 = vmatprep.subr.mxu0 0.0
        %1738 = vmatpush1.msra.mxu0 0.0
        %1739 = vmatprep.subr.mxu0 0.0
        %1740 = vmatpush1.msra.mxu0 0.0
        %1741 = vmatprep.subr.mxu0 0.0
        %1742 = vmatpush1.msra.mxu0 0.0
        %1743 = vmatprep.subr.mxu0 0.0
        %1744 = vmatpush1.msra.mxu0 0.0
        %1745 = vmatprep.subr.mxu0 0.0
        %1746 = vmatpush1.msra.mxu0 0.0
        %1747 = vmatprep.subr.mxu0 0.0
        %1748 = vmatpush1.msra.mxu0 0.0
        %1749 = vmatprep.subr.mxu0 0.0
        %1750 = vmatpush1.msra.mxu0 0.0
        %1751 = vmatprep.subr.mxu0 0.0
        %1752 = vmatpush1.msra.mxu0 0.0
        %1753 = vmatprep.subr.mxu0 0.0
        %1754 = vmatpush1.msra.mxu0 0.0
        %1755 = vmatprep.subr.mxu0 0.0
        %1756 = vmatpush1.msra.mxu0 0.0
        %1757 = vmatprep.subr.mxu0 0.0
        %1758 = vmatpush1.msra.mxu0 0.0
        %1759 = vmatprep.subr.mxu0 0.0
        %1760 = vmatpush1.msra.mxu0 0.0
        %1761 = vmatprep.subr.mxu0 0.0
        %1762 = vmatpush1.msra.mxu0 0.0
        %1763 = vmatprep.subr.mxu0 0.0
        %1764 = vmatpush1.msra.mxu0 0.0
        %1765 = vmatprep.subr.mxu0 0.0
        %1766 = vmatpush1.msra.mxu0 0.0
        %1767 = vmatprep.subr.mxu0 0.0
        %1768 = vmatpush1.msra.mxu0 0.0
        %1769 = vmatprep.subr.mxu0 0.0
        %1770 = vmatpush1.msra.mxu0 0.0
        %1771 = vmatprep.subr.mxu0 0.0
        %1772 = vmatpush1.msra.mxu0 0.0
        %1773 = vmatprep.subr.mxu0 0.0
        %1774 = vmatpush1.msra.mxu0 0.0
        %1775 = vmatprep.subr.mxu0 0.0
        %1776 = vmatpush1.msra.mxu0 0.0
        %1777 = vmatprep.subr.mxu0 0.0
        %1778 = vmatpush1.msra.mxu0 0.0
        %1779 = vmatprep.subr.mxu0 0.0
        %1780 = vmatpush1.msra.mxu0 0.0
        %1781 = vmatprep.subr.mxu0 0.0
        %1782 = vmatpush1.msra.mxu0 0.0
        %1783 = vmatprep.subr.mxu0 0.0
        %1784 = vmatpush1.msra.mxu0 0.0
        %1785 = vmatprep.subr.mxu0 0.0
        %1786 = vmatpush1.msra.mxu0 0.0
        %1787 = vmatprep.subr.mxu0 0.0
        %1788 = vmatpush1.msra.mxu0 0.0
        %1789 = vmatprep.subr.mxu0 0.0
        %1790 = vmatpush1.msra.mxu0 0.0
        %1791 = vmatprep.subr.mxu0 0.0
        %1792 = vmatpush1.msra.mxu0 0.0
        %1793 = vmatprep.mubr.f32.mxu0 0.0
        %1794 = vmatmul.mubr.f32.gmra.mrb[0].mxu0 %v1724
        %v1795 = vpop.f32.mrb[0].mxu0
        %v1796 = vadd.f32 0.0, %v1795
        %v1797 = vpop.f32.mrb[0].mxu0
        %1798 = vmatprep.mubr.f32.mxu0 0.0
        %1799 = vmatmul.mubr.f32.gmra.mrb[0].mxu0 %v1727
        %v1800 = vpop.f32.mrb[0].mxu0
        %v1801 = vadd.f32 0.0, %v1800
        %v1802 = vpop.f32.mrb[0].mxu0
        %1803 = vdwg.mxu0
        %1806 = vrot.lane.b32.xlu0 %v1045, 96
        %v1807 = vpop.permute.xlu0 %1806
        %1808 = vrot.lane.b32.xlu0 %v1050, 96
        %v1809 = vpop.permute.xlu0 %1808
        %v1813 = vsel %vm1274, %v1713, 0
        %v1816 = vsel %vm1274, %v1714, 0
        %1818 = vmatprep.subr.mxu0 0.0
        %1819 = vmatpush1.msra.mxu0 %v1807
        %1820 = vmatprep.subr.mxu0 0.0
        %1821 = vmatpush1.msra.mxu0 %v1809
        %1822 = vmatprep.subr.mxu0 0.0
        %1823 = vmatpush1.msra.mxu0 0.0
        %1824 = vmatprep.subr.mxu0 0.0
        %1825 = vmatpush1.msra.mxu0 0.0
        %1826 = vmatprep.subr.mxu0 0.0
        %1827 = vmatpush1.msra.mxu0 0.0
        %1828 = vmatprep.subr.mxu0 0.0
        %1829 = vmatpush1.msra.mxu0 0.0
        %1830 = vmatprep.subr.mxu0 0.0
        %1831 = vmatpush1.msra.mxu0 0.0
        %1832 = vmatprep.subr.mxu0 0.0
        %1833 = vmatpush1.msra.mxu0 0.0
        %1834 = vmatprep.subr.mxu0 0.0
        %1835 = vmatpush1.msra.mxu0 0.0
        %1836 = vmatprep.subr.mxu0 0.0
        %1837 = vmatpush1.msra.mxu0 0.0
        %1838 = vmatprep.subr.mxu0 0.0
        %1839 = vmatpush1.msra.mxu0 0.0
        %1840 = vmatprep.subr.mxu0 0.0
        %1841 = vmatpush1.msra.mxu0 0.0
        %1842 = vmatprep.subr.mxu0 0.0
        %1843 = vmatpush1.msra.mxu0 0.0
        %1844 = vmatprep.subr.mxu0 0.0
        %1845 = vmatpush1.msra.mxu0 0.0
        %1846 = vmatprep.subr.mxu0 0.0
        %1847 = vmatpush1.msra.mxu0 0.0
        %1848 = vmatprep.subr.mxu0 0.0
        %1849 = vmatpush1.msra.mxu0 0.0
        %1850 = vmatprep.subr.mxu0 0.0
        %1851 = vmatpush1.msra.mxu0 0.0
        %1852 = vmatprep.subr.mxu0 0.0
        %1853 = vmatpush1.msra.mxu0 0.0
        %1854 = vmatprep.subr.mxu0 0.0
        %1855 = vmatpush1.msra.mxu0 0.0
        %1856 = vmatprep.subr.mxu0 0.0
        %1857 = vmatpush1.msra.mxu0 0.0
        %1858 = vmatprep.subr.mxu0 0.0
        %1859 = vmatpush1.msra.mxu0 0.0
        %1860 = vmatprep.subr.mxu0 0.0
        %1861 = vmatpush1.msra.mxu0 0.0
        %1862 = vmatprep.subr.mxu0 0.0
        %1863 = vmatpush1.msra.mxu0 0.0
        %1864 = vmatprep.subr.mxu0 0.0
        %1865 = vmatpush1.msra.mxu0 0.0
        %1866 = vmatprep.subr.mxu0 0.0
        %1867 = vmatpush1.msra.mxu0 0.0
        %1868 = vmatprep.subr.mxu0 0.0
        %1869 = vmatpush1.msra.mxu0 0.0
        %1870 = vmatprep.subr.mxu0 0.0
        %1871 = vmatpush1.msra.mxu0 0.0
        %1872 = vmatprep.subr.mxu0 0.0
        %1873 = vmatpush1.msra.mxu0 0.0
        %1874 = vmatprep.subr.mxu0 0.0
        %1875 = vmatpush1.msra.mxu0 0.0
        %1876 = vmatprep.subr.mxu0 0.0
        %1877 = vmatpush1.msra.mxu0 0.0
        %1878 = vmatprep.subr.mxu0 0.0
        %1879 = vmatpush1.msra.mxu0 0.0
        %1880 = vmatprep.subr.mxu0 0.0
        %1881 = vmatpush1.msra.mxu0 0.0
        %1882 = vmatprep.mubr.f32.mxu0 0.0
        %1883 = vmatmul.mubr.f32.gmra.mrb[0].mxu0 %v1813
        %v1884 = vpop.f32.mrb[0].mxu0
        %v1885 = vadd.f32 0.0, %v1884
        %v1886 = vpop.f32.mrb[0].mxu0
        %1887 = vmatprep.mubr.f32.mxu0 0.0
        %1888 = vmatmul.mubr.f32.gmra.mrb[0].mxu0 %v1816
        %v1889 = vpop.f32.mrb[0].mxu0
        %v1890 = vadd.f32 0.0, %v1889
        %v1891 = vpop.f32.mrb[0].mxu0
        %1892 = vdwg.mxu0
        %1893 = vrot.lane.b32.xlu0 %v819, 64
        %v1894 = vpop.permute.xlu0 %1893
        %1895 = vrot.lane.b32.xlu0 %v824, 64
        %v1896 = vpop.permute.xlu0 %1895
        %1897 = vrot.lane.b32.xlu0 %v927, 64
        %v1898 = vpop.permute.xlu0 %1897
        %1899 = vrot.lane.b32.xlu0 %v932, 64
        %v1900 = vpop.permute.xlu0 %1899
        %v1901 = vsel %vm1079, %v1894, 0
        %v1903 = vsel %vm1079, %v1896, 0
        %v1905 = vsel %vm1079, %v1898, 0
        %v1907 = vsel %vm1079, %v1900, 0
        %1909 = vmatprep.subr.mxu0 0.0
        %1910 = vmatpush1.xpose.msra.mxu0 %v1905
        %1911 = vmatprep.subr.mxu0 0.0
        %1912 = vmatpush1.xpose.msra.mxu0 %v1907
        %1913 = vmatprep.subr.mxu0 0.0
        %1914 = vmatpush1.xpose.msra.mxu0 0.0
        %1915 = vmatprep.subr.mxu0 0.0
        %1916 = vmatpush1.xpose.msra.mxu0 0.0
        %1917 = vmatprep.subr.mxu0 0.0
        %1918 = vmatpush1.xpose.msra.mxu0 0.0
        %1919 = vmatprep.subr.mxu0 0.0
        %1920 = vmatpush1.xpose.msra.mxu0 0.0
        %1921 = vmatprep.subr.mxu0 0.0
        %1922 = vmatpush1.xpose.msra.mxu0 0.0
        %1923 = vmatprep.subr.mxu0 0.0
        %1924 = vmatpush1.xpose.msra.mxu0 0.0
        %1925 = vmatprep.subr.mxu0 0.0
        %1926 = vmatpush1.xpose.msra.mxu0 0.0
        %1927 = vmatprep.subr.mxu0 0.0
        %1928 = vmatpush1.xpose.msra.mxu0 0.0
        %1929 = vmatprep.subr.mxu0 0.0
        %1930 = vmatpush1.xpose.msra.mxu0 0.0
        %1931 = vmatprep.subr.mxu0 0.0
        %1932 = vmatpush1.xpose.msra.mxu0 0.0
        %1933 = vmatprep.subr.mxu0 0.0
        %1934 = vmatpush1.xpose.msra.mxu0 0.0
        %1935 = vmatprep.subr.mxu0 0.0
        %1936 = vmatpush1.xpose.msra.mxu0 0.0
        %1937 = vmatprep.subr.mxu0 0.0
        %1938 = vmatpush1.xpose.msra.mxu0 0.0
        %1939 = vmatprep.subr.mxu0 0.0
        %1940 = vmatpush1.xpose.msra.mxu0 0.0
        %1941 = vmatprep.subr.mxu0 0.0
        %1942 = vmatpush1.xpose.msra.mxu0 0.0
        %1943 = vmatprep.subr.mxu0 0.0
        %1944 = vmatpush1.xpose.msra.mxu0 0.0
        %1945 = vmatprep.subr.mxu0 0.0
        %1946 = vmatpush1.xpose.msra.mxu0 0.0
        %1947 = vmatprep.subr.mxu0 0.0
        %1948 = vmatpush1.xpose.msra.mxu0 0.0
        %1949 = vmatprep.subr.mxu0 0.0
        %1950 = vmatpush1.xpose.msra.mxu0 0.0
        %1951 = vmatprep.subr.mxu0 0.0
        %1952 = vmatpush1.xpose.msra.mxu0 0.0
        %1953 = vmatprep.subr.mxu0 0.0
        %1954 = vmatpush1.xpose.msra.mxu0 0.0
        %1955 = vmatprep.subr.mxu0 0.0
        %1956 = vmatpush1.xpose.msra.mxu0 0.0
        %1957 = vmatprep.subr.mxu0 0.0
        %1958 = vmatpush1.xpose.msra.mxu0 0.0
        %1959 = vmatprep.subr.mxu0 0.0
        %1960 = vmatpush1.xpose.msra.mxu0 0.0
        %1961 = vmatprep.subr.mxu0 0.0
        %1962 = vmatpush1.xpose.msra.mxu0 0.0
        %1963 = vmatprep.subr.mxu0 0.0
        %1964 = vmatpush1.xpose.msra.mxu0 0.0
        %1965 = vmatprep.subr.mxu0 0.0
        %1966 = vmatpush1.xpose.msra.mxu0 0.0
        %1967 = vmatprep.subr.mxu0 0.0
        %1968 = vmatpush1.xpose.msra.mxu0 0.0
        %1969 = vmatprep.subr.mxu0 0.0
        %1970 = vmatpush1.xpose.msra.mxu0 0.0
        %1971 = vmatprep.subr.mxu0 0.0
        %1972 = vmatpush1.xpose.msra.mxu0 0.0
        %1973 = vmatprep.mubr.f32.mxu0 0.0
        %1974 = vmatmul.mubr.f32.gmra.mrb[0].mxu0 %v1901
        %v1975 = vpop.f32.mrb[0].mxu0
        %v1976 = vadd.f32 0.0, %v1975
        %v1977 = vpop.f32.mrb[0].mxu0
        %1978 = vmatprep.mubr.f32.mxu0 0.0
        %1979 = vmatmul.mubr.f32.gmra.mrb[0].mxu0 %v1903
        %v1980 = vpop.f32.mrb[0].mxu0
        %v1981 = vadd.f32 0.0, %v1980
        %v1982 = vpop.f32.mrb[0].mxu0
        %1983 = vdwg.mxu0
        %1984 = vrot.lane.b32.xlu0 %v829, 64
        %v1985 = vpop.permute.xlu0 %1984
        %1986 = vrot.lane.b32.xlu0 %v834, 64
        %v1987 = vpop.permute.xlu0 %1986
        %1988 = vrot.lane.b32.xlu0 %v937, 64
        %v1989 = vpop.permute.xlu0 %1988
        %1990 = vrot.lane.b32.xlu0 %v942, 64
        %v1991 = vpop.permute.xlu0 %1990
        %v1992 = vsel %vm1079, %v1985, 0
        %v1994 = vsel %vm1079, %v1987, 0
        %v1996 = vsel %vm1079, %v1989, 0
        %v1998 = vsel %vm1079, %v1991, 0
        %2000 = vmatprep.subr.mxu0 0.0
        %2001 = vmatpush1.xpose.msra.mxu0 %v1996
        %2002 = vmatprep.subr.mxu0 0.0
        %2003 = vmatpush1.xpose.msra.mxu0 %v1998
        %2004 = vmatprep.subr.mxu0 0.0
        %2005 = vmatpush1.xpose.msra.mxu0 0.0
        %2006 = vmatprep.subr.mxu0 0.0
        %2007 = vmatpush1.xpose.msra.mxu0 0.0
        %2008 = vmatprep.subr.mxu0 0.0
        %2009 = vmatpush1.xpose.msra.mxu0 0.0
        %2010 = vmatprep.subr.mxu0 0.0
        %2011 = vmatpush1.xpose.msra.mxu0 0.0
        %2012 = vmatprep.subr.mxu0 0.0
        %2013 = vmatpush1.xpose.msra.mxu0 0.0
        %2014 = vmatprep.subr.mxu0 0.0
        %2015 = vmatpush1.xpose.msra.mxu0 0.0
        %2016 = vmatprep.subr.mxu0 0.0
        %2017 = vmatpush1.xpose.msra.mxu0 0.0
        %2018 = vmatprep.subr.mxu0 0.0
        %2019 = vmatpush1.xpose.msra.mxu0 0.0
        %2020 = vmatprep.subr.mxu0 0.0
        %2021 = vmatpush1.xpose.msra.mxu0 0.0
        %2022 = vmatprep.subr.mxu0 0.0
        %2023 = vmatpush1.xpose.msra.mxu0 0.0
        %2024 = vmatprep.subr.mxu0 0.0
        %2025 = vmatpush1.xpose.msra.mxu0 0.0
        %2026 = vmatprep.subr.mxu0 0.0
        %2027 = vmatpush1.xpose.msra.mxu0 0.0
        %2028 = vmatprep.subr.mxu0 0.0
        %2029 = vmatpush1.xpose.msra.mxu0 0.0
        %2030 = vmatprep.subr.mxu0 0.0
        %2031 = vmatpush1.xpose.msra.mxu0 0.0
        %2032 = vmatprep.subr.mxu0 0.0
        %2033 = vmatpush1.xpose.msra.mxu0 0.0
        %2034 = vmatprep.subr.mxu0 0.0
        %2035 = vmatpush1.xpose.msra.mxu0 0.0
        %2036 = vmatprep.subr.mxu0 0.0
        %2037 = vmatpush1.xpose.msra.mxu0 0.0
        %2038 = vmatprep.subr.mxu0 0.0
        %2039 = vmatpush1.xpose.msra.mxu0 0.0
        %2040 = vmatprep.subr.mxu0 0.0
        %2041 = vmatpush1.xpose.msra.mxu0 0.0
        %2042 = vmatprep.subr.mxu0 0.0
        %2043 = vmatpush1.xpose.msra.mxu0 0.0
        %2044 = vmatprep.subr.mxu0 0.0
        %2045 = vmatpush1.xpose.msra.mxu0 0.0
        %2046 = vmatprep.subr.mxu0 0.0
        %2047 = vmatpush1.xpose.msra.mxu0 0.0
        %2048 = vmatprep.subr.mxu0 0.0
        %2049 = vmatpush1.xpose.msra.mxu0 0.0
        %2050 = vmatprep.subr.mxu0 0.0
        %2051 = vmatpush1.xpose.msra.mxu0 0.0
        %2052 = vmatprep.subr.mxu0 0.0
        %2053 = vmatpush1.xpose.msra.mxu0 0.0
        %2054 = vmatprep.subr.mxu0 0.0
        %2055 = vmatpush1.xpose.msra.mxu0 0.0
        %2056 = vmatprep.subr.mxu0 0.0
        %2057 = vmatpush1.xpose.msra.mxu0 0.0
        %2058 = vmatprep.subr.mxu0 0.0
        %2059 = vmatpush1.xpose.msra.mxu0 0.0
        %2060 = vmatprep.subr.mxu0 0.0
        %2061 = vmatpush1.xpose.msra.mxu0 0.0
        %2062 = vmatprep.subr.mxu0 0.0
        %2063 = vmatpush1.xpose.msra.mxu0 0.0
        %2064 = vmatprep.mubr.f32.mxu0 0.0
        %2065 = vmatmul.mubr.f32.gmra.mrb[0].mxu0 %v1992
        %v2066 = vpop.f32.mrb[0].mxu0
        %v2067 = vadd.f32 0.0, %v2066
        %v2068 = vpop.f32.mrb[0].mxu0
        %2069 = vmatprep.mubr.f32.mxu0 0.0
        %2070 = vmatmul.mubr.f32.gmra.mrb[0].mxu0 %v1994
        %v2071 = vpop.f32.mrb[0].mxu0
        %v2072 = vadd.f32 0.0, %v2071
        %v2073 = vpop.f32.mrb[0].mxu0
        %2074 = vdwg.mxu0
        %v2075 = vmul.f32 %v1976, 0.17677669
        %v2076 = vmul.f32 %v1981, 0.17677669
        %v2077 = vmul.f32 %v2067, 0.17677669
        %v2078 = vmul.f32 %v2072, 0.17677669
        %v2079 = vadd.f32 %v2075, %v1263
        %v2080 = vadd.f32 %v2076, %v1263
        %v2081 = vadd.f32 %v2077, %v1267
        %v2082 = vadd.f32 %v2078, %v1267
        %v2083 = vsel %vm1274, %v2079, -inf
        %2084 = vmax.xlane.f32.xlu0 %v2083
        %v2085 = vpop.xlane.xlu0 %2084
        %v2086 = vsel %vm1274, %v2080, -inf
        %2087 = vmax.xlane.f32.xlu0 %v2086
        %v2088 = vpop.xlane.xlu0 %2087
        %v2089 = vsel %vm1274, %v2081, -inf
        %2090 = vmax.xlane.f32.xlu0 %v2089
        %v2091 = vpop.xlane.xlu0 %2090
        %v2092 = vsel %vm1274, %v2082, -inf
        %2093 = vmax.xlane.f32.xlu0 %v2092
        %v2094 = vpop.xlane.xlu0 %2093
        %v2095 = vsub.f32 %v2079, %v2085
        %v2096 = vsub.f32 %v2080, %v2088
        %v2097 = vsub.f32 %v2081, %v2091
        %v2098 = vsub.f32 %v2082, %v2094
        %v2099 = vmul.f32 %v2095, 1.442695
        %v2100 = vpow.pop %v2099
        %v2101 = vmul.f32 %v2096, 1.442695
        %v2102 = vpow.pop %v2101
        %v2103 = vmul.f32 %v2097, 1.442695
        %v2104 = vpow.pop %v2103
        %v2105 = vmul.f32 %v2098, 1.442695
        %v2106 = vpow.pop %v2105
        %v2107 = vsel %vm1274, %v2100, 0.0
        %2108 = vadd.xlane.f32.xlu0 %v2107
        %v2109 = vpop.xlane.xlu0 %2108
        %v2110 = vsel %vm1274, %v2102, 0.0
        %2111 = vadd.xlane.f32.xlu0 %v2110
        %v2112 = vpop.xlane.xlu0 %2111
        %v2113 = vsel %vm1274, %v2104, 0.0
        %2114 = vadd.xlane.f32.xlu0 %v2113
        %v2115 = vpop.xlane.xlu0 %2114
        %v2116 = vsel %vm1274, %v2106, 0.0
        %2117 = vadd.xlane.f32.xlu0 %v2116
        %v2118 = vpop.xlane.xlu0 %2117
        %v2119 = vrcp.pop %v2109
        %v2120 = vrcp.pop %v2112
        %v2121 = vrcp.pop %v2115
        %v2122 = vrcp.pop %v2118
        %v2123 = vmul.f32 %v2100, %v2119
        %v2124 = vmul.f32 %v2102, %v2120
        %v2125 = vmul.f32 %v2104, %v2121
        %v2126 = vmul.f32 %v2106, %v2122
        %2127 = vrot.lane.b32.xlu0 %v1035, 64
        %v2128 = vpop.permute.xlu0 %2127
        %2129 = vrot.lane.b32.xlu0 %v1040, 64
        %v2130 = vpop.permute.xlu0 %2129
        %v2134 = vsel %vm1274, %v2123, 0
        %v2137 = vsel %vm1274, %v2124, 0
        %2139 = vmatprep.subr.mxu0 0.0
        %2140 = vmatpush1.msra.mxu0 %v2128
        %2141 = vmatprep.subr.mxu0 0.0
        %2142 = vmatpush1.msra.mxu0 %v2130
        %2143 = vmatprep.subr.mxu0 0.0
        %2144 = vmatpush1.msra.mxu0 0.0
        %2145 = vmatprep.subr.mxu0 0.0
        %2146 = vmatpush1.msra.mxu0 0.0
        %2147 = vmatprep.subr.mxu0 0.0
        %2148 = vmatpush1.msra.mxu0 0.0
        %2149 = vmatprep.subr.mxu0 0.0
        %2150 = vmatpush1.msra.mxu0 0.0
        %2151 = vmatprep.subr.mxu0 0.0
        %2152 = vmatpush1.msra.mxu0 0.0
        %2153 = vmatprep.subr.mxu0 0.0
        %2154 = vmatpush1.msra.mxu0 0.0
        %2155 = vmatprep.subr.mxu0 0.0
        %2156 = vmatpush1.msra.mxu0 0.0
        %2157 = vmatprep.subr.mxu0 0.0
        %2158 = vmatpush1.msra.mxu0 0.0
        %2159 = vmatprep.subr.mxu0 0.0
        %2160 = vmatpush1.msra.mxu0 0.0
        %2161 = vmatprep.subr.mxu0 0.0
        %2162 = vmatpush1.msra.mxu0 0.0
        %2163 = vmatprep.subr.mxu0 0.0
        %2164 = vmatpush1.msra.mxu0 0.0
        %2165 = vmatprep.subr.mxu0 0.0
        %2166 = vmatpush1.msra.mxu0 0.0
        %2167 = vmatprep.subr.mxu0 0.0
        %2168 = vmatpush1.msra.mxu0 0.0
        %2169 = vmatprep.subr.mxu0 0.0
        %2170 = vmatpush1.msra.mxu0 0.0
        %2171 = vmatprep.subr.mxu0 0.0
        %2172 = vmatpush1.msra.mxu0 0.0
        %2173 = vmatprep.subr.mxu0 0.0
        %2174 = vmatpush1.msra.mxu0 0.0
        %2175 = vmatprep.subr.mxu0 0.0
        %2176 = vmatpush1.msra.mxu0 0.0
        %2177 = vmatprep.subr.mxu0 0.0
        %2178 = vmatpush1.msra.mxu0 0.0
        %2179 = vmatprep.subr.mxu0 0.0
        %2180 = vmatpush1.msra.mxu0 0.0
        %2181 = vmatprep.subr.mxu0 0.0
        %2182 = vmatpush1.msra.mxu0 0.0
        %2183 = vmatprep.subr.mxu0 0.0
        %2184 = vmatpush1.msra.mxu0 0.0
        %2185 = vmatprep.subr.mxu0 0.0
        %2186 = vmatpush1.msra.mxu0 0.0
        %2187 = vmatprep.subr.mxu0 0.0
        %2188 = vmatpush1.msra.mxu0 0.0
        %2189 = vmatprep.subr.mxu0 0.0
        %2190 = vmatpush1.msra.mxu0 0.0
        %2191 = vmatprep.subr.mxu0 0.0
        %2192 = vmatpush1.msra.mxu0 0.0
        %2193 = vmatprep.subr.mxu0 0.0
        %2194 = vmatpush1.msra.mxu0 0.0
        %2195 = vmatprep.subr.mxu0 0.0
        %2196 = vmatpush1.msra.mxu0 0.0
        %2197 = vmatprep.subr.mxu0 0.0
        %2198 = vmatpush1.msra.mxu0 0.0
        %2199 = vmatprep.subr.mxu0 0.0
        %2200 = vmatpush1.msra.mxu0 0.0
        %2201 = vmatprep.subr.mxu0 0.0
        %2202 = vmatpush1.msra.mxu0 0.0
        %2203 = vmatprep.mubr.f32.mxu0 0.0
        %2204 = vmatmul.mubr.f32.gmra.mrb[0].mxu0 %v2134
        %v2205 = vpop.f32.mrb[0].mxu0
        %v2206 = vadd.f32 0.0, %v2205
        %v2207 = vpop.f32.mrb[0].mxu0
        %2208 = vmatprep.mubr.f32.mxu0 0.0
        %2209 = vmatmul.mubr.f32.gmra.mrb[0].mxu0 %v2137
        %v2210 = vpop.f32.mrb[0].mxu0
        %v2211 = vadd.f32 0.0, %v2210
        %v2212 = vpop.f32.mrb[0].mxu0
        %2213 = vdwg.mxu0
        %2214 = vrot.lane.b32.xlu0 %v1045, 64
        %v2215 = vpop.permute.xlu0 %2214
        %2216 = vrot.lane.b32.xlu0 %v1050, 64
        %v2217 = vpop.permute.xlu0 %2216
        %v2221 = vsel %vm1274, %v2125, 0
        %v2224 = vsel %vm1274, %v2126, 0
        %2226 = vmatprep.subr.mxu0 0.0
        %2227 = vmatpush1.msra.mxu0 %v2215
        %2228 = vmatprep.subr.mxu0 0.0
        %2229 = vmatpush1.msra.mxu0 %v2217
        %2230 = vmatprep.subr.mxu0 0.0
        %2231 = vmatpush1.msra.mxu0 0.0
        %2232 = vmatprep.subr.mxu0 0.0
        %2233 = vmatpush1.msra.mxu0 0.0
        %2234 = vmatprep.subr.mxu0 0.0
        %2235 = vmatpush1.msra.mxu0 0.0
        %2236 = vmatprep.subr.mxu0 0.0
        %2237 = vmatpush1.msra.mxu0 0.0
        %2238 = vmatprep.subr.mxu0 0.0
        %2239 = vmatpush1.msra.mxu0 0.0
        %2240 = vmatprep.subr.mxu0 0.0
        %2241 = vmatpush1.msra.mxu0 0.0
        %2242 = vmatprep.subr.mxu0 0.0
        %2243 = vmatpush1.msra.mxu0 0.0
        %2244 = vmatprep.subr.mxu0 0.0
        %2245 = vmatpush1.msra.mxu0 0.0
        %2246 = vmatprep.subr.mxu0 0.0
        %2247 = vmatpush1.msra.mxu0 0.0
        %2248 = vmatprep.subr.mxu0 0.0
        %2249 = vmatpush1.msra.mxu0 0.0
        %2250 = vmatprep.subr.mxu0 0.0
        %2251 = vmatpush1.msra.mxu0 0.0
        %2252 = vmatprep.subr.mxu0 0.0
        %2253 = vmatpush1.msra.mxu0 0.0
        %2254 = vmatprep.subr.mxu0 0.0
        %2255 = vmatpush1.msra.mxu0 0.0
        %2256 = vmatprep.subr.mxu0 0.0
        %2257 = vmatpush1.msra.mxu0 0.0
        %2258 = vmatprep.subr.mxu0 0.0
        %2259 = vmatpush1.msra.mxu0 0.0
        %2260 = vmatprep.subr.mxu0 0.0
        %2261 = vmatpush1.msra.mxu0 0.0
        %2262 = vmatprep.subr.mxu0 0.0
        %2263 = vmatpush1.msra.mxu0 0.0
        %2264 = vmatprep.subr.mxu0 0.0
        %2265 = vmatpush1.msra.mxu0 0.0
        %2266 = vmatprep.subr.mxu0 0.0
        %2267 = vmatpush1.msra.mxu0 0.0
        %2268 = vmatprep.subr.mxu0 0.0
        %2269 = vmatpush1.msra.mxu0 0.0
        %2270 = vmatprep.subr.mxu0 0.0
        %2271 = vmatpush1.msra.mxu0 0.0
        %2272 = vmatprep.subr.mxu0 0.0
        %2273 = vmatpush1.msra.mxu0 0.0
        %2274 = vmatprep.subr.mxu0 0.0
        %2275 = vmatpush1.msra.mxu0 0.0
        %2276 = vmatprep.subr.mxu0 0.0
        %2277 = vmatpush1.msra.mxu0 0.0
        %2278 = vmatprep.subr.mxu0 0.0
        %2279 = vmatpush1.msra.mxu0 0.0
        %2280 = vmatprep.subr.mxu0 0.0
        %2281 = vmatpush1.msra.mxu0 0.0
        %2282 = vmatprep.subr.mxu0 0.0
        %2283 = vmatpush1.msra.mxu0 0.0
        %2284 = vmatprep.subr.mxu0 0.0
        %2285 = vmatpush1.msra.mxu0 0.0
        %2286 = vmatprep.subr.mxu0 0.0
        %2287 = vmatpush1.msra.mxu0 0.0
        %2288 = vmatprep.subr.mxu0 0.0
        %2289 = vmatpush1.msra.mxu0 0.0
        %2290 = vmatprep.mubr.f32.mxu0 0.0
        %2291 = vmatmul.mubr.f32.gmra.mrb[0].mxu0 %v2221
        %v2292 = vpop.f32.mrb[0].mxu0
        %v2293 = vadd.f32 0.0, %v2292
        %v2294 = vpop.f32.mrb[0].mxu0
        %2295 = vmatprep.mubr.f32.mxu0 0.0
        %2296 = vmatmul.mubr.f32.gmra.mrb[0].mxu0 %v2224
        %v2297 = vpop.f32.mrb[0].mxu0
        %v2298 = vadd.f32 0.0, %v2297
        %v2299 = vpop.f32.mrb[0].mxu0
        %2300 = vdwg.mxu0
        %2301 = vrot.lane.b32.xlu0 %v819, 32
        %v2302 = vpop.permute.xlu0 %2301
        %2303 = vrot.lane.b32.xlu0 %v824, 32
        %v2304 = vpop.permute.xlu0 %2303
        %2305 = vrot.lane.b32.xlu0 %v927, 32
        %v2306 = vpop.permute.xlu0 %2305
        %2307 = vrot.lane.b32.xlu0 %v932, 32
        %v2308 = vpop.permute.xlu0 %2307
        %v2309 = vsel %vm1079, %v2302, 0
        %v2311 = vsel %vm1079, %v2304, 0
        %v2313 = vsel %vm1079, %v2306, 0
        %v2315 = vsel %vm1079, %v2308, 0
        %2317 = vmatprep.subr.mxu0 0.0
        %2318 = vmatpush1.xpose.msra.mxu0 %v2313
        %2319 = vmatprep.subr.mxu0 0.0
        %2320 = vmatpush1.xpose.msra.mxu0 %v2315
        %2321 = vmatprep.subr.mxu0 0.0
        %2322 = vmatpush1.xpose.msra.mxu0 0.0
        %2323 = vmatprep.subr.mxu0 0.0
        %2324 = vmatpush1.xpose.msra.mxu0 0.0
        %2325 = vmatprep.subr.mxu0 0.0
        %2326 = vmatpush1.xpose.msra.mxu0 0.0
        %2327 = vmatprep.subr.mxu0 0.0
        %2328 = vmatpush1.xpose.msra.mxu0 0.0
        %2329 = vmatprep.subr.mxu0 0.0
        %2330 = vmatpush1.xpose.msra.mxu0 0.0
        %2331 = vmatprep.subr.mxu0 0.0
        %2332 = vmatpush1.xpose.msra.mxu0 0.0
        %2333 = vmatprep.subr.mxu0 0.0
        %2334 = vmatpush1.xpose.msra.mxu0 0.0
        %2335 = vmatprep.subr.mxu0 0.0
        %2336 = vmatpush1.xpose.msra.mxu0 0.0
        %2337 = vmatprep.subr.mxu0 0.0
        %2338 = vmatpush1.xpose.msra.mxu0 0.0
        %2339 = vmatprep.subr.mxu0 0.0
        %2340 = vmatpush1.xpose.msra.mxu0 0.0
        %2341 = vmatprep.subr.mxu0 0.0
        %2342 = vmatpush1.xpose.msra.mxu0 0.0
        %2343 = vmatprep.subr.mxu0 0.0
        %2344 = vmatpush1.xpose.msra.mxu0 0.0
        %2345 = vmatprep.subr.mxu0 0.0
        %2346 = vmatpush1.xpose.msra.mxu0 0.0
        %2347 = vmatprep.subr.mxu0 0.0
        %2348 = vmatpush1.xpose.msra.mxu0 0.0
        %2349 = vmatprep.subr.mxu0 0.0
        %2350 = vmatpush1.xpose.msra.mxu0 0.0
        %2351 = vmatprep.subr.mxu0 0.0
        %2352 = vmatpush1.xpose.msra.mxu0 0.0
        %2353 = vmatprep.subr.mxu0 0.0
        %2354 = vmatpush1.xpose.msra.mxu0 0.0
        %2355 = vmatprep.subr.mxu0 0.0
        %2356 = vmatpush1.xpose.msra.mxu0 0.0
        %2357 = vmatprep.subr.mxu0 0.0
        %2358 = vmatpush1.xpose.msra.mxu0 0.0
        %2359 = vmatprep.subr.mxu0 0.0
        %2360 = vmatpush1.xpose.msra.mxu0 0.0
        %2361 = vmatprep.subr.mxu0 0.0
        %2362 = vmatpush1.xpose.msra.mxu0 0.0
        %2363 = vmatprep.subr.mxu0 0.0
        %2364 = vmatpush1.xpose.msra.mxu0 0.0
        %2365 = vmatprep.subr.mxu0 0.0
        %2366 = vmatpush1.xpose.msra.mxu0 0.0
        %2367 = vmatprep.subr.mxu0 0.0
        %2368 = vmatpush1.xpose.msra.mxu0 0.0
        %2369 = vmatprep.subr.mxu0 0.0
        %2370 = vmatpush1.xpose.msra.mxu0 0.0
        %2371 = vmatprep.subr.mxu0 0.0
        %2372 = vmatpush1.xpose.msra.mxu0 0.0
        %2373 = vmatprep.subr.mxu0 0.0
        %2374 = vmatpush1.xpose.msra.mxu0 0.0
        %2375 = vmatprep.subr.mxu0 0.0
        %2376 = vmatpush1.xpose.msra.mxu0 0.0
        %2377 = vmatprep.subr.mxu0 0.0
        %2378 = vmatpush1.xpose.msra.mxu0 0.0
        %2379 = vmatprep.subr.mxu0 0.0
        %2380 = vmatpush1.xpose.msra.mxu0 0.0
        %2381 = vmatprep.mubr.f32.mxu0 0.0
        %2382 = vmatmul.mubr.f32.gmra.mrb[0].mxu0 %v2309
        %v2383 = vpop.f32.mrb[0].mxu0
        %v2384 = vadd.f32 0.0, %v2383
        %v2385 = vpop.f32.mrb[0].mxu0
        %2386 = vmatprep.mubr.f32.mxu0 0.0
        %2387 = vmatmul.mubr.f32.gmra.mrb[0].mxu0 %v2311
        %v2388 = vpop.f32.mrb[0].mxu0
        %v2389 = vadd.f32 0.0, %v2388
        %v2390 = vpop.f32.mrb[0].mxu0
        %2391 = vdwg.mxu0
        %2392 = vrot.lane.b32.xlu0 %v829, 32
        %v2393 = vpop.permute.xlu0 %2392
        %2394 = vrot.lane.b32.xlu0 %v834, 32
        %v2395 = vpop.permute.xlu0 %2394
        %2396 = vrot.lane.b32.xlu0 %v937, 32
        %v2397 = vpop.permute.xlu0 %2396
        %2398 = vrot.lane.b32.xlu0 %v942, 32
        %v2399 = vpop.permute.xlu0 %2398
        %v2400 = vsel %vm1079, %v2393, 0
        %v2402 = vsel %vm1079, %v2395, 0
        %v2404 = vsel %vm1079, %v2397, 0
        %v2406 = vsel %vm1079, %v2399, 0
        %2408 = vmatprep.subr.mxu0 0.0
        %2409 = vmatpush1.xpose.msra.mxu0 %v2404
        %2410 = vmatprep.subr.mxu0 0.0
        %2411 = vmatpush1.xpose.msra.mxu0 %v2406
        %2412 = vmatprep.subr.mxu0 0.0
        %2413 = vmatpush1.xpose.msra.mxu0 0.0
        %2414 = vmatprep.subr.mxu0 0.0
        %2415 = vmatpush1.xpose.msra.mxu0 0.0
        %2416 = vmatprep.subr.mxu0 0.0
        %2417 = vmatpush1.xpose.msra.mxu0 0.0
        %2418 = vmatprep.subr.mxu0 0.0
        %2419 = vmatpush1.xpose.msra.mxu0 0.0
        %2420 = vmatprep.subr.mxu0 0.0
        %2421 = vmatpush1.xpose.msra.mxu0 0.0
        %2422 = vmatprep.subr.mxu0 0.0
        %2423 = vmatpush1.xpose.msra.mxu0 0.0
        %2424 = vmatprep.subr.mxu0 0.0
        %2425 = vmatpush1.xpose.msra.mxu0 0.0
        %2426 = vmatprep.subr.mxu0 0.0
        %2427 = vmatpush1.xpose.msra.mxu0 0.0
        %2428 = vmatprep.subr.mxu0 0.0
        %2429 = vmatpush1.xpose.msra.mxu0 0.0
        %2430 = vmatprep.subr.mxu0 0.0
        %2431 = vmatpush1.xpose.msra.mxu0 0.0
        %2432 = vmatprep.subr.mxu0 0.0
        %2433 = vmatpush1.xpose.msra.mxu0 0.0
        %2434 = vmatprep.subr.mxu0 0.0
        %2435 = vmatpush1.xpose.msra.mxu0 0.0
        %2436 = vmatprep.subr.mxu0 0.0
        %2437 = vmatpush1.xpose.msra.mxu0 0.0
        %2438 = vmatprep.subr.mxu0 0.0
        %2439 = vmatpush1.xpose.msra.mxu0 0.0
        %2440 = vmatprep.subr.mxu0 0.0
        %2441 = vmatpush1.xpose.msra.mxu0 0.0
        %2442 = vmatprep.subr.mxu0 0.0
        %2443 = vmatpush1.xpose.msra.mxu0 0.0
        %2444 = vmatprep.subr.mxu0 0.0
        %2445 = vmatpush1.xpose.msra.mxu0 0.0
        %2446 = vmatprep.subr.mxu0 0.0
        %2447 = vmatpush1.xpose.msra.mxu0 0.0
        %2448 = vmatprep.subr.mxu0 0.0
        %2449 = vmatpush1.xpose.msra.mxu0 0.0
        %2450 = vmatprep.subr.mxu0 0.0
        %2451 = vmatpush1.xpose.msra.mxu0 0.0
        %2452 = vmatprep.subr.mxu0 0.0
        %2453 = vmatpush1.xpose.msra.mxu0 0.0
        %2454 = vmatprep.subr.mxu0 0.0
        %2455 = vmatpush1.xpose.msra.mxu0 0.0
        %2456 = vmatprep.subr.mxu0 0.0
        %2457 = vmatpush1.xpose.msra.mxu0 0.0
        %2458 = vmatprep.subr.mxu0 0.0
        %2459 = vmatpush1.xpose.msra.mxu0 0.0
        %2460 = vmatprep.subr.mxu0 0.0
        %2461 = vmatpush1.xpose.msra.mxu0 0.0
        %2462 = vmatprep.subr.mxu0 0.0
        %2463 = vmatpush1.xpose.msra.mxu0 0.0
        %2464 = vmatprep.subr.mxu0 0.0
        %2465 = vmatpush1.xpose.msra.mxu0 0.0
        %2466 = vmatprep.subr.mxu0 0.0
        %2467 = vmatpush1.xpose.msra.mxu0 0.0
        %2468 = vmatprep.subr.mxu0 0.0
        %2469 = vmatpush1.xpose.msra.mxu0 0.0
        %2470 = vmatprep.subr.mxu0 0.0
        %2471 = vmatpush1.xpose.msra.mxu0 0.0
        %2472 = vmatprep.mubr.f32.mxu0 0.0
        %2473 = vmatmul.mubr.f32.gmra.mrb[0].mxu0 %v2400
        %v2474 = vpop.f32.mrb[0].mxu0
        %v2475 = vadd.f32 0.0, %v2474
        %v2476 = vpop.f32.mrb[0].mxu0
        %2477 = vmatprep.mubr.f32.mxu0 0.0
        %2478 = vmatmul.mubr.f32.gmra.mrb[0].mxu0 %v2402
        %v2479 = vpop.f32.mrb[0].mxu0
        %v2480 = vadd.f32 0.0, %v2479
        %v2481 = vpop.f32.mrb[0].mxu0
        %2482 = vdwg.mxu0
        %v2483 = vmul.f32 %v2384, 0.17677669
        %v2484 = vmul.f32 %v2389, 0.17677669
        %v2485 = vmul.f32 %v2475, 0.17677669
        %v2486 = vmul.f32 %v2480, 0.17677669
        %v2487 = vadd.f32 %v2483, %v1263
        %v2488 = vadd.f32 %v2484, %v1263
        %v2489 = vadd.f32 %v2485, %v1267
        %v2490 = vadd.f32 %v2486, %v1267
        %v2491 = vsel %vm1274, %v2487, -inf
        %2492 = vmax.xlane.f32.xlu0 %v2491
        %v2493 = vpop.xlane.xlu0 %2492
        %v2494 = vsel %vm1274, %v2488, -inf
        %2495 = vmax.xlane.f32.xlu0 %v2494
        %v2496 = vpop.xlane.xlu0 %2495
        %v2497 = vsel %vm1274, %v2489, -inf
        %2498 = vmax.xlane.f32.xlu0 %v2497
        %v2499 = vpop.xlane.xlu0 %2498
        %v2500 = vsel %vm1274, %v2490, -inf
        %2501 = vmax.xlane.f32.xlu0 %v2500
        %v2502 = vpop.xlane.xlu0 %2501
        %v2503 = vsub.f32 %v2487, %v2493
        %v2504 = vsub.f32 %v2488, %v2496
        %v2505 = vsub.f32 %v2489, %v2499
        %v2506 = vsub.f32 %v2490, %v2502
        %v2507 = vmul.f32 %v2503, 1.442695
        %v2508 = vpow.pop %v2507
        %v2509 = vmul.f32 %v2504, 1.442695
        %v2510 = vpow.pop %v2509
        %v2511 = vmul.f32 %v2505, 1.442695
        %v2512 = vpow.pop %v2511
        %v2513 = vmul.f32 %v2506, 1.442695
        %v2514 = vpow.pop %v2513
        %v2515 = vsel %vm1274, %v2508, 0.0
        %2516 = vadd.xlane.f32.xlu0 %v2515
        %v2517 = vpop.xlane.xlu0 %2516
        %v2518 = vsel %vm1274, %v2510, 0.0
        %2519 = vadd.xlane.f32.xlu0 %v2518
        %v2520 = vpop.xlane.xlu0 %2519
        %v2521 = vsel %vm1274, %v2512, 0.0
        %2522 = vadd.xlane.f32.xlu0 %v2521
        %v2523 = vpop.xlane.xlu0 %2522
        %v2524 = vsel %vm1274, %v2514, 0.0
        %2525 = vadd.xlane.f32.xlu0 %v2524
        %v2526 = vpop.xlane.xlu0 %2525
        %v2527 = vrcp.pop %v2517
        %v2528 = vrcp.pop %v2520
        %v2529 = vrcp.pop %v2523
        %v2530 = vrcp.pop %v2526
        %v2531 = vmul.f32 %v2508, %v2527
        %v2532 = vmul.f32 %v2510, %v2528
        %v2533 = vmul.f32 %v2512, %v2529
        %v2534 = vmul.f32 %v2514, %v2530
        %2535 = vrot.lane.b32.xlu0 %v1035, 32
        %v2536 = vpop.permute.xlu0 %2535
        %2537 = vrot.lane.b32.xlu0 %v1040, 32
        %v2538 = vpop.permute.xlu0 %2537
        %v2542 = vsel %vm1274, %v2531, 0
        %v2545 = vsel %vm1274, %v2532, 0
        %2547 = vmatprep.subr.mxu0 0.0
        %2548 = vmatpush1.msra.mxu0 %v2536
        %2549 = vmatprep.subr.mxu0 0.0
        %2550 = vmatpush1.msra.mxu0 %v2538
        %2551 = vmatprep.subr.mxu0 0.0
        %2552 = vmatpush1.msra.mxu0 0.0
        %2553 = vmatprep.subr.mxu0 0.0
        %2554 = vmatpush1.msra.mxu0 0.0
        %2555 = vmatprep.subr.mxu0 0.0
        %2556 = vmatpush1.msra.mxu0 0.0
        %2557 = vmatprep.subr.mxu0 0.0
        %2558 = vmatpush1.msra.mxu0 0.0
        %2559 = vmatprep.subr.mxu0 0.0
        %2560 = vmatpush1.msra.mxu0 0.0
        %2561 = vmatprep.subr.mxu0 0.0
        %2562 = vmatpush1.msra.mxu0 0.0
        %2563 = vmatprep.subr.mxu0 0.0
        %2564 = vmatpush1.msra.mxu0 0.0
        %2565 = vmatprep.subr.mxu0 0.0
        %2566 = vmatpush1.msra.mxu0 0.0
        %2567 = vmatprep.subr.mxu0 0.0
        %2568 = vmatpush1.msra.mxu0 0.0
        %2569 = vmatprep.subr.mxu0 0.0
        %2570 = vmatpush1.msra.mxu0 0.0
        %2571 = vmatprep.subr.mxu0 0.0
        %2572 = vmatpush1.msra.mxu0 0.0
        %2573 = vmatprep.subr.mxu0 0.0
        %2574 = vmatpush1.msra.mxu0 0.0
        %2575 = vmatprep.subr.mxu0 0.0
        %2576 = vmatpush1.msra.mxu0 0.0
        %2577 = vmatprep.subr.mxu0 0.0
        %2578 = vmatpush1.msra.mxu0 0.0
        %2579 = vmatprep.subr.mxu0 0.0
        %2580 = vmatpush1.msra.mxu0 0.0
        %2581 = vmatprep.subr.mxu0 0.0
        %2582 = vmatpush1.msra.mxu0 0.0
        %2583 = vmatprep.subr.mxu0 0.0
        %2584 = vmatpush1.msra.mxu0 0.0
        %2585 = vmatprep.subr.mxu0 0.0
        %2586 = vmatpush1.msra.mxu0 0.0
        %2587 = vmatprep.subr.mxu0 0.0
        %2588 = vmatpush1.msra.mxu0 0.0
        %2589 = vmatprep.subr.mxu0 0.0
        %2590 = vmatpush1.msra.mxu0 0.0
        %2591 = vmatprep.subr.mxu0 0.0
        %2592 = vmatpush1.msra.mxu0 0.0
        %2593 = vmatprep.subr.mxu0 0.0
        %2594 = vmatpush1.msra.mxu0 0.0
        %2595 = vmatprep.subr.mxu0 0.0
        %2596 = vmatpush1.msra.mxu0 0.0
        %2597 = vmatprep.subr.mxu0 0.0
        %2598 = vmatpush1.msra.mxu0 0.0
        %2599 = vmatprep.subr.mxu0 0.0
        %2600 = vmatpush1.msra.mxu0 0.0
        %2601 = vmatprep.subr.mxu0 0.0
        %2602 = vmatpush1.msra.mxu0 0.0
        %2603 = vmatprep.subr.mxu0 0.0
        %2604 = vmatpush1.msra.mxu0 0.0
        %2605 = vmatprep.subr.mxu0 0.0
        %2606 = vmatpush1.msra.mxu0 0.0
        %2607 = vmatprep.subr.mxu0 0.0
        %2608 = vmatpush1.msra.mxu0 0.0
        %2609 = vmatprep.subr.mxu0 0.0
        %2610 = vmatpush1.msra.mxu0 0.0
        %2611 = vmatprep.mubr.f32.mxu0 0.0
        %2612 = vmatmul.mubr.f32.gmra.mrb[0].mxu0 %v2542
        %v2613 = vpop.f32.mrb[0].mxu0
        %v2614 = vadd.f32 0.0, %v2613
        %v2615 = vpop.f32.mrb[0].mxu0
        %2616 = vmatprep.mubr.f32.mxu0 0.0
        %2617 = vmatmul.mubr.f32.gmra.mrb[0].mxu0 %v2545
        %v2618 = vpop.f32.mrb[0].mxu0
        %v2619 = vadd.f32 0.0, %v2618
        %v2620 = vpop.f32.mrb[0].mxu0
        %2621 = vdwg.mxu0
        %2622 = vrot.lane.b32.xlu0 %v1045, 32
        %v2623 = vpop.permute.xlu0 %2622
        %2624 = vrot.lane.b32.xlu0 %v1050, 32
        %v2625 = vpop.permute.xlu0 %2624
        %v2629 = vsel %vm1274, %v2533, 0
        %v2632 = vsel %vm1274, %v2534, 0
        %2634 = vmatprep.subr.mxu0 0.0
        %2635 = vmatpush1.msra.mxu0 %v2623
        %2636 = vmatprep.subr.mxu0 0.0
        %2637 = vmatpush1.msra.mxu0 %v2625
        %2638 = vmatprep.subr.mxu0 0.0
        %2639 = vmatpush1.msra.mxu0 0.0
        %2640 = vmatprep.subr.mxu0 0.0
        %2641 = vmatpush1.msra.mxu0 0.0
        %2642 = vmatprep.subr.mxu0 0.0
        %2643 = vmatpush1.msra.mxu0 0.0
        %2644 = vmatprep.subr.mxu0 0.0
        %2645 = vmatpush1.msra.mxu0 0.0
        %2646 = vmatprep.subr.mxu0 0.0
        %2647 = vmatpush1.msra.mxu0 0.0
        %2648 = vmatprep.subr.mxu0 0.0
        %2649 = vmatpush1.msra.mxu0 0.0
        %2650 = vmatprep.subr.mxu0 0.0
        %2651 = vmatpush1.msra.mxu0 0.0
        %2652 = vmatprep.subr.mxu0 0.0
        %2653 = vmatpush1.msra.mxu0 0.0
        %2654 = vmatprep.subr.mxu0 0.0
        %2655 = vmatpush1.msra.mxu0 0.0
        %2656 = vmatprep.subr.mxu0 0.0
        %2657 = vmatpush1.msra.mxu0 0.0
        %2658 = vmatprep.subr.mxu0 0.0
        %2659 = vmatpush1.msra.mxu0 0.0
        %2660 = vmatprep.subr.mxu0 0.0
        %2661 = vmatpush1.msra.mxu0 0.0
        %2662 = vmatprep.subr.mxu0 0.0
        %2663 = vmatpush1.msra.mxu0 0.0
        %2664 = vmatprep.subr.mxu0 0.0
        %2665 = vmatpush1.msra.mxu0 0.0
        %2666 = vmatprep.subr.mxu0 0.0
        %2667 = vmatpush1.msra.mxu0 0.0
        %2668 = vmatprep.subr.mxu0 0.0
        %2669 = vmatpush1.msra.mxu0 0.0
        %2670 = vmatprep.subr.mxu0 0.0
        %2671 = vmatpush1.msra.mxu0 0.0
        %2672 = vmatprep.subr.mxu0 0.0
        %2673 = vmatpush1.msra.mxu0 0.0
        %2674 = vmatprep.subr.mxu0 0.0
        %2675 = vmatpush1.msra.mxu0 0.0
        %2676 = vmatprep.subr.mxu0 0.0
        %2677 = vmatpush1.msra.mxu0 0.0
        %2678 = vmatprep.subr.mxu0 0.0
        %2679 = vmatpush1.msra.mxu0 0.0
        %2680 = vmatprep.subr.mxu0 0.0
        %2681 = vmatpush1.msra.mxu0 0.0
        %2682 = vmatprep.subr.mxu0 0.0
        %2683 = vmatpush1.msra.mxu0 0.0
        %2684 = vmatprep.subr.mxu0 0.0
        %2685 = vmatpush1.msra.mxu0 0.0
        %2686 = vmatprep.subr.mxu0 0.0
        %2687 = vmatpush1.msra.mxu0 0.0
        %2688 = vmatprep.subr.mxu0 0.0
        %2689 = vmatpush1.msra.mxu0 0.0
        %2690 = vmatprep.subr.mxu0 0.0
        %2691 = vmatpush1.msra.mxu0 0.0
        %2692 = vmatprep.subr.mxu0 0.0
        %2693 = vmatpush1.msra.mxu0 0.0
        %2694 = vmatprep.subr.mxu0 0.0
        %2695 = vmatpush1.msra.mxu0 0.0
        %2696 = vmatprep.subr.mxu0 0.0
        %2697 = vmatpush1.msra.mxu0 0.0
        %2698 = vmatprep.mubr.f32.mxu0 0.0
        %2699 = vmatmul.mubr.f32.gmra.mrb[0].mxu0 %v2629
        %v2700 = vpop.f32.mrb[0].mxu0
        %v2701 = vadd.f32 0.0, %v2700
        %v2702 = vpop.f32.mrb[0].mxu0
        %2703 = vmatprep.mubr.f32.mxu0 0.0
        %2704 = vmatmul.mubr.f32.gmra.mrb[0].mxu0 %v2632
        %v2705 = vpop.f32.mrb[0].mxu0
        %v2706 = vadd.f32 0.0, %v2705
        %v2707 = vpop.f32.mrb[0].mxu0
        %2708 = vdwg.mxu0
        %2713 = vrot.lane.b32.xlu0 %v1796, 32
        %v2714 = vpop.permute.xlu0 %2713
        %2715 = vrot.lane.b32.xlu0 %v1801, 32
        %v2716 = vpop.permute.xlu0 %2715
        %2717 = vrot.lane.b32.xlu0 %v1885, 32
        %v2718 = vpop.permute.xlu0 %2717
        %2719 = vrot.lane.b32.xlu0 %v1890, 32
        %v2720 = vpop.permute.xlu0 %2719
        %2729 = vrot.lane.b32.xlu0 %v2206, 64
        %v2730 = vpop.permute.xlu0 %2729
        %2731 = vrot.lane.b32.xlu0 %v2211, 64
        %v2732 = vpop.permute.xlu0 %2731
        %2733 = vrot.lane.b32.xlu0 %v2293, 64
        %v2734 = vpop.permute.xlu0 %2733
        %2735 = vrot.lane.b32.xlu0 %v2298, 64
        %v2736 = vpop.permute.xlu0 %2735
        %2745 = vrot.lane.b32.xlu0 %v2614, 96
        %v2746 = vpop.permute.xlu0 %2745
        %2747 = vrot.lane.b32.xlu0 %v2619, 96
        %v2748 = vpop.permute.xlu0 %2747
        %2749 = vrot.lane.b32.xlu0 %v2701, 96
        %v2750 = vpop.permute.xlu0 %2749
        %2751 = vrot.lane.b32.xlu0 %v2706, 96
        %v2752 = vpop.permute.xlu0 %2751
        %v2757 = vsel %vm1079, %v1392, %v2714
        %v2758 = vsel %vm1079, %v1397, %v2716
        %v2759 = vsel %vm1079, %v1473, %v2718
        %v2760 = vsel %vm1079, %v1478, %v2720
        %vm2761 = vcmask 523264
        %v2762 = vsel %vm2761, %v2757, %v2730
        %v2763 = vsel %vm2761, %v2758, %v2732
        %v2764 = vsel %vm2761, %v2759, %v2734
        %v2765 = vsel %vm2761, %v2760, %v2736
        %vm2766 = vcmask 785408
        %v2767 = vsel %vm2766, %v2762, %v2746
        %v2768 = vsel %vm2766, %v2763, %v2748
        %v2769 = vsel %vm2766, %v2764, %v2750
        %v2770 = vsel %vm2766, %v2765, %v2752
        %v2771 = vld [vmem:[#allocation2] sm:$0xff]
        %v2772 = vld [vmem:[#allocation2 + $0x8] sm:$0xff]
        %v2773 = vld [vmem:[#allocation2 + $0x10] sm:$0xff]
        %v2774 = vld [vmem:[#allocation2 + $0x18] sm:$0xff]
        %2775 = vmatprep.subr.mxu0 0.0
        %2776 = vmatpush1.msra.mxu0 %v1059
        %2777 = vmatprep.subr.mxu0 0.0
        %2778 = vmatpush1.msra.mxu0 %v1060
        %2779 = vmatprep.subr.mxu0 0.0
        %2780 = vmatpush1.msra.mxu0 %v1061
        %2781 = vmatprep.subr.mxu0 0.0
        %2782 = vmatpush1.msra.mxu0 %v1062
        %2783 = vmatprep.subr.mxu0 0.0
        %2784 = vmatpush1.msra.mxu0 %v1063
        %2785 = vmatprep.subr.mxu0 0.0
        %2786 = vmatpush1.msra.mxu0 %v1064
        %2787 = vmatprep.subr.mxu0 0.0
        %2788 = vmatpush1.msra.mxu0 %v1065
        %2789 = vmatprep.subr.mxu0 0.0
        %2790 = vmatpush1.msra.mxu0 %v1066
        %2791 = vmatprep.subr.mxu0 0.0
        %2792 = vmatpush1.msra.mxu0 %v1067
        %2793 = vmatprep.subr.mxu0 0.0
        %2794 = vmatpush1.msra.mxu0 %v1068
        %2795 = vmatprep.subr.mxu0 0.0
        %2796 = vmatpush1.msra.mxu0 %v1069
        %2797 = vmatprep.subr.mxu0 0.0
        %2798 = vmatpush1.msra.mxu0 %v1070
        %2799 = vmatprep.subr.mxu0 0.0
        %2800 = vmatpush1.msra.mxu0 %v1071
        %2801 = vmatprep.subr.mxu0 0.0
        %2802 = vmatpush1.msra.mxu0 %v1072
        %2803 = vmatprep.subr.mxu0 0.0
        %2804 = vmatpush1.msra.mxu0 %v1073
        %2805 = vmatprep.subr.mxu0 0.0
        %2806 = vmatpush1.msra.mxu0 %v1074
        %2807 = vmatprep.subr.mxu0 0.0
        %2808 = vmatpush1.msra.mxu0 0.0
        %2809 = vmatprep.subr.mxu0 0.0
        %2810 = vmatpush1.msra.mxu0 0.0
        %2811 = vmatprep.subr.mxu0 0.0
        %2812 = vmatpush1.msra.mxu0 0.0
        %2813 = vmatprep.subr.mxu0 0.0
        %2814 = vmatpush1.msra.mxu0 0.0
        %2815 = vmatprep.subr.mxu0 0.0
        %2816 = vmatpush1.msra.mxu0 0.0
        %2817 = vmatprep.subr.mxu0 0.0
        %2818 = vmatpush1.msra.mxu0 0.0
        %2819 = vmatprep.subr.mxu0 0.0
        %2820 = vmatpush1.msra.mxu0 0.0
        %2821 = vmatprep.subr.mxu0 0.0
        %2822 = vmatpush1.msra.mxu0 0.0
        %2823 = vmatprep.subr.mxu0 0.0
        %2824 = vmatpush1.msra.mxu0 0.0
        %2825 = vmatprep.subr.mxu0 0.0
        %2826 = vmatpush1.msra.mxu0 0.0
        %2827 = vmatprep.subr.mxu0 0.0
        %2828 = vmatpush1.msra.mxu0 0.0
        %2829 = vmatprep.subr.mxu0 0.0
        %2830 = vmatpush1.msra.mxu0 0.0
        %2831 = vmatprep.subr.mxu0 0.0
        %2832 = vmatpush1.msra.mxu0 0.0
        %2833 = vmatprep.subr.mxu0 0.0
        %2834 = vmatpush1.msra.mxu0 0.0
        %2835 = vmatprep.subr.mxu0 0.0
        %2836 = vmatpush1.msra.mxu0 0.0
        %2837 = vmatprep.subr.mxu0 0.0
        %2838 = vmatpush1.msra.mxu0 0.0
        %2839 = vmatprep.mubr.f32.mxu0 0.0
        %2840 = vmatmul.mubr.f32.gmra.mrb[0].mxu0 %v2767
        %v2841 = vpop.f32.mrb[0].mxu0
        %v2842 = vadd.f32 0.0, %v2841
        %v2843 = vpop.f32.mrb[0].mxu0
        %2844 = vmatprep.mubr.f32.mxu0 0.0
        %2845 = vmatmul.mubr.f32.gmra.mrb[0].mxu0 %v2768
        %v2846 = vpop.f32.mrb[0].mxu0
        %v2847 = vadd.f32 0.0, %v2846
        %v2848 = vpop.f32.mrb[0].mxu0
        %2849 = vmatprep.mubr.f32.mxu0 0.0
        %2850 = vmatmul.mubr.f32.gmra.mrb[0].mxu0 %v2769
        %v2851 = vpop.f32.mrb[0].mxu0
        %v2852 = vadd.f32 0.0, %v2851
        %v2853 = vpop.f32.mrb[0].mxu0
        %2854 = vmatprep.mubr.f32.mxu0 0.0
        %2855 = vmatmul.mubr.f32.gmra.mrb[0].mxu0 %v2770
        %v2856 = vpop.f32.mrb[0].mxu0
        %v2857 = vadd.f32 0.0, %v2856
        %v2858 = vpop.f32.mrb[0].mxu0
        %2859 = vdwg.mxu0
        %v2860 = vadd.f32 %v2771, %v2842
        %v2861 = vadd.f32 %v2772, %v2847
        %v2862 = vadd.f32 %v2773, %v2852
        %v2863 = vadd.f32 %v2774, %v2857
        %2864 = vst [vmem:[#allocation2] sm:$0xff] %v2860
        %2865 = vst [vmem:[#allocation2 + $0x8] sm:$0xff] %v2861
        %2866 = vst [vmem:[#allocation2 + $0x10] sm:$0xff] %v2862
        %2867 = vst [vmem:[#allocation2 + $0x18] sm:$0xff] %v2863
        %v2868 = vld [vmem:[#allocation2] sm:$0xff]
        %v2869 = vld [vmem:[#allocation2 + $0x8] sm:$0xff]
        %v2870 = vld [vmem:[#allocation2 + $0x10] sm:$0xff]
        %v2871 = vld [vmem:[#allocation2 + $0x18] sm:$0xff]
        %v2872 = vld [vmem:[%s9] sm:$0x1]
        %v2874 = vlaneseq
        %v2875 = vshrl.u32 %v2874, 7
        %v2876 = vsub.s32 0, %v2875
        %v2877 = vrot.slane %v2872, %v2876
        %v2879 = vadd.f32 %v2868, %v2877
        %v2880 = vadd.f32 %v2869, %v2877
        %v2881 = vadd.f32 %v2870, %v2877
        %v2882 = vadd.f32 %v2871, %v2877
        %v2883 = vadd.f32 %v725, %v2879
        %v2884 = vadd.f32 %v726, %v2880
        %v2885 = vadd.f32 %v727, %v2881
        %v2886 = vadd.f32 %v728, %v2882
        %2887 = vadd.xlane.f32.xlu0 %v2883
        %v2888 = vpop.xlane.xlu0 %2887
        %2889 = vadd.xlane.f32.xlu0 %v2884
        %v2890 = vpop.xlane.xlu0 %2889
        %2891 = vadd.xlane.f32.xlu0 %v2885
        %v2892 = vpop.xlane.xlu0 %2891
        %2893 = vadd.xlane.f32.xlu0 %v2886
        %v2894 = vpop.xlane.xlu0 %2893
        %v2895 = vrcp.pop 128.0
        %v2896 = vmul.f32 %v2888, %v2895
        %v2897 = vmul.f32 %v2890, %v2895
        %v2898 = vmul.f32 %v2892, %v2895
        %v2899 = vmul.f32 %v2894, %v2895
        %v2900 = vmul.f32 %v2883, %v2883
        %v2901 = vmul.f32 %v2884, %v2884
        %v2902 = vmul.f32 %v2885, %v2885
        %v2903 = vmul.f32 %v2886, %v2886
        %2904 = vadd.xlane.f32.xlu0 %v2900
        %v2905 = vpop.xlane.xlu0 %2904
        %2906 = vadd.xlane.f32.xlu0 %v2901
        %v2907 = vpop.xlane.xlu0 %2906
        %2908 = vadd.xlane.f32.xlu0 %v2902
        %v2909 = vpop.xlane.xlu0 %2908
        %2910 = vadd.xlane.f32.xlu0 %v2903
        %v2911 = vpop.xlane.xlu0 %2910
        %v2912 = vmul.f32 %v2905, %v2895
        %v2913 = vmul.f32 %v2907, %v2895
        %v2914 = vmul.f32 %v2909, %v2895
        %v2915 = vmul.f32 %v2911, %v2895
        %v2916 = vmul.f32 %v2896, %v2896
        %v2917 = vmul.f32 %v2897, %v2897
        %v2918 = vmul.f32 %v2898, %v2898
        %v2919 = vmul.f32 %v2899, %v2899
        %v2920 = vsub.f32 %v2912, %v2916
        %v2921 = vsub.f32 %v2913, %v2917
        %v2922 = vsub.f32 %v2914, %v2918
        %v2923 = vsub.f32 %v2915, %v2919
        %v2924 = vmax.f32 %v2920, 0.0
        %v2925 = vmax.f32 %v2921, 0.0
        %v2926 = vmax.f32 %v2922, 0.0
        %v2927 = vmax.f32 %v2923, 0.0
        %v2928 = vsub.f32 %v2883, %v2896
        %v2929 = vsub.f32 %v2884, %v2897
        %v2930 = vsub.f32 %v2885, %v2898
        %v2931 = vsub.f32 %v2886, %v2899
        %v2932 = vadd.f32 %v2924, 1e-05
        %v2933 = vadd.f32 %v2925, 1e-05
        %v2934 = vadd.f32 %v2926, 1e-05
        %v2935 = vadd.f32 %v2927, 1e-05
        %v2936 = vrsqrt.pop %v2932
        %v2937 = vrsqrt.pop %v2933
        %v2938 = vrsqrt.pop %v2934
        %v2939 = vrsqrt.pop %v2935
        %v2940 = vmul.f32 %v2928, %v2936
        %v2941 = vmul.f32 %v2929, %v2937
        %v2942 = vmul.f32 %v2930, %v2938
        %v2943 = vmul.f32 %v2931, %v2939
        %v2944 = vld [vmem:[%s10] sm:$0x1]
        %v2946 = vlaneseq
        %v2947 = vshrl.u32 %v2946, 7
        %v2948 = vsub.s32 0, %v2947
        %v2949 = vrot.slane %v2944, %v2948
        %v2951 = vmul.f32 %v2940, %v2949
        %v2952 = vmul.f32 %v2941, %v2949
        %v2953 = vmul.f32 %v2942, %v2949
        %v2954 = vmul.f32 %v2943, %v2949
        %v2955 = vld [vmem:[%s11] sm:$0x1]
        %v2957 = vlaneseq
        %v2958 = vshrl.u32 %v2957, 7
        %v2959 = vsub.s32 0, %v2958
        %v2960 = vrot.slane %v2955, %v2959
        %v2962 = vadd.f32 %v2951, %v2960
        %v2963 = vadd.f32 %v2952, %v2960
        %v2964 = vadd.f32 %v2953, %v2960
        %v2965 = vadd.f32 %v2954, %v2960
        %v2966 = vld [vmem:[#allocation14] sm:$0xff]
        %v2967 = vld [vmem:[#allocation14 + $0x8] sm:$0xff]
        %v2968 = vld [vmem:[#allocation14 + $0x10] sm:$0xff]
        %v2969 = vld [vmem:[#allocation14 + $0x18] sm:$0xff]
        %v2970 = vld [vmem:[#allocation14 + $0x20] sm:$0xff]
        %v2971 = vld [vmem:[#allocation14 + $0x28] sm:$0xff]
        %v2972 = vld [vmem:[#allocation14 + $0x30] sm:$0xff]
        %v2973 = vld [vmem:[#allocation14 + $0x38] sm:$0xff]
        %v2974 = vld [vmem:[#allocation14 + $0x40] sm:$0xff]
        %v2975 = vld [vmem:[#allocation14 + $0x48] sm:$0xff]
        %v2976 = vld [vmem:[#allocation14 + $0x50] sm:$0xff]
        %v2977 = vld [vmem:[#allocation14 + $0x58] sm:$0xff]
        %v2978 = vld [vmem:[#allocation14 + $0x60] sm:$0xff]
        %v2979 = vld [vmem:[#allocation14 + $0x68] sm:$0xff]
        %v2980 = vld [vmem:[#allocation14 + $0x70] sm:$0xff]
        %v2981 = vld [vmem:[#allocation14 + $0x78] sm:$0xff]
        %v2982 = vld [vmem:[#allocation14 + $0x80] sm:$0xff]
        %v2983 = vld [vmem:[#allocation14 + $0x88] sm:$0xff]
        %v2984 = vld [vmem:[#allocation14 + $0x90] sm:$0xff]
        %v2985 = vld [vmem:[#allocation14 + $0x98] sm:$0xff]
        %v2986 = vld [vmem:[#allocation14 + $0xa0] sm:$0xff]
        %v2987 = vld [vmem:[#allocation14 + $0xa8] sm:$0xff]
        %v2988 = vld [vmem:[#allocation14 + $0xb0] sm:$0xff]
        %v2989 = vld [vmem:[#allocation14 + $0xb8] sm:$0xff]
        %v2990 = vld [vmem:[#allocation14 + $0xc0] sm:$0xff]
        %v2991 = vld [vmem:[#allocation14 + $0xc8] sm:$0xff]
        %v2992 = vld [vmem:[#allocation14 + $0xd0] sm:$0xff]
        %v2993 = vld [vmem:[#allocation14 + $0xd8] sm:$0xff]
        %v2994 = vld [vmem:[#allocation14 + $0xe0] sm:$0xff]
        %v2995 = vld [vmem:[#allocation14 + $0xe8] sm:$0xff]
        %v2996 = vld [vmem:[#allocation14 + $0xf0] sm:$0xff]
        %v2997 = vld [vmem:[#allocation14 + $0xf8] sm:$0xff]
        %v2998 = vld [vmem:[%s13] sm:$0x3]
        %v3000 = vlaneseq
        %v3001 = vshrl.u32 %v3000, 7
        %v3002 = vsub.s32 0, %v3001
        %v3003 = vrot.slane %v2998, %v3002
        %v3004 = vlaneseq
        %v3005 = vshrl.u32 %v3004, 7
        %v3006 = vsub.s32 1, %v3005
        %v3007 = vrot.slane %v2998, %v3006
        %3010 = vmatprep.subr.mxu0 %v2967
        %3011 = vmatpush1.msra.mxu0 %v2966
        %3012 = vmatprep.subr.mxu0 %v2969
        %3013 = vmatpush1.msra.mxu0 %v2968
        %3014 = vmatprep.subr.mxu0 %v2971
        %3015 = vmatpush1.msra.mxu0 %v2970
        %3016 = vmatprep.subr.mxu0 %v2973
        %3017 = vmatpush1.msra.mxu0 %v2972
        %3018 = vmatprep.subr.mxu0 %v2975
        %3019 = vmatpush1.msra.mxu0 %v2974
        %3020 = vmatprep.subr.mxu0 %v2977
        %3021 = vmatpush1.msra.mxu0 %v2976
        %3022 = vmatprep.subr.mxu0 %v2979
        %3023 = vmatpush1.msra.mxu0 %v2978
        %3024 = vmatprep.subr.mxu0 %v2981
        %3025 = vmatpush1.msra.mxu0 %v2980
        %3026 = vmatprep.subr.mxu0 %v2983
        %3027 = vmatpush1.msra.mxu0 %v2982
        %3028 = vmatprep.subr.mxu0 %v2985
        %3029 = vmatpush1.msra.mxu0 %v2984
        %3030 = vmatprep.subr.mxu0 %v2987
        %3031 = vmatpush1.msra.mxu0 %v2986
        %3032 = vmatprep.subr.mxu0 %v2989
        %3033 = vmatpush1.msra.mxu0 %v2988
        %3034 = vmatprep.subr.mxu0 %v2991
        %3035 = vmatpush1.msra.mxu0 %v2990
        %3036 = vmatprep.subr.mxu0 %v2993
        %3037 = vmatpush1.msra.mxu0 %v2992
        %3038 = vmatprep.subr.mxu0 %v2995
        %3039 = vmatpush1.msra.mxu0 %v2994
        %3040 = vmatprep.subr.mxu0 %v2997
        %3041 = vmatpush1.msra.mxu0 %v2996
        %3042 = vmatprep.subr.mxu0 0.0
        %3043 = vmatpush1.msra.mxu0 0.0
        %3044 = vmatprep.subr.mxu0 0.0
        %3045 = vmatpush1.msra.mxu0 0.0
        %3046 = vmatprep.subr.mxu0 0.0
        %3047 = vmatpush1.msra.mxu0 0.0
        %3048 = vmatprep.subr.mxu0 0.0
        %3049 = vmatpush1.msra.mxu0 0.0
        %3050 = vmatprep.subr.mxu0 0.0
        %3051 = vmatpush1.msra.mxu0 0.0
        %3052 = vmatprep.subr.mxu0 0.0
        %3053 = vmatpush1.msra.mxu0 0.0
        %3054 = vmatprep.subr.mxu0 0.0
        %3055 = vmatpush1.msra.mxu0 0.0
        %3056 = vmatprep.subr.mxu0 0.0
        %3057 = vmatpush1.msra.mxu0 0.0
        %3058 = vmatprep.subr.mxu0 0.0
        %3059 = vmatpush1.msra.mxu0 0.0
        %3060 = vmatprep.subr.mxu0 0.0
        %3061 = vmatpush1.msra.mxu0 0.0
        %3062 = vmatprep.subr.mxu0 0.0
        %3063 = vmatpush1.msra.mxu0 0.0
        %3064 = vmatprep.subr.mxu0 0.0
        %3065 = vmatpush1.msra.mxu0 0.0
        %3066 = vmatprep.subr.mxu0 0.0
        %3067 = vmatpush1.msra.mxu0 0.0
        %3068 = vmatprep.subr.mxu0 0.0
        %3069 = vmatpush1.msra.mxu0 0.0
        %3070 = vmatprep.subr.mxu0 0.0
        %3071 = vmatpush1.msra.mxu0 0.0
        %3072 = vmatprep.subr.mxu0 0.0
        %3073 = vmatpush1.msra.mxu0 0.0
        %3074 = vmatprep.mubr.f32.mxu0 0.0
        %3075 = vmatmul.mubr.f32.gmra.mrb[0].mxu0 %v2962
        %v3076 = vpop.f32.mrb[0].mxu0
        %v3077 = vadd.f32 %v3003, %v3076
        %v3078 = vpop.f32.mrb[0].mxu0
        %v3079 = vadd.f32 %v3007, %v3078
        %3080 = vmatprep.mubr.f32.mxu0 0.0
        %3081 = vmatmul.mubr.f32.gmra.mrb[0].mxu0 %v2963
        %v3082 = vpop.f32.mrb[0].mxu0
        %v3083 = vadd.f32 %v3003, %v3082
        %v3084 = vpop.f32.mrb[0].mxu0
        %v3085 = vadd.f32 %v3007, %v3084
        %3086 = vmatprep.mubr.f32.mxu0 0.0
        %3087 = vmatmul.mubr.f32.gmra.mrb[0].mxu0 %v2964
        %v3088 = vpop.f32.mrb[0].mxu0
        %v3089 = vadd.f32 %v3003, %v3088
        %v3090 = vpop.f32.mrb[0].mxu0
        %v3091 = vadd.f32 %v3007, %v3090
        %3092 = vmatprep.mubr.f32.mxu0 0.0
        %3093 = vmatmul.mubr.f32.gmra.mrb[0].mxu0 %v2965
        %v3094 = vpop.f32.mrb[0].mxu0
        %v3095 = vadd.f32 %v3003, %v3094
        %v3096 = vpop.f32.mrb[0].mxu0
        %v3097 = vadd.f32 %v3007, %v3096
        %3098 = vdwg.mxu0
        %v3099 = vmax.f32 %v3077, 0.0
        %v3100 = vmax.f32 %v3079, 0.0
        %v3101 = vmax.f32 %v3083, 0.0
        %v3102 = vmax.f32 %v3085, 0.0
        %v3103 = vmax.f32 %v3089, 0.0
        %v3104 = vmax.f32 %v3091, 0.0
        %v3105 = vmax.f32 %v3095, 0.0
        %v3106 = vmax.f32 %v3097, 0.0
        %v3107 = vld [vmem:[#allocation15] sm:$0xff]
        %v3108 = vld [vmem:[#allocation15 + $0x8] sm:$0xff]
        %v3109 = vld [vmem:[#allocation15 + $0x10] sm:$0xff]
        %v3110 = vld [vmem:[#allocation15 + $0x18] sm:$0xff]
        %v3111 = vld [vmem:[#allocation15 + $0x20] sm:$0xff]
        %v3112 = vld [vmem:[#allocation15 + $0x28] sm:$0xff]
        %v3113 = vld [vmem:[#allocation15 + $0x30] sm:$0xff]
        %v3114 = vld [vmem:[#allocation15 + $0x38] sm:$0xff]
        %v3115 = vld [vmem:[#allocation15 + $0x40] sm:$0xff]
        %v3116 = vld [vmem:[#allocation15 + $0x48] sm:$0xff]
        %v3117 = vld [vmem:[#allocation15 + $0x50] sm:$0xff]
        %v3118 = vld [vmem:[#allocation15 + $0x58] sm:$0xff]
        %v3119 = vld [vmem:[#allocation15 + $0x60] sm:$0xff]
        %v3120 = vld [vmem:[#allocation15 + $0x68] sm:$0xff]
        %v3121 = vld [vmem:[#allocation15 + $0x70] sm:$0xff]
        %v3122 = vld [vmem:[#allocation15 + $0x78] sm:$0xff]
        %v3123 = vld [vmem:[#allocation15 + $0x80] sm:$0xff]
        %v3124 = vld [vmem:[#allocation15 + $0x88] sm:$0xff]
        %v3125 = vld [vmem:[#allocation15 + $0x90] sm:$0xff]
        %v3126 = vld [vmem:[#allocation15 + $0x98] sm:$0xff]
        %v3127 = vld [vmem:[#allocation15 + $0xa0] sm:$0xff]
        %v3128 = vld [vmem:[#allocation15 + $0xa8] sm:$0xff]
        %v3129 = vld [vmem:[#allocation15 + $0xb0] sm:$0xff]
        %v3130 = vld [vmem:[#allocation15 + $0xb8] sm:$0xff]
        %v3131 = vld [vmem:[#allocation15 + $0xc0] sm:$0xff]
        %v3132 = vld [vmem:[#allocation15 + $0xc8] sm:$0xff]
        %v3133 = vld [vmem:[#allocation15 + $0xd0] sm:$0xff]
        %v3134 = vld [vmem:[#allocation15 + $0xd8] sm:$0xff]
        %v3135 = vld [vmem:[#allocation15 + $0xe0] sm:$0xff]
        %v3136 = vld [vmem:[#allocation15 + $0xe8] sm:$0xff]
        %v3137 = vld [vmem:[#allocation15 + $0xf0] sm:$0xff]
        %v3138 = vld [vmem:[#allocation15 + $0xf8] sm:$0xff]
        %v3139 = vld [vmem:[%s15] sm:$0x1]
        %v3141 = vlaneseq
        %v3142 = vshrl.u32 %v3141, 7
        %v3143 = vsub.s32 0, %v3142
        %v3144 = vrot.slane %v3139, %v3143
        %3146 = vmatprep.subr.mxu0 0.0
        %3147 = vmatpush1.msra.mxu0 %v3107
        %3148 = vmatprep.subr.mxu0 0.0
        %3149 = vmatpush1.msra.mxu0 %v3108
        %3150 = vmatprep.subr.mxu0 0.0
        %3151 = vmatpush1.msra.mxu0 %v3109
        %3152 = vmatprep.subr.mxu0 0.0
        %3153 = vmatpush1.msra.mxu0 %v3110
        %3154 = vmatprep.subr.mxu0 0.0
        %3155 = vmatpush1.msra.mxu0 %v3111
        %3156 = vmatprep.subr.mxu0 0.0
        %3157 = vmatpush1.msra.mxu0 %v3112
        %3158 = vmatprep.subr.mxu0 0.0
        %3159 = vmatpush1.msra.mxu0 %v3113
        %3160 = vmatprep.subr.mxu0 0.0
        %3161 = vmatpush1.msra.mxu0 %v3114
        %3162 = vmatprep.subr.mxu0 0.0
        %3163 = vmatpush1.msra.mxu0 %v3115
        %3164 = vmatprep.subr.mxu0 0.0
        %3165 = vmatpush1.msra.mxu0 %v3116
        %3166 = vmatprep.subr.mxu0 0.0
        %3167 = vmatpush1.msra.mxu0 %v3117
        %3168 = vmatprep.subr.mxu0 0.0
        %3169 = vmatpush1.msra.mxu0 %v3118
        %3170 = vmatprep.subr.mxu0 0.0
        %3171 = vmatpush1.msra.mxu0 %v3119
        %3172 = vmatprep.subr.mxu0 0.0
        %3173 = vmatpush1.msra.mxu0 %v3120
        %3174 = vmatprep.subr.mxu0 0.0
        %3175 = vmatpush1.msra.mxu0 %v3121
        %3176 = vmatprep.subr.mxu0 0.0
        %3177 = vmatpush1.msra.mxu0 %v3122
        %3178 = vmatprep.subr.mxu0 0.0
        %3179 = vmatpush1.msra.mxu0 %v3123
        %3180 = vmatprep.subr.mxu0 0.0
        %3181 = vmatpush1.msra.mxu0 %v3124
        %3182 = vmatprep.subr.mxu0 0.0
        %3183 = vmatpush1.msra.mxu0 %v3125
        %3184 = vmatprep.subr.mxu0 0.0
        %3185 = vmatpush1.msra.mxu0 %v3126
        %3186 = vmatprep.subr.mxu0 0.0
        %3187 = vmatpush1.msra.mxu0 %v3127
        %3188 = vmatprep.subr.mxu0 0.0
        %3189 = vmatpush1.msra.mxu0 %v3128
        %3190 = vmatprep.subr.mxu0 0.0
        %3191 = vmatpush1.msra.mxu0 %v3129
        %3192 = vmatprep.subr.mxu0 0.0
        %3193 = vmatpush1.msra.mxu0 %v3130
        %3194 = vmatprep.subr.mxu0 0.0
        %3195 = vmatpush1.msra.mxu0 %v3131
        %3196 = vmatprep.subr.mxu0 0.0
        %3197 = vmatpush1.msra.mxu0 %v3132
        %3198 = vmatprep.subr.mxu0 0.0
        %3199 = vmatpush1.msra.mxu0 %v3133
        %3200 = vmatprep.subr.mxu0 0.0
        %3201 = vmatpush1.msra.mxu0 %v3134
        %3202 = vmatprep.subr.mxu0 0.0
        %3203 = vmatpush1.msra.mxu0 %v3135
        %3204 = vmatprep.subr.mxu0 0.0
        %3205 = vmatpush1.msra.mxu0 %v3136
        %3206 = vmatprep.subr.mxu0 0.0
        %3207 = vmatpush1.msra.mxu0 %v3137
        %3208 = vmatprep.subr.mxu0 0.0
        %3209 = vmatpush1.msra.mxu0 %v3138
        %3210 = vmatprep.mubr.f32.mxu0 %v3100
        %3211 = vmatmul.mubr.f32.gmra.mrb[0].mxu0 %v3099
        %v3212 = vpop.f32.mrb[0].mxu0
        %v3213 = vadd.f32 %v3144, %v3212
        %v3214 = vpop.f32.mrb[0].mxu0
        %3215 = vmatprep.mubr.f32.mxu0 %v3102
        %3216 = vmatmul.mubr.f32.gmra.mrb[0].mxu0 %v3101
        %v3217 = vpop.f32.mrb[0].mxu0
        %v3218 = vadd.f32 %v3144, %v3217
        %v3219 = vpop.f32.mrb[0].mxu0
        %3220 = vmatprep.mubr.f32.mxu0 %v3104
        %3221 = vmatmul.mubr.f32.gmra.mrb[0].mxu0 %v3103
        %v3222 = vpop.f32.mrb[0].mxu0
        %v3223 = vadd.f32 %v3144, %v3222
        %v3224 = vpop.f32.mrb[0].mxu0
        %3225 = vmatprep.mubr.f32.mxu0 %v3106
        %3226 = vmatmul.mubr.f32.gmra.mrb[0].mxu0 %v3105
        %v3227 = vpop.f32.mrb[0].mxu0
        %v3228 = vadd.f32 %v3144, %v3227
        %v3229 = vpop.f32.mrb[0].mxu0
        %3230 = vdwg.mxu0
        %v3231 = vadd.f32 %v2962, %v3213
        %v3232 = vadd.f32 %v2963, %v3218
        %v3233 = vadd.f32 %v2964, %v3223
        %v3234 = vadd.f32 %v2965, %v3228
        %3235 = vadd.xlane.f32.xlu0 %v3231
        %v3236 = vpop.xlane.xlu0 %3235
        %3237 = vadd.xlane.f32.xlu0 %v3232
        %v3238 = vpop.xlane.xlu0 %3237
        %3239 = vadd.xlane.f32.xlu0 %v3233
        %v3240 = vpop.xlane.xlu0 %3239
        %3241 = vadd.xlane.f32.xlu0 %v3234
        %v3242 = vpop.xlane.xlu0 %3241
        %v3243 = vmul.f32 %v3236, %v2895
        %v3244 = vmul.f32 %v3238, %v2895
        %v3245 = vmul.f32 %v3240, %v2895
        %v3246 = vmul.f32 %v3242, %v2895
        %v3247 = vmul.f32 %v3231, %v3231
        %v3248 = vmul.f32 %v3232, %v3232
        %v3249 = vmul.f32 %v3233, %v3233
        %v3250 = vmul.f32 %v3234, %v3234
        %3251 = vadd.xlane.f32.xlu0 %v3247
        %v3252 = vpop.xlane.xlu0 %3251
        %3253 = vadd.xlane.f32.xlu0 %v3248
        %v3254 = vpop.xlane.xlu0 %3253
        %3255 = vadd.xlane.f32.xlu0 %v3249
        %v3256 = vpop.xlane.xlu0 %3255
        %3257 = vadd.xlane.f32.xlu0 %v3250
        %v3258 = vpop.xlane.xlu0 %3257
        %v3259 = vmul.f32 %v3252, %v2895
        %v3260 = vmul.f32 %v3254, %v2895
        %v3261 = vmul.f32 %v3256, %v2895
        %v3262 = vmul.f32 %v3258, %v2895
        %v3263 = vmul.f32 %v3243, %v3243
        %v3264 = vmul.f32 %v3244, %v3244
        %v3265 = vmul.f32 %v3245, %v3245
        %v3266 = vmul.f32 %v3246, %v3246
        %v3267 = vsub.f32 %v3259, %v3263
        %v3268 = vsub.f32 %v3260, %v3264
        %v3269 = vsub.f32 %v3261, %v3265
        %v3270 = vsub.f32 %v3262, %v3266
        %v3271 = vmax.f32 %v3267, 0.0
        %v3272 = vmax.f32 %v3268, 0.0
        %v3273 = vmax.f32 %v3269, 0.0
        %v3274 = vmax.f32 %v3270, 0.0
        %v3275 = vsub.f32 %v3231, %v3243
        %v3276 = vsub.f32 %v3232, %v3244
        %v3277 = vsub.f32 %v3233, %v3245
        %v3278 = vsub.f32 %v3234, %v3246
        %v3279 = vadd.f32 %v3271, 1e-05
        %v3280 = vadd.f32 %v3272, 1e-05
        %v3281 = vadd.f32 %v3273, 1e-05
        %v3282 = vadd.f32 %v3274, 1e-05
        %v3283 = vrsqrt.pop %v3279
        %v3284 = vrsqrt.pop %v3280
        %v3285 = vrsqrt.pop %v3281
        %v3286 = vrsqrt.pop %v3282
        %v3287 = vmul.f32 %v3275, %v3283
        %v3288 = vmul.f32 %v3276, %v3284
        %v3289 = vmul.f32 %v3277, %v3285
        %v3290 = vmul.f32 %v3278, %v3286
        %v3291 = vld [vmem:[%s16] sm:$0x1]
        %v3293 = vlaneseq
        %v3294 = vshrl.u32 %v3293, 7
        %v3295 = vsub.s32 0, %v3294
        %v3296 = vrot.slane %v3291, %v3295
        %v3298 = vmul.f32 %v3287, %v3296
        %v3299 = vmul.f32 %v3288, %v3296
        %v3300 = vmul.f32 %v3289, %v3296
        %v3301 = vmul.f32 %v3290, %v3296
        %v3302 = vld [vmem:[%s17] sm:$0x1]
        %v3304 = vlaneseq
        %v3305 = vshrl.u32 %v3304, 7
        %v3306 = vsub.s32 0, %v3305
        %v3307 = vrot.slane %v3302, %v3306
        %v3309 = vadd.f32 %v3298, %v3307
        %v3310 = vadd.f32 %v3299, %v3307
        %v3311 = vadd.f32 %v3300, %v3307
        %v3312 = vadd.f32 %v3301, %v3307
        %3313 = vst [vmem:[%s721] sm:$0xff] %v3309
        %3314 = vst [vmem:[%s721 + $0x8] sm:$0xff] %v3310
        %3315 = vst [vmem:[%s721 + $0x10] sm:$0xff] %v3311
        %3316 = vst [vmem:[%s721 + $0x18] sm:$0xff] %v3312
        %s3317 = sand.u32 %s437, 1
        %s3318 = scalar_lea.sflag [#allocation5], %s3317
        %s3319 = sand.u32 %s437, 1
        %s3320 = smul.addr %s3319, 32
        %s3321 = scalar_lea.vmem [#allocation17], %s3320
        // Predicated region
        $region125: #{tpu_custom_call.1} parent=91 // pred_check
          %p3322 = pneg %p447
        $region126: #{tpu_custom_call.1} parent=91 // pred_check_branch
          %3324 = sbr.rel (%p3322) target = $region128
        $region127: #{tpu_custom_call.1} parent=91 // pred_region
          %s3325 = smul.u32 2, %s41
          %s3327 = ssub.s32 512, 512
          %3328 = vsyncadd %s3318, %s3327
          %s3329 = smul.addr %s3325, 2
          %s3330 = smul.addr %s3329, 128
          %s3331 = scalar_lea.hbm %s18, %s3330
          %s3332 = sshll.u32 %s3321, 4
          %s3333 = int_to_ptr.vmem [resolvable:$true] %s3332
          %3338 = dma.vmem_to_hbm [thread:$0]  %s3333, 512, %s3331, %s3318, 128, 128, 8
        $region128: #{tpu_custom_call.1} parent=91 // pred_fallthru
          _
      $region92: #{tpu_custom_call.1} parent=5 // pred_fallthru
        _
      %p3339 = scmp.le.s32.totalorder 2, %s36
      // Predicated region
      $region129: #{tpu_custom_call.1} parent=5 // pred_check
        %p3340 = pneg %p3339
      $region130: #{tpu_custom_call.1} parent=5 // pred_check_branch
        %3342 = sbr.rel (%p3340) target = $region132
      $region131: #{tpu_custom_call.1} parent=5 // pred_region
        %s3343 = ssub.s32 %s36, 2
        // Predicated region
        $region133: #{tpu_custom_call.1} parent=131 // pred_check
          %p3344 = pneg %p453
        $region134: #{tpu_custom_call.1} parent=131 // pred_check_branch
          %3346 = sbr.rel (%p3344) target = $region136
        $region135: #{tpu_custom_call.1} parent=131 // pred_region
          %s3347 = sand.u32 %s438, 1
          %s3348 = scalar_lea.sflag [#allocation5], %s3347
          %s3349 = sand.u32 %s438, 1
          %s3350 = smul.addr %s3349, 32
          %s3351 = scalar_lea.vmem [#allocation17], %s3350
          %3352 = dma.done %s3348, 512
        $region136: #{tpu_custom_call.1} parent=131 // pred_fallthru
          _
      $region132: #{tpu_custom_call.1} parent=5 // pred_fallthru
        _
    $region6: #{tpu_custom_call.1} parent=1 // loop_footer
      %s40 = sadd.s32 1, %s36
    $region7: #{tpu_custom_call.1} parent=1 // loop_footer_branch
      %35 = sbr.rel target = $region3
    $region8: #{tpu_custom_call.1} parent=1 // loop_exit
      _
    %3353 = vsyncpa [#allocation4], 1
    %s3354 = scalar_lea.sflag [#allocation4], 1
    %3355 = vsyncpa %s3354, 1
    %3356 = vsyncpa [#allocation7], 1
    %s3357 = scalar_lea.sflag [#allocation7], 1
    %3358 = vsyncpa %s3357, 1
    %3359 = vsyncpa [#allocation10], 1
    %3360 = vsyncpa [#allocation13], 1
    %3361 = vsyncpa [#allocation16], 1
    %3362 = vsyncpa [#allocation5], 1
    %s3363 = scalar_lea.sflag [#allocation5], 1
    %3364 = vsyncpa %s3363, 1

// kernel: tpu_custom_call.1
$region0: #{tpu_custom_call.1}
  #allocation0 [shape = 'u32[]', space=smem, size = 0x4, offset = 0x4, fixed_abs, tag = 'smem constant byte address 0x4 - core index']
  #allocation1 [shape = 'u32[144,128]{1,0:T(1,128)}', space=vmem, size = 0x12000, scoped, tag = 'internal scratch']
  #allocation2 [shape = 'f32[32,128]{1,0:T(8,128)}', space=vmem, size = 0x4000, scoped, tag = 'scratch operand']
  %s0 = inlined_call_operand.hbm [shape: f32[4,16,128], index: 0, kind: input, shape index: {}]
  %s1 = inlined_call_operand.hbm [shape: s32[4,1,16], index: 1, kind: input, shape index: {}]
  %s2 = inlined_call_operand.hbm [shape: f32[128,128], index: 2, kind: input, shape index: {}]
  %s3 = inlined_call_operand.vmem [shape: f32[1,128], index: 3, kind: input, shape index: {}]
  %s4 = inlined_call_operand.hbm [shape: f32[128,128], index: 4, kind: input, shape index: {}]
  %s5 = inlined_call_operand.vmem [shape: f32[1,128], index: 5, kind: input, shape index: {}]
  %s6 = inlined_call_operand.hbm [shape: f32[128,128], index: 6, kind: input, shape index: {}]
  %s7 = inlined_call_operand.vmem [shape: f32[1,128], index: 7, kind: input, shape index: {}]
  %s8 = inlined_call_operand.hbm [shape: f32[128,128], index: 8, kind: input, shape index: {}]
  %s9 = inlined_call_operand.vmem [shape: f32[1,128], index: 9, kind: input, shape index: {}]
  %s10 = inlined_call_operand.vmem [shape: f32[1,128], index: 10, kind: input, shape index: {}]
  %s11 = inlined_call_operand.vmem [shape: f32[1,128], index: 11, kind: input, shape index: {}]
  %s12 = inlined_call_operand.hbm [shape: f32[128,256], index: 12, kind: input, shape index: {}]
  %s13 = inlined_call_operand.vmem [shape: f32[1,256], index: 13, kind: input, shape index: {}]
  %s14 = inlined_call_operand.hbm [shape: f32[256,128], index: 14, kind: input, shape index: {}]
  %s15 = inlined_call_operand.vmem [shape: f32[1,128], index: 15, kind: input, shape index: {}]
  %s16 = inlined_call_operand.vmem [shape: f32[1,128], index: 16, kind: input, shape index: {}]
  %s17 = inlined_call_operand.vmem [shape: f32[1,128], index: 17, kind: input, shape index: {}]
  %s18 = inlined_call_operand.hbm [shape: f32[4,16,128], index: 18, kind: output, shape index: {}]
  %s19 = sld [smem:[#allocation0]]
  $region137: #{tpu_custom_call.1} parent=0
    _
  %s21 = ssub.s32 1, %s19
  %s22 = scalar_select 0, %s21, %s19
  $region1: #{tpu_custom_call.1} parent=0
    #allocation3 [shape = 'u8[32768]{0}', space=vmem, size = 0x8000, scoped, tag = 'input window, operand 0']
    #allocation4 [shape = 's32[2]{0}', space=sflag, size = 0x8, scoped, tag = 'scoped memory for tpu_custom_call.1']
    #allocation5 [shape = 's32[2]{0}', space=sflag, size = 0x8, scoped, tag = 'scoped memory for tpu_custom_call.1']
    #allocation6 [shape = 'u8[2048]{0}', space=vmem, size = 0x800, scoped, tag = 'input window, operand 1']
    #allocation7 [shape = 's32[2]{0}', space=sflag, size = 0x8, scoped, tag = 'scoped memory for tpu_custom_call.1']
    #allocation8 [shape = 'u8[65536]{0}', space=vmem, size = 0x10000, scoped, tag = 'input window, operand 2, single buffered']
    #allocation9 [shape = 'u8[65536]{0}', space=vmem, size = 0x10000, scoped, tag = 'input window, operand 4, single buffered']
    #allocation10 [shape = 's32[1]{0}', space=sflag, size = 0x4, scoped, tag = 'scoped memory for tpu_custom_call.1']
    #allocation11 [shape = 'u8[65536]{0}', space=vmem, size = 0x10000, scoped, tag = 'input window, operand 6, single buffered']
    #allocation12 [shape = 'u8[65536]{0}', space=vmem, size = 0x10000, scoped, tag = 'input window, operand 8, single buffered']
    #allocation13 [shape = 's32[1]{0}', space=sflag, size = 0x4, scoped, tag = 'scoped memory for tpu_custom_call.1']
    #allocation14 [shape = 'u8[131072]{0}', space=vmem, size = 0x20000, scoped, tag = 'input window, operand 12, single buffered']
    #allocation15 [shape = 'u8[131072]{0}', space=vmem, size = 0x20000, scoped, tag = 'input window, operand 14, single buffered']
    #allocation16 [shape = 's32[1]{0}', space=sflag, size = 0x4, scoped, tag = 'scoped memory for tpu_custom_call.1']
    #allocation17 [shape = 'u8[32768]{0}', space=vmem, size = 0x8000, scoped, tag = 'output window, operand 0']
    %23 = vsyncpa [#allocation4], 0
    %s24 = scalar_lea.sflag [#allocation4], 1
    %25 = vsyncpa %s24, 0
    %26 = vsyncpa [#allocation7], 0
    %s27 = scalar_lea.sflag [#allocation7], 1
    %28 = vsyncpa %s27, 0
    %29 = vsyncpa [#allocation10], 0
    %30 = vsyncpa [#allocation13], 0
    %31 = vsyncpa [#allocation16], 0
    %32 = vsyncpa [#allocation5], 0
    %s33 = scalar_lea.sflag [#allocation5], 1
    %34 = vsyncpa %s33, 0
    loop: start=0, step=1, limit=4
    $region2: #{tpu_custom_call.1} parent=1 // loop_pre_header
      _
    $region3: #{tpu_custom_call.1} parent=1 // loop_header
      %s36 = sphi 0, %s40
      %p37 = scmp.ge.s32.totalorder %s36, 4
      %s46 = sphi 0, %s48
      %s49 = sphi 0, %s46
      %s50 = sphi 0, %s49
      %s66 = sphi 0, %s50
      %s72 = sphi 0, %s74
      %s75 = sphi 0, %s72
      %s76 = sphi 0, %s75
      %s92 = sphi 0, %s76
      %s96 = sphi 0, %s96
      %s98 = sphi 0, %s96
      %s99 = sphi 0, %s98
      %s113 = sphi 0, %s99
      %s117 = sphi 0, %s117
      %s119 = sphi 0, %s117
      %s120 = sphi 0, %s119
      %s134 = sphi 0, %s120
      %s138 = sphi 0, %s138
      %s140 = sphi 0, %s138
      %s141 = sphi 0, %s140
      %s155 = sphi 0, %s141
      %s159 = sphi 0, %s159
      %s161 = sphi 0, %s159
      %s162 = sphi 0, %s161
      %s176 = sphi 0, %s162
      %s180 = sphi 0, %s180
      %s182 = sphi 0, %s180
      %s183 = sphi 0, %s182
      %s197 = sphi 0, %s183
      %s201 = sphi 0, %s201
      %s203 = sphi 0, %s201
      %s204 = sphi 0, %s203
      %s218 = sphi 0, %s204
      %s222 = sphi 0, %s222
      %s224 = sphi 0, %s222
      %s225 = sphi 0, %s224
      %s239 = sphi 0, %s225
      %s243 = sphi 0, %s243
      %s245 = sphi 0, %s243
      %s246 = sphi 0, %s245
      %s260 = sphi 0, %s246
      %s264 = sphi 0, %s264
      %s266 = sphi 0, %s264
      %s267 = sphi 0, %s266
      %s281 = sphi 0, %s267
      %s285 = sphi 0, %s285
      %s287 = sphi 0, %s285
      %s288 = sphi 0, %s287
      %s302 = sphi 0, %s288
      %s306 = sphi 0, %s306
      %s308 = sphi 0, %s306
      %s309 = sphi 0, %s308
      %s323 = sphi 0, %s309
      %s327 = sphi 0, %s327
      %s329 = sphi 0, %s327
      %s330 = sphi 0, %s329
      %s344 = sphi 0, %s330
      %s348 = sphi 0, %s348
      %s350 = sphi 0, %s348
      %s351 = sphi 0, %s350
      %s365 = sphi 0, %s351
      %s369 = sphi 0, %s369
      %s371 = sphi 0, %s369
      %s372 = sphi 0, %s371
      %s386 = sphi 0, %s372
      %s390 = sphi 0, %s390
      %s392 = sphi 0, %s390
      %s393 = sphi 0, %s392
      %s407 = sphi 0, %s393
      %s411 = sphi 0, %s411
      %s413 = sphi 0, %s411
      %s414 = sphi 0, %s413
      %s428 = sphi 0, %s414
      %s434 = sphi 0, %s436
      %s437 = sphi 0, %s434
      %s438 = sphi 0, %s437
      %s454 = sphi 0, %s438
    $region4: #{tpu_custom_call.1} parent=1 // loop_header_branch
      %39 = sbr.rel (%p37) target = $region8
    $region5: #{tpu_custom_call.1} parent=1 // loop_body
      %s41 = ssub.s32 %s36, 1
      %s42 = ssub.s32 %s36, 2
      %s43 = sadd.s32 %s36, 1
      %s44 = ssub.s32 %s36, %s43
      %p45 = scmp.eq.s32.totalorder %s44, 0
      %s47 = sadd.s32 %s46, 1
      %s48 = scalar_select %p45, %s46, %s47
      %p51 = pneg %p45
      %p52 = scmp.eq.s32.totalorder %s36, 1
      %p53 = por %p51, %p52
      %p54 = scmp.ne.s32.totalorder %s46, %s49
      %p55 = scmp.eq.s32.totalorder %s36, 0
      %p56 = por %p54, %p55
      %p57 = scmp.ne.s32.totalorder %s46, %s49
      %p58 = scmp.eq.s32.totalorder %s41, 1
      %p59 = por %p57, %p58
      %p60 = scmp.ne.s32.totalorder %s49, %s50
      %p61 = scmp.eq.s32.totalorder %s41, 0
      %p62 = por %p60, %p61
      %p63 = scmp.ne.s32.totalorder %s49, %s50
      %p64 = scmp.eq.s32.totalorder %s42, 1
      %p65 = por %p63, %p64
      %p67 = scmp.ne.s32.totalorder %s50, %s66
      %p68 = scmp.eq.s32.totalorder %s42, 0
      %p69 = por %p67, %p68
      %s70 = ssub.s32 %s36, %s43
      %p71 = scmp.eq.s32.totalorder %s70, 0
      %s73 = sadd.s32 %s72, 1
      %s74 = scalar_select %p71, %s72, %s73
      %p77 = pneg %p71
      %p78 = scmp.eq.s32.totalorder %s36, 1
      %p79 = por %p77, %p78
      %p80 = scmp.ne.s32.totalorder %s72, %s75
      %p81 = scmp.eq.s32.totalorder %s36, 0
      %p82 = por %p80, %p81
      %p83 = scmp.ne.s32.totalorder %s72, %s75
      %p84 = scmp.eq.s32.totalorder %s41, 1
      %p85 = por %p83, %p84
      %p86 = scmp.ne.s32.totalorder %s75, %s76
      %p87 = scmp.eq.s32.totalorder %s41, 0
      %p88 = por %p86, %p87
      %p89 = scmp.ne.s32.totalorder %s75, %s76
      %p90 = scmp.eq.s32.totalorder %s42, 1
      %p91 = por %p89, %p90
      %p93 = scmp.ne.s32.totalorder %s76, %s92
      %p94 = scmp.eq.s32.totalorder %s42, 0
      %p95 = por %p93, %p94
      %s97 = sadd.s32 %s96, 1
      %p100 = scmp.eq.s32.totalorder %s36, 1
      %p101 = scmp.ne.s32.totalorder %s96, %s98
      %p102 = scmp.eq.s32.totalorder %s36, 0
      %p103 = por %p101, %p102
      %p104 = scmp.ne.s32.totalorder %s96, %s98
      %p105 = scmp.eq.s32.totalorder %s41, 1
      %p106 = por %p104, %p105
      %p107 = scmp.ne.s32.totalorder %s98, %s99
      %p108 = scmp.eq.s32.totalorder %s41, 0
      %p109 = por %p107, %p108
      %p110 = scmp.ne.s32.totalorder %s98, %s99
      %p111 = scmp.eq.s32.totalorder %s42, 1
      %p112 = por %p110, %p111
      %p114 = scmp.ne.s32.totalorder %s99, %s113
      %p115 = scmp.eq.s32.totalorder %s42, 0
      %p116 = por %p114, %p115
      %s118 = sadd.s32 %s117, 1
      %p121 = scmp.eq.s32.totalorder %s36, 1
      %p122 = scmp.ne.s32.totalorder %s117, %s119
      %p123 = scmp.eq.s32.totalorder %s36, 0
      %p124 = por %p122, %p123
      %p125 = scmp.ne.s32.totalorder %s117, %s119
      %p126 = scmp.eq.s32.totalorder %s41, 1
      %p127 = por %p125, %p126
      %p128 = scmp.ne.s32.totalorder %s119, %s120
      %p129 = scmp.eq.s32.totalorder %s41, 0
      %p130 = por %p128, %p129
      %p131 = scmp.ne.s32.totalorder %s119, %s120
      %p132 = scmp.eq.s32.totalorder %s42, 1
      %p133 = por %p131, %p132
      %p135 = scmp.ne.s32.totalorder %s120, %s134
      %p136 = scmp.eq.s32.totalorder %s42, 0
      %p137 = por %p135, %p136
      %s139 = sadd.s32 %s138, 1
      %p142 = scmp.eq.s32.totalorder %s36, 1
      %p143 = scmp.ne.s32.totalorder %s138, %s140
      %p144 = scmp.eq.s32.totalorder %s36, 0
      %p145 = por %p143, %p144
      %p146 = scmp.ne.s32.totalorder %s138, %s140
      %p147 = scmp.eq.s32.totalorder %s41, 1
      %p148 = por %p146, %p147
      %p149 = scmp.ne.s32.totalorder %s140, %s141
      %p150 = scmp.eq.s32.totalorder %s41, 0
      %p151 = por %p149, %p150
      %p152 = scmp.ne.s32.totalorder %s140, %s141
      %p153 = scmp.eq.s32.totalorder %s42, 1
      %p154 = por %p152, %p153
      %p156 = scmp.ne.s32.totalorder %s141, %s155
      %p157 = scmp.eq.s32.totalorder %s42, 0
      %p158 = por %p156, %p157
      %s160 = sadd.s32 %s159, 1
      %p163 = scmp.eq.s32.totalorder %s36, 1
      %p164 = scmp.ne.s32.totalorder %s159, %s161
      %p165 = scmp.eq.s32.totalorder %s36, 0
      %p166 = por %p164, %p165
      %p167 = scmp.ne.s32.totalorder %s159, %s161
      %p168 = scmp.eq.s32.totalorder %s41, 1
      %p169 = por %p167, %p168
      %p170 = scmp.ne.s32.totalorder %s161, %s162
      %p171 = scmp.eq.s32.totalorder %s41, 0
      %p172 = por %p170, %p171
      %p173 = scmp.ne.s32.totalorder %s161, %s162
      %p174 = scmp.eq.s32.totalorder %s42, 1
      %p175 = por %p173, %p174
      %p177 = scmp.ne.s32.totalorder %s162, %s176
      %p178 = scmp.eq.s32.totalorder %s42, 0
      %p179 = por %p177, %p178
      %s181 = sadd.s32 %s180, 1
      %p184 = scmp.eq.s32.totalorder %s36, 1
      %p185 = scmp.ne.s32.totalorder %s180, %s182
      %p186 = scmp.eq.s32.totalorder %s36, 0
      %p187 = por %p185, %p186
      %p188 = scmp.ne.s32.totalorder %s180, %s182
      %p189 = scmp.eq.s32.totalorder %s41, 1
      %p190 = por %p188, %p189
      %p191 = scmp.ne.s32.totalorder %s182, %s183
      %p192 = scmp.eq.s32.totalorder %s41, 0
      %p193 = por %p191, %p192
      %p194 = scmp.ne.s32.totalorder %s182, %s183
      %p195 = scmp.eq.s32.totalorder %s42, 1
      %p196 = por %p194, %p195
      %p198 = scmp.ne.s32.totalorder %s183, %s197
      %p199 = scmp.eq.s32.totalorder %s42, 0
      %p200 = por %p198, %p199
      %s202 = sadd.s32 %s201, 1
      %p205 = scmp.eq.s32.totalorder %s36, 1
      %p206 = scmp.ne.s32.totalorder %s201, %s203
      %p207 = scmp.eq.s32.totalorder %s36, 0
      %p208 = por %p206, %p207
      %p209 = scmp.ne.s32.totalorder %s201, %s203
      %p210 = scmp.eq.s32.totalorder %s41, 1
      %p211 = por %p209, %p210
      %p212 = scmp.ne.s32.totalorder %s203, %s204
      %p213 = scmp.eq.s32.totalorder %s41, 0
      %p214 = por %p212, %p213
      %p215 = scmp.ne.s32.totalorder %s203, %s204
      %p216 = scmp.eq.s32.totalorder %s42, 1
      %p217 = por %p215, %p216
      %p219 = scmp.ne.s32.totalorder %s204, %s218
      %p220 = scmp.eq.s32.totalorder %s42, 0
      %p221 = por %p219, %p220
      %s223 = sadd.s32 %s222, 1
      %p226 = scmp.eq.s32.totalorder %s36, 1
      %p227 = scmp.ne.s32.totalorder %s222, %s224
      %p228 = scmp.eq.s32.totalorder %s36, 0
      %p229 = por %p227, %p228
      %p230 = scmp.ne.s32.totalorder %s222, %s224
      %p231 = scmp.eq.s32.totalorder %s41, 1
      %p232 = por %p230, %p231
      %p233 = scmp.ne.s32.totalorder %s224, %s225
      %p234 = scmp.eq.s32.totalorder %s41, 0
      %p235 = por %p233, %p234
      %p236 = scmp.ne.s32.totalorder %s224, %s225
      %p237 = scmp.eq.s32.totalorder %s42, 1
      %p238 = por %p236, %p237
      %p240 = scmp.ne.s32.totalorder %s225, %s239
      %p241 = scmp.eq.s32.totalorder %s42, 0
      %p242 = por %p240, %p241
      %s244 = sadd.s32 %s243, 1
      %p247 = scmp.eq.s32.totalorder %s36, 1
      %p248 = scmp.ne.s32.totalorder %s243, %s245
      %p249 = scmp.eq.s32.totalorder %s36, 0
      %p250 = por %p248, %p249
      %p251 = scmp.ne.s32.totalorder %s243, %s245
      %p252 = scmp.eq.s32.totalorder %s41, 1
      %p253 = por %p251, %p252
      %p254 = scmp.ne.s32.totalorder %s245, %s246
      %p255 = scmp.eq.s32.totalorder %s41, 0
      %p256 = por %p254, %p255
      %p257 = scmp.ne.s32.totalorder %s245, %s246
      %p258 = scmp.eq.s32.totalorder %s42, 1
      %p259 = por %p257, %p258
      %p261 = scmp.ne.s32.totalorder %s246, %s260
      %p262 = scmp.eq.s32.totalorder %s42, 0
      %p263 = por %p261, %p262
      %s265 = sadd.s32 %s264, 1
      %p268 = scmp.eq.s32.totalorder %s36, 1
      %p269 = scmp.ne.s32.totalorder %s264, %s266
      %p270 = scmp.eq.s32.totalorder %s36, 0
      %p271 = por %p269, %p270
      %p272 = scmp.ne.s32.totalorder %s264, %s266
      %p273 = scmp.eq.s32.totalorder %s41, 1
      %p274 = por %p272, %p273
      %p275 = scmp.ne.s32.totalorder %s266, %s267
      %p276 = scmp.eq.s32.totalorder %s41, 0
      %p277 = por %p275, %p276
      %p278 = scmp.ne.s32.totalorder %s266, %s267
      %p279 = scmp.eq.s32.totalorder %s42, 1
      %p280 = por %p278, %p279
      %p282 = scmp.ne.s32.totalorder %s267, %s281
      %p283 = scmp.eq.s32.totalorder %s42, 0
      %p284 = por %p282, %p283
      %s286 = sadd.s32 %s285, 1
      %p289 = scmp.eq.s32.totalorder %s36, 1
      %p290 = scmp.ne.s32.totalorder %s285, %s287
      %p291 = scmp.eq.s32.totalorder %s36, 0
      %p292 = por %p290, %p291
      %p293 = scmp.ne.s32.totalorder %s285, %s287
      %p294 = scmp.eq.s32.totalorder %s41, 1
      %p295 = por %p293, %p294
      %p296 = scmp.ne.s32.totalorder %s287, %s288
      %p297 = scmp.eq.s32.totalorder %s41, 0
      %p298 = por %p296, %p297
      %p299 = scmp.ne.s32.totalorder %s287, %s288
      %p300 = scmp.eq.s32.totalorder %s42, 1
      %p301 = por %p299, %p300
      %p303 = scmp.ne.s32.totalorder %s288, %s302
      %p304 = scmp.eq.s32.totalorder %s42, 0
      %p305 = por %p303, %p304
      %s307 = sadd.s32 %s306, 1
      %p310 = scmp.eq.s32.totalorder %s36, 1
      %p311 = scmp.ne.s32.totalorder %s306, %s308
      %p312 = scmp.eq.s32.totalorder %s36, 0
      %p313 = por %p311, %p312
      %p314 = scmp.ne.s32.totalorder %s306, %s308
      %p315 = scmp.eq.s32.totalorder %s41, 1
      %p316 = por %p314, %p315
      %p317 = scmp.ne.s32.totalorder %s308, %s309
      %p318 = scmp.eq.s32.totalorder %s41, 0
      %p319 = por %p317, %p318
      %p320 = scmp.ne.s32.totalorder %s308, %s309
      %p321 = scmp.eq.s32.totalorder %s42, 1
      %p322 = por %p320, %p321
      %p324 = scmp.ne.s32.totalorder %s309, %s323
      %p325 = scmp.eq.s32.totalorder %s42, 0
      %p326 = por %p324, %p325
      %s328 = sadd.s32 %s327, 1
      %p331 = scmp.eq.s32.totalorder %s36, 1
      %p332 = scmp.ne.s32.totalorder %s327, %s329
      %p333 = scmp.eq.s32.totalorder %s36, 0
      %p334 = por %p332, %p333
      %p335 = scmp.ne.s32.totalorder %s327, %s329
      %p336 = scmp.eq.s32.totalorder %s41, 1
      %p337 = por %p335, %p336
      %p338 = scmp.ne.s32.totalorder %s329, %s330
      %p339 = scmp.eq.s32.totalorder %s41, 0
      %p340 = por %p338, %p339
      %p341 = scmp.ne.s32.totalorder %s329, %s330
      %p342 = scmp.eq.s32.totalorder %s42, 1
      %p343 = por %p341, %p342
      %p345 = scmp.ne.s32.totalorder %s330, %s344
      %p346 = scmp.eq.s32.totalorder %s42, 0
      %p347 = por %p345, %p346
      %s349 = sadd.s32 %s348, 1
      %p352 = scmp.eq.s32.totalorder %s36, 1
      %p353 = scmp.ne.s32.totalorder %s348, %s350
      %p354 = scmp.eq.s32.totalorder %s36, 0
      %p355 = por %p353, %p354
      %p356 = scmp.ne.s32.totalorder %s348, %s350
      %p357 = scmp.eq.s32.totalorder %s41, 1
      %p358 = por %p356, %p357
      %p359 = scmp.ne.s32.totalorder %s350, %s351
      %p360 = scmp.eq.s32.totalorder %s41, 0
      %p361 = por %p359, %p360
      %p362 = scmp.ne.s32.totalorder %s350, %s351
      %p363 = scmp.eq.s32.totalorder %s42, 1
      %p364 = por %p362, %p363
      %p366 = scmp.ne.s32.totalorder %s351, %s365
      %p367 = scmp.eq.s32.totalorder %s42, 0
      %p368 = por %p366, %p367
      %s370 = sadd.s32 %s369, 1
      %p373 = scmp.eq.s32.totalorder %s36, 1
      %p374 = scmp.ne.s32.totalorder %s369, %s371
      %p375 = scmp.eq.s32.totalorder %s36, 0
      %p376 = por %p374, %p375
      %p377 = scmp.ne.s32.totalorder %s369, %s371
      %p378 = scmp.eq.s32.totalorder %s41, 1
      %p379 = por %p377, %p378
      %p380 = scmp.ne.s32.totalorder %s371, %s372
      %p381 = scmp.eq.s32.totalorder %s41, 0
      %p382 = por %p380, %p381
      %p383 = scmp.ne.s32.totalorder %s371, %s372
      %p384 = scmp.eq.s32.totalorder %s42, 1
      %p385 = por %p383, %p384
      %p387 = scmp.ne.s32.totalorder %s372, %s386
      %p388 = scmp.eq.s32.totalorder %s42, 0
      %p389 = por %p387, %p388
      %s391 = sadd.s32 %s390, 1
      %p394 = scmp.eq.s32.totalorder %s36, 1
      %p395 = scmp.ne.s32.totalorder %s390, %s392
      %p396 = scmp.eq.s32.totalorder %s36, 0
      %p397 = por %p395, %p396
      %p398 = scmp.ne.s32.totalorder %s390, %s392
      %p399 = scmp.eq.s32.totalorder %s41, 1
      %p400 = por %p398, %p399
      %p401 = scmp.ne.s32.totalorder %s392, %s393
      %p402 = scmp.eq.s32.totalorder %s41, 0
      %p403 = por %p401, %p402
      %p404 = scmp.ne.s32.totalorder %s392, %s393
      %p405 = scmp.eq.s32.totalorder %s42, 1
      %p406 = por %p404, %p405
      %p408 = scmp.ne.s32.totalorder %s393, %s407
      %p409 = scmp.eq.s32.totalorder %s42, 0
      %p410 = por %p408, %p409
      %s412 = sadd.s32 %s411, 1
      %p415 = scmp.eq.s32.totalorder %s36, 1
      %p416 = scmp.ne.s32.totalorder %s411, %s413
      %p417 = scmp.eq.s32.totalorder %s36, 0
      %p418 = por %p416, %p417
      %p419 = scmp.ne.s32.totalorder %s411, %s413
      %p420 = scmp.eq.s32.totalorder %s41, 1
      %p421 = por %p419, %p420
      %p422 = scmp.ne.s32.totalorder %s413, %s414
      %p423 = scmp.eq.s32.totalorder %s41, 0
      %p424 = por %p422, %p423
      %p425 = scmp.ne.s32.totalorder %s413, %s414
      %p426 = scmp.eq.s32.totalorder %s42, 1
      %p427 = por %p425, %p426
      %p429 = scmp.ne.s32.totalorder %s414, %s428
      %p430 = scmp.eq.s32.totalorder %s42, 0
      %p431 = por %p429, %p430
      %s432 = ssub.s32 %s36, %s43
      %p433 = scmp.eq.s32.totalorder %s432, 0
      %s435 = sadd.s32 %s434, 1
      %s436 = scalar_select %p433, %s434, %s435
      %p439 = pneg %p433
      %p440 = scmp.eq.s32.totalorder %s36, 1
      %p441 = por %p439, %p440
      %p442 = scmp.ne.s32.totalorder %s434, %s437
      %p443 = scmp.eq.s32.totalorder %s36, 0
      %p444 = por %p442, %p443
      %p445 = scmp.ne.s32.totalorder %s434, %s437
      %p446 = scmp.eq.s32.totalorder %s41, 1
      %p447 = por %p445, %p446
      %p448 = scmp.ne.s32.totalorder %s437, %s438
      %p449 = scmp.eq.s32.totalorder %s41, 0
      %p450 = por %p448, %p449
      %p451 = scmp.ne.s32.totalorder %s437, %s438
      %p452 = scmp.eq.s32.totalorder %s42, 1
      %p453 = por %p451, %p452
      %p455 = scmp.ne.s32.totalorder %s438, %s454
      %p456 = scmp.eq.s32.totalorder %s42, 0
      %p457 = por %p455, %p456
      %p458 = scmp.le.s32.totalorder 1, %s36
      %p459 = scmp.lt.s32.totalorder %s36, 3
      %p460 = pnand %p458, %p459
      %p461 = pneg %p460
      // Predicated region
      $region9: #{tpu_custom_call.1} parent=5 // pred_check
        _
      $region10: #{tpu_custom_call.1} parent=5 // pred_check_branch
        %463 = sbr.rel (%p460) target = $region12
      $region11: #{tpu_custom_call.1} parent=5 // pred_region
        %s464 = ssub.s32 %s36, 1
        // Predicated region
        $region13: #{tpu_custom_call.1} parent=11 // pred_check
          %p465 = pneg %p109
        $region14: #{tpu_custom_call.1} parent=11 // pred_check_branch
          %467 = sbr.rel (%p465) target = $region16
        $region15: #{tpu_custom_call.1} parent=11 // pred_region
          %s469 = ssub.s32 2048, 2048
          %470 = vsyncadd [#allocation7], %s469
          %s471 = sshll.u32 [#allocation8], 4
          %s472 = int_to_ptr.vmem [resolvable:$true] %s471
          %477 = dma.hbm_to_vmem [thread:$0]  %s2, 2048, %s472, [#allocation7], 128, 128, 8
        $region16: #{tpu_custom_call.1} parent=11 // pred_fallthru
          _
        // Predicated region
        $region17: #{tpu_custom_call.1} parent=11 // pred_check
          %p478 = pneg %p130
        $region18: #{tpu_custom_call.1} parent=11 // pred_check_branch
          %480 = sbr.rel (%p478) target = $region20
        $region19: #{tpu_custom_call.1} parent=11 // pred_region
          _
        $region20: #{tpu_custom_call.1} parent=11 // pred_fallthru
          _
        // Predicated region
        $region21: #{tpu_custom_call.1} parent=11 // pred_check
          %p481 = pneg %p151
        $region22: #{tpu_custom_call.1} parent=11 // pred_check_branch
          %483 = sbr.rel (%p481) target = $region24
        $region23: #{tpu_custom_call.1} parent=11 // pred_region
          %s485 = ssub.s32 2048, 2048
          %486 = vsyncadd [#allocation10], %s485
          %s487 = sshll.u32 [#allocation9], 4
          %s488 = int_to_ptr.vmem [resolvable:$true] %s487
          %493 = dma.hbm_to_vmem [thread:$0]  %s4, 2048, %s488, [#allocation10], 128, 128, 8
        $region24: #{tpu_custom_call.1} parent=11 // pred_fallthru
          _
        // Predicated region
        $region25: #{tpu_custom_call.1} parent=11 // pred_check
          %p494 = pneg %p172
        $region26: #{tpu_custom_call.1} parent=11 // pred_check_branch
          %496 = sbr.rel (%p494) target = $region28
        $region27: #{tpu_custom_call.1} parent=11 // pred_region
          _
        $region28: #{tpu_custom_call.1} parent=11 // pred_fallthru
          _
        // Predicated region
        $region29: #{tpu_custom_call.1} parent=11 // pred_check
          %p497 = pneg %p193
        $region30: #{tpu_custom_call.1} parent=11 // pred_check_branch
          %499 = sbr.rel (%p497) target = $region32
        $region31: #{tpu_custom_call.1} parent=11 // pred_region
          %s501 = ssub.s32 2048, 2048
          %502 = vsyncadd [#allocation10], %s501
          %s503 = sshll.u32 [#allocation11], 4
          %s504 = int_to_ptr.vmem [resolvable:$true] %s503
          %509 = dma.hbm_to_vmem [thread:$0]  %s6, 2048, %s504, [#allocation10], 128, 128, 8
        $region32: #{tpu_custom_call.1} parent=11 // pred_fallthru
          _
        // Predicated region
        $region33: #{tpu_custom_call.1} parent=11 // pred_check
          %p510 = pneg %p214
        $region34: #{tpu_custom_call.1} parent=11 // pred_check_branch
          %512 = sbr.rel (%p510) target = $region36
        $region35: #{tpu_custom_call.1} parent=11 // pred_region
          _
        $region36: #{tpu_custom_call.1} parent=11 // pred_fallthru
          _
        // Predicated region
        $region37: #{tpu_custom_call.1} parent=11 // pred_check
          %p513 = pneg %p235
        $region38: #{tpu_custom_call.1} parent=11 // pred_check_branch
          %515 = sbr.rel (%p513) target = $region40
        $region39: #{tpu_custom_call.1} parent=11 // pred_region
          %s517 = ssub.s32 2048, 2048
          %518 = vsyncadd [#allocation13], %s517
          %s519 = sshll.u32 [#allocation12], 4
          %s520 = int_to_ptr.vmem [resolvable:$true] %s519
          %525 = dma.hbm_to_vmem [thread:$0]  %s8, 2048, %s520, [#allocation13], 128, 128, 8
        $region40: #{tpu_custom_call.1} parent=11 // pred_fallthru
          _
        // Predicated region
        $region41: #{tpu_custom_call.1} parent=11 // pred_check
          %p526 = pneg %p256
        $region42: #{tpu_custom_call.1} parent=11 // pred_check_branch
          %528 = sbr.rel (%p526) target = $region44
        $region43: #{tpu_custom_call.1} parent=11 // pred_region
          _
        $region44: #{tpu_custom_call.1} parent=11 // pred_fallthru
          _
        // Predicated region
        $region45: #{tpu_custom_call.1} parent=11 // pred_check
          %p529 = pneg %p277
        $region46: #{tpu_custom_call.1} parent=11 // pred_check_branch
          %531 = sbr.rel (%p529) target = $region48
        $region47: #{tpu_custom_call.1} parent=11 // pred_region
          _
        $region48: #{tpu_custom_call.1} parent=11 // pred_fallthru
          _
        // Predicated region
        $region49: #{tpu_custom_call.1} parent=11 // pred_check
          %p532 = pneg %p298
        $region50: #{tpu_custom_call.1} parent=11 // pred_check_branch
          %534 = sbr.rel (%p532) target = $region52
        $region51: #{tpu_custom_call.1} parent=11 // pred_region
          _
        $region52: #{tpu_custom_call.1} parent=11 // pred_fallthru
          _
        // Predicated region
        $region53: #{tpu_custom_call.1} parent=11 // pred_check
          %p535 = pneg %p319
        $region54: #{tpu_custom_call.1} parent=11 // pred_check_branch
          %537 = sbr.rel (%p535) target = $region56
        $region55: #{tpu_custom_call.1} parent=11 // pred_region
          %s539 = ssub.s32 4096, 4096
          %540 = vsyncadd [#allocation13], %s539
          %s541 = sshll.u32 [#allocation14], 4
          %s542 = int_to_ptr.vmem [resolvable:$true] %s541
          %547 = dma.hbm_to_vmem [thread:$0]  %s12, 4096, %s542, [#allocation13], 256, 256, 16
        $region56: #{tpu_custom_call.1} parent=11 // pred_fallthru
          _
        // Predicated region
        $region57: #{tpu_custom_call.1} parent=11 // pred_check
          %p548 = pneg %p340
        $region58: #{tpu_custom_call.1} parent=11 // pred_check_branch
          %550 = sbr.rel (%p548) target = $region60
        $region59: #{tpu_custom_call.1} parent=11 // pred_region
          _
        $region60: #{tpu_custom_call.1} parent=11 // pred_fallthru
          _
        // Predicated region
        $region61: #{tpu_custom_call.1} parent=11 // pred_check
          %p551 = pneg %p361
        $region62: #{tpu_custom_call.1} parent=11 // pred_check_branch
          %553 = sbr.rel (%p551) target = $region64
        $region63: #{tpu_custom_call.1} parent=11 // pred_region
          %s555 = ssub.s32 4096, 4096
          %556 = vsyncadd [#allocation16], %s555
          %s557 = sshll.u32 [#allocation15], 4
          %s558 = int_to_ptr.vmem [resolvable:$true] %s557
          %563 = dma.hbm_to_vmem [thread:$0]  %s14, 4096, %s558, [#allocation16], 128, 128, 8
        $region64: #{tpu_custom_call.1} parent=11 // pred_fallthru
          _
        // Predicated region
        $region65: #{tpu_custom_call.1} parent=11 // pred_check
          %p564 = pneg %p382
        $region66: #{tpu_custom_call.1} parent=11 // pred_check_branch
          %566 = sbr.rel (%p564) target = $region68
        $region67: #{tpu_custom_call.1} parent=11 // pred_region
          _
        $region68: #{tpu_custom_call.1} parent=11 // pred_fallthru
          _
        // Predicated region
        $region69: #{tpu_custom_call.1} parent=11 // pred_check
          %p567 = pneg %p403
        $region70: #{tpu_custom_call.1} parent=11 // pred_check_branch
          %569 = sbr.rel (%p567) target = $region72
        $region71: #{tpu_custom_call.1} parent=11 // pred_region
          _
        $region72: #{tpu_custom_call.1} parent=11 // pred_fallthru
          _
        // Predicated region
        $region73: #{tpu_custom_call.1} parent=11 // pred_check
          %p570 = pneg %p424
        $region74: #{tpu_custom_call.1} parent=11 // pred_check_branch
          %572 = sbr.rel (%p570) target = $region76
        $region75: #{tpu_custom_call.1} parent=11 // pred_region
          _
        $region76: #{tpu_custom_call.1} parent=11 // pred_fallthru
          _
      $region12: #{tpu_custom_call.1} parent=5 // pred_fallthru
        _
      %p573 = scmp.lt.s32.totalorder %s36, 2
      // Predicated region
      $region77: #{tpu_custom_call.1} parent=5 // pred_check
        %p574 = pneg %p573
      $region78: #{tpu_custom_call.1} parent=5 // pred_check_branch
        %576 = sbr.rel (%p574) target = $region80
      $region79: #{tpu_custom_call.1} parent=5 // pred_region
        // Predicated region
        $region81: #{tpu_custom_call.1} parent=79 // pred_check
          %p577 = pneg %p56
        $region82: #{tpu_custom_call.1} parent=79 // pred_check_branch
          %579 = sbr.rel (%p577) target = $region84
        $region83: #{tpu_custom_call.1} parent=79 // pred_region
          %s580 = sand.u32 %s46, 1
          %s581 = scalar_lea.sflag [#allocation4], %s580
          %s582 = sand.u32 %s46, 1
          %s583 = smul.addr %s582, 32
          %s584 = scalar_lea.vmem [#allocation3], %s583
          %s585 = smul.u32 2, %s36
          %s587 = ssub.s32 512, 512
          %588 = vsyncadd %s581, %s587
          %s589 = smul.addr %s585, 2
          %s590 = smul.addr %s589, 128
          %s591 = scalar_lea.hbm %s0, %s590
          %s592 = sshll.u32 %s584, 4
          %s593 = int_to_ptr.vmem [resolvable:$true] %s592
          %598 = dma.hbm_to_vmem [thread:$0]  %s591, 512, %s593, %s581, 128, 128, 8
        $region84: #{tpu_custom_call.1} parent=79 // pred_fallthru
          _
        // Predicated region
        $region85: #{tpu_custom_call.1} parent=79 // pred_check
          %p599 = pneg %p82
        $region86: #{tpu_custom_call.1} parent=79 // pred_check_branch
          %601 = sbr.rel (%p599) target = $region88
        $region87: #{tpu_custom_call.1} parent=79 // pred_region
          %s602 = sand.u32 %s36, 1
          %s603 = scalar_lea.sflag [#allocation7], %s602
          %s604 = sand.u32 %s72, 1
          %s605 = smul.addr %s604, 2
          %s606 = scalar_lea.vmem [#allocation6], %s605
          %s607 = smul.u32 2, %s36
          %s609 = ssub.s32 32, 32
          %610 = vsyncadd %s603, %s609
          %s611 = smul.addr %s607, 16
          %s612 = scalar_lea.hbm %s1, %s611
          %s613 = sshll.u32 %s606, 4
          %s614 = int_to_ptr.vmem [resolvable:$true] %s613
          %619 = dma.hbm_to_vmem [thread:$0]  %s612, 32, %s614, %s603, 16, 16, 1
        $region88: #{tpu_custom_call.1} parent=79 // pred_fallthru
          _
      $region80: #{tpu_custom_call.1} parent=5 // pred_fallthru
        _
      %p620 = scmp.le.s32.totalorder 1, %s36
      %p621 = scmp.lt.s32.totalorder %s36, 3
      %p622 = pnand %p620, %p621
      %p623 = pneg %p622
      // Predicated region
      $region89: #{tpu_custom_call.1} parent=5 // pred_check
        _
      $region90: #{tpu_custom_call.1} parent=5 // pred_check_branch
        %625 = sbr.rel (%p622) target = $region92
      $region91: #{tpu_custom_call.1} parent=5 // pred_region
        %s626 = ssub.s32 %s36, 1
        %s627 = sand.u32 %s49, 1
        %s628 = scalar_lea.sflag [#allocation4], %s627
        %s629 = sand.u32 %s49, 1
        %s630 = smul.addr %s629, 32
        %s631 = scalar_lea.vmem [#allocation3], %s630
        // Predicated region
        $region93: #{tpu_custom_call.1} parent=91 // pred_check
          %p632 = pneg %p62
        $region94: #{tpu_custom_call.1} parent=91 // pred_check_branch
          %634 = sbr.rel (%p632) target = $region96
        $region95: #{tpu_custom_call.1} parent=91 // pred_region
          %635 = dma.done %s628, 512
        $region96: #{tpu_custom_call.1} parent=91 // pred_fallthru
          _
        %s636 = sand.u32 %s41, 1
        %s637 = scalar_lea.sflag [#allocation7], %s636
        %s638 = sand.u32 %s75, 1
        %s639 = smul.addr %s638, 2
        %s640 = scalar_lea.vmem [#allocation6], %s639
        // Predicated region
        $region97: #{tpu_custom_call.1} parent=91 // pred_check
          %p641 = pneg %p88
        $region98: #{tpu_custom_call.1} parent=91 // pred_check_branch
          %643 = sbr.rel (%p641) target = $region100
        $region99: #{tpu_custom_call.1} parent=91 // pred_region
          %644 = dma.done %s637, 32
        $region100: #{tpu_custom_call.1} parent=91 // pred_fallthru
          _
        // Predicated region
        $region101: #{tpu_custom_call.1} parent=91 // pred_check
          %p645 = pneg %p109
        $region102: #{tpu_custom_call.1} parent=91 // pred_check_branch
          %647 = sbr.rel (%p645) target = $region104
        $region103: #{tpu_custom_call.1} parent=91 // pred_region
          %648 = dma.done [#allocation7], 2048
        $region104: #{tpu_custom_call.1} parent=91 // pred_fallthru
          _
        // Predicated region
        $region105: #{tpu_custom_call.1} parent=91 // pred_check
          %p649 = pneg %p151
        $region106: #{tpu_custom_call.1} parent=91 // pred_check_branch
          %651 = sbr.rel (%p649) target = $region108
        $region107: #{tpu_custom_call.1} parent=91 // pred_region
          %652 = dma.done [#allocation10], 2048
        $region108: #{tpu_custom_call.1} parent=91 // pred_fallthru
          _
        // Predicated region
        $region109: #{tpu_custom_call.1} parent=91 // pred_check
          %p653 = pneg %p193
        $region110: #{tpu_custom_call.1} parent=91 // pred_check_branch
          %655 = sbr.rel (%p653) target = $region112
        $region111: #{tpu_custom_call.1} parent=91 // pred_region
          %656 = dma.done [#allocation10], 2048
        $region112: #{tpu_custom_call.1} parent=91 // pred_fallthru
          _
        // Predicated region
        $region113: #{tpu_custom_call.1} parent=91 // pred_check
          %p657 = pneg %p235
        $region114: #{tpu_custom_call.1} parent=91 // pred_check_branch
          %659 = sbr.rel (%p657) target = $region116
        $region115: #{tpu_custom_call.1} parent=91 // pred_region
          %660 = dma.done [#allocation13], 2048
        $region116: #{tpu_custom_call.1} parent=91 // pred_fallthru
          _
        // Predicated region
        $region117: #{tpu_custom_call.1} parent=91 // pred_check
          %p661 = pneg %p319
        $region118: #{tpu_custom_call.1} parent=91 // pred_check_branch
          %663 = sbr.rel (%p661) target = $region120
        $region119: #{tpu_custom_call.1} parent=91 // pred_region
          %664 = dma.done [#allocation13], 4096
        $region120: #{tpu_custom_call.1} parent=91 // pred_fallthru
          _
        // Predicated region
        $region121: #{tpu_custom_call.1} parent=91 // pred_check
          %p665 = pneg %p361
        $region122: #{tpu_custom_call.1} parent=91 // pred_check_branch
          %667 = sbr.rel (%p665) target = $region124
        $region123: #{tpu_custom_call.1} parent=91 // pred_region
          %668 = dma.done [#allocation16], 4096
        $region124: #{tpu_custom_call.1} parent=91 // pred_fallthru
          _
        %s669 = sand.u32 %s49, 1
        %s670 = scalar_lea.sflag [#allocation4], %s669
        %s671 = sand.u32 %s49, 1
        %s672 = smul.addr %s671, 32
        %s673 = scalar_lea.vmem [#allocation3], %s672
        %p674 = pneg %p62
        %p675 = pneg %p59
        %s676 = sand.u32 %s41, 1
        %s677 = scalar_lea.sflag [#allocation7], %s676
        %s678 = sand.u32 %s75, 1
        %s679 = smul.addr %s678, 2
        %s680 = scalar_lea.vmem [#allocation6], %s679
        %p681 = pneg %p88
        %p682 = pneg %p85
        %p683 = pneg %p109
        %p684 = pneg %p106
        %p685 = pneg %p130
        %p686 = pneg %p127
        %p687 = pneg %p151
        %p688 = pneg %p148
        %p689 = pneg %p172
        %p690 = pneg %p169
        %p691 = pneg %p193
        %p692 = pneg %p190
        %p693 = pneg %p214
        %p694 = pneg %p211
        %p695 = pneg %p235
        %p696 = pneg %p232
        %p697 = pneg %p256
        %p698 = pneg %p253
        %p699 = pneg %p277
        %p700 = pneg %p274
        %p701 = pneg %p298
        %p702 = pneg %p295
        %p703 = pneg %p319
        %p704 = pneg %p316
        %p705 = pneg %p340
        %p706 = pneg %p337
        %p707 = pneg %p361
        %p708 = pneg %p358
        %p709 = pneg %p382
        %p710 = pneg %p379
        %p711 = pneg %p403
        %p712 = pneg %p400
        %p713 = pneg %p424
        %p714 = pneg %p421
        %p715 = pneg %p450
        %p716 = pneg %p447
        %s717 = sand.u32 %s437, 1
        %s718 = scalar_lea.sflag [#allocation5], %s717
        %s719 = sand.u32 %s437, 1
        %s720 = smul.addr %s719, 32
        %s721 = scalar_lea.vmem [#allocation17], %s720
        %s722 = smul.u32 2, %s41
        %s723 = smul.u32 2, %s41
        %s724 = smul.u32 2, %s41
        %v725 = vld [vmem:[%s631] sm:$0xff]
        %v726 = vld [vmem:[%s631 + $0x8] sm:$0xff]
        %v727 = vld [vmem:[%s631 + $0x10] sm:$0xff]
        %v728 = vld [vmem:[%s631 + $0x18] sm:$0xff]
        %v729 = vld [vmem:[#allocation8] sm:$0xff]
        %v730 = vld [vmem:[#allocation8 + $0x8] sm:$0xff]
        %v731 = vld [vmem:[#allocation8 + $0x10] sm:$0xff]
        %v732 = vld [vmem:[#allocation8 + $0x18] sm:$0xff]
        %v733 = vld [vmem:[#allocation8 + $0x20] sm:$0xff]
        %v734 = vld [vmem:[#allocation8 + $0x28] sm:$0xff]
        %v735 = vld [vmem:[#allocation8 + $0x30] sm:$0xff]
        %v736 = vld [vmem:[#allocation8 + $0x38] sm:$0xff]
        %v737 = vld [vmem:[#allocation8 + $0x40] sm:$0xff]
        %v738 = vld [vmem:[#allocation8 + $0x48] sm:$0xff]
        %v739 = vld [vmem:[#allocation8 + $0x50] sm:$0xff]
        %v740 = vld [vmem:[#allocation8 + $0x58] sm:$0xff]
        %v741 = vld [vmem:[#allocation8 + $0x60] sm:$0xff]
        %v742 = vld [vmem:[#allocation8 + $0x68] sm:$0xff]
        %v743 = vld [vmem:[#allocation8 + $0x70] sm:$0xff]
        %v744 = vld [vmem:[#allocation8 + $0x78] sm:$0xff]
        %v745 = vld [vmem:[%s3] sm:$0x1]
        %v747 = vlaneseq
        %v748 = vshrl.u32 %v747, 7
        %v749 = vsub.s32 0, %v748
        %v750 = vrot.slane %v745, %v749
        %752 = vmatprep.subr.mxu0 0.0
        %753 = vmatpush1.msra.mxu0 %v729
        %754 = vmatprep.subr.mxu0 0.0
        %755 = vmatpush1.msra.mxu0 %v730
        %756 = vmatprep.subr.mxu0 0.0
        %757 = vmatpush1.msra.mxu0 %v731
        %758 = vmatprep.subr.mxu0 0.0
        %759 = vmatpush1.msra.mxu0 %v732
        %760 = vmatprep.subr.mxu0 0.0
        %761 = vmatpush1.msra.mxu0 %v733
        %762 = vmatprep.subr.mxu0 0.0
        %763 = vmatpush1.msra.mxu0 %v734
        %764 = vmatprep.subr.mxu0 0.0
        %765 = vmatpush1.msra.mxu0 %v735
        %766 = vmatprep.subr.mxu0 0.0
        %767 = vmatpush1.msra.mxu0 %v736
        %768 = vmatprep.subr.mxu0 0.0
        %769 = vmatpush1.msra.mxu0 %v737
        %770 = vmatprep.subr.mxu0 0.0
        %771 = vmatpush1.msra.mxu0 %v738
        %772 = vmatprep.subr.mxu0 0.0
        %773 = vmatpush1.msra.mxu0 %v739
        %774 = vmatprep.subr.mxu0 0.0
        %775 = vmatpush1.msra.mxu0 %v740
        %776 = vmatprep.subr.mxu0 0.0
        %777 = vmatpush1.msra.mxu0 %v741
        %778 = vmatprep.subr.mxu0 0.0
        %779 = vmatpush1.msra.mxu0 %v742
        %780 = vmatprep.subr.mxu0 0.0
        %781 = vmatpush1.msra.mxu0 %v743
        %782 = vmatprep.subr.mxu0 0.0
        %783 = vmatpush1.msra.mxu0 %v744
        %784 = vmatprep.subr.mxu0 0.0
        %785 = vmatpush1.msra.mxu0 0.0
        %786 = vmatprep.subr.mxu0 0.0
        %787 = vmatpush1.msra.mxu0 0.0
        %788 = vmatprep.subr.mxu0 0.0
        %789 = vmatpush1.msra.mxu0 0.0
        %790 = vmatprep.subr.mxu0 0.0
        %791 = vmatpush1.msra.mxu0 0.0
        %792 = vmatprep.subr.mxu0 0.0
        %793 = vmatpush1.msra.mxu0 0.0
        %794 = vmatprep.subr.mxu0 0.0
        %795 = vmatpush1.msra.mxu0 0.0
        %796 = vmatprep.subr.mxu0 0.0
        %797 = vmatpush1.msra.mxu0 0.0
        %798 = vmatprep.subr.mxu0 0.0
        %799 = vmatpush1.msra.mxu0 0.0
        %800 = vmatprep.subr.mxu0 0.0
        %801 = vmatpush1.msra.mxu0 0.0
        %802 = vmatprep.subr.mxu0 0.0
        %803 = vmatpush1.msra.mxu0 0.0
        %804 = vmatprep.subr.mxu0 0.0
        %805 = vmatpush1.msra.mxu0 0.0
        %806 = vmatprep.subr.mxu0 0.0
        %807 = vmatpush1.msra.mxu0 0.0
        %808 = vmatprep.subr.mxu0 0.0
        %809 = vmatpush1.msra.mxu0 0.0
        %810 = vmatprep.subr.mxu0 0.0
        %811 = vmatpush1.msra.mxu0 0.0
        %812 = vmatprep.subr.mxu0 0.0
        %813 = vmatpush1.msra.mxu0 0.0
        %814 = vmatprep.subr.mxu0 0.0
        %815 = vmatpush1.msra.mxu0 0.0
        %816 = vmatprep.mubr.f32.mxu0 0.0
        %817 = vmatmul.mubr.f32.gmra.mrb[0].mxu0 %v725
        %v818 = vpop.f32.mrb[0].mxu0
        %v819 = vadd.f32 %v750, %v818
        %v820 = vpop.f32.mrb[0].mxu0
        %821 = vmatprep.mubr.f32.mxu0 0.0
        %822 = vmatmul.mubr.f32.gmra.mrb[0].mxu0 %v726
        %v823 = vpop.f32.mrb[0].mxu0
        %v824 = vadd.f32 %v750, %v823
        %v825 = vpop.f32.mrb[0].mxu0
        %826 = vmatprep.mubr.f32.mxu0 0.0
        %827 = vmatmul.mubr.f32.gmra.mrb[0].mxu0 %v727
        %v828 = vpop.f32.mrb[0].mxu0
        %v829 = vadd.f32 %v750, %v828
        %v830 = vpop.f32.mrb[0].mxu0
        %831 = vmatprep.mubr.f32.mxu0 0.0
        %832 = vmatmul.mubr.f32.gmra.mrb[0].mxu0 %v728
        %v833 = vpop.f32.mrb[0].mxu0
        %v834 = vadd.f32 %v750, %v833
        %v835 = vpop.f32.mrb[0].mxu0
        %836 = vdwg.mxu0
        %v837 = vld [vmem:[#allocation9] sm:$0xff]
        %v838 = vld [vmem:[#allocation9 + $0x8] sm:$0xff]
        %v839 = vld [vmem:[#allocation9 + $0x10] sm:$0xff]
        %v840 = vld [vmem:[#allocation9 + $0x18] sm:$0xff]
        %v841 = vld [vmem:[#allocation9 + $0x20] sm:$0xff]
        %v842 = vld [vmem:[#allocation9 + $0x28] sm:$0xff]
        %v843 = vld [vmem:[#allocation9 + $0x30] sm:$0xff]
        %v844 = vld [vmem:[#allocation9 + $0x38] sm:$0xff]
        %v845 = vld [vmem:[#allocation9 + $0x40] sm:$0xff]
        %v846 = vld [vmem:[#allocation9 + $0x48] sm:$0xff]
        %v847 = vld [vmem:[#allocation9 + $0x50] sm:$0xff]
        %v848 = vld [vmem:[#allocation9 + $0x58] sm:$0xff]
        %v849 = vld [vmem:[#allocation9 + $0x60] sm:$0xff]
        %v850 = vld [vmem:[#allocation9 + $0x68] sm:$0xff]
        %v851 = vld [vmem:[#allocation9 + $0x70] sm:$0xff]
        %v852 = vld [vmem:[#allocation9 + $0x78] sm:$0xff]
        %v853 = vld [vmem:[%s5] sm:$0x1]
        %v855 = vlaneseq
        %v856 = vshrl.u32 %v855, 7
        %v857 = vsub.s32 0, %v856
        %v858 = vrot.slane %v853, %v857
        %860 = vmatprep.subr.mxu0 0.0
        %861 = vmatpush1.msra.mxu0 %v837
        %862 = vmatprep.subr.mxu0 0.0
        %863 = vmatpush1.msra.mxu0 %v838
        %864 = vmatprep.subr.mxu0 0.0
        %865 = vmatpush1.msra.mxu0 %v839
        %866 = vmatprep.subr.mxu0 0.0
        %867 = vmatpush1.msra.mxu0 %v840
        %868 = vmatprep.subr.mxu0 0.0
        %869 = vmatpush1.msra.mxu0 %v841
        %870 = vmatprep.subr.mxu0 0.0
        %871 = vmatpush1.msra.mxu0 %v842
        %872 = vmatprep.subr.mxu0 0.0
        %873 = vmatpush1.msra.mxu0 %v843
        %874 = vmatprep.subr.mxu0 0.0
        %875 = vmatpush1.msra.mxu0 %v844
        %876 = vmatprep.subr.mxu0 0.0
        %877 = vmatpush1.msra.mxu0 %v845
        %878 = vmatprep.subr.mxu0 0.0
        %879 = vmatpush1.msra.mxu0 %v846
        %880 = vmatprep.subr.mxu0 0.0
        %881 = vmatpush1.msra.mxu0 %v847
        %882 = vmatprep.subr.mxu0 0.0
        %883 = vmatpush1.msra.mxu0 %v848
        %884 = vmatprep.subr.mxu0 0.0
        %885 = vmatpush1.msra.mxu0 %v849
        %886 = vmatprep.subr.mxu0 0.0
        %887 = vmatpush1.msra.mxu0 %v850
        %888 = vmatprep.subr.mxu0 0.0
        %889 = vmatpush1.msra.mxu0 %v851
        %890 = vmatprep.subr.mxu0 0.0
        %891 = vmatpush1.msra.mxu0 %v852
        %892 = vmatprep.subr.mxu0 0.0
        %893 = vmatpush1.msra.mxu0 0.0
        %894 = vmatprep.subr.mxu0 0.0
        %895 = vmatpush1.msra.mxu0 0.0
        %896 = vmatprep.subr.mxu0 0.0
        %897 = vmatpush1.msra.mxu0 0.0
        %898 = vmatprep.subr.mxu0 0.0
        %899 = vmatpush1.msra.mxu0 0.0
        %900 = vmatprep.subr.mxu0 0.0
        %901 = vmatpush1.msra.mxu0 0.0
        %902 = vmatprep.subr.mxu0 0.0
        %903 = vmatpush1.msra.mxu0 0.0
        %904 = vmatprep.subr.mxu0 0.0
        %905 = vmatpush1.msra.mxu0 0.0
        %906 = vmatprep.subr.mxu0 0.0
        %907 = vmatpush1.msra.mxu0 0.0
        %908 = vmatprep.subr.mxu0 0.0
        %909 = vmatpush1.msra.mxu0 0.0
        %910 = vmatprep.subr.mxu0 0.0
        %911 = vmatpush1.msra.mxu0 0.0
        %912 = vmatprep.subr.mxu0 0.0
        %913 = vmatpush1.msra.mxu0 0.0
        %914 = vmatprep.subr.mxu0 0.0
        %915 = vmatpush1.msra.mxu0 0.0
        %916 = vmatprep.subr.mxu0 0.0
        %917 = vmatpush1.msra.mxu0 0.0
        %918 = vmatprep.subr.mxu0 0.0
        %919 = vmatpush1.msra.mxu0 0.0
        %920 = vmatprep.subr.mxu0 0.0
        %921 = vmatpush1.msra.mxu0 0.0
        %922 = vmatprep.subr.mxu0 0.0
        %923 = vmatpush1.msra.mxu0 0.0
        %924 = vmatprep.mubr.f32.mxu0 0.0
        %925 = vmatmul.mubr.f32.gmra.mrb[0].mxu0 %v725
        %v926 = vpop.f32.mrb[0].mxu0
        %v927 = vadd.f32 %v858, %v926
        %v928 = vpop.f32.mrb[0].mxu0
        %929 = vmatprep.mubr.f32.mxu0 0.0
        %930 = vmatmul.mubr.f32.gmra.mrb[0].mxu0 %v726
        %v931 = vpop.f32.mrb[0].mxu0
        %v932 = vadd.f32 %v858, %v931
        %v933 = vpop.f32.mrb[0].mxu0
        %934 = vmatprep.mubr.f32.mxu0 0.0
        %935 = vmatmul.mubr.f32.gmra.mrb[0].mxu0 %v727
        %v936 = vpop.f32.mrb[0].mxu0
        %v937 = vadd.f32 %v858, %v936
        %v938 = vpop.f32.mrb[0].mxu0
        %939 = vmatprep.mubr.f32.mxu0 0.0
        %940 = vmatmul.mubr.f32.gmra.mrb[0].mxu0 %v728
        %v941 = vpop.f32.mrb[0].mxu0
        %v942 = vadd.f32 %v858, %v941
        %v943 = vpop.f32.mrb[0].mxu0
        %944 = vdwg.mxu0
        %v945 = vld [vmem:[#allocation11] sm:$0xff]
        %v946 = vld [vmem:[#allocation11 + $0x8] sm:$0xff]
        %v947 = vld [vmem:[#allocation11 + $0x10] sm:$0xff]
        %v948 = vld [vmem:[#allocation11 + $0x18] sm:$0xff]
        %v949 = vld [vmem:[#allocation11 + $0x20] sm:$0xff]
        %v950 = vld [vmem:[#allocation11 + $0x28] sm:$0xff]
        %v951 = vld [vmem:[#allocation11 + $0x30] sm:$0xff]
        %v952 = vld [vmem:[#allocation11 + $0x38] sm:$0xff]
        %v953 = vld [vmem:[#allocation11 + $0x40] sm:$0xff]
        %v954 = vld [vmem:[#allocation11 + $0x48] sm:$0xff]
        %v955 = vld [vmem:[#allocation11 + $0x50] sm:$0xff]
        %v956 = vld [vmem:[#allocation11 + $0x58] sm:$0xff]
        %v957 = vld [vmem:[#allocation11 + $0x60] sm:$0xff]
        %v958 = vld [vmem:[#allocation11 + $0x68] sm:$0xff]
        %v959 = vld [vmem:[#allocation11 + $0x70] sm:$0xff]
        %v960 = vld [vmem:[#allocation11 + $0x78] sm:$0xff]
        %v961 = vld [vmem:[%s7] sm:$0x1]
        %v963 = vlaneseq
        %v964 = vshrl.u32 %v963, 7
        %v965 = vsub.s32 0, %v964
        %v966 = vrot.slane %v961, %v965
        %968 = vmatprep.subr.mxu0 0.0
        %969 = vmatpush1.msra.mxu0 %v945
        %970 = vmatprep.subr.mxu0 0.0
        %971 = vmatpush1.msra.mxu0 %v946
        %972 = vmatprep.subr.mxu0 0.0
        %973 = vmatpush1.msra.mxu0 %v947
        %974 = vmatprep.subr.mxu0 0.0
        %975 = vmatpush1.msra.mxu0 %v948
        %976 = vmatprep.subr.mxu0 0.0
        %977 = vmatpush1.msra.mxu0 %v949
        %978 = vmatprep.subr.mxu0 0.0
        %979 = vmatpush1.msra.mxu0 %v950
        %980 = vmatprep.subr.mxu0 0.0
        %981 = vmatpush1.msra.mxu0 %v951
        %982 = vmatprep.subr.mxu0 0.0
        %983 = vmatpush1.msra.mxu0 %v952
        %984 = vmatprep.subr.mxu0 0.0
        %985 = vmatpush1.msra.mxu0 %v953
        %986 = vmatprep.subr.mxu0 0.0
        %987 = vmatpush1.msra.mxu0 %v954
        %988 = vmatprep.subr.mxu0 0.0
        %989 = vmatpush1.msra.mxu0 %v955
        %990 = vmatprep.subr.mxu0 0.0
        %991 = vmatpush1.msra.mxu0 %v956
        %992 = vmatprep.subr.mxu0 0.0
        %993 = vmatpush1.msra.mxu0 %v957
        %994 = vmatprep.subr.mxu0 0.0
        %995 = vmatpush1.msra.mxu0 %v958
        %996 = vmatprep.subr.mxu0 0.0
        %997 = vmatpush1.msra.mxu0 %v959
        %998 = vmatprep.subr.mxu0 0.0
        %999 = vmatpush1.msra.mxu0 %v960
        %1000 = vmatprep.subr.mxu0 0.0
        %1001 = vmatpush1.msra.mxu0 0.0
        %1002 = vmatprep.subr.mxu0 0.0
        %1003 = vmatpush1.msra.mxu0 0.0
        %1004 = vmatprep.subr.mxu0 0.0
        %1005 = vmatpush1.msra.mxu0 0.0
        %1006 = vmatprep.subr.mxu0 0.0
        %1007 = vmatpush1.msra.mxu0 0.0
        %1008 = vmatprep.subr.mxu0 0.0
        %1009 = vmatpush1.msra.mxu0 0.0
        %1010 = vmatprep.subr.mxu0 0.0
        %1011 = vmatpush1.msra.mxu0 0.0
        %1012 = vmatprep.subr.mxu0 0.0
        %1013 = vmatpush1.msra.mxu0 0.0
        %1014 = vmatprep.subr.mxu0 0.0
        %1015 = vmatpush1.msra.mxu0 0.0
        %1016 = vmatprep.subr.mxu0 0.0
        %1017 = vmatpush1.msra.mxu0 0.0
        %1018 = vmatprep.subr.mxu0 0.0
        %1019 = vmatpush1.msra.mxu0 0.0
        %1020 = vmatprep.subr.mxu0 0.0
        %1021 = vmatpush1.msra.mxu0 0.0
        %1022 = vmatprep.subr.mxu0 0.0
        %1023 = vmatpush1.msra.mxu0 0.0
        %1024 = vmatprep.subr.mxu0 0.0
        %1025 = vmatpush1.msra.mxu0 0.0
        %1026 = vmatprep.subr.mxu0 0.0
        %1027 = vmatpush1.msra.mxu0 0.0
        %1028 = vmatprep.subr.mxu0 0.0
        %1029 = vmatpush1.msra.mxu0 0.0
        %1030 = vmatprep.subr.mxu0 0.0
        %1031 = vmatpush1.msra.mxu0 0.0
        %1032 = vmatprep.mubr.f32.mxu0 0.0
        %1033 = vmatmul.mubr.f32.gmra.mrb[0].mxu0 %v725
        %v1034 = vpop.f32.mrb[0].mxu0
        %v1035 = vadd.f32 %v966, %v1034
        %v1036 = vpop.f32.mrb[0].mxu0
        %1037 = vmatprep.mubr.f32.mxu0 0.0
        %1038 = vmatmul.mubr.f32.gmra.mrb[0].mxu0 %v726
        %v1039 = vpop.f32.mrb[0].mxu0
        %v1040 = vadd.f32 %v966, %v1039
        %v1041 = vpop.f32.mrb[0].mxu0
        %1042 = vmatprep.mubr.f32.mxu0 0.0
        %1043 = vmatmul.mubr.f32.gmra.mrb[0].mxu0 %v727
        %v1044 = vpop.f32.mrb[0].mxu0
        %v1045 = vadd.f32 %v966, %v1044
        %v1046 = vpop.f32.mrb[0].mxu0
        %1047 = vmatprep.mubr.f32.mxu0 0.0
        %1048 = vmatmul.mubr.f32.gmra.mrb[0].mxu0 %v728
        %v1049 = vpop.f32.mrb[0].mxu0
        %v1050 = vadd.f32 %v966, %v1049
        %v1051 = vpop.f32.mrb[0].mxu0
        %1052 = vdwg.mxu0
        %v1053 = vld [vmem:[%s640] sm:$0x1]
        %v1054 = vld [vmem:[%s640 + $0x1] sm:$0x1]
        %vm1055 = vcmp.eq.s32.totalorder %v1053, 0
        %vm1056 = vcmp.eq.s32.totalorder %v1054, 0
        %v1057 = vsel %vm1055, -1e+09, 0.0
        %v1058 = vsel %vm1056, -1e+09, 0.0
        %v1059 = vld [vmem:[#allocation12] sm:$0xff]
        %v1060 = vld [vmem:[#allocation12 + $0x8] sm:$0xff]
        %v1061 = vld [vmem:[#allocation12 + $0x10] sm:$0xff]
        %v1062 = vld [vmem:[#allocation12 + $0x18] sm:$0xff]
        %v1063 = vld [vmem:[#allocation12 + $0x20] sm:$0xff]
        %v1064 = vld [vmem:[#allocation12 + $0x28] sm:$0xff]
        %v1065 = vld [vmem:[#allocation12 + $0x30] sm:$0xff]
        %v1066 = vld [vmem:[#allocation12 + $0x38] sm:$0xff]
        %v1067 = vld [vmem:[#allocation12 + $0x40] sm:$0xff]
        %v1068 = vld [vmem:[#allocation12 + $0x48] sm:$0xff]
        %v1069 = vld [vmem:[#allocation12 + $0x50] sm:$0xff]
        %v1070 = vld [vmem:[#allocation12 + $0x58] sm:$0xff]
        %v1071 = vld [vmem:[#allocation12 + $0x60] sm:$0xff]
        %v1072 = vld [vmem:[#allocation12 + $0x68] sm:$0xff]
        %v1073 = vld [vmem:[#allocation12 + $0x70] sm:$0xff]
        %v1074 = vld [vmem:[#allocation12 + $0x78] sm:$0xff]
        %1075 = vst [vmem:[#allocation2] sm:$0xff] 0.0
        %1076 = vst [vmem:[#allocation2 + $0x8] sm:$0xff] 0.0
        %1077 = vst [vmem:[#allocation2 + $0x10] sm:$0xff] 0.0
        %1078 = vst [vmem:[#allocation2 + $0x18] sm:$0xff] 0.0
        %vm1079 = vcmask 261120
        %v1081 = vsel %vm1079, %v819, 0
        %v1084 = vsel %vm1079, %v824, 0
        %v1087 = vsel %vm1079, %v927, 0
        %v1090 = vsel %vm1079, %v932, 0
        %1092 = vmatprep.subr.mxu0 0.0
        %1093 = vmatpush1.xpose.msra.mxu0 %v1087
        %1094 = vmatprep.subr.mxu0 0.0
        %1095 = vmatpush1.xpose.msra.mxu0 %v1090
        %1096 = vmatprep.subr.mxu0 0.0
        %1097 = vmatpush1.xpose.msra.mxu0 0.0
        %1098 = vmatprep.subr.mxu0 0.0
        %1099 = vmatpush1.xpose.msra.mxu0 0.0
        %1100 = vmatprep.subr.mxu0 0.0
        %1101 = vmatpush1.xpose.msra.mxu0 0.0
        %1102 = vmatprep.subr.mxu0 0.0
        %1103 = vmatpush1.xpose.msra.mxu0 0.0
        %1104 = vmatprep.subr.mxu0 0.0
        %1105 = vmatpush1.xpose.msra.mxu0 0.0
        %1106 = vmatprep.subr.mxu0 0.0
        %1107 = vmatpush1.xpose.msra.mxu0 0.0
        %1108 = vmatprep.subr.mxu0 0.0
        %1109 = vmatpush1.xpose.msra.mxu0 0.0
        %1110 = vmatprep.subr.mxu0 0.0
        %1111 = vmatpush1.xpose.msra.mxu0 0.0
        %1112 = vmatprep.subr.mxu0 0.0
        %1113 = vmatpush1.xpose.msra.mxu0 0.0
        %1114 = vmatprep.subr.mxu0 0.0
        %1115 = vmatpush1.xpose.msra.mxu0 0.0
        %1116 = vmatprep.subr.mxu0 0.0
        %1117 = vmatpush1.xpose.msra.mxu0 0.0
        %1118 = vmatprep.subr.mxu0 0.0
        %1119 = vmatpush1.xpose.msra.mxu0 0.0
        %1120 = vmatprep.subr.mxu0 0.0
        %1121 = vmatpush1.xpose.msra.mxu0 0.0
        %1122 = vmatprep.subr.mxu0 0.0
        %1123 = vmatpush1.xpose.msra.mxu0 0.0
        %1124 = vmatprep.subr.mxu0 0.0
        %1125 = vmatpush1.xpose.msra.mxu0 0.0
        %1126 = vmatprep.subr.mxu0 0.0
        %1127 = vmatpush1.xpose.msra.mxu0 0.0
        %1128 = vmatprep.subr.mxu0 0.0
        %1129 = vmatpush1.xpose.msra.mxu0 0.0
        %1130 = vmatprep.subr.mxu0 0.0
        %1131 = vmatpush1.xpose.msra.mxu0 0.0
        %1132 = vmatprep.subr.mxu0 0.0
        %1133 = vmatpush1.xpose.msra.mxu0 0.0
        %1134 = vmatprep.subr.mxu0 0.0
        %1135 = vmatpush1.xpose.msra.mxu0 0.0
        %1136 = vmatprep.subr.mxu0 0.0
        %1137 = vmatpush1.xpose.msra.mxu0 0.0
        %1138 = vmatprep.subr.mxu0 0.0
        %1139 = vmatpush1.xpose.msra.mxu0 0.0
        %1140 = vmatprep.subr.mxu0 0.0
        %1141 = vmatpush1.xpose.msra.mxu0 0.0
        %1142 = vmatprep.subr.mxu0 0.0
        %1143 = vmatpush1.xpose.msra.mxu0 0.0
        %1144 = vmatprep.subr.mxu0 0.0
        %1145 = vmatpush1.xpose.msra.mxu0 0.0
        %1146 = vmatprep.subr.mxu0 0.0
        %1147 = vmatpush1.xpose.msra.mxu0 0.0
        %1148 = vmatprep.subr.mxu0 0.0
        %1149 = vmatpush1.xpose.msra.mxu0 0.0
        %1150 = vmatprep.subr.mxu0 0.0
        %1151 = vmatpush1.xpose.msra.mxu0 0.0
        %1152 = vmatprep.subr.mxu0 0.0
        %1153 = vmatpush1.xpose.msra.mxu0 0.0
        %1154 = vmatprep.subr.mxu0 0.0
        %1155 = vmatpush1.xpose.msra.mxu0 0.0
        %1156 = vmatprep.mubr.f32.mxu0 0.0
        %1157 = vmatmul.mubr.f32.gmra.mrb[0].mxu0 %v1081
        %v1158 = vpop.f32.mrb[0].mxu0
        %v1159 = vadd.f32 0.0, %v1158
        %v1160 = vpop.f32.mrb[0].mxu0
        %1161 = vmatprep.mubr.f32.mxu0 0.0
        %1162 = vmatmul.mubr.f32.gmra.mrb[0].mxu0 %v1084
        %v1163 = vpop.f32.mrb[0].mxu0
        %v1164 = vadd.f32 0.0, %v1163
        %v1165 = vpop.f32.mrb[0].mxu0
        %1166 = vdwg.mxu0
        %v1168 = vsel %vm1079, %v829, 0
        %v1171 = vsel %vm1079, %v834, 0
        %v1174 = vsel %vm1079, %v937, 0
        %v1177 = vsel %vm1079, %v942, 0
        %1179 = vmatprep.subr.mxu0 0.0
        %1180 = vmatpush1.xpose.msra.mxu0 %v1174
        %1181 = vmatprep.subr.mxu0 0.0
        %1182 = vmatpush1.xpose.msra.mxu0 %v1177
        %1183 = vmatprep.subr.mxu0 0.0
        %1184 = vmatpush1.xpose.msra.mxu0 0.0
        %1185 = vmatprep.subr.mxu0 0.0
        %1186 = vmatpush1.xpose.msra.mxu0 0.0
        %1187 = vmatprep.subr.mxu0 0.0
        %1188 = vmatpush1.xpose.msra.mxu0 0.0
        %1189 = vmatprep.subr.mxu0 0.0
        %1190 = vmatpush1.xpose.msra.mxu0 0.0
        %1191 = vmatprep.subr.mxu0 0.0
        %1192 = vmatpush1.xpose.msra.mxu0 0.0
        %1193 = vmatprep.subr.mxu0 0.0
        %1194 = vmatpush1.xpose.msra.mxu0 0.0
        %1195 = vmatprep.subr.mxu0 0.0
        %1196 = vmatpush1.xpose.msra.mxu0 0.0
        %1197 = vmatprep.subr.mxu0 0.0
        %1198 = vmatpush1.xpose.msra.mxu0 0.0
        %1199 = vmatprep.subr.mxu0 0.0
        %1200 = vmatpush1.xpose.msra.mxu0 0.0
        %1201 = vmatprep.subr.mxu0 0.0
        %1202 = vmatpush1.xpose.msra.mxu0 0.0
        %1203 = vmatprep.subr.mxu0 0.0
        %1204 = vmatpush1.xpose.msra.mxu0 0.0
        %1205 = vmatprep.subr.mxu0 0.0
        %1206 = vmatpush1.xpose.msra.mxu0 0.0
        %1207 = vmatprep.subr.mxu0 0.0
        %1208 = vmatpush1.xpose.msra.mxu0 0.0
        %1209 = vmatprep.subr.mxu0 0.0
        %1210 = vmatpush1.xpose.msra.mxu0 0.0
        %1211 = vmatprep.subr.mxu0 0.0
        %1212 = vmatpush1.xpose.msra.mxu0 0.0
        %1213 = vmatprep.subr.mxu0 0.0
        %1214 = vmatpush1.xpose.msra.mxu0 0.0
        %1215 = vmatprep.subr.mxu0 0.0
        %1216 = vmatpush1.xpose.msra.mxu0 0.0
        %1217 = vmatprep.subr.mxu0 0.0
        %1218 = vmatpush1.xpose.msra.mxu0 0.0
        %1219 = vmatprep.subr.mxu0 0.0
        %1220 = vmatpush1.xpose.msra.mxu0 0.0
        %1221 = vmatprep.subr.mxu0 0.0
        %1222 = vmatpush1.xpose.msra.mxu0 0.0
        %1223 = vmatprep.subr.mxu0 0.0
        %1224 = vmatpush1.xpose.msra.mxu0 0.0
        %1225 = vmatprep.subr.mxu0 0.0
        %1226 = vmatpush1.xpose.msra.mxu0 0.0
        %1227 = vmatprep.subr.mxu0 0.0
        %1228 = vmatpush1.xpose.msra.mxu0 0.0
        %1229 = vmatprep.subr.mxu0 0.0
        %1230 = vmatpush1.xpose.msra.mxu0 0.0
        %1231 = vmatprep.subr.mxu0 0.0
        %1232 = vmatpush1.xpose.msra.mxu0 0.0
        %1233 = vmatprep.subr.mxu0 0.0
        %1234 = vmatpush1.xpose.msra.mxu0 0.0
        %1235 = vmatprep.subr.mxu0 0.0
        %1236 = vmatpush1.xpose.msra.mxu0 0.0
        %1237 = vmatprep.subr.mxu0 0.0
        %1238 = vmatpush1.xpose.msra.mxu0 0.0
        %1239 = vmatprep.subr.mxu0 0.0
        %1240 = vmatpush1.xpose.msra.mxu0 0.0
        %1241 = vmatprep.subr.mxu0 0.0
        %1242 = vmatpush1.xpose.msra.mxu0 0.0
        %1243 = vmatprep.mubr.f32.mxu0 0.0
        %1244 = vmatmul.mubr.f32.gmra.mrb[0].mxu0 %v1168
        %v1245 = vpop.f32.mrb[0].mxu0
        %v1246 = vadd.f32 0.0, %v1245
        %v1247 = vpop.f32.mrb[0].mxu0
        %1248 = vmatprep.mubr.f32.mxu0 0.0
        %1249 = vmatmul.mubr.f32.gmra.mrb[0].mxu0 %v1171
        %v1250 = vpop.f32.mrb[0].mxu0
        %v1251 = vadd.f32 0.0, %v1250
        %v1252 = vpop.f32.mrb[0].mxu0
        %1253 = vdwg.mxu0
        %v1254 = vmul.f32 %v1159, 0.17677669
        %v1255 = vmul.f32 %v1164, 0.17677669
        %v1256 = vmul.f32 %v1246, 0.17677669
        %v1257 = vmul.f32 %v1251, 0.17677669
        %v1260 = vlaneseq
        %v1261 = vshrl.u32 %v1260, 7
        %v1262 = vsub.s32 0, %v1261
        %v1263 = vrot.slane %v1057, %v1262
        %v1264 = vlaneseq
        %v1265 = vshrl.u32 %v1264, 7
        %v1266 = vsub.s32 0, %v1265
        %v1267 = vrot.slane %v1058, %v1266
        %v1270 = vadd.f32 %v1254, %v1263
        %v1271 = vadd.f32 %v1255, %v1263
        %v1272 = vadd.f32 %v1256, %v1267
        %v1273 = vadd.f32 %v1257, %v1267
        %vm1274 = vcmask 130048
        %v1275 = vsel %vm1274, %v1270, -inf
        %1276 = vmax.xlane.f32.xlu0 %v1275
        %v1277 = vpop.xlane.xlu0 %1276
        %v1278 = vsel %vm1274, %v1271, -inf
        %1279 = vmax.xlane.f32.xlu0 %v1278
        %v1280 = vpop.xlane.xlu0 %1279
        %v1281 = vsel %vm1274, %v1272, -inf
        %1282 = vmax.xlane.f32.xlu0 %v1281
        %v1283 = vpop.xlane.xlu0 %1282
        %v1284 = vsel %vm1274, %v1273, -inf
        %1285 = vmax.xlane.f32.xlu0 %v1284
        %v1286 = vpop.xlane.xlu0 %1285
        %v1287 = vsub.f32 %v1270, %v1277
        %v1288 = vsub.f32 %v1271, %v1280
        %v1289 = vsub.f32 %v1272, %v1283
        %v1290 = vsub.f32 %v1273, %v1286
        %v1291 = vmul.f32 %v1287, 1.442695
        %v1292 = vpow.pop %v1291
        %v1293 = vmul.f32 %v1288, 1.442695
        %v1294 = vpow.pop %v1293
        %v1295 = vmul.f32 %v1289, 1.442695
        %v1296 = vpow.pop %v1295
        %v1297 = vmul.f32 %v1290, 1.442695
        %v1298 = vpow.pop %v1297
        %v1299 = vsel %vm1274, %v1292, 0.0
        %1300 = vadd.xlane.f32.xlu0 %v1299
        %v1301 = vpop.xlane.xlu0 %1300
        %v1302 = vsel %vm1274, %v1294, 0.0
        %1303 = vadd.xlane.f32.xlu0 %v1302
        %v1304 = vpop.xlane.xlu0 %1303
        %v1305 = vsel %vm1274, %v1296, 0.0
        %1306 = vadd.xlane.f32.xlu0 %v1305
        %v1307 = vpop.xlane.xlu0 %1306
        %v1308 = vsel %vm1274, %v1298, 0.0
        %1309 = vadd.xlane.f32.xlu0 %v1308
        %v1310 = vpop.xlane.xlu0 %1309
        %v1311 = vrcp.pop %v1301
        %v1312 = vrcp.pop %v1304
        %v1313 = vrcp.pop %v1307
        %v1314 = vrcp.pop %v1310
        %v1315 = vmul.f32 %v1292, %v1311
        %v1316 = vmul.f32 %v1294, %v1312
        %v1317 = vmul.f32 %v1296, %v1313
        %v1318 = vmul.f32 %v1298, %v1314
        %v1320 = vsel %vm1274, %v1315, 0
        %v1323 = vsel %vm1274, %v1316, 0
        %1325 = vmatprep.subr.mxu0 0.0
        %1326 = vmatpush1.msra.mxu0 %v1035
        %1327 = vmatprep.subr.mxu0 0.0
        %1328 = vmatpush1.msra.mxu0 %v1040
        %1329 = vmatprep.subr.mxu0 0.0
        %1330 = vmatpush1.msra.mxu0 0.0
        %1331 = vmatprep.subr.mxu0 0.0
        %1332 = vmatpush1.msra.mxu0 0.0
        %1333 = vmatprep.subr.mxu0 0.0
        %1334 = vmatpush1.msra.mxu0 0.0
        %1335 = vmatprep.subr.mxu0 0.0
        %1336 = vmatpush1.msra.mxu0 0.0
        %1337 = vmatprep.subr.mxu0 0.0
        %1338 = vmatpush1.msra.mxu0 0.0
        %1339 = vmatprep.subr.mxu0 0.0
        %1340 = vmatpush1.msra.mxu0 0.0
        %1341 = vmatprep.subr.mxu0 0.0
        %1342 = vmatpush1.msra.mxu0 0.0
        %1343 = vmatprep.subr.mxu0 0.0
        %1344 = vmatpush1.msra.mxu0 0.0
        %1345 = vmatprep.subr.mxu0 0.0
        %1346 = vmatpush1.msra.mxu0 0.0
        %1347 = vmatprep.subr.mxu0 0.0
        %1348 = vmatpush1.msra.mxu0 0.0
        %1349 = vmatprep.subr.mxu0 0.0
        %1350 = vmatpush1.msra.mxu0 0.0
        %1351 = vmatprep.subr.mxu0 0.0
        %1352 = vmatpush1.msra.mxu0 0.0
        %1353 = vmatprep.subr.mxu0 0.0
        %1354 = vmatpush1.msra.mxu0 0.0
        %1355 = vmatprep.subr.mxu0 0.0
        %1356 = vmatpush1.msra.mxu0 0.0
        %1357 = vmatprep.subr.mxu0 0.0
        %1358 = vmatpush1.msra.mxu0 0.0
        %1359 = vmatprep.subr.mxu0 0.0
        %1360 = vmatpush1.msra.mxu0 0.0
        %1361 = vmatprep.subr.mxu0 0.0
        %1362 = vmatpush1.msra.mxu0 0.0
        %1363 = vmatprep.subr.mxu0 0.0
        %1364 = vmatpush1.msra.mxu0 0.0
        %1365 = vmatprep.subr.mxu0 0.0
        %1366 = vmatpush1.msra.mxu0 0.0
        %1367 = vmatprep.subr.mxu0 0.0
        %1368 = vmatpush1.msra.mxu0 0.0
        %1369 = vmatprep.subr.mxu0 0.0
        %1370 = vmatpush1.msra.mxu0 0.0
        %1371 = vmatprep.subr.mxu0 0.0
        %1372 = vmatpush1.msra.mxu0 0.0
        %1373 = vmatprep.subr.mxu0 0.0
        %1374 = vmatpush1.msra.mxu0 0.0
        %1375 = vmatprep.subr.mxu0 0.0
        %1376 = vmatpush1.msra.mxu0 0.0
        %1377 = vmatprep.subr.mxu0 0.0
        %1378 = vmatpush1.msra.mxu0 0.0
        %1379 = vmatprep.subr.mxu0 0.0
        %1380 = vmatpush1.msra.mxu0 0.0
        %1381 = vmatprep.subr.mxu0 0.0
        %1382 = vmatpush1.msra.mxu0 0.0
        %1383 = vmatprep.subr.mxu0 0.0
        %1384 = vmatpush1.msra.mxu0 0.0
        %1385 = vmatprep.subr.mxu0 0.0
        %1386 = vmatpush1.msra.mxu0 0.0
        %1387 = vmatprep.subr.mxu0 0.0
        %1388 = vmatpush1.msra.mxu0 0.0
        %1389 = vmatprep.mubr.f32.mxu0 0.0
        %1390 = vmatmul.mubr.f32.gmra.mrb[0].mxu0 %v1320
        %v1391 = vpop.f32.mrb[0].mxu0
        %v1392 = vadd.f32 0.0, %v1391
        %v1393 = vpop.f32.mrb[0].mxu0
        %1394 = vmatprep.mubr.f32.mxu0 0.0
        %1395 = vmatmul.mubr.f32.gmra.mrb[0].mxu0 %v1323
        %v1396 = vpop.f32.mrb[0].mxu0
        %v1397 = vadd.f32 0.0, %v1396
        %v1398 = vpop.f32.mrb[0].mxu0
        %1399 = vdwg.mxu0
        %v1401 = vsel %vm1274, %v1317, 0
        %v1404 = vsel %vm1274, %v1318, 0
        %1406 = vmatprep.subr.mxu0 0.0
        %1407 = vmatpush1.msra.mxu0 %v1045
        %1408 = vmatprep.subr.mxu0 0.0
        %1409 = vmatpush1.msra.mxu0 %v1050
        %1410 = vmatprep.subr.mxu0 0.0
        %1411 = vmatpush1.msra.mxu0 0.0
        %1412 = vmatprep.subr.mxu0 0.0
        %1413 = vmatpush1.msra.mxu0 0.0
        %1414 = vmatprep.subr.mxu0 0.0
        %1415 = vmatpush1.msra.mxu0 0.0
        %1416 = vmatprep.subr.mxu0 0.0
        %1417 = vmatpush1.msra.mxu0 0.0
        %1418 = vmatprep.subr.mxu0 0.0
        %1419 = vmatpush1.msra.mxu0 0.0
        %1420 = vmatprep.subr.mxu0 0.0
        %1421 = vmatpush1.msra.mxu0 0.0
        %1422 = vmatprep.subr.mxu0 0.0
        %1423 = vmatpush1.msra.mxu0 0.0
        %1424 = vmatprep.subr.mxu0 0.0
        %1425 = vmatpush1.msra.mxu0 0.0
        %1426 = vmatprep.subr.mxu0 0.0
        %1427 = vmatpush1.msra.mxu0 0.0
        %1428 = vmatprep.subr.mxu0 0.0
        %1429 = vmatpush1.msra.mxu0 0.0
        %1430 = vmatprep.subr.mxu0 0.0
        %1431 = vmatpush1.msra.mxu0 0.0
        %1432 = vmatprep.subr.mxu0 0.0
        %1433 = vmatpush1.msra.mxu0 0.0
        %1434 = vmatprep.subr.mxu0 0.0
        %1435 = vmatpush1.msra.mxu0 0.0
        %1436 = vmatprep.subr.mxu0 0.0
        %1437 = vmatpush1.msra.mxu0 0.0
        %1438 = vmatprep.subr.mxu0 0.0
        %1439 = vmatpush1.msra.mxu0 0.0
        %1440 = vmatprep.subr.mxu0 0.0
        %1441 = vmatpush1.msra.mxu0 0.0
        %1442 = vmatprep.subr.mxu0 0.0
        %1443 = vmatpush1.msra.mxu0 0.0
        %1444 = vmatprep.subr.mxu0 0.0
        %1445 = vmatpush1.msra.mxu0 0.0
        %1446 = vmatprep.subr.mxu0 0.0
        %1447 = vmatpush1.msra.mxu0 0.0
        %1448 = vmatprep.subr.mxu0 0.0
        %1449 = vmatpush1.msra.mxu0 0.0
        %1450 = vmatprep.subr.mxu0 0.0
        %1451 = vmatpush1.msra.mxu0 0.0
        %1452 = vmatprep.subr.mxu0 0.0
        %1453 = vmatpush1.msra.mxu0 0.0
        %1454 = vmatprep.subr.mxu0 0.0
        %1455 = vmatpush1.msra.mxu0 0.0
        %1456 = vmatprep.subr.mxu0 0.0
        %1457 = vmatpush1.msra.mxu0 0.0
        %1458 = vmatprep.subr.mxu0 0.0
        %1459 = vmatpush1.msra.mxu0 0.0
        %1460 = vmatprep.subr.mxu0 0.0
        %1461 = vmatpush1.msra.mxu0 0.0
        %1462 = vmatprep.subr.mxu0 0.0
        %1463 = vmatpush1.msra.mxu0 0.0
        %1464 = vmatprep.subr.mxu0 0.0
        %1465 = vmatpush1.msra.mxu0 0.0
        %1466 = vmatprep.subr.mxu0 0.0
        %1467 = vmatpush1.msra.mxu0 0.0
        %1468 = vmatprep.subr.mxu0 0.0
        %1469 = vmatpush1.msra.mxu0 0.0
        %1470 = vmatprep.mubr.f32.mxu0 0.0
        %1471 = vmatmul.mubr.f32.gmra.mrb[0].mxu0 %v1401
        %v1472 = vpop.f32.mrb[0].mxu0
        %v1473 = vadd.f32 0.0, %v1472
        %v1474 = vpop.f32.mrb[0].mxu0
        %1475 = vmatprep.mubr.f32.mxu0 0.0
        %1476 = vmatmul.mubr.f32.gmra.mrb[0].mxu0 %v1404
        %v1477 = vpop.f32.mrb[0].mxu0
        %v1478 = vadd.f32 0.0, %v1477
        %v1479 = vpop.f32.mrb[0].mxu0
        %1480 = vdwg.mxu0
        %1481 = vrot.lane.b32.xlu0 %v819, 96
        %v1482 = vpop.permute.xlu0 %1481
        %1483 = vrot.lane.b32.xlu0 %v824, 96
        %v1484 = vpop.permute.xlu0 %1483
        %1485 = vrot.lane.b32.xlu0 %v927, 96
        %v1486 = vpop.permute.xlu0 %1485
        %1487 = vrot.lane.b32.xlu0 %v932, 96
        %v1488 = vpop.permute.xlu0 %1487
        %v1489 = vsel %vm1079, %v1482, 0
        %v1491 = vsel %vm1079, %v1484, 0
        %v1493 = vsel %vm1079, %v1486, 0
        %v1495 = vsel %vm1079, %v1488, 0
        %1497 = vmatprep.subr.mxu0 0.0
        %1498 = vmatpush1.xpose.msra.mxu0 %v1493
        %1499 = vmatprep.subr.mxu0 0.0
        %1500 = vmatpush1.xpose.msra.mxu0 %v1495
        %1501 = vmatprep.subr.mxu0 0.0
        %1502 = vmatpush1.xpose.msra.mxu0 0.0
        %1503 = vmatprep.subr.mxu0 0.0
        %1504 = vmatpush1.xpose.msra.mxu0 0.0
        %1505 = vmatprep.subr.mxu0 0.0
        %1506 = vmatpush1.xpose.msra.mxu0 0.0
        %1507 = vmatprep.subr.mxu0 0.0
        %1508 = vmatpush1.xpose.msra.mxu0 0.0
        %1509 = vmatprep.subr.mxu0 0.0
        %1510 = vmatpush1.xpose.msra.mxu0 0.0
        %1511 = vmatprep.subr.mxu0 0.0
        %1512 = vmatpush1.xpose.msra.mxu0 0.0
        %1513 = vmatprep.subr.mxu0 0.0
        %1514 = vmatpush1.xpose.msra.mxu0 0.0
        %1515 = vmatprep.subr.mxu0 0.0
        %1516 = vmatpush1.xpose.msra.mxu0 0.0
        %1517 = vmatprep.subr.mxu0 0.0
        %1518 = vmatpush1.xpose.msra.mxu0 0.0
        %1519 = vmatprep.subr.mxu0 0.0
        %1520 = vmatpush1.xpose.msra.mxu0 0.0
        %1521 = vmatprep.subr.mxu0 0.0
        %1522 = vmatpush1.xpose.msra.mxu0 0.0
        %1523 = vmatprep.subr.mxu0 0.0
        %1524 = vmatpush1.xpose.msra.mxu0 0.0
        %1525 = vmatprep.subr.mxu0 0.0
        %1526 = vmatpush1.xpose.msra.mxu0 0.0
        %1527 = vmatprep.subr.mxu0 0.0
        %1528 = vmatpush1.xpose.msra.mxu0 0.0
        %1529 = vmatprep.subr.mxu0 0.0
        %1530 = vmatpush1.xpose.msra.mxu0 0.0
        %1531 = vmatprep.subr.mxu0 0.0
        %1532 = vmatpush1.xpose.msra.mxu0 0.0
        %1533 = vmatprep.subr.mxu0 0.0
        %1534 = vmatpush1.xpose.msra.mxu0 0.0
        %1535 = vmatprep.subr.mxu0 0.0
        %1536 = vmatpush1.xpose.msra.mxu0 0.0
        %1537 = vmatprep.subr.mxu0 0.0
        %1538 = vmatpush1.xpose.msra.mxu0 0.0
        %1539 = vmatprep.subr.mxu0 0.0
        %1540 = vmatpush1.xpose.msra.mxu0 0.0
        %1541 = vmatprep.subr.mxu0 0.0
        %1542 = vmatpush1.xpose.msra.mxu0 0.0
        %1543 = vmatprep.subr.mxu0 0.0
        %1544 = vmatpush1.xpose.msra.mxu0 0.0
        %1545 = vmatprep.subr.mxu0 0.0
        %1546 = vmatpush1.xpose.msra.mxu0 0.0
        %1547 = vmatprep.subr.mxu0 0.0
        %1548 = vmatpush1.xpose.msra.mxu0 0.0
        %1549 = vmatprep.subr.mxu0 0.0
        %1550 = vmatpush1.xpose.msra.mxu0 0.0
        %1551 = vmatprep.subr.mxu0 0.0
        %1552 = vmatpush1.xpose.msra.mxu0 0.0
        %1553 = vmatprep.subr.mxu0 0.0
        %1554 = vmatpush1.xpose.msra.mxu0 0.0
        %1555 = vmatprep.subr.mxu0 0.0
        %1556 = vmatpush1.xpose.msra.mxu0 0.0
        %1557 = vmatprep.subr.mxu0 0.0
        %1558 = vmatpush1.xpose.msra.mxu0 0.0
        %1559 = vmatprep.subr.mxu0 0.0
        %1560 = vmatpush1.xpose.msra.mxu0 0.0
        %1561 = vmatprep.mubr.f32.mxu0 0.0
        %1562 = vmatmul.mubr.f32.gmra.mrb[0].mxu0 %v1489
        %v1563 = vpop.f32.mrb[0].mxu0
        %v1564 = vadd.f32 0.0, %v1563
        %v1565 = vpop.f32.mrb[0].mxu0
        %1566 = vmatprep.mubr.f32.mxu0 0.0
        %1567 = vmatmul.mubr.f32.gmra.mrb[0].mxu0 %v1491
        %v1568 = vpop.f32.mrb[0].mxu0
        %v1569 = vadd.f32 0.0, %v1568
        %v1570 = vpop.f32.mrb[0].mxu0
        %1571 = vdwg.mxu0
        %1572 = vrot.lane.b32.xlu0 %v829, 96
        %v1573 = vpop.permute.xlu0 %1572
        %1574 = vrot.lane.b32.xlu0 %v834, 96
        %v1575 = vpop.permute.xlu0 %1574
        %1576 = vrot.lane.b32.xlu0 %v937, 96
        %v1577 = vpop.permute.xlu0 %1576
        %1578 = vrot.lane.b32.xlu0 %v942, 96
        %v1579 = vpop.permute.xlu0 %1578
        %v1580 = vsel %vm1079, %v1573, 0
        %v1582 = vsel %vm1079, %v1575, 0
        %v1584 = vsel %vm1079, %v1577, 0
        %v1586 = vsel %vm1079, %v1579, 0
        %1588 = vmatprep.subr.mxu0 0.0
        %1589 = vmatpush1.xpose.msra.mxu0 %v1584
        %1590 = vmatprep.subr.mxu0 0.0
        %1591 = vmatpush1.xpose.msra.mxu0 %v1586
        %1592 = vmatprep.subr.mxu0 0.0
        %1593 = vmatpush1.xpose.msra.mxu0 0.0
        %1594 = vmatprep.subr.mxu0 0.0
        %1595 = vmatpush1.xpose.msra.mxu0 0.0
        %1596 = vmatprep.subr.mxu0 0.0
        %1597 = vmatpush1.xpose.msra.mxu0 0.0
        %1598 = vmatprep.subr.mxu0 0.0
        %1599 = vmatpush1.xpose.msra.mxu0 0.0
        %1600 = vmatprep.subr.mxu0 0.0
        %1601 = vmatpush1.xpose.msra.mxu0 0.0
        %1602 = vmatprep.subr.mxu0 0.0
        %1603 = vmatpush1.xpose.msra.mxu0 0.0
        %1604 = vmatprep.subr.mxu0 0.0
        %1605 = vmatpush1.xpose.msra.mxu0 0.0
        %1606 = vmatprep.subr.mxu0 0.0
        %1607 = vmatpush1.xpose.msra.mxu0 0.0
        %1608 = vmatprep.subr.mxu0 0.0
        %1609 = vmatpush1.xpose.msra.mxu0 0.0
        %1610 = vmatprep.subr.mxu0 0.0
        %1611 = vmatpush1.xpose.msra.mxu0 0.0
        %1612 = vmatprep.subr.mxu0 0.0
        %1613 = vmatpush1.xpose.msra.mxu0 0.0
        %1614 = vmatprep.subr.mxu0 0.0
        %1615 = vmatpush1.xpose.msra.mxu0 0.0
        %1616 = vmatprep.subr.mxu0 0.0
        %1617 = vmatpush1.xpose.msra.mxu0 0.0
        %1618 = vmatprep.subr.mxu0 0.0
        %1619 = vmatpush1.xpose.msra.mxu0 0.0
        %1620 = vmatprep.subr.mxu0 0.0
        %1621 = vmatpush1.xpose.msra.mxu0 0.0
        %1622 = vmatprep.subr.mxu0 0.0
        %1623 = vmatpush1.xpose.msra.mxu0 0.0
        %1624 = vmatprep.subr.mxu0 0.0
        %1625 = vmatpush1.xpose.msra.mxu0 0.0
        %1626 = vmatprep.subr.mxu0 0.0
        %1627 = vmatpush1.xpose.msra.mxu0 0.0
        %1628 = vmatprep.subr.mxu0 0.0
        %1629 = vmatpush1.xpose.msra.mxu0 0.0
        %1630 = vmatprep.subr.mxu0 0.0
        %1631 = vmatpush1.xpose.msra.mxu0 0.0
        %1632 = vmatprep.subr.mxu0 0.0
        %1633 = vmatpush1.xpose.msra.mxu0 0.0
        %1634 = vmatprep.subr.mxu0 0.0
        %1635 = vmatpush1.xpose.msra.mxu0 0.0
        %1636 = vmatprep.subr.mxu0 0.0
        %1637 = vmatpush1.xpose.msra.mxu0 0.0
        %1638 = vmatprep.subr.mxu0 0.0
        %1639 = vmatpush1.xpose.msra.mxu0 0.0
        %1640 = vmatprep.subr.mxu0 0.0
        %1641 = vmatpush1.xpose.msra.mxu0 0.0
        %1642 = vmatprep.subr.mxu0 0.0
        %1643 = vmatpush1.xpose.msra.mxu0 0.0
        %1644 = vmatprep.subr.mxu0 0.0
        %1645 = vmatpush1.xpose.msra.mxu0 0.0
        %1646 = vmatprep.subr.mxu0 0.0
        %1647 = vmatpush1.xpose.msra.mxu0 0.0
        %1648 = vmatprep.subr.mxu0 0.0
        %1649 = vmatpush1.xpose.msra.mxu0 0.0
        %1650 = vmatprep.subr.mxu0 0.0
        %1651 = vmatpush1.xpose.msra.mxu0 0.0
        %1652 = vmatprep.mubr.f32.mxu0 0.0
        %1653 = vmatmul.mubr.f32.gmra.mrb[0].mxu0 %v1580
        %v1654 = vpop.f32.mrb[0].mxu0
        %v1655 = vadd.f32 0.0, %v1654
        %v1656 = vpop.f32.mrb[0].mxu0
        %1657 = vmatprep.mubr.f32.mxu0 0.0
        %1658 = vmatmul.mubr.f32.gmra.mrb[0].mxu0 %v1582
        %v1659 = vpop.f32.mrb[0].mxu0
        %v1660 = vadd.f32 0.0, %v1659
        %v1661 = vpop.f32.mrb[0].mxu0
        %1662 = vdwg.mxu0
        %v1663 = vmul.f32 %v1564, 0.17677669
        %v1664 = vmul.f32 %v1569, 0.17677669
        %v1665 = vmul.f32 %v1655, 0.17677669
        %v1666 = vmul.f32 %v1660, 0.17677669
        %v1667 = vadd.f32 %v1663, %v1263
        %v1668 = vadd.f32 %v1664, %v1263
        %v1669 = vadd.f32 %v1665, %v1267
        %v1670 = vadd.f32 %v1666, %v1267
        %v1671 = vsel %vm1274, %v1667, -inf
        %1672 = vmax.xlane.f32.xlu0 %v1671
        %v1673 = vpop.xlane.xlu0 %1672
        %v1674 = vsel %vm1274, %v1668, -inf
        %1675 = vmax.xlane.f32.xlu0 %v1674
        %v1676 = vpop.xlane.xlu0 %1675
        %v1677 = vsel %vm1274, %v1669, -inf
        %1678 = vmax.xlane.f32.xlu0 %v1677
        %v1679 = vpop.xlane.xlu0 %1678
        %v1680 = vsel %vm1274, %v1670, -inf
        %1681 = vmax.xlane.f32.xlu0 %v1680
        %v1682 = vpop.xlane.xlu0 %1681
        %v1683 = vsub.f32 %v1667, %v1673
        %v1684 = vsub.f32 %v1668, %v1676
        %v1685 = vsub.f32 %v1669, %v1679
        %v1686 = vsub.f32 %v1670, %v1682
        %v1687 = vmul.f32 %v1683, 1.442695
        %v1688 = vpow.pop %v1687
        %v1689 = vmul.f32 %v1684, 1.442695
        %v1690 = vpow.pop %v1689
        %v1691 = vmul.f32 %v1685, 1.442695
        %v1692 = vpow.pop %v1691
        %v1693 = vmul.f32 %v1686, 1.442695
        %v1694 = vpow.pop %v1693
        %v1695 = vsel %vm1274, %v1688, 0.0
        %1696 = vadd.xlane.f32.xlu0 %v1695
        %v1697 = vpop.xlane.xlu0 %1696
        %v1698 = vsel %vm1274, %v1690, 0.0
        %1699 = vadd.xlane.f32.xlu0 %v1698
        %v1700 = vpop.xlane.xlu0 %1699
        %v1701 = vsel %vm1274, %v1692, 0.0
        %1702 = vadd.xlane.f32.xlu0 %v1701
        %v1703 = vpop.xlane.xlu0 %1702
        %v1704 = vsel %vm1274, %v1694, 0.0
        %1705 = vadd.xlane.f32.xlu0 %v1704
        %v1706 = vpop.xlane.xlu0 %1705
        %v1707 = vrcp.pop %v1697
        %v1708 = vrcp.pop %v1700
        %v1709 = vrcp.pop %v1703
        %v1710 = vrcp.pop %v1706
        %v1711 = vmul.f32 %v1688, %v1707
        %v1712 = vmul.f32 %v1690, %v1708
        %v1713 = vmul.f32 %v1692, %v1709
        %v1714 = vmul.f32 %v1694, %v1710
        %1717 = vrot.lane.b32.xlu0 %v1035, 96
        %v1718 = vpop.permute.xlu0 %1717
        %1719 = vrot.lane.b32.xlu0 %v1040, 96
        %v1720 = vpop.permute.xlu0 %1719
        %v1724 = vsel %vm1274, %v1711, 0
        %v1727 = vsel %vm1274, %v1712, 0
        %1729 = vmatprep.subr.mxu0 0.0
        %1730 = vmatpush1.msra.mxu0 %v1718
        %1731 = vmatprep.subr.mxu0 0.0
        %1732 = vmatpush1.msra.mxu0 %v1720
        %1733 = vmatprep.subr.mxu0 0.0
        %1734 = vmatpush1.msra.mxu0 0.0
        %1735 = vmatprep.subr.mxu0 0.0
        %1736 = vmatpush1.msra.mxu0 0.0
        %1737 = vmatprep.subr.mxu0 0.0
        %1738 = vmatpush1.msra.mxu0 0.0
        %1739 = vmatprep.subr.mxu0 0.0
        %1740 = vmatpush1.msra.mxu0 0.0
        %1741 = vmatprep.subr.mxu0 0.0
        %1742 = vmatpush1.msra.mxu0 0.0
        %1743 = vmatprep.subr.mxu0 0.0
        %1744 = vmatpush1.msra.mxu0 0.0
        %1745 = vmatprep.subr.mxu0 0.0
        %1746 = vmatpush1.msra.mxu0 0.0
        %1747 = vmatprep.subr.mxu0 0.0
        %1748 = vmatpush1.msra.mxu0 0.0
        %1749 = vmatprep.subr.mxu0 0.0
        %1750 = vmatpush1.msra.mxu0 0.0
        %1751 = vmatprep.subr.mxu0 0.0
        %1752 = vmatpush1.msra.mxu0 0.0
        %1753 = vmatprep.subr.mxu0 0.0
        %1754 = vmatpush1.msra.mxu0 0.0
        %1755 = vmatprep.subr.mxu0 0.0
        %1756 = vmatpush1.msra.mxu0 0.0
        %1757 = vmatprep.subr.mxu0 0.0
        %1758 = vmatpush1.msra.mxu0 0.0
        %1759 = vmatprep.subr.mxu0 0.0
        %1760 = vmatpush1.msra.mxu0 0.0
        %1761 = vmatprep.subr.mxu0 0.0
        %1762 = vmatpush1.msra.mxu0 0.0
        %1763 = vmatprep.subr.mxu0 0.0
        %1764 = vmatpush1.msra.mxu0 0.0
        %1765 = vmatprep.subr.mxu0 0.0
        %1766 = vmatpush1.msra.mxu0 0.0
        %1767 = vmatprep.subr.mxu0 0.0
        %1768 = vmatpush1.msra.mxu0 0.0
        %1769 = vmatprep.subr.mxu0 0.0
        %1770 = vmatpush1.msra.mxu0 0.0
        %1771 = vmatprep.subr.mxu0 0.0
        %1772 = vmatpush1.msra.mxu0 0.0
        %1773 = vmatprep.subr.mxu0 0.0
        %1774 = vmatpush1.msra.mxu0 0.0
        %1775 = vmatprep.subr.mxu0 0.0
        %1776 = vmatpush1.msra.mxu0 0.0
        %1777 = vmatprep.subr.mxu0 0.0
        %1778 = vmatpush1.msra.mxu0 0.0
        %1779 = vmatprep.subr.mxu0 0.0
        %1780 = vmatpush1.msra.mxu0 0.0
        %1781 = vmatprep.subr.mxu0 0.0
        %1782 = vmatpush1.msra.mxu0 0.0
        %1783 = vmatprep.subr.mxu0 0.0
        %1784 = vmatpush1.msra.mxu0 0.0
        %1785 = vmatprep.subr.mxu0 0.0
        %1786 = vmatpush1.msra.mxu0 0.0
        %1787 = vmatprep.subr.mxu0 0.0
        %1788 = vmatpush1.msra.mxu0 0.0
        %1789 = vmatprep.subr.mxu0 0.0
        %1790 = vmatpush1.msra.mxu0 0.0
        %1791 = vmatprep.subr.mxu0 0.0
        %1792 = vmatpush1.msra.mxu0 0.0
        %1793 = vmatprep.mubr.f32.mxu0 0.0
        %1794 = vmatmul.mubr.f32.gmra.mrb[0].mxu0 %v1724
        %v1795 = vpop.f32.mrb[0].mxu0
        %v1796 = vadd.f32 0.0, %v1795
        %v1797 = vpop.f32.mrb[0].mxu0
        %1798 = vmatprep.mubr.f32.mxu0 0.0
        %1799 = vmatmul.mubr.f32.gmra.mrb[0].mxu0 %v1727
        %v1800 = vpop.f32.mrb[0].mxu0
        %v1801 = vadd.f32 0.0, %v1800
        %v1802 = vpop.f32.mrb[0].mxu0
        %1803 = vdwg.mxu0
        %1806 = vrot.lane.b32.xlu0 %v1045, 96
        %v1807 = vpop.permute.xlu0 %1806
        %1808 = vrot.lane.b32.xlu0 %v1050, 96
        %v1809 = vpop.permute.xlu0 %1808
        %v1813 = vsel %vm1274, %v1713, 0
        %v1816 = vsel %vm1274, %v1714, 0
        %1818 = vmatprep.subr.mxu0 0.0
        %1819 = vmatpush1.msra.mxu0 %v1807
        %1820 = vmatprep.subr.mxu0 0.0
        %1821 = vmatpush1.msra.mxu0 %v1809
        %1822 = vmatprep.subr.mxu0 0.0
        %1823 = vmatpush1.msra.mxu0 0.0
        %1824 = vmatprep.subr.mxu0 0.0
        %1825 = vmatpush1.msra.mxu0 0.0
        %1826 = vmatprep.subr.mxu0 0.0
        %1827 = vmatpush1.msra.mxu0 0.0
        %1828 = vmatprep.subr.mxu0 0.0
        %1829 = vmatpush1.msra.mxu0 0.0
        %1830 = vmatprep.subr.mxu0 0.0
        %1831 = vmatpush1.msra.mxu0 0.0
        %1832 = vmatprep.subr.mxu0 0.0
        %1833 = vmatpush1.msra.mxu0 0.0
        %1834 = vmatprep.subr.mxu0 0.0
        %1835 = vmatpush1.msra.mxu0 0.0
        %1836 = vmatprep.subr.mxu0 0.0
        %1837 = vmatpush1.msra.mxu0 0.0
        %1838 = vmatprep.subr.mxu0 0.0
        %1839 = vmatpush1.msra.mxu0 0.0
        %1840 = vmatprep.subr.mxu0 0.0
        %1841 = vmatpush1.msra.mxu0 0.0
        %1842 = vmatprep.subr.mxu0 0.0
        %1843 = vmatpush1.msra.mxu0 0.0
        %1844 = vmatprep.subr.mxu0 0.0
        %1845 = vmatpush1.msra.mxu0 0.0
        %1846 = vmatprep.subr.mxu0 0.0
        %1847 = vmatpush1.msra.mxu0 0.0
        %1848 = vmatprep.subr.mxu0 0.0
        %1849 = vmatpush1.msra.mxu0 0.0
        %1850 = vmatprep.subr.mxu0 0.0
        %1851 = vmatpush1.msra.mxu0 0.0
        %1852 = vmatprep.subr.mxu0 0.0
        %1853 = vmatpush1.msra.mxu0 0.0
        %1854 = vmatprep.subr.mxu0 0.0
        %1855 = vmatpush1.msra.mxu0 0.0
        %1856 = vmatprep.subr.mxu0 0.0
        %1857 = vmatpush1.msra.mxu0 0.0
        %1858 = vmatprep.subr.mxu0 0.0
        %1859 = vmatpush1.msra.mxu0 0.0
        %1860 = vmatprep.subr.mxu0 0.0
        %1861 = vmatpush1.msra.mxu0 0.0
        %1862 = vmatprep.subr.mxu0 0.0
        %1863 = vmatpush1.msra.mxu0 0.0
        %1864 = vmatprep.subr.mxu0 0.0
        %1865 = vmatpush1.msra.mxu0 0.0
        %1866 = vmatprep.subr.mxu0 0.0
        %1867 = vmatpush1.msra.mxu0 0.0
        %1868 = vmatprep.subr.mxu0 0.0
        %1869 = vmatpush1.msra.mxu0 0.0
        %1870 = vmatprep.subr.mxu0 0.0
        %1871 = vmatpush1.msra.mxu0 0.0
        %1872 = vmatprep.subr.mxu0 0.0
        %1873 = vmatpush1.msra.mxu0 0.0
        %1874 = vmatprep.subr.mxu0 0.0
        %1875 = vmatpush1.msra.mxu0 0.0
        %1876 = vmatprep.subr.mxu0 0.0
        %1877 = vmatpush1.msra.mxu0 0.0
        %1878 = vmatprep.subr.mxu0 0.0
        %1879 = vmatpush1.msra.mxu0 0.0
        %1880 = vmatprep.subr.mxu0 0.0
        %1881 = vmatpush1.msra.mxu0 0.0
        %1882 = vmatprep.mubr.f32.mxu0 0.0
        %1883 = vmatmul.mubr.f32.gmra.mrb[0].mxu0 %v1813
        %v1884 = vpop.f32.mrb[0].mxu0
        %v1885 = vadd.f32 0.0, %v1884
        %v1886 = vpop.f32.mrb[0].mxu0
        %1887 = vmatprep.mubr.f32.mxu0 0.0
        %1888 = vmatmul.mubr.f32.gmra.mrb[0].mxu0 %v1816
        %v1889 = vpop.f32.mrb[0].mxu0
        %v1890 = vadd.f32 0.0, %v1889
        %v1891 = vpop.f32.mrb[0].mxu0
        %1892 = vdwg.mxu0
        %1893 = vrot.lane.b32.xlu0 %v819, 64
        %v1894 = vpop.permute.xlu0 %1893
        %1895 = vrot.lane.b32.xlu0 %v824, 64
        %v1896 = vpop.permute.xlu0 %1895
        %1897 = vrot.lane.b32.xlu0 %v927, 64
        %v1898 = vpop.permute.xlu0 %1897
        %1899 = vrot.lane.b32.xlu0 %v932, 64
        %v1900 = vpop.permute.xlu0 %1899
        %v1901 = vsel %vm1079, %v1894, 0
        %v1903 = vsel %vm1079, %v1896, 0
        %v1905 = vsel %vm1079, %v1898, 0
        %v1907 = vsel %vm1079, %v1900, 0
        %1909 = vmatprep.subr.mxu0 0.0
        %1910 = vmatpush1.xpose.msra.mxu0 %v1905
        %1911 = vmatprep.subr.mxu0 0.0
        %1912 = vmatpush1.xpose.msra.mxu0 %v1907
        %1913 = vmatprep.subr.mxu0 0.0
        %1914 = vmatpush1.xpose.msra.mxu0 0.0
        %1915 = vmatprep.subr.mxu0 0.0
        %1916 = vmatpush1.xpose.msra.mxu0 0.0
        %1917 = vmatprep.subr.mxu0 0.0
        %1918 = vmatpush1.xpose.msra.mxu0 0.0
        %1919 = vmatprep.subr.mxu0 0.0
        %1920 = vmatpush1.xpose.msra.mxu0 0.0
        %1921 = vmatprep.subr.mxu0 0.0
        %1922 = vmatpush1.xpose.msra.mxu0 0.0
        %1923 = vmatprep.subr.mxu0 0.0
        %1924 = vmatpush1.xpose.msra.mxu0 0.0
        %1925 = vmatprep.subr.mxu0 0.0
        %1926 = vmatpush1.xpose.msra.mxu0 0.0
        %1927 = vmatprep.subr.mxu0 0.0
        %1928 = vmatpush1.xpose.msra.mxu0 0.0
        %1929 = vmatprep.subr.mxu0 0.0
        %1930 = vmatpush1.xpose.msra.mxu0 0.0
        %1931 = vmatprep.subr.mxu0 0.0
        %1932 = vmatpush1.xpose.msra.mxu0 0.0
        %1933 = vmatprep.subr.mxu0 0.0
        %1934 = vmatpush1.xpose.msra.mxu0 0.0
        %1935 = vmatprep.subr.mxu0 0.0
        %1936 = vmatpush1.xpose.msra.mxu0 0.0
        %1937 = vmatprep.subr.mxu0 0.0
        %1938 = vmatpush1.xpose.msra.mxu0 0.0
        %1939 = vmatprep.subr.mxu0 0.0
        %1940 = vmatpush1.xpose.msra.mxu0 0.0
        %1941 = vmatprep.subr.mxu0 0.0
        %1942 = vmatpush1.xpose.msra.mxu0 0.0
        %1943 = vmatprep.subr.mxu0 0.0
        %1944 = vmatpush1.xpose.msra.mxu0 0.0
        %1945 = vmatprep.subr.mxu0 0.0
        %1946 = vmatpush1.xpose.msra.mxu0 0.0
        %1947 = vmatprep.subr.mxu0 0.0
        %1948 = vmatpush1.xpose.msra.mxu0 0.0
        %1949 = vmatprep.subr.mxu0 0.0
        %1950 = vmatpush1.xpose.msra.mxu0 0.0
        %1951 = vmatprep.subr.mxu0 0.0
        %1952 = vmatpush1.xpose.msra.mxu0 0.0
        %1953 = vmatprep.subr.mxu0 0.0
        %1954 = vmatpush1.xpose.msra.mxu0 0.0
        %1955 = vmatprep.subr.mxu0 0.0
        %1956 = vmatpush1.xpose.msra.mxu0 0.0
        %1957 = vmatprep.subr.mxu0 0.0
        %1958 = vmatpush1.xpose.msra.mxu0 0.0
        %1959 = vmatprep.subr.mxu0 0.0
        %1960 = vmatpush1.xpose.msra.mxu0 0.0
        %1961 = vmatprep.subr.mxu0 0.0
        %1962 = vmatpush1.xpose.msra.mxu0 0.0
        %1963 = vmatprep.subr.mxu0 0.0
        %1964 = vmatpush1.xpose.msra.mxu0 0.0
        %1965 = vmatprep.subr.mxu0 0.0
        %1966 = vmatpush1.xpose.msra.mxu0 0.0
        %1967 = vmatprep.subr.mxu0 0.0
        %1968 = vmatpush1.xpose.msra.mxu0 0.0
        %1969 = vmatprep.subr.mxu0 0.0
        %1970 = vmatpush1.xpose.msra.mxu0 0.0
        %1971 = vmatprep.subr.mxu0 0.0
        %1972 = vmatpush1.xpose.msra.mxu0 0.0
        %1973 = vmatprep.mubr.f32.mxu0 0.0
        %1974 = vmatmul.mubr.f32.gmra.mrb[0].mxu0 %v1901
        %v1975 = vpop.f32.mrb[0].mxu0
        %v1976 = vadd.f32 0.0, %v1975
        %v1977 = vpop.f32.mrb[0].mxu0
        %1978 = vmatprep.mubr.f32.mxu0 0.0
        %1979 = vmatmul.mubr.f32.gmra.mrb[0].mxu0 %v1903
        %v1980 = vpop.f32.mrb[0].mxu0
        %v1981 = vadd.f32 0.0, %v1980
        %v1982 = vpop.f32.mrb[0].mxu0
        %1983 = vdwg.mxu0
        %1984 = vrot.lane.b32.xlu0 %v829, 64
        %v1985 = vpop.permute.xlu0 %1984
        %1986 = vrot.lane.b32.xlu0 %v834, 64
        %v1987 = vpop.permute.xlu0 %1986
        %1988 = vrot.lane.b32.xlu0 %v937, 64
        %v1989 = vpop.permute.xlu0 %1988
        %1990 = vrot.lane.b32.xlu0 %v942, 64
        %v1991 = vpop.permute.xlu0 %1990
        %v1992 = vsel %vm1079, %v1985, 0
        %v1994 = vsel %vm1079, %v1987, 0
        %v1996 = vsel %vm1079, %v1989, 0
        %v1998 = vsel %vm1079, %v1991, 0
        %2000 = vmatprep.subr.mxu0 0.0
        %2001 = vmatpush1.xpose.msra.mxu0 %v1996
        %2002 = vmatprep.subr.mxu0 0.0
        %2003 = vmatpush1.xpose.msra.mxu0 %v1998
        %2004 = vmatprep.subr.mxu0 0.0
        %2005 = vmatpush1.xpose.msra.mxu0 0.0
        %2006 = vmatprep.subr.mxu0 0.0
        %2007 = vmatpush1.xpose.msra.mxu0 0.0
        %2008 = vmatprep.subr.mxu0 0.0
        %2009 = vmatpush1.xpose.msra.mxu0 0.0
        %2010 = vmatprep.subr.mxu0 0.0
        %2011 = vmatpush1.xpose.msra.mxu0 0.0
        %2012 = vmatprep.subr.mxu0 0.0
        %2013 = vmatpush1.xpose.msra.mxu0 0.0
        %2014 = vmatprep.subr.mxu0 0.0
        %2015 = vmatpush1.xpose.msra.mxu0 0.0
        %2016 = vmatprep.subr.mxu0 0.0
        %2017 = vmatpush1.xpose.msra.mxu0 0.0
        %2018 = vmatprep.subr.mxu0 0.0
        %2019 = vmatpush1.xpose.msra.mxu0 0.0
        %2020 = vmatprep.subr.mxu0 0.0
        %2021 = vmatpush1.xpose.msra.mxu0 0.0
        %2022 = vmatprep.subr.mxu0 0.0
        %2023 = vmatpush1.xpose.msra.mxu0 0.0
        %2024 = vmatprep.subr.mxu0 0.0
        %2025 = vmatpush1.xpose.msra.mxu0 0.0
        %2026 = vmatprep.subr.mxu0 0.0
        %2027 = vmatpush1.xpose.msra.mxu0 0.0
        %2028 = vmatprep.subr.mxu0 0.0
        %2029 = vmatpush1.xpose.msra.mxu0 0.0
        %2030 = vmatprep.subr.mxu0 0.0
        %2031 = vmatpush1.xpose.msra.mxu0 0.0
        %2032 = vmatprep.subr.mxu0 0.0
        %2033 = vmatpush1.xpose.msra.mxu0 0.0
        %2034 = vmatprep.subr.mxu0 0.0
        %2035 = vmatpush1.xpose.msra.mxu0 0.0
        %2036 = vmatprep.subr.mxu0 0.0
        %2037 = vmatpush1.xpose.msra.mxu0 0.0
        %2038 = vmatprep.subr.mxu0 0.0
        %2039 = vmatpush1.xpose.msra.mxu0 0.0
        %2040 = vmatprep.subr.mxu0 0.0
        %2041 = vmatpush1.xpose.msra.mxu0 0.0
        %2042 = vmatprep.subr.mxu0 0.0
        %2043 = vmatpush1.xpose.msra.mxu0 0.0
        %2044 = vmatprep.subr.mxu0 0.0
        %2045 = vmatpush1.xpose.msra.mxu0 0.0
        %2046 = vmatprep.subr.mxu0 0.0
        %2047 = vmatpush1.xpose.msra.mxu0 0.0
        %2048 = vmatprep.subr.mxu0 0.0
        %2049 = vmatpush1.xpose.msra.mxu0 0.0
        %2050 = vmatprep.subr.mxu0 0.0
        %2051 = vmatpush1.xpose.msra.mxu0 0.0
        %2052 = vmatprep.subr.mxu0 0.0
        %2053 = vmatpush1.xpose.msra.mxu0 0.0
        %2054 = vmatprep.subr.mxu0 0.0
        %2055 = vmatpush1.xpose.msra.mxu0 0.0
        %2056 = vmatprep.subr.mxu0 0.0
        %2057 = vmatpush1.xpose.msra.mxu0 0.0
        %2058 = vmatprep.subr.mxu0 0.0
        %2059 = vmatpush1.xpose.msra.mxu0 0.0
        %2060 = vmatprep.subr.mxu0 0.0
        %2061 = vmatpush1.xpose.msra.mxu0 0.0
        %2062 = vmatprep.subr.mxu0 0.0
        %2063 = vmatpush1.xpose.msra.mxu0 0.0
        %2064 = vmatprep.mubr.f32.mxu0 0.0
        %2065 = vmatmul.mubr.f32.gmra.mrb[0].mxu0 %v1992
        %v2066 = vpop.f32.mrb[0].mxu0
        %v2067 = vadd.f32 0.0, %v2066
        %v2068 = vpop.f32.mrb[0].mxu0
        %2069 = vmatprep.mubr.f32.mxu0 0.0
        %2070 = vmatmul.mubr.f32.gmra.mrb[0].mxu0 %v1994
        %v2071 = vpop.f32.mrb[0].mxu0
        %v2072 = vadd.f32 0.0, %v2071
        %v2073 = vpop.f32.mrb[0].mxu0
        %2074 = vdwg.mxu0
        %v2075 = vmul.f32 %v1976, 0.17677669
        %v2076 = vmul.f32 %v1981, 0.17677669
        %v2077 = vmul.f32 %v2067, 0.17677669
        %v2078 = vmul.f32 %v2072, 0.17677669
        %v2079 = vadd.f32 %v2075, %v1263
        %v2080 = vadd.f32 %v2076, %v1263
        %v2081 = vadd.f32 %v2077, %v1267
        %v2082 = vadd.f32 %v2078, %v1267
        %v2083 = vsel %vm1274, %v2079, -inf
        %2084 = vmax.xlane.f32.xlu0 %v2083
        %v2085 = vpop.xlane.xlu0 %2084
        %v2086 = vsel %vm1274, %v2080, -inf
        %2087 = vmax.xlane.f32.xlu0 %v2086
        %v2088 = vpop.xlane.xlu0 %2087
        %v2089 = vsel %vm1274, %v2081, -inf
        %2090 = vmax.xlane.f32.xlu0 %v2089
        %v2091 = vpop.xlane.xlu0 %2090
        %v2092 = vsel %vm1274, %v2082, -inf
        %2093 = vmax.xlane.f32.xlu0 %v2092
        %v2094 = vpop.xlane.xlu0 %2093
        %v2095 = vsub.f32 %v2079, %v2085
        %v2096 = vsub.f32 %v2080, %v2088
        %v2097 = vsub.f32 %v2081, %v2091
        %v2098 = vsub.f32 %v2082, %v2094
        %v2099 = vmul.f32 %v2095, 1.442695
        %v2100 = vpow.pop %v2099
        %v2101 = vmul.f32 %v2096, 1.442695
        %v2102 = vpow.pop %v2101
        %v2103 = vmul.f32 %v2097, 1.442695
        %v2104 = vpow.pop %v2103
        %v2105 = vmul.f32 %v2098, 1.442695
        %v2106 = vpow.pop %v2105
        %v2107 = vsel %vm1274, %v2100, 0.0
        %2108 = vadd.xlane.f32.xlu0 %v2107
        %v2109 = vpop.xlane.xlu0 %2108
        %v2110 = vsel %vm1274, %v2102, 0.0
        %2111 = vadd.xlane.f32.xlu0 %v2110
        %v2112 = vpop.xlane.xlu0 %2111
        %v2113 = vsel %vm1274, %v2104, 0.0
        %2114 = vadd.xlane.f32.xlu0 %v2113
        %v2115 = vpop.xlane.xlu0 %2114
        %v2116 = vsel %vm1274, %v2106, 0.0
        %2117 = vadd.xlane.f32.xlu0 %v2116
        %v2118 = vpop.xlane.xlu0 %2117
        %v2119 = vrcp.pop %v2109
        %v2120 = vrcp.pop %v2112
        %v2121 = vrcp.pop %v2115
        %v2122 = vrcp.pop %v2118
        %v2123 = vmul.f32 %v2100, %v2119
        %v2124 = vmul.f32 %v2102, %v2120
        %v2125 = vmul.f32 %v2104, %v2121
        %v2126 = vmul.f32 %v2106, %v2122
        %2127 = vrot.lane.b32.xlu0 %v1035, 64
        %v2128 = vpop.permute.xlu0 %2127
        %2129 = vrot.lane.b32.xlu0 %v1040, 64
        %v2130 = vpop.permute.xlu0 %2129
        %v2134 = vsel %vm1274, %v2123, 0
        %v2137 = vsel %vm1274, %v2124, 0
        %2139 = vmatprep.subr.mxu0 0.0
        %2140 = vmatpush1.msra.mxu0 %v2128
        %2141 = vmatprep.subr.mxu0 0.0
        %2142 = vmatpush1.msra.mxu0 %v2130
        %2143 = vmatprep.subr.mxu0 0.0
        %2144 = vmatpush1.msra.mxu0 0.0
        %2145 = vmatprep.subr.mxu0 0.0
        %2146 = vmatpush1.msra.mxu0 0.0
        %2147 = vmatprep.subr.mxu0 0.0
        %2148 = vmatpush1.msra.mxu0 0.0
        %2149 = vmatprep.subr.mxu0 0.0
        %2150 = vmatpush1.msra.mxu0 0.0
        %2151 = vmatprep.subr.mxu0 0.0
        %2152 = vmatpush1.msra.mxu0 0.0
        %2153 = vmatprep.subr.mxu0 0.0
        %2154 = vmatpush1.msra.mxu0 0.0
        %2155 = vmatprep.subr.mxu0 0.0
        %2156 = vmatpush1.msra.mxu0 0.0
        %2157 = vmatprep.subr.mxu0 0.0
        %2158 = vmatpush1.msra.mxu0 0.0
        %2159 = vmatprep.subr.mxu0 0.0
        %2160 = vmatpush1.msra.mxu0 0.0
        %2161 = vmatprep.subr.mxu0 0.0
        %2162 = vmatpush1.msra.mxu0 0.0
        %2163 = vmatprep.subr.mxu0 0.0
        %2164 = vmatpush1.msra.mxu0 0.0
        %2165 = vmatprep.subr.mxu0 0.0
        %2166 = vmatpush1.msra.mxu0 0.0
        %2167 = vmatprep.subr.mxu0 0.0
        %2168 = vmatpush1.msra.mxu0 0.0
        %2169 = vmatprep.subr.mxu0 0.0
        %2170 = vmatpush1.msra.mxu0 0.0
        %2171 = vmatprep.subr.mxu0 0.0
        %2172 = vmatpush1.msra.mxu0 0.0
        %2173 = vmatprep.subr.mxu0 0.0
        %2174 = vmatpush1.msra.mxu0 0.0
        %2175 = vmatprep.subr.mxu0 0.0
        %2176 = vmatpush1.msra.mxu0 0.0
        %2177 = vmatprep.subr.mxu0 0.0
        %2178 = vmatpush1.msra.mxu0 0.0
        %2179 = vmatprep.subr.mxu0 0.0
        %2180 = vmatpush1.msra.mxu0 0.0
        %2181 = vmatprep.subr.mxu0 0.0
        %2182 = vmatpush1.msra.mxu0 0.0
        %2183 = vmatprep.subr.mxu0 0.0
        %2184 = vmatpush1.msra.mxu0 0.0
        %2185 = vmatprep.subr.mxu0 0.0
        %2186 = vmatpush1.msra.mxu0 0.0
        %2187 = vmatprep.subr.mxu0 0.0
        %2188 = vmatpush1.msra.mxu0 0.0
        %2189 = vmatprep.subr.mxu0 0.0
        %2190 = vmatpush1.msra.mxu0 0.0
        %2191 = vmatprep.subr.mxu0 0.0
        %2192 = vmatpush1.msra.mxu0 0.0
        %2193 = vmatprep.subr.mxu0 0.0
        %2194 = vmatpush1.msra.mxu0 0.0
        %2195 = vmatprep.subr.mxu0 0.0
        %2196 = vmatpush1.msra.mxu0 0.0
        %2197 = vmatprep.subr.mxu0 0.0
        %2198 = vmatpush1.msra.mxu0 0.0
        %2199 = vmatprep.subr.mxu0 0.0
        %2200 = vmatpush1.msra.mxu0 0.0
        %2201 = vmatprep.subr.mxu0 0.0
        %2202 = vmatpush1.msra.mxu0 0.0
        %2203 = vmatprep.mubr.f32.mxu0 0.0
        %2204 = vmatmul.mubr.f32.gmra.mrb[0].mxu0 %v2134
        %v2205 = vpop.f32.mrb[0].mxu0
        %v2206 = vadd.f32 0.0, %v2205
        %v2207 = vpop.f32.mrb[0].mxu0
        %2208 = vmatprep.mubr.f32.mxu0 0.0
        %2209 = vmatmul.mubr.f32.gmra.mrb[0].mxu0 %v2137
        %v2210 = vpop.f32.mrb[0].mxu0
        %v2211 = vadd.f32 0.0, %v2210
        %v2212 = vpop.f32.mrb[0].mxu0
        %2213 = vdwg.mxu0
        %2214 = vrot.lane.b32.xlu0 %v1045, 64
        %v2215 = vpop.permute.xlu0 %2214
        %2216 = vrot.lane.b32.xlu0 %v1050, 64
        %v2217 = vpop.permute.xlu0 %2216
        %v2221 = vsel %vm1274, %v2125, 0
        %v2224 = vsel %vm1274, %v2126, 0
        %2226 = vmatprep.subr.mxu0 0.0
        %2227 = vmatpush1.msra.mxu0 %v2215
        %2228 = vmatprep.subr.mxu0 0.0
        %2229 = vmatpush1.msra.mxu0 %v2217
        %2230 = vmatprep.subr.mxu0 0.0
        %2231 = vmatpush1.msra.mxu0 0.0
        %2232 = vmatprep.subr.mxu0 0.0
        %2233 = vmatpush1.msra.mxu0 0.0
        %2234 = vmatprep.subr.mxu0 0.0
        %2235 = vmatpush1.msra.mxu0 0.0
        %2236 = vmatprep.subr.mxu0 0.0
        %2237 = vmatpush1.msra.mxu0 0.0
        %2238 = vmatprep.subr.mxu0 0.0
        %2239 = vmatpush1.msra.mxu0 0.0
        %2240 = vmatprep.subr.mxu0 0.0
        %2241 = vmatpush1.msra.mxu0 0.0
        %2242 = vmatprep.subr.mxu0 0.0
        %2243 = vmatpush1.msra.mxu0 0.0
        %2244 = vmatprep.subr.mxu0 0.0
        %2245 = vmatpush1.msra.mxu0 0.0
        %2246 = vmatprep.subr.mxu0 0.0
        %2247 = vmatpush1.msra.mxu0 0.0
        %2248 = vmatprep.subr.mxu0 0.0
        %2249 = vmatpush1.msra.mxu0 0.0
        %2250 = vmatprep.subr.mxu0 0.0
        %2251 = vmatpush1.msra.mxu0 0.0
        %2252 = vmatprep.subr.mxu0 0.0
        %2253 = vmatpush1.msra.mxu0 0.0
        %2254 = vmatprep.subr.mxu0 0.0
        %2255 = vmatpush1.msra.mxu0 0.0
        %2256 = vmatprep.subr.mxu0 0.0
        %2257 = vmatpush1.msra.mxu0 0.0
        %2258 = vmatprep.subr.mxu0 0.0
        %2259 = vmatpush1.msra.mxu0 0.0
        %2260 = vmatprep.subr.mxu0 0.0
        %2261 = vmatpush1.msra.mxu0 0.0
        %2262 = vmatprep.subr.mxu0 0.0
        %2263 = vmatpush1.msra.mxu0 0.0
        %2264 = vmatprep.subr.mxu0 0.0
        %2265 = vmatpush1.msra.mxu0 0.0
        %2266 = vmatprep.subr.mxu0 0.0
        %2267 = vmatpush1.msra.mxu0 0.0
        %2268 = vmatprep.subr.mxu0 0.0
        %2269 = vmatpush1.msra.mxu0 0.0
        %2270 = vmatprep.subr.mxu0 0.0
        %2271 = vmatpush1.msra.mxu0 0.0
        %2272 = vmatprep.subr.mxu0 0.0
        %2273 = vmatpush1.msra.mxu0 0.0
        %2274 = vmatprep.subr.mxu0 0.0
        %2275 = vmatpush1.msra.mxu0 0.0
        %2276 = vmatprep.subr.mxu0 0.0
        %2277 = vmatpush1.msra.mxu0 0.0
        %2278 = vmatprep.subr.mxu0 0.0
        %2279 = vmatpush1.msra.mxu0 0.0
        %2280 = vmatprep.subr.mxu0 0.0
        %2281 = vmatpush1.msra.mxu0 0.0
        %2282 = vmatprep.subr.mxu0 0.0
        %2283 = vmatpush1.msra.mxu0 0.0
        %2284 = vmatprep.subr.mxu0 0.0
        %2285 = vmatpush1.msra.mxu0 0.0
        %2286 = vmatprep.subr.mxu0 0.0
        %2287 = vmatpush1.msra.mxu0 0.0
        %2288 = vmatprep.subr.mxu0 0.0
        %2289 = vmatpush1.msra.mxu0 0.0
        %2290 = vmatprep.mubr.f32.mxu0 0.0
        %2291 = vmatmul.mubr.f32.gmra.mrb[0].mxu0 %v2221
        %v2292 = vpop.f32.mrb[0].mxu0
        %v2293 = vadd.f32 0.0, %v2292
        %v2294 = vpop.f32.mrb[0].mxu0
        %2295 = vmatprep.mubr.f32.mxu0 0.0
        %2296 = vmatmul.mubr.f32.gmra.mrb[0].mxu0 %v2224
        %v2297 = vpop.f32.mrb[0].mxu0
        %v2298 = vadd.f32 0.0, %v2297
        %v2299 = vpop.f32.mrb[0].mxu0
        %2300 = vdwg.mxu0
        %2301 = vrot.lane.b32.xlu0 %v819, 32
        %v2302 = vpop.permute.xlu0 %2301
        %2303 = vrot.lane.b32.xlu0 %v824, 32
        %v2304 = vpop.permute.xlu0 %2303
        %2305 = vrot.lane.b32.xlu0 %v927, 32
        %v2306 = vpop.permute.xlu0 %2305
        %2307 = vrot.lane.b32.xlu0 %v932, 32
        %v2308 = vpop.permute.xlu0 %2307
        %v2309 = vsel %vm1079, %v2302, 0
        %v2311 = vsel %vm1079, %v2304, 0
        %v2313 = vsel %vm1079, %v2306, 0
        %v2315 = vsel %vm1079, %v2308, 0
        %2317 = vmatprep.subr.mxu0 0.0
        %2318 = vmatpush1.xpose.msra.mxu0 %v2313
        %2319 = vmatprep.subr.mxu0 0.0
        %2320 = vmatpush1.xpose.msra.mxu0 %v2315
        %2321 = vmatprep.subr.mxu0 0.0
        %2322 = vmatpush1.xpose.msra.mxu0 0.0
        %2323 = vmatprep.subr.mxu0 0.0
        %2324 = vmatpush1.xpose.msra.mxu0 0.0
        %2325 = vmatprep.subr.mxu0 0.0
        %2326 = vmatpush1.xpose.msra.mxu0 0.0
        %2327 = vmatprep.subr.mxu0 0.0
        %2328 = vmatpush1.xpose.msra.mxu0 0.0
        %2329 = vmatprep.subr.mxu0 0.0
        %2330 = vmatpush1.xpose.msra.mxu0 0.0
        %2331 = vmatprep.subr.mxu0 0.0
        %2332 = vmatpush1.xpose.msra.mxu0 0.0
        %2333 = vmatprep.subr.mxu0 0.0
        %2334 = vmatpush1.xpose.msra.mxu0 0.0
        %2335 = vmatprep.subr.mxu0 0.0
        %2336 = vmatpush1.xpose.msra.mxu0 0.0
        %2337 = vmatprep.subr.mxu0 0.0
        %2338 = vmatpush1.xpose.msra.mxu0 0.0
        %2339 = vmatprep.subr.mxu0 0.0
        %2340 = vmatpush1.xpose.msra.mxu0 0.0
        %2341 = vmatprep.subr.mxu0 0.0
        %2342 = vmatpush1.xpose.msra.mxu0 0.0
        %2343 = vmatprep.subr.mxu0 0.0
        %2344 = vmatpush1.xpose.msra.mxu0 0.0
        %2345 = vmatprep.subr.mxu0 0.0
        %2346 = vmatpush1.xpose.msra.mxu0 0.0
        %2347 = vmatprep.subr.mxu0 0.0
        %2348 = vmatpush1.xpose.msra.mxu0 0.0
        %2349 = vmatprep.subr.mxu0 0.0
        %2350 = vmatpush1.xpose.msra.mxu0 0.0
        %2351 = vmatprep.subr.mxu0 0.0
        %2352 = vmatpush1.xpose.msra.mxu0 0.0
        %2353 = vmatprep.subr.mxu0 0.0
        %2354 = vmatpush1.xpose.msra.mxu0 0.0
        %2355 = vmatprep.subr.mxu0 0.0
        %2356 = vmatpush1.xpose.msra.mxu0 0.0
        %2357 = vmatprep.subr.mxu0 0.0
        %2358 = vmatpush1.xpose.msra.mxu0 0.0
        %2359 = vmatprep.subr.mxu0 0.0
        %2360 = vmatpush1.xpose.msra.mxu0 0.0
        %2361 = vmatprep.subr.mxu0 0.0
        %2362 = vmatpush1.xpose.msra.mxu0 0.0
        %2363 = vmatprep.subr.mxu0 0.0
        %2364 = vmatpush1.xpose.msra.mxu0 0.0
        %2365 = vmatprep.subr.mxu0 0.0
        %2366 = vmatpush1.xpose.msra.mxu0 0.0
        %2367 = vmatprep.subr.mxu0 0.0
        %2368 = vmatpush1.xpose.msra.mxu0 0.0
        %2369 = vmatprep.subr.mxu0 0.0
        %2370 = vmatpush1.xpose.msra.mxu0 0.0
        %2371 = vmatprep.subr.mxu0 0.0
        %2372 = vmatpush1.xpose.msra.mxu0 0.0
        %2373 = vmatprep.subr.mxu0 0.0
        %2374 = vmatpush1.xpose.msra.mxu0 0.0
        %2375 = vmatprep.subr.mxu0 0.0
        %2376 = vmatpush1.xpose.msra.mxu0 0.0
        %2377 = vmatprep.subr.mxu0 0.0
        %2378 = vmatpush1.xpose.msra.mxu0 0.0
        %2379 = vmatprep.subr.mxu0 0.0
        %2380 = vmatpush1.xpose.msra.mxu0 0.0
        %2381 = vmatprep.mubr.f32.mxu0 0.0
        %2382 = vmatmul.mubr.f32.gmra.mrb[0].mxu0 %v2309
        %v2383 = vpop.f32.mrb[0].mxu0
        %v2384 = vadd.f32 0.0, %v2383
        %v2385 = vpop.f32.mrb[0].mxu0
        %2386 = vmatprep.mubr.f32.mxu0 0.0
        %2387 = vmatmul.mubr.f32.gmra.mrb[0].mxu0 %v2311
        %v2388 = vpop.f32.mrb[0].mxu0
        %v2389 = vadd.f32 0.0, %v2388
        %v2390 = vpop.f32.mrb[0].mxu0
        %2391 = vdwg.mxu0
        %2392 = vrot.lane.b32.xlu0 %v829, 32
        %v2393 = vpop.permute.xlu0 %2392
        %2394 = vrot.lane.b32.xlu0 %v834, 32
        %v2395 = vpop.permute.xlu0 %2394
        %2396 = vrot.lane.b32.xlu0 %v937, 32
        %v2397 = vpop.permute.xlu0 %2396
        %2398 = vrot.lane.b32.xlu0 %v942, 32
        %v2399 = vpop.permute.xlu0 %2398
        %v2400 = vsel %vm1079, %v2393, 0
        %v2402 = vsel %vm1079, %v2395, 0
        %v2404 = vsel %vm1079, %v2397, 0
        %v2406 = vsel %vm1079, %v2399, 0
        %2408 = vmatprep.subr.mxu0 0.0
        %2409 = vmatpush1.xpose.msra.mxu0 %v2404
        %2410 = vmatprep.subr.mxu0 0.0
        %2411 = vmatpush1.xpose.msra.mxu0 %v2406
        %2412 = vmatprep.subr.mxu0 0.0
        %2413 = vmatpush1.xpose.msra.mxu0 0.0
        %2414 = vmatprep.subr.mxu0 0.0
        %2415 = vmatpush1.xpose.msra.mxu0 0.0
        %2416 = vmatprep.subr.mxu0 0.0
        %2417 = vmatpush1.xpose.msra.mxu0 0.0
        %2418 = vmatprep.subr.mxu0 0.0
        %2419 = vmatpush1.xpose.msra.mxu0 0.0
        %2420 = vmatprep.subr.mxu0 0.0
        %2421 = vmatpush1.xpose.msra.mxu0 0.0
        %2422 = vmatprep.subr.mxu0 0.0
        %2423 = vmatpush1.xpose.msra.mxu0 0.0
        %2424 = vmatprep.subr.mxu0 0.0
        %2425 = vmatpush1.xpose.msra.mxu0 0.0
        %2426 = vmatprep.subr.mxu0 0.0
        %2427 = vmatpush1.xpose.msra.mxu0 0.0
        %2428 = vmatprep.subr.mxu0 0.0
        %2429 = vmatpush1.xpose.msra.mxu0 0.0
        %2430 = vmatprep.subr.mxu0 0.0
        %2431 = vmatpush1.xpose.msra.mxu0 0.0
        %2432 = vmatprep.subr.mxu0 0.0
        %2433 = vmatpush1.xpose.msra.mxu0 0.0
        %2434 = vmatprep.subr.mxu0 0.0
        %2435 = vmatpush1.xpose.msra.mxu0 0.0
        %2436 = vmatprep.subr.mxu0 0.0
        %2437 = vmatpush1.xpose.msra.mxu0 0.0
        %2438 = vmatprep.subr.mxu0 0.0
        %2439 = vmatpush1.xpose.msra.mxu0 0.0
        %2440 = vmatprep.subr.mxu0 0.0
        %2441 = vmatpush1.xpose.msra.mxu0 0.0
        %2442 = vmatprep.subr.mxu0 0.0
        %2443 = vmatpush1.xpose.msra.mxu0 0.0
        %2444 = vmatprep.subr.mxu0 0.0
        %2445 = vmatpush1.xpose.msra.mxu0 0.0
        %2446 = vmatprep.subr.mxu0 0.0
        %2447 = vmatpush1.xpose.msra.mxu0 0.0
        %2448 = vmatprep.subr.mxu0 0.0
        %2449 = vmatpush1.xpose.msra.mxu0 0.0
        %2450 = vmatprep.subr.mxu0 0.0
        %2451 = vmatpush1.xpose.msra.mxu0 0.0
        %2452 = vmatprep.subr.mxu0 0.0
        %2453 = vmatpush1.xpose.msra.mxu0 0.0
        %2454 = vmatprep.subr.mxu0 0.0
        %2455 = vmatpush1.xpose.msra.mxu0 0.0
        %2456 = vmatprep.subr.mxu0 0.0
        %2457 = vmatpush1.xpose.msra.mxu0 0.0
        %2458 = vmatprep.subr.mxu0 0.0
        %2459 = vmatpush1.xpose.msra.mxu0 0.0
        %2460 = vmatprep.subr.mxu0 0.0
        %2461 = vmatpush1.xpose.msra.mxu0 0.0
        %2462 = vmatprep.subr.mxu0 0.0
        %2463 = vmatpush1.xpose.msra.mxu0 0.0
        %2464 = vmatprep.subr.mxu0 0.0
        %2465 = vmatpush1.xpose.msra.mxu0 0.0
        %2466 = vmatprep.subr.mxu0 0.0
        %2467 = vmatpush1.xpose.msra.mxu0 0.0
        %2468 = vmatprep.subr.mxu0 0.0
        %2469 = vmatpush1.xpose.msra.mxu0 0.0
        %2470 = vmatprep.subr.mxu0 0.0
        %2471 = vmatpush1.xpose.msra.mxu0 0.0
        %2472 = vmatprep.mubr.f32.mxu0 0.0
        %2473 = vmatmul.mubr.f32.gmra.mrb[0].mxu0 %v2400
        %v2474 = vpop.f32.mrb[0].mxu0
        %v2475 = vadd.f32 0.0, %v2474
        %v2476 = vpop.f32.mrb[0].mxu0
        %2477 = vmatprep.mubr.f32.mxu0 0.0
        %2478 = vmatmul.mubr.f32.gmra.mrb[0].mxu0 %v2402
        %v2479 = vpop.f32.mrb[0].mxu0
        %v2480 = vadd.f32 0.0, %v2479
        %v2481 = vpop.f32.mrb[0].mxu0
        %2482 = vdwg.mxu0
        %v2483 = vmul.f32 %v2384, 0.17677669
        %v2484 = vmul.f32 %v2389, 0.17677669
        %v2485 = vmul.f32 %v2475, 0.17677669
        %v2486 = vmul.f32 %v2480, 0.17677669
        %v2487 = vadd.f32 %v2483, %v1263
        %v2488 = vadd.f32 %v2484, %v1263
        %v2489 = vadd.f32 %v2485, %v1267
        %v2490 = vadd.f32 %v2486, %v1267
        %v2491 = vsel %vm1274, %v2487, -inf
        %2492 = vmax.xlane.f32.xlu0 %v2491
        %v2493 = vpop.xlane.xlu0 %2492
        %v2494 = vsel %vm1274, %v2488, -inf
        %2495 = vmax.xlane.f32.xlu0 %v2494
        %v2496 = vpop.xlane.xlu0 %2495
        %v2497 = vsel %vm1274, %v2489, -inf
        %2498 = vmax.xlane.f32.xlu0 %v2497
        %v2499 = vpop.xlane.xlu0 %2498
        %v2500 = vsel %vm1274, %v2490, -inf
        %2501 = vmax.xlane.f32.xlu0 %v2500
        %v2502 = vpop.xlane.xlu0 %2501
        %v2503 = vsub.f32 %v2487, %v2493
        %v2504 = vsub.f32 %v2488, %v2496
        %v2505 = vsub.f32 %v2489, %v2499
        %v2506 = vsub.f32 %v2490, %v2502
        %v2507 = vmul.f32 %v2503, 1.442695
        %v2508 = vpow.pop %v2507
        %v2509 = vmul.f32 %v2504, 1.442695
        %v2510 = vpow.pop %v2509
        %v2511 = vmul.f32 %v2505, 1.442695
        %v2512 = vpow.pop %v2511
        %v2513 = vmul.f32 %v2506, 1.442695
        %v2514 = vpow.pop %v2513
        %v2515 = vsel %vm1274, %v2508, 0.0
        %2516 = vadd.xlane.f32.xlu0 %v2515
        %v2517 = vpop.xlane.xlu0 %2516
        %v2518 = vsel %vm1274, %v2510, 0.0
        %2519 = vadd.xlane.f32.xlu0 %v2518
        %v2520 = vpop.xlane.xlu0 %2519
        %v2521 = vsel %vm1274, %v2512, 0.0
        %2522 = vadd.xlane.f32.xlu0 %v2521
        %v2523 = vpop.xlane.xlu0 %2522
        %v2524 = vsel %vm1274, %v2514, 0.0
        %2525 = vadd.xlane.f32.xlu0 %v2524
        %v2526 = vpop.xlane.xlu0 %2525
        %v2527 = vrcp.pop %v2517
        %v2528 = vrcp.pop %v2520
        %v2529 = vrcp.pop %v2523
        %v2530 = vrcp.pop %v2526
        %v2531 = vmul.f32 %v2508, %v2527
        %v2532 = vmul.f32 %v2510, %v2528
        %v2533 = vmul.f32 %v2512, %v2529
        %v2534 = vmul.f32 %v2514, %v2530
        %2535 = vrot.lane.b32.xlu0 %v1035, 32
        %v2536 = vpop.permute.xlu0 %2535
        %2537 = vrot.lane.b32.xlu0 %v1040, 32
        %v2538 = vpop.permute.xlu0 %2537
        %v2542 = vsel %vm1274, %v2531, 0
        %v2545 = vsel %vm1274, %v2532, 0
        %2547 = vmatprep.subr.mxu0 0.0
        %2548 = vmatpush1.msra.mxu0 %v2536
        %2549 = vmatprep.subr.mxu0 0.0
        %2550 = vmatpush1.msra.mxu0 %v2538
        %2551 = vmatprep.subr.mxu0 0.0
        %2552 = vmatpush1.msra.mxu0 0.0
        %2553 = vmatprep.subr.mxu0 0.0
        %2554 = vmatpush1.msra.mxu0 0.0
        %2555 = vmatprep.subr.mxu0 0.0
        %2556 = vmatpush1.msra.mxu0 0.0
        %2557 = vmatprep.subr.mxu0 0.0
        %2558 = vmatpush1.msra.mxu0 0.0
        %2559 = vmatprep.subr.mxu0 0.0
        %2560 = vmatpush1.msra.mxu0 0.0
        %2561 = vmatprep.subr.mxu0 0.0
        %2562 = vmatpush1.msra.mxu0 0.0
        %2563 = vmatprep.subr.mxu0 0.0
        %2564 = vmatpush1.msra.mxu0 0.0
        %2565 = vmatprep.subr.mxu0 0.0
        %2566 = vmatpush1.msra.mxu0 0.0
        %2567 = vmatprep.subr.mxu0 0.0
        %2568 = vmatpush1.msra.mxu0 0.0
        %2569 = vmatprep.subr.mxu0 0.0
        %2570 = vmatpush1.msra.mxu0 0.0
        %2571 = vmatprep.subr.mxu0 0.0
        %2572 = vmatpush1.msra.mxu0 0.0
        %2573 = vmatprep.subr.mxu0 0.0
        %2574 = vmatpush1.msra.mxu0 0.0
        %2575 = vmatprep.subr.mxu0 0.0
        %2576 = vmatpush1.msra.mxu0 0.0
        %2577 = vmatprep.subr.mxu0 0.0
        %2578 = vmatpush1.msra.mxu0 0.0
        %2579 = vmatprep.subr.mxu0 0.0
        %2580 = vmatpush1.msra.mxu0 0.0
        %2581 = vmatprep.subr.mxu0 0.0
        %2582 = vmatpush1.msra.mxu0 0.0
        %2583 = vmatprep.subr.mxu0 0.0
        %2584 = vmatpush1.msra.mxu0 0.0
        %2585 = vmatprep.subr.mxu0 0.0
        %2586 = vmatpush1.msra.mxu0 0.0
        %2587 = vmatprep.subr.mxu0 0.0
        %2588 = vmatpush1.msra.mxu0 0.0
        %2589 = vmatprep.subr.mxu0 0.0
        %2590 = vmatpush1.msra.mxu0 0.0
        %2591 = vmatprep.subr.mxu0 0.0
        %2592 = vmatpush1.msra.mxu0 0.0
        %2593 = vmatprep.subr.mxu0 0.0
        %2594 = vmatpush1.msra.mxu0 0.0
        %2595 = vmatprep.subr.mxu0 0.0
        %2596 = vmatpush1.msra.mxu0 0.0
        %2597 = vmatprep.subr.mxu0 0.0
        %2598 = vmatpush1.msra.mxu0 0.0
        %2599 = vmatprep.subr.mxu0 0.0
        %2600 = vmatpush1.msra.mxu0 0.0
        %2601 = vmatprep.subr.mxu0 0.0
        %2602 = vmatpush1.msra.mxu0 0.0
        %2603 = vmatprep.subr.mxu0 0.0
        %2604 = vmatpush1.msra.mxu0 0.0
        %2605 = vmatprep.subr.mxu0 0.0
        %2606 = vmatpush1.msra.mxu0 0.0
        %2607 = vmatprep.subr.mxu0 0.0
        %2608 = vmatpush1.msra.mxu0 0.0
        %2609 = vmatprep.subr.mxu0 0.0
        %2610 = vmatpush1.msra.mxu0 0.0
        %2611 = vmatprep.mubr.f32.mxu0 0.0
        %2612 = vmatmul.mubr.f32.gmra.mrb[0].mxu0 %v2542
        %v2613 = vpop.f32.mrb[0].mxu0
        %v2614 = vadd.f32 0.0, %v2613
        %v2615 = vpop.f32.mrb[0].mxu0
        %2616 = vmatprep.mubr.f32.mxu0 0.0
        %2617 = vmatmul.mubr.f32.gmra.mrb[0].mxu0 %v2545
        %v2618 = vpop.f32.mrb[0].mxu0
        %v2619 = vadd.f32 0.0, %v2618
        %v2620 = vpop.f32.mrb[0].mxu0
        %2621 = vdwg.mxu0
        %2622 = vrot.lane.b32.xlu0 %v1045, 32
        %v2623 = vpop.permute.xlu0 %2622
        %2624 = vrot.lane.b32.xlu0 %v1050, 32
        %v2625 = vpop.permute.xlu0 %2624
        %v2629 = vsel %vm1274, %v2533, 0
        %v2632 = vsel %vm1274, %v2534, 0
        %2634 = vmatprep.subr.mxu0 0.0
        %2635 = vmatpush1.msra.mxu0 %v2623
        %2636 = vmatprep.subr.mxu0 0.0
        %2637 = vmatpush1.msra.mxu0 %v2625
        %2638 = vmatprep.subr.mxu0 0.0
        %2639 = vmatpush1.msra.mxu0 0.0
        %2640 = vmatprep.subr.mxu0 0.0
        %2641 = vmatpush1.msra.mxu0 0.0
        %2642 = vmatprep.subr.mxu0 0.0
        %2643 = vmatpush1.msra.mxu0 0.0
        %2644 = vmatprep.subr.mxu0 0.0
        %2645 = vmatpush1.msra.mxu0 0.0
        %2646 = vmatprep.subr.mxu0 0.0
        %2647 = vmatpush1.msra.mxu0 0.0
        %2648 = vmatprep.subr.mxu0 0.0
        %2649 = vmatpush1.msra.mxu0 0.0
        %2650 = vmatprep.subr.mxu0 0.0
        %2651 = vmatpush1.msra.mxu0 0.0
        %2652 = vmatprep.subr.mxu0 0.0
        %2653 = vmatpush1.msra.mxu0 0.0
        %2654 = vmatprep.subr.mxu0 0.0
        %2655 = vmatpush1.msra.mxu0 0.0
        %2656 = vmatprep.subr.mxu0 0.0
        %2657 = vmatpush1.msra.mxu0 0.0
        %2658 = vmatprep.subr.mxu0 0.0
        %2659 = vmatpush1.msra.mxu0 0.0
        %2660 = vmatprep.subr.mxu0 0.0
        %2661 = vmatpush1.msra.mxu0 0.0
        %2662 = vmatprep.subr.mxu0 0.0
        %2663 = vmatpush1.msra.mxu0 0.0
        %2664 = vmatprep.subr.mxu0 0.0
        %2665 = vmatpush1.msra.mxu0 0.0
        %2666 = vmatprep.subr.mxu0 0.0
        %2667 = vmatpush1.msra.mxu0 0.0
        %2668 = vmatprep.subr.mxu0 0.0
        %2669 = vmatpush1.msra.mxu0 0.0
        %2670 = vmatprep.subr.mxu0 0.0
        %2671 = vmatpush1.msra.mxu0 0.0
        %2672 = vmatprep.subr.mxu0 0.0
        %2673 = vmatpush1.msra.mxu0 0.0
        %2674 = vmatprep.subr.mxu0 0.0
        %2675 = vmatpush1.msra.mxu0 0.0
        %2676 = vmatprep.subr.mxu0 0.0
        %2677 = vmatpush1.msra.mxu0 0.0
        %2678 = vmatprep.subr.mxu0 0.0
        %2679 = vmatpush1.msra.mxu0 0.0
        %2680 = vmatprep.subr.mxu0 0.0
        %2681 = vmatpush1.msra.mxu0 0.0
        %2682 = vmatprep.subr.mxu0 0.0
        %2683 = vmatpush1.msra.mxu0 0.0
        %2684 = vmatprep.subr.mxu0 0.0
        %2685 = vmatpush1.msra.mxu0 0.0
        %2686 = vmatprep.subr.mxu0 0.0
        %2687 = vmatpush1.msra.mxu0 0.0
        %2688 = vmatprep.subr.mxu0 0.0
        %2689 = vmatpush1.msra.mxu0 0.0
        %2690 = vmatprep.subr.mxu0 0.0
        %2691 = vmatpush1.msra.mxu0 0.0
        %2692 = vmatprep.subr.mxu0 0.0
        %2693 = vmatpush1.msra.mxu0 0.0
        %2694 = vmatprep.subr.mxu0 0.0
        %2695 = vmatpush1.msra.mxu0 0.0
        %2696 = vmatprep.subr.mxu0 0.0
        %2697 = vmatpush1.msra.mxu0 0.0
        %2698 = vmatprep.mubr.f32.mxu0 0.0
        %2699 = vmatmul.mubr.f32.gmra.mrb[0].mxu0 %v2629
        %v2700 = vpop.f32.mrb[0].mxu0
        %v2701 = vadd.f32 0.0, %v2700
        %v2702 = vpop.f32.mrb[0].mxu0
        %2703 = vmatprep.mubr.f32.mxu0 0.0
        %2704 = vmatmul.mubr.f32.gmra.mrb[0].mxu0 %v2632
        %v2705 = vpop.f32.mrb[0].mxu0
        %v2706 = vadd.f32 0.0, %v2705
        %v2707 = vpop.f32.mrb[0].mxu0
        %2708 = vdwg.mxu0
        %2713 = vrot.lane.b32.xlu0 %v1796, 32
        %v2714 = vpop.permute.xlu0 %2713
        %2715 = vrot.lane.b32.xlu0 %v1801, 32
        %v2716 = vpop.permute.xlu0 %2715
        %2717 = vrot.lane.b32.xlu0 %v1885, 32
        %v2718 = vpop.permute.xlu0 %2717
        %2719 = vrot.lane.b32.xlu0 %v1890, 32
        %v2720 = vpop.permute.xlu0 %2719
        %2729 = vrot.lane.b32.xlu0 %v2206, 64
        %v2730 = vpop.permute.xlu0 %2729
        %2731 = vrot.lane.b32.xlu0 %v2211, 64
        %v2732 = vpop.permute.xlu0 %2731
        %2733 = vrot.lane.b32.xlu0 %v2293, 64
        %v2734 = vpop.permute.xlu0 %2733
        %2735 = vrot.lane.b32.xlu0 %v2298, 64
        %v2736 = vpop.permute.xlu0 %2735
        %2745 = vrot.lane.b32.xlu0 %v2614, 96
        %v2746 = vpop.permute.xlu0 %2745
        %2747 = vrot.lane.b32.xlu0 %v2619, 96
        %v2748 = vpop.permute.xlu0 %2747
        %2749 = vrot.lane.b32.xlu0 %v2701, 96
        %v2750 = vpop.permute.xlu0 %2749
        %2751 = vrot.lane.b32.xlu0 %v2706, 96
        %v2752 = vpop.permute.xlu0 %2751
        %v2757 = vsel %vm1079, %v1392, %v2714
        %v2758 = vsel %vm1079, %v1397, %v2716
        %v2759 = vsel %vm1079, %v1473, %v2718
        %v2760 = vsel %vm1079, %v1478, %v2720
        %vm2761 = vcmask 523264
        %v2762 = vsel %vm2761, %v2757, %v2730
        %v2763 = vsel %vm2761, %v2758, %v2732
        %v2764 = vsel %vm2761, %v2759, %v2734
        %v2765 = vsel %vm2761, %v2760, %v2736
        %vm2766 = vcmask 785408
        %v2767 = vsel %vm2766, %v2762, %v2746
        %v2768 = vsel %vm2766, %v2763, %v2748
        %v2769 = vsel %vm2766, %v2764, %v2750
        %v2770 = vsel %vm2766, %v2765, %v2752
        %v2771 = vld [vmem:[#allocation2] sm:$0xff]
        %v2772 = vld [vmem:[#allocation2 + $0x8] sm:$0xff]
        %v2773 = vld [vmem:[#allocation2 + $0x10] sm:$0xff]
        %v2774 = vld [vmem:[#allocation2 + $0x18] sm:$0xff]
        %2775 = vmatprep.subr.mxu0 0.0
        %2776 = vmatpush1.msra.mxu0 %v1059
        %2777 = vmatprep.subr.mxu0 0.0
        %2778 = vmatpush1.msra.mxu0 %v1060
        %2779 = vmatprep.subr.mxu0 0.0
        %2780 = vmatpush1.msra.mxu0 %v1061
        %2781 = vmatprep.subr.mxu0 0.0
        %2782 = vmatpush1.msra.mxu0 %v1062
        %2783 = vmatprep.subr.mxu0 0.0
        %2784 = vmatpush1.msra.mxu0 %v1063
        %2785 = vmatprep.subr.mxu0 0.0
        %2786 = vmatpush1.msra.mxu0 %v1064
        %2787 = vmatprep.subr.mxu0 0.0
        %2788 = vmatpush1.msra.mxu0 %v1065
        %2789 = vmatprep.subr.mxu0 0.0
        %2790 = vmatpush1.msra.mxu0 %v1066
        %2791 = vmatprep.subr.mxu0 0.0
        %2792 = vmatpush1.msra.mxu0 %v1067
        %2793 = vmatprep.subr.mxu0 0.0
        %2794 = vmatpush1.msra.mxu0 %v1068
        %2795 = vmatprep.subr.mxu0 0.0
        %2796 = vmatpush1.msra.mxu0 %v1069
        %2797 = vmatprep.subr.mxu0 0.0
        %2798 = vmatpush1.msra.mxu0 %v1070
        %2799 = vmatprep.subr.mxu0 0.0
        %2800 = vmatpush1.msra.mxu0 %v1071
        %2801 = vmatprep.subr.mxu0 0.0
        %2802 = vmatpush1.msra.mxu0 %v1072
        %2803 = vmatprep.subr.mxu0 0.0
        %2804 = vmatpush1.msra.mxu0 %v1073
        %2805 = vmatprep.subr.mxu0 0.0
        %2806 = vmatpush1.msra.mxu0 %v1074
        %2807 = vmatprep.subr.mxu0 0.0
        %2808 = vmatpush1.msra.mxu0 0.0
        %2809 = vmatprep.subr.mxu0 0.0
        %2810 = vmatpush1.msra.mxu0 0.0
        %2811 = vmatprep.subr.mxu0 0.0
        %2812 = vmatpush1.msra.mxu0 0.0
        %2813 = vmatprep.subr.mxu0 0.0
        %2814 = vmatpush1.msra.mxu0 0.0
        %2815 = vmatprep.subr.mxu0 0.0
        %2816 = vmatpush1.msra.mxu0 0.0
        %2817 = vmatprep.subr.mxu0 0.0
        %2818 = vmatpush1.msra.mxu0 0.0
        %2819 = vmatprep.subr.mxu0 0.0
        %2820 = vmatpush1.msra.mxu0 0.0
        %2821 = vmatprep.subr.mxu0 0.0
        %2822 = vmatpush1.msra.mxu0 0.0
        %2823 = vmatprep.subr.mxu0 0.0
        %2824 = vmatpush1.msra.mxu0 0.0
        %2825 = vmatprep.subr.mxu0 0.0
        %2826 = vmatpush1.msra.mxu0 0.0
        %2827 = vmatprep.subr.mxu0 0.0
        %2828 = vmatpush1.msra.mxu0 0.0
        %2829 = vmatprep.subr.mxu0 0.0
        %2830 = vmatpush1.msra.mxu0 0.0
        %2831 = vmatprep.subr.mxu0 0.0
        %2832 = vmatpush1.msra.mxu0 0.0
        %2833 = vmatprep.subr.mxu0 0.0
        %2834 = vmatpush1.msra.mxu0 0.0
        %2835 = vmatprep.subr.mxu0 0.0
        %2836 = vmatpush1.msra.mxu0 0.0
        %2837 = vmatprep.subr.mxu0 0.0
        %2838 = vmatpush1.msra.mxu0 0.0
        %2839 = vmatprep.mubr.f32.mxu0 0.0
        %2840 = vmatmul.mubr.f32.gmra.mrb[0].mxu0 %v2767
        %v2841 = vpop.f32.mrb[0].mxu0
        %v2842 = vadd.f32 0.0, %v2841
        %v2843 = vpop.f32.mrb[0].mxu0
        %2844 = vmatprep.mubr.f32.mxu0 0.0
        %2845 = vmatmul.mubr.f32.gmra.mrb[0].mxu0 %v2768
        %v2846 = vpop.f32.mrb[0].mxu0
        %v2847 = vadd.f32 0.0, %v2846
        %v2848 = vpop.f32.mrb[0].mxu0
        %2849 = vmatprep.mubr.f32.mxu0 0.0
        %2850 = vmatmul.mubr.f32.gmra.mrb[0].mxu0 %v2769
        %v2851 = vpop.f32.mrb[0].mxu0
        %v2852 = vadd.f32 0.0, %v2851
        %v2853 = vpop.f32.mrb[0].mxu0
        %2854 = vmatprep.mubr.f32.mxu0 0.0
        %2855 = vmatmul.mubr.f32.gmra.mrb[0].mxu0 %v2770
        %v2856 = vpop.f32.mrb[0].mxu0
        %v2857 = vadd.f32 0.0, %v2856
        %v2858 = vpop.f32.mrb[0].mxu0
        %2859 = vdwg.mxu0
        %v2860 = vadd.f32 %v2771, %v2842
        %v2861 = vadd.f32 %v2772, %v2847
        %v2862 = vadd.f32 %v2773, %v2852
        %v2863 = vadd.f32 %v2774, %v2857
        %2864 = vst [vmem:[#allocation2] sm:$0xff] %v2860
        %2865 = vst [vmem:[#allocation2 + $0x8] sm:$0xff] %v2861
        %2866 = vst [vmem:[#allocation2 + $0x10] sm:$0xff] %v2862
        %2867 = vst [vmem:[#allocation2 + $0x18] sm:$0xff] %v2863
        %v2868 = vld [vmem:[#allocation2] sm:$0xff]
        %v2869 = vld [vmem:[#allocation2 + $0x8] sm:$0xff]
        %v2870 = vld [vmem:[#allocation2 + $0x10] sm:$0xff]
        %v2871 = vld [vmem:[#allocation2 + $0x18] sm:$0xff]
        %v2872 = vld [vmem:[%s9] sm:$0x1]
        %v2874 = vlaneseq
        %v2875 = vshrl.u32 %v2874, 7
        %v2876 = vsub.s32 0, %v2875
        %v2877 = vrot.slane %v2872, %v2876
        %v2879 = vadd.f32 %v2868, %v2877
        %v2880 = vadd.f32 %v2869, %v2877
        %v2881 = vadd.f32 %v2870, %v2877
        %v2882 = vadd.f32 %v2871, %v2877
        %v2883 = vadd.f32 %v725, %v2879
        %v2884 = vadd.f32 %v726, %v2880
        %v2885 = vadd.f32 %v727, %v2881
        %v2886 = vadd.f32 %v728, %v2882
        %2887 = vadd.xlane.f32.xlu0 %v2883
        %v2888 = vpop.xlane.xlu0 %2887
        %2889 = vadd.xlane.f32.xlu0 %v2884
        %v2890 = vpop.xlane.xlu0 %2889
        %2891 = vadd.xlane.f32.xlu0 %v2885
        %v2892 = vpop.xlane.xlu0 %2891
        %2893 = vadd.xlane.f32.xlu0 %v2886
        %v2894 = vpop.xlane.xlu0 %2893
        %v2895 = vrcp.pop 128.0
        %v2896 = vmul.f32 %v2888, %v2895
        %v2897 = vmul.f32 %v2890, %v2895
        %v2898 = vmul.f32 %v2892, %v2895
        %v2899 = vmul.f32 %v2894, %v2895
        %v2900 = vmul.f32 %v2883, %v2883
        %v2901 = vmul.f32 %v2884, %v2884
        %v2902 = vmul.f32 %v2885, %v2885
        %v2903 = vmul.f32 %v2886, %v2886
        %2904 = vadd.xlane.f32.xlu0 %v2900
        %v2905 = vpop.xlane.xlu0 %2904
        %2906 = vadd.xlane.f32.xlu0 %v2901
        %v2907 = vpop.xlane.xlu0 %2906
        %2908 = vadd.xlane.f32.xlu0 %v2902
        %v2909 = vpop.xlane.xlu0 %2908
        %2910 = vadd.xlane.f32.xlu0 %v2903
        %v2911 = vpop.xlane.xlu0 %2910
        %v2912 = vmul.f32 %v2905, %v2895
        %v2913 = vmul.f32 %v2907, %v2895
        %v2914 = vmul.f32 %v2909, %v2895
        %v2915 = vmul.f32 %v2911, %v2895
        %v2916 = vmul.f32 %v2896, %v2896
        %v2917 = vmul.f32 %v2897, %v2897
        %v2918 = vmul.f32 %v2898, %v2898
        %v2919 = vmul.f32 %v2899, %v2899
        %v2920 = vsub.f32 %v2912, %v2916
        %v2921 = vsub.f32 %v2913, %v2917
        %v2922 = vsub.f32 %v2914, %v2918
        %v2923 = vsub.f32 %v2915, %v2919
        %v2924 = vmax.f32 %v2920, 0.0
        %v2925 = vmax.f32 %v2921, 0.0
        %v2926 = vmax.f32 %v2922, 0.0
        %v2927 = vmax.f32 %v2923, 0.0
        %v2928 = vsub.f32 %v2883, %v2896
        %v2929 = vsub.f32 %v2884, %v2897
        %v2930 = vsub.f32 %v2885, %v2898
        %v2931 = vsub.f32 %v2886, %v2899
        %v2932 = vadd.f32 %v2924, 1e-05
        %v2933 = vadd.f32 %v2925, 1e-05
        %v2934 = vadd.f32 %v2926, 1e-05
        %v2935 = vadd.f32 %v2927, 1e-05
        %v2936 = vrsqrt.pop %v2932
        %v2937 = vrsqrt.pop %v2933
        %v2938 = vrsqrt.pop %v2934
        %v2939 = vrsqrt.pop %v2935
        %v2940 = vmul.f32 %v2928, %v2936
        %v2941 = vmul.f32 %v2929, %v2937
        %v2942 = vmul.f32 %v2930, %v2938
        %v2943 = vmul.f32 %v2931, %v2939
        %v2944 = vld [vmem:[%s10] sm:$0x1]
        %v2946 = vlaneseq
        %v2947 = vshrl.u32 %v2946, 7
        %v2948 = vsub.s32 0, %v2947
        %v2949 = vrot.slane %v2944, %v2948
        %v2951 = vmul.f32 %v2940, %v2949
        %v2952 = vmul.f32 %v2941, %v2949
        %v2953 = vmul.f32 %v2942, %v2949
        %v2954 = vmul.f32 %v2943, %v2949
        %v2955 = vld [vmem:[%s11] sm:$0x1]
        %v2957 = vlaneseq
        %v2958 = vshrl.u32 %v2957, 7
        %v2959 = vsub.s32 0, %v2958
        %v2960 = vrot.slane %v2955, %v2959
        %v2962 = vadd.f32 %v2951, %v2960
        %v2963 = vadd.f32 %v2952, %v2960
        %v2964 = vadd.f32 %v2953, %v2960
        %v2965 = vadd.f32 %v2954, %v2960
        %v2966 = vld [vmem:[#allocation14] sm:$0xff]
        %v2967 = vld [vmem:[#allocation14 + $0x8] sm:$0xff]
        %v2968 = vld [vmem:[#allocation14 + $0x10] sm:$0xff]
        %v2969 = vld [vmem:[#allocation14 + $0x18] sm:$0xff]
        %v2970 = vld [vmem:[#allocation14 + $0x20] sm:$0xff]
        %v2971 = vld [vmem:[#allocation14 + $0x28] sm:$0xff]
        %v2972 = vld [vmem:[#allocation14 + $0x30] sm:$0xff]
        %v2973 = vld [vmem:[#allocation14 + $0x38] sm:$0xff]
        %v2974 = vld [vmem:[#allocation14 + $0x40] sm:$0xff]
        %v2975 = vld [vmem:[#allocation14 + $0x48] sm:$0xff]
        %v2976 = vld [vmem:[#allocation14 + $0x50] sm:$0xff]
        %v2977 = vld [vmem:[#allocation14 + $0x58] sm:$0xff]
        %v2978 = vld [vmem:[#allocation14 + $0x60] sm:$0xff]
        %v2979 = vld [vmem:[#allocation14 + $0x68] sm:$0xff]
        %v2980 = vld [vmem:[#allocation14 + $0x70] sm:$0xff]
        %v2981 = vld [vmem:[#allocation14 + $0x78] sm:$0xff]
        %v2982 = vld [vmem:[#allocation14 + $0x80] sm:$0xff]
        %v2983 = vld [vmem:[#allocation14 + $0x88] sm:$0xff]
        %v2984 = vld [vmem:[#allocation14 + $0x90] sm:$0xff]
        %v2985 = vld [vmem:[#allocation14 + $0x98] sm:$0xff]
        %v2986 = vld [vmem:[#allocation14 + $0xa0] sm:$0xff]
        %v2987 = vld [vmem:[#allocation14 + $0xa8] sm:$0xff]
        %v2988 = vld [vmem:[#allocation14 + $0xb0] sm:$0xff]
        %v2989 = vld [vmem:[#allocation14 + $0xb8] sm:$0xff]
        %v2990 = vld [vmem:[#allocation14 + $0xc0] sm:$0xff]
        %v2991 = vld [vmem:[#allocation14 + $0xc8] sm:$0xff]
        %v2992 = vld [vmem:[#allocation14 + $0xd0] sm:$0xff]
        %v2993 = vld [vmem:[#allocation14 + $0xd8] sm:$0xff]
        %v2994 = vld [vmem:[#allocation14 + $0xe0] sm:$0xff]
        %v2995 = vld [vmem:[#allocation14 + $0xe8] sm:$0xff]
        %v2996 = vld [vmem:[#allocation14 + $0xf0] sm:$0xff]
        %v2997 = vld [vmem:[#allocation14 + $0xf8] sm:$0xff]
        %v2998 = vld [vmem:[%s13] sm:$0x3]
        %v3000 = vlaneseq
        %v3001 = vshrl.u32 %v3000, 7
        %v3002 = vsub.s32 0, %v3001
        %v3003 = vrot.slane %v2998, %v3002
        %v3004 = vlaneseq
        %v3005 = vshrl.u32 %v3004, 7
        %v3006 = vsub.s32 1, %v3005
        %v3007 = vrot.slane %v2998, %v3006
        %3010 = vmatprep.subr.mxu0 %v2967
        %3011 = vmatpush1.msra.mxu0 %v2966
        %3012 = vmatprep.subr.mxu0 %v2969
        %3013 = vmatpush1.msra.mxu0 %v2968
        %3014 = vmatprep.subr.mxu0 %v2971
        %3015 = vmatpush1.msra.mxu0 %v2970
        %3016 = vmatprep.subr.mxu0 %v2973
        %3017 = vmatpush1.msra.mxu0 %v2972
        %3018 = vmatprep.subr.mxu0 %v2975
        %3019 = vmatpush1.msra.mxu0 %v2974
        %3020 = vmatprep.subr.mxu0 %v2977
        %3021 = vmatpush1.msra.mxu0 %v2976
        %3022 = vmatprep.subr.mxu0 %v2979
        %3023 = vmatpush1.msra.mxu0 %v2978
        %3024 = vmatprep.subr.mxu0 %v2981
        %3025 = vmatpush1.msra.mxu0 %v2980
        %3026 = vmatprep.subr.mxu0 %v2983
        %3027 = vmatpush1.msra.mxu0 %v2982
        %3028 = vmatprep.subr.mxu0 %v2985
        %3029 = vmatpush1.msra.mxu0 %v2984
        %3030 = vmatprep.subr.mxu0 %v2987
        %3031 = vmatpush1.msra.mxu0 %v2986
        %3032 = vmatprep.subr.mxu0 %v2989
        %3033 = vmatpush1.msra.mxu0 %v2988
        %3034 = vmatprep.subr.mxu0 %v2991
        %3035 = vmatpush1.msra.mxu0 %v2990
        %3036 = vmatprep.subr.mxu0 %v2993
        %3037 = vmatpush1.msra.mxu0 %v2992
        %3038 = vmatprep.subr.mxu0 %v2995
        %3039 = vmatpush1.msra.mxu0 %v2994
        %3040 = vmatprep.subr.mxu0 %v2997
        %3041 = vmatpush1.msra.mxu0 %v2996
        %3042 = vmatprep.subr.mxu0 0.0
        %3043 = vmatpush1.msra.mxu0 0.0
        %3044 = vmatprep.subr.mxu0 0.0
        %3045 = vmatpush1.msra.mxu0 0.0
        %3046 = vmatprep.subr.mxu0 0.0
        %3047 = vmatpush1.msra.mxu0 0.0
        %3048 = vmatprep.subr.mxu0 0.0
        %3049 = vmatpush1.msra.mxu0 0.0
        %3050 = vmatprep.subr.mxu0 0.0
        %3051 = vmatpush1.msra.mxu0 0.0
        %3052 = vmatprep.subr.mxu0 0.0
        %3053 = vmatpush1.msra.mxu0 0.0
        %3054 = vmatprep.subr.mxu0 0.0
        %3055 = vmatpush1.msra.mxu0 0.0
        %3056 = vmatprep.subr.mxu0 0.0
        %3057 = vmatpush1.msra.mxu0 0.0
        %3058 = vmatprep.subr.mxu0 0.0
        %3059 = vmatpush1.msra.mxu0 0.0
        %3060 = vmatprep.subr.mxu0 0.0
        %3061 = vmatpush1.msra.mxu0 0.0
        %3062 = vmatprep.subr.mxu0 0.0
        %3063 = vmatpush1.msra.mxu0 0.0
        %3064 = vmatprep.subr.mxu0 0.0
        %3065 = vmatpush1.msra.mxu0 0.0
        %3066 = vmatprep.subr.mxu0 0.0
        %3067 = vmatpush1.msra.mxu0 0.0
        %3068 = vmatprep.subr.mxu0 0.0
        %3069 = vmatpush1.msra.mxu0 0.0
        %3070 = vmatprep.subr.mxu0 0.0
        %3071 = vmatpush1.msra.mxu0 0.0
        %3072 = vmatprep.subr.mxu0 0.0
        %3073 = vmatpush1.msra.mxu0 0.0
        %3074 = vmatprep.mubr.f32.mxu0 0.0
        %3075 = vmatmul.mubr.f32.gmra.mrb[0].mxu0 %v2962
        %v3076 = vpop.f32.mrb[0].mxu0
        %v3077 = vadd.f32 %v3003, %v3076
        %v3078 = vpop.f32.mrb[0].mxu0
        %v3079 = vadd.f32 %v3007, %v3078
        %3080 = vmatprep.mubr.f32.mxu0 0.0
        %3081 = vmatmul.mubr.f32.gmra.mrb[0].mxu0 %v2963
        %v3082 = vpop.f32.mrb[0].mxu0
        %v3083 = vadd.f32 %v3003, %v3082
        %v3084 = vpop.f32.mrb[0].mxu0
        %v3085 = vadd.f32 %v3007, %v3084
        %3086 = vmatprep.mubr.f32.mxu0 0.0
        %3087 = vmatmul.mubr.f32.gmra.mrb[0].mxu0 %v2964
        %v3088 = vpop.f32.mrb[0].mxu0
        %v3089 = vadd.f32 %v3003, %v3088
        %v3090 = vpop.f32.mrb[0].mxu0
        %v3091 = vadd.f32 %v3007, %v3090
        %3092 = vmatprep.mubr.f32.mxu0 0.0
        %3093 = vmatmul.mubr.f32.gmra.mrb[0].mxu0 %v2965
        %v3094 = vpop.f32.mrb[0].mxu0
        %v3095 = vadd.f32 %v3003, %v3094
        %v3096 = vpop.f32.mrb[0].mxu0
        %v3097 = vadd.f32 %v3007, %v3096
        %3098 = vdwg.mxu0
        %v3099 = vmax.f32 %v3077, 0.0
        %v3100 = vmax.f32 %v3079, 0.0
        %v3101 = vmax.f32 %v3083, 0.0
        %v3102 = vmax.f32 %v3085, 0.0
        %v3103 = vmax.f32 %v3089, 0.0
        %v3104 = vmax.f32 %v3091, 0.0
        %v3105 = vmax.f32 %v3095, 0.0
        %v3106 = vmax.f32 %v3097, 0.0
        %v3107 = vld [vmem:[#allocation15] sm:$0xff]
        %v3108 = vld [vmem:[#allocation15 + $0x8] sm:$0xff]
        %v3109 = vld [vmem:[#allocation15 + $0x10] sm:$0xff]
        %v3110 = vld [vmem:[#allocation15 + $0x18] sm:$0xff]
        %v3111 = vld [vmem:[#allocation15 + $0x20] sm:$0xff]
        %v3112 = vld [vmem:[#allocation15 + $0x28] sm:$0xff]
        %v3113 = vld [vmem:[#allocation15 + $0x30] sm:$0xff]
        %v3114 = vld [vmem:[#allocation15 + $0x38] sm:$0xff]
        %v3115 = vld [vmem:[#allocation15 + $0x40] sm:$0xff]
        %v3116 = vld [vmem:[#allocation15 + $0x48] sm:$0xff]
        %v3117 = vld [vmem:[#allocation15 + $0x50] sm:$0xff]
        %v3118 = vld [vmem:[#allocation15 + $0x58] sm:$0xff]
        %v3119 = vld [vmem:[#allocation15 + $0x60] sm:$0xff]
        %v3120 = vld [vmem:[#allocation15 + $0x68] sm:$0xff]
        %v3121 = vld [vmem:[#allocation15 + $0x70] sm:$0xff]
        %v3122 = vld [vmem:[#allocation15 + $0x78] sm:$0xff]
        %v3123 = vld [vmem:[#allocation15 + $0x80] sm:$0xff]
        %v3124 = vld [vmem:[#allocation15 + $0x88] sm:$0xff]
        %v3125 = vld [vmem:[#allocation15 + $0x90] sm:$0xff]
        %v3126 = vld [vmem:[#allocation15 + $0x98] sm:$0xff]
        %v3127 = vld [vmem:[#allocation15 + $0xa0] sm:$0xff]
        %v3128 = vld [vmem:[#allocation15 + $0xa8] sm:$0xff]
        %v3129 = vld [vmem:[#allocation15 + $0xb0] sm:$0xff]
        %v3130 = vld [vmem:[#allocation15 + $0xb8] sm:$0xff]
        %v3131 = vld [vmem:[#allocation15 + $0xc0] sm:$0xff]
        %v3132 = vld [vmem:[#allocation15 + $0xc8] sm:$0xff]
        %v3133 = vld [vmem:[#allocation15 + $0xd0] sm:$0xff]
        %v3134 = vld [vmem:[#allocation15 + $0xd8] sm:$0xff]
        %v3135 = vld [vmem:[#allocation15 + $0xe0] sm:$0xff]
        %v3136 = vld [vmem:[#allocation15 + $0xe8] sm:$0xff]
        %v3137 = vld [vmem:[#allocation15 + $0xf0] sm:$0xff]
        %v3138 = vld [vmem:[#allocation15 + $0xf8] sm:$0xff]
        %v3139 = vld [vmem:[%s15] sm:$0x1]
        %v3141 = vlaneseq
        %v3142 = vshrl.u32 %v3141, 7
        %v3143 = vsub.s32 0, %v3142
        %v3144 = vrot.slane %v3139, %v3143
        %3146 = vmatprep.subr.mxu0 0.0
        %3147 = vmatpush1.msra.mxu0 %v3107
        %3148 = vmatprep.subr.mxu0 0.0
        %3149 = vmatpush1.msra.mxu0 %v3108
        %3150 = vmatprep.subr.mxu0 0.0
        %3151 = vmatpush1.msra.mxu0 %v3109
        %3152 = vmatprep.subr.mxu0 0.0
        %3153 = vmatpush1.msra.mxu0 %v3110
        %3154 = vmatprep.subr.mxu0 0.0
        %3155 = vmatpush1.msra.mxu0 %v3111
        %3156 = vmatprep.subr.mxu0 0.0
        %3157 = vmatpush1.msra.mxu0 %v3112
        %3158 = vmatprep.subr.mxu0 0.0
        %3159 = vmatpush1.msra.mxu0 %v3113
        %3160 = vmatprep.subr.mxu0 0.0
        %3161 = vmatpush1.msra.mxu0 %v3114
        %3162 = vmatprep.subr.mxu0 0.0
        %3163 = vmatpush1.msra.mxu0 %v3115
        %3164 = vmatprep.subr.mxu0 0.0
        %3165 = vmatpush1.msra.mxu0 %v3116
        %3166 = vmatprep.subr.mxu0 0.0
        %3167 = vmatpush1.msra.mxu0 %v3117
        %3168 = vmatprep.subr.mxu0 0.0
        %3169 = vmatpush1.msra.mxu0 %v3118
        %3170 = vmatprep.subr.mxu0 0.0
        %3171 = vmatpush1.msra.mxu0 %v3119
        %3172 = vmatprep.subr.mxu0 0.0
        %3173 = vmatpush1.msra.mxu0 %v3120
        %3174 = vmatprep.subr.mxu0 0.0
        %3175 = vmatpush1.msra.mxu0 %v3121
        %3176 = vmatprep.subr.mxu0 0.0
        %3177 = vmatpush1.msra.mxu0 %v3122
        %3178 = vmatprep.subr.mxu0 0.0
        %3179 = vmatpush1.msra.mxu0 %v3123
        %3180 = vmatprep.subr.mxu0 0.0
        %3181 = vmatpush1.msra.mxu0 %v3124
        %3182 = vmatprep.subr.mxu0 0.0
        %3183 = vmatpush1.msra.mxu0 %v3125
        %3184 = vmatprep.subr.mxu0 0.0
        %3185 = vmatpush1.msra.mxu0 %v3126
        %3186 = vmatprep.subr.mxu0 0.0
        %3187 = vmatpush1.msra.mxu0 %v3127
        %3188 = vmatprep.subr.mxu0 0.0
        %3189 = vmatpush1.msra.mxu0 %v3128
        %3190 = vmatprep.subr.mxu0 0.0
        %3191 = vmatpush1.msra.mxu0 %v3129
        %3192 = vmatprep.subr.mxu0 0.0
        %3193 = vmatpush1.msra.mxu0 %v3130
        %3194 = vmatprep.subr.mxu0 0.0
        %3195 = vmatpush1.msra.mxu0 %v3131
        %3196 = vmatprep.subr.mxu0 0.0
        %3197 = vmatpush1.msra.mxu0 %v3132
        %3198 = vmatprep.subr.mxu0 0.0
        %3199 = vmatpush1.msra.mxu0 %v3133
        %3200 = vmatprep.subr.mxu0 0.0
        %3201 = vmatpush1.msra.mxu0 %v3134
        %3202 = vmatprep.subr.mxu0 0.0
        %3203 = vmatpush1.msra.mxu0 %v3135
        %3204 = vmatprep.subr.mxu0 0.0
        %3205 = vmatpush1.msra.mxu0 %v3136
        %3206 = vmatprep.subr.mxu0 0.0
        %3207 = vmatpush1.msra.mxu0 %v3137
        %3208 = vmatprep.subr.mxu0 0.0
        %3209 = vmatpush1.msra.mxu0 %v3138
        %3210 = vmatprep.mubr.f32.mxu0 %v3100
        %3211 = vmatmul.mubr.f32.gmra.mrb[0].mxu0 %v3099
        %v3212 = vpop.f32.mrb[0].mxu0
        %v3213 = vadd.f32 %v3144, %v3212
        %v3214 = vpop.f32.mrb[0].mxu0
        %3215 = vmatprep.mubr.f32.mxu0 %v3102
        %3216 = vmatmul.mubr.f32.gmra.mrb[0].mxu0 %v3101
        %v3217 = vpop.f32.mrb[0].mxu0
        %v3218 = vadd.f32 %v3144, %v3217
        %v3219 = vpop.f32.mrb[0].mxu0
        %3220 = vmatprep.mubr.f32.mxu0 %v3104
        %3221 = vmatmul.mubr.f32.gmra.mrb[0].mxu0 %v3103
        %v3222 = vpop.f32.mrb[0].mxu0
        %v3223 = vadd.f32 %v3144, %v3222
        %v3224 = vpop.f32.mrb[0].mxu0
        %3225 = vmatprep.mubr.f32.mxu0 %v3106
        %3226 = vmatmul.mubr.f32.gmra.mrb[0].mxu0 %v3105
        %v3227 = vpop.f32.mrb[0].mxu0
        %v3228 = vadd.f32 %v3144, %v3227
        %v3229 = vpop.f32.mrb[0].mxu0
        %3230 = vdwg.mxu0
        %v3231 = vadd.f32 %v2962, %v3213
        %v3232 = vadd.f32 %v2963, %v3218
        %v3233 = vadd.f32 %v2964, %v3223
        %v3234 = vadd.f32 %v2965, %v3228
        %3235 = vadd.xlane.f32.xlu0 %v3231
        %v3236 = vpop.xlane.xlu0 %3235
        %3237 = vadd.xlane.f32.xlu0 %v3232
        %v3238 = vpop.xlane.xlu0 %3237
        %3239 = vadd.xlane.f32.xlu0 %v3233
        %v3240 = vpop.xlane.xlu0 %3239
        %3241 = vadd.xlane.f32.xlu0 %v3234
        %v3242 = vpop.xlane.xlu0 %3241
        %v3243 = vmul.f32 %v3236, %v2895
        %v3244 = vmul.f32 %v3238, %v2895
        %v3245 = vmul.f32 %v3240, %v2895
        %v3246 = vmul.f32 %v3242, %v2895
        %v3247 = vmul.f32 %v3231, %v3231
        %v3248 = vmul.f32 %v3232, %v3232
        %v3249 = vmul.f32 %v3233, %v3233
        %v3250 = vmul.f32 %v3234, %v3234
        %3251 = vadd.xlane.f32.xlu0 %v3247
        %v3252 = vpop.xlane.xlu0 %3251
        %3253 = vadd.xlane.f32.xlu0 %v3248
        %v3254 = vpop.xlane.xlu0 %3253
        %3255 = vadd.xlane.f32.xlu0 %v3249
        %v3256 = vpop.xlane.xlu0 %3255
        %3257 = vadd.xlane.f32.xlu0 %v3250
        %v3258 = vpop.xlane.xlu0 %3257
        %v3259 = vmul.f32 %v3252, %v2895
        %v3260 = vmul.f32 %v3254, %v2895
        %v3261 = vmul.f32 %v3256, %v2895
        %v3262 = vmul.f32 %v3258, %v2895
        %v3263 = vmul.f32 %v3243, %v3243
        %v3264 = vmul.f32 %v3244, %v3244
        %v3265 = vmul.f32 %v3245, %v3245
        %v3266 = vmul.f32 %v3246, %v3246
        %v3267 = vsub.f32 %v3259, %v3263
        %v3268 = vsub.f32 %v3260, %v3264
        %v3269 = vsub.f32 %v3261, %v3265
        %v3270 = vsub.f32 %v3262, %v3266
        %v3271 = vmax.f32 %v3267, 0.0
        %v3272 = vmax.f32 %v3268, 0.0
        %v3273 = vmax.f32 %v3269, 0.0
        %v3274 = vmax.f32 %v3270, 0.0
        %v3275 = vsub.f32 %v3231, %v3243
        %v3276 = vsub.f32 %v3232, %v3244
        %v3277 = vsub.f32 %v3233, %v3245
        %v3278 = vsub.f32 %v3234, %v3246
        %v3279 = vadd.f32 %v3271, 1e-05
        %v3280 = vadd.f32 %v3272, 1e-05
        %v3281 = vadd.f32 %v3273, 1e-05
        %v3282 = vadd.f32 %v3274, 1e-05
        %v3283 = vrsqrt.pop %v3279
        %v3284 = vrsqrt.pop %v3280
        %v3285 = vrsqrt.pop %v3281
        %v3286 = vrsqrt.pop %v3282
        %v3287 = vmul.f32 %v3275, %v3283
        %v3288 = vmul.f32 %v3276, %v3284
        %v3289 = vmul.f32 %v3277, %v3285
        %v3290 = vmul.f32 %v3278, %v3286
        %v3291 = vld [vmem:[%s16] sm:$0x1]
        %v3293 = vlaneseq
        %v3294 = vshrl.u32 %v3293, 7
        %v3295 = vsub.s32 0, %v3294
        %v3296 = vrot.slane %v3291, %v3295
        %v3298 = vmul.f32 %v3287, %v3296
        %v3299 = vmul.f32 %v3288, %v3296
        %v3300 = vmul.f32 %v3289, %v3296
        %v3301 = vmul.f32 %v3290, %v3296
        %v3302 = vld [vmem:[%s17] sm:$0x1]
        %v3304 = vlaneseq
        %v3305 = vshrl.u32 %v3304, 7
        %v3306 = vsub.s32 0, %v3305
        %v3307 = vrot.slane %v3302, %v3306
        %v3309 = vadd.f32 %v3298, %v3307
        %v3310 = vadd.f32 %v3299, %v3307
        %v3311 = vadd.f32 %v3300, %v3307
        %v3312 = vadd.f32 %v3301, %v3307
        %3313 = vst [vmem:[%s721] sm:$0xff] %v3309
        %3314 = vst [vmem:[%s721 + $0x8] sm:$0xff] %v3310
        %3315 = vst [vmem:[%s721 + $0x10] sm:$0xff] %v3311
        %3316 = vst [vmem:[%s721 + $0x18] sm:$0xff] %v3312
        %s3317 = sand.u32 %s437, 1
        %s3318 = scalar_lea.sflag [#allocation5], %s3317
        %s3319 = sand.u32 %s437, 1
        %s3320 = smul.addr %s3319, 32
        %s3321 = scalar_lea.vmem [#allocation17], %s3320
        // Predicated region
        $region125: #{tpu_custom_call.1} parent=91 // pred_check
          %p3322 = pneg %p447
        $region126: #{tpu_custom_call.1} parent=91 // pred_check_branch
          %3324 = sbr.rel (%p3322) target = $region128
        $region127: #{tpu_custom_call.1} parent=91 // pred_region
          %s3325 = smul.u32 2, %s41
          %s3327 = ssub.s32 512, 512
          %3328 = vsyncadd %s3318, %s3327
          %s3329 = smul.addr %s3325, 2
          %s3330 = smul.addr %s3329, 128
          %s3331 = scalar_lea.hbm %s18, %s3330
          %s3332 = sshll.u32 %s3321, 4
          %s3333 = int_to_ptr.vmem [resolvable:$true] %s3332
          %3338 = dma.vmem_to_hbm [thread:$0]  %s3333, 512, %s3331, %s3318, 128, 128, 8
        $region128: #{tpu_custom_call.1} parent=91 // pred_fallthru
          _
      $region92: #{tpu_custom_call.1} parent=5 // pred_fallthru
        _
      %p3339 = scmp.le.s32.totalorder 2, %s36
      // Predicated region
      $region129: #{tpu_custom_call.1} parent=5 // pred_check
        %p3340 = pneg %p3339
      $region130: #{tpu_custom_call.1} parent=5 // pred_check_branch
        %3342 = sbr.rel (%p3340) target = $region132
      $region131: #{tpu_custom_call.1} parent=5 // pred_region
        %s3343 = ssub.s32 %s36, 2
        // Predicated region
        $region133: #{tpu_custom_call.1} parent=131 // pred_check
          %p3344 = pneg %p453
        $region134: #{tpu_custom_call.1} parent=131 // pred_check_branch
          %3346 = sbr.rel (%p3344) target = $region136
        $region135: #{tpu_custom_call.1} parent=131 // pred_region
          %s3347 = sand.u32 %s438, 1
          %s3348 = scalar_lea.sflag [#allocation5], %s3347
          %s3349 = sand.u32 %s438, 1
          %s3350 = smul.addr %s3349, 32
          %s3351 = scalar_lea.vmem [#allocation17], %s3350
          %3352 = dma.done %s3348, 512
        $region136: #{tpu_custom_call.1} parent=131 // pred_fallthru
          _
      $region132: #{tpu_custom_call.1} parent=5 // pred_fallthru
        _
    $region6: #{tpu_custom_call.1} parent=1 // loop_footer
      %s40 = sadd.s32 1, %s36
    $region7: #{tpu_custom_call.1} parent=1 // loop_footer_branch
      %35 = sbr.rel target = $region3
    $region8: #{tpu_custom_call.1} parent=1 // loop_exit
      _
    %3353 = vsyncpa [#allocation4], 1
    %s3354 = scalar_lea.sflag [#allocation4], 1
    %3355 = vsyncpa %s3354, 1
    %3356 = vsyncpa [#allocation7], 1
    %s3357 = scalar_lea.sflag [#allocation7], 1
    %3358 = vsyncpa %s3357, 1
    %3359 = vsyncpa [#allocation10], 1
    %3360 = vsyncpa [#allocation13], 1
    %3361 = vsyncpa [#allocation16], 1
    %3362 = vsyncpa [#allocation5], 1
    %s3363 = scalar_lea.sflag [#allocation5], 1
    %3364 = vsyncpa %s3363, 1

</llo_original>
